<compile_context>
chip_gen: v6e
topology: v6e:2x2x1
jax: 0.10.0
libtpu: 0.0.40
codegen_flags: <defaults>
</compile_context>

<pallas_src>
import functools

import jax
import jax.numpy as jnp
from jax.experimental import pallas as pl
from jax.experimental.pallas import tpu as pltpu


# ----------------------------------------------------------------------------
# small helpers
# ----------------------------------------------------------------------------
ROW_TILE = 512          # rows per grid step for the point/edge kernels
SLOPE = 0.2             # LeakyReLU negative slope


def _row_tile(m):
    # min(512, m): either divisible by 8 (512) or equal to the full dim.
    return min(ROW_TILE, m)


def _knn_query_tile(n):
    # keep the (TQ, N) f32 distance block around ~4 MB so double-buffering
    # fits comfortably inside v7x's smaller VMEM.
    budget_rows = max(8, (4 * 1024 * 1024) // (4 * max(n, 1)))
    tq = min(ROW_TILE, n, budget_rows)
    if tq < n:
        tq = max(8, (tq // 8) * 8)
    return tq


def _leaky(h, slope):
    return jnp.where(h >= 0.0, h, slope * h)


# ----------------------------------------------------------------------------
# Pallas kernels
# ----------------------------------------------------------------------------
def _edge_conv_max_kernel(*refs, num_k, slope, two_convs):
    """Fused edge-conv block on one row tile.

    refs (two_convs=True):
      nb_ref (k, TM, C) bf16, c_ref (TM, C) bf16,
      wn (C, 64), wc (C, 64), s1 (1, 64), b1 (1, 64),
      w2 (64, 64), s2 (1, 64), b2 (1, 64),  o_ref (TM, 64) f32
    Computes max_j LeakyReLU(BN2(W2 @ LeakyReLU(BN1(W1 @ [nb_j - c, c])))).
    """
    if two_convs:
        (nb_ref, c_ref, wn_ref, wc_ref, s1_ref, b1_ref,
         w2_ref, s2_ref, b2_ref, o_ref) = refs
    else:
        nb_ref, c_ref, wn_ref, wc_ref, s1_ref, b1_ref, o_ref = refs
        w2_ref = s2_ref = b2_ref = None

    wn = wn_ref[...]
    s1 = s1_ref[...]
    b1 = b1_ref[...]
    # center term of conv1: computed once per point (not once per edge).
    hc = jnp.dot(c_ref[...], wc_ref[...], preferred_element_type=jnp.float32)

    if two_convs:
        w2 = w2_ref[...]
        s2 = s2_ref[...]
        b2 = b2_ref[...]

    acc = None
    for j in range(num_k):                      # static unroll over neighbors
        h = jnp.dot(nb_ref[j], wn, preferred_element_type=jnp.float32) + hc
        h = _leaky(h * s1 + b1, slope)
        if two_convs:
            h = jnp.dot(h.astype(jnp.bfloat16), w2,
                        preferred_element_type=jnp.float32)
            h = _leaky(h * s2 + b2, slope)
        acc = h if acc is None else jnp.maximum(acc, h)
    o_ref[...] = acc


def _conv_global_max_kernel(x_ref, w_ref, s_ref, b_ref, o_ref, *,
                            slope, n_total, tile_n):
    """conv6 (+BN+LeakyReLU) fused with a running max over the N axis.

    x_ref (1, TN, 192) bf16, w (192, emb), s/b (1, emb), o_ref (1, 1, emb) f32.
    Output block is revisited across the 'arbitrary' N axis (accumulator).
    """
    n = pl.program_id(1)

    @pl.when(n == 0)
    def _():
        o_ref[...] = jnp.full(o_ref.shape, -jnp.inf, o_ref.dtype)

    h = jnp.dot(x_ref[0], w_ref[...], preferred_element_type=jnp.float32)
    h = _leaky(h * s_ref[...] + b_ref[...], slope)

    if n_total % tile_n != 0:                    # mask ragged last tile
        row = n * tile_n + jax.lax.broadcasted_iota(jnp.int32, h.shape, 0)
        h = jnp.where(row < n_total, h, -jnp.inf)

    o_ref[0] = jnp.maximum(o_ref[0], jnp.max(h, axis=0, keepdims=True))


def _head_kernel(x_ref, g_ref, w7_ref, s7_ref, b7_ref,
                 w8_ref, s8_ref, b8_ref, w9_ref, o_ref, *, slope):
    """Fused conv7 -> conv8 -> (dropout=id) -> conv9 on one (TN, 192) tile.

    The global-feature part of conv7 enters as the per-batch bias g_ref.
    """
    h = jnp.dot(x_ref[0], w7_ref[...], preferred_element_type=jnp.float32)
    h = h + g_ref[0]                              # gmax @ W7[:emb]  (pre-BN)
    h = _leaky(h * s7_ref[...] + b7_ref[...], slope)

    h = jnp.dot(h.astype(jnp.bfloat16), w8_ref[...],
                preferred_element_type=jnp.float32)
    h = _leaky(h * s8_ref[...] + b8_ref[...], slope)

    # TODO(synk): nn.Dropout is identity at inference; no RNG applied here.
    o_ref[0] = jnp.dot(h.astype(jnp.bfloat16), w9_ref[...],
                       preferred_element_type=jnp.float32)


def _pairwise_dist_kernel(q_ref, k_ref, xx_ref, d_ref):
    """Negative squared pairwise distances for one (TQ, N) query tile.

    d[i, j] = 2 q_i.k_j - |q_i|^2 - |k_j|^2  (= -||q_i - k_j||^2)
    """
    q = q_ref[0]                                  # (TQ, C) f32
    kx = k_ref[0]                                 # (N,  C) f32
    g = jax.lax.dot_general(q, kx, (((1,), (1,)), ((), ())),
                            preferred_element_type=jnp.float32)   # (TQ, N)
    sq_q = jnp.sum(q * q, axis=-1, keepdims=True)                 # (TQ, 1)
    d_ref[0] = 2.0 * g - sq_q - xx_ref[0]                         # (TQ, N)


# ----------------------------------------------------------------------------
# Pallas wrappers
# ----------------------------------------------------------------------------
def pallas_edge_conv_max(nbT, center, first, second=None, *, slope=SLOPE):
    """nbT: (k, M, C) bf16 neighbors, center: (M, C) bf16 -> (M, 64) f32."""
    num_k, M, C = nbT.shape
    F1 = first["wn"].shape[1]
    TM = _row_tile(M)
    grid = (pl.cdiv(M, TM),)

    in_specs = [
        pl.BlockSpec((num_k, TM, C), lambda i: (0, i, 0)),
        pl.BlockSpec((TM, C), lambda i: (i, 0)),
        pl.BlockSpec(first["wn"].shape, lambda i: (0, 0)),
        pl.BlockSpec(first["wc"].shape, lambda i: (0, 0)),
        pl.BlockSpec((1, F1), lambda i: (0, 0)),
        pl.BlockSpec((1, F1), lambda i: (0, 0)),
    ]
    args = [nbT, center, first["wn"], first["wc"],
            first["scale"], first["shift"]]

    f_out = F1
    if second is not None:
        f_out = second["w"].shape[1]
        in_specs += [
            pl.BlockSpec(second["w"].shape, lambda i: (0, 0)),
            pl.BlockSpec((1, f_out), lambda i: (0, 0)),
            pl.BlockSpec((1, f_out), lambda i: (0, 0)),
        ]
        args += [second["w"], second["scale"], second["shift"]]

    kernel = functools.partial(_edge_conv_max_kernel, num_k=num_k,
                               slope=slope, two_convs=second is not None)
    return pl.pallas_call(
        kernel,
        out_shape=jax.ShapeDtypeStruct((M, f_out), jnp.float32),
        grid=grid,
        in_specs=in_specs,
        out_specs=pl.BlockSpec((TM, f_out), lambda i: (i, 0)),
        compiler_params=pltpu.CompilerParams(dimension_semantics=("parallel",)),
    )(*args)


def edge_block(x_bnc, idx, first, second=None, *, slope=SLOPE):
    """x_bnc: (B, N, C) f32 features, idx: (B, N, k) -> (B, N, 64) f32."""
    B, N, C = x_bnc.shape
    k = idx.shape[-1]
    xb = x_bnc.astype(jnp.bfloat16)
    flat = xb.reshape(B * N, C)
    offs = (jnp.arange(B, dtype=idx.dtype) * N)[:, None, None]
    # neighbor-major layout so the kernel indexes neighbors on the lead axis
    gidx = jnp.transpose(idx + offs, (2, 0, 1)).reshape(k, B * N)
    nbT = flat[gidx]                                         # (k, B*N, C) bf16
    out = pallas_edge_conv_max(nbT, flat, first, second, slope=slope)
    return out.reshape(B, N, -1)


def pallas_conv6_global_max(x_cat_bf, block, *, slope=SLOPE):
    """x_cat_bf: (B, N, 192) bf16 -> per-batch global max feature (B, emb) f32."""
    B, N, C = x_cat_bf.shape
    emb = block["w"].shape[1]
    TN = _row_tile(N)
    grid = (B, pl.cdiv(N, TN))
    kernel = functools.partial(_conv_global_max_kernel, slope=slope,
                               n_total=N, tile_n=TN)
    out = pl.pallas_call(
        kernel,
        out_shape=jax.ShapeDtypeStruct((B, 1, emb), jnp.float32),
        grid=grid,
        in_specs=[
            pl.BlockSpec((1, TN, C), lambda b, n: (b, n, 0)),
            pl.BlockSpec(block["w"].shape, lambda b, n: (0, 0)),
            pl.BlockSpec((1, emb), lambda b, n: (0, 0)),
            pl.BlockSpec((1, emb), lambda b, n: (0, 0)),
        ],
        out_specs=pl.BlockSpec((1, 1, emb), lambda b, n: (b, 0, 0)),
        compiler_params=pltpu.CompilerParams(
            dimension_semantics=("parallel", "arbitrary")),
    )(x_cat_bf, block["w"], block["scale"], block["shift"])
    return out[:, 0, :]                                       # (B, emb)


def pallas_head(x_cat_bf, gbias, p7, p8, p9, *, slope=SLOPE):
    """Fused conv7/conv8/conv9: (B, N, 192) + per-batch bias -> (B, N, nf)."""
    B, N, C = x_cat_bf.shape
    nf = p9["w"].shape[1]
    TN = _row_tile(N)
    grid = (B, pl.cdiv(N, TN))
    kernel = functools.partial(_head_kernel, slope=slope)
    return pl.pallas_call(
        kernel,
        out_shape=jax.ShapeDtypeStruct((B, N, nf), jnp.float32),
        grid=grid,
        in_specs=[
            pl.BlockSpec((1, TN, C), lambda b, n: (b, n, 0)),
            pl.BlockSpec((1, 1, gbias.shape[-1]), lambda b, n: (b, 0, 0)),
            pl.BlockSpec(p7["w_x"].shape, lambda b, n: (0, 0)),
            pl.BlockSpec(p7["scale"].shape, lambda b, n: (0, 0)),
            pl.BlockSpec(p7["shift"].shape, lambda b, n: (0, 0)),
            pl.BlockSpec(p8["w"].shape, lambda b, n: (0, 0)),
            pl.BlockSpec(p8["scale"].shape, lambda b, n: (0, 0)),
            pl.BlockSpec(p8["shift"].shape, lambda b, n: (0, 0)),
            pl.BlockSpec(p9["w"].shape, lambda b, n: (0, 0)),
        ],
        out_specs=pl.BlockSpec((1, TN, nf), lambda b, n: (b, n, 0)),
        compiler_params=pltpu.CompilerParams(
            dimension_semantics=("parallel", "parallel")),
    )(x_cat_bf, gbias, p7["w_x"], p7["scale"], p7["shift"],
      p8["w"], p8["scale"], p8["shift"], p9["w"])


def pallas_knn(x_bnc, k):
    """KNN indices (largest of -||xi-xj||^2). x_bnc: (B, N, C) -> (B, N, k)."""
    B, N, C = x_bnc.shape
    x32 = x_bnc.astype(jnp.float32)
    xx = jnp.sum(x32 * x32, axis=-1)[:, None, :]              # (B, 1, N)
    TQ = _knn_query_tile(N)
    grid = (B, pl.cdiv(N, TQ))
    dist = pl.pallas_call(
        _pairwise_dist_kernel,
        out_shape=jax.ShapeDtypeStruct((B, N, N), jnp.float32),
        grid=grid,
        in_specs=[
            pl.BlockSpec((1, TQ, C), lambda b, q: (b, q, 0)),   # query tile
            pl.BlockSpec((1, N, C), lambda b, q: (b, 0, 0)),    # all keys
            pl.BlockSpec((1, 1, N), lambda b, q: (b, 0, 0)),    # key sq-norms
        ],
        out_specs=pl.BlockSpec((1, TQ, N), lambda b, q: (b, q, 0)),
        compiler_params=pltpu.CompilerParams(
            dimension_semantics=("parallel", "parallel")),
    )(x32, x32, xx)
    # TODO(synk): top-k selection stays in XLA; fusing a running top-k into the
    # pairwise kernel would remove one O(N^2) HBM round trip at large N.
    _, idx = jax.lax.top_k(dist, k)                            # (B, N, k)
    return idx


# ----------------------------------------------------------------------------
# parameters (deterministic synthetic init; BN folded into scale/shift;
# edge-conv weights pre-split into neighbor/center parts; conv7 split into
# global / point parts; matmul weights stored in bf16)
# ----------------------------------------------------------------------------
def _weight(key, cin, cout):
    return jax.random.normal(key, (cin, cout), jnp.float32) / jnp.sqrt(float(cin))


def _bn_affine(key, cout):
    kg, kb, km, kv = jax.random.split(key, 4)
    gamma = 1.0 + 0.1 * jax.random.normal(kg, (cout,), jnp.float32)
    beta = 0.1 * jax.random.normal(kb, (cout,), jnp.float32)
    mean = 0.1 * jax.random.normal(km, (cout,), jnp.float32)
    var = 1.0 + 0.1 * jax.random.uniform(kv, (cout,), jnp.float32)
    scale = gamma / jnp.sqrt(var + 1e-5)
    shift = beta - mean * scale
    return scale.reshape(1, cout), shift.reshape(1, cout)


def _edge_first_block(kw, kbn, c_point, cout):
    w = _weight(kw, 2 * c_point, cout)
    s, b = _bn_affine(kbn, cout)
    return {"wn": w[:c_point].astype(jnp.bfloat16),
            "wc": (w[c_point:] - w[:c_point]).astype(jnp.bfloat16),
            "scale": s, "shift": b}


def _plain_block(kw, kbn, cin, cout, with_bn=True):
    w = _weight(kw, cin, cout)
    if with_bn:
        s, b = _bn_affine(kbn, cout)
    else:
        s = jnp.ones((1, cout), jnp.float32)
        b = jnp.zeros((1, cout), jnp.float32)
    return {"w": w.astype(jnp.bfloat16), "scale": s, "shift": b}


def init_params(key, emb_dims, num_features):
    ks = jax.random.split(key, 18)
    p = {}
    p["conv1"] = _edge_first_block(ks[0], ks[1], 6, 64)        # Conv2d(12, 64)
    p["conv2"] = _plain_block(ks[2], ks[3], 64, 64)
    p["conv3"] = _edge_first_block(ks[4], ks[5], 64, 64)       # Conv2d(128, 64)
    p["conv4"] = _plain_block(ks[6], ks[7], 64, 64)
    p["conv5"] = _edge_first_block(ks[8], ks[9], 64, 64)       # Conv2d(128, 64)
    p["conv6"] = _plain_block(ks[10], ks[11], 192, emb_dims)
    # conv7: Conv1d(emb+192, 512) split into global (emb) and point (192) parts
    w7 = _weight(ks[12], emb_dims + 192, 512)
    s7, b7 = _bn_affine(ks[13], 512)
    p["conv7"] = {"w_g": w7[:emb_dims].astype(jnp.bfloat16),
                  "w_x": w7[emb_dims:].astype(jnp.bfloat16),
                  "scale": s7, "shift": b7}
    p["conv8"] = _plain_block(ks[14], ks[15], 512, 256)
    p["conv9"] = _plain_block(ks[16], ks[17], 256, num_features, with_bn=False)
    return p


# ----------------------------------------------------------------------------
# full forward pass
# ----------------------------------------------------------------------------
def dgcnn_semseg_forward(x, params, *, k, emb_dims):
    """x: (B, 6, N) float32 (PyTorch NCW).  Returns (x_out, logits,
    activations, xyzn) mirroring the torch module's forward."""
    del emb_dims  # shapes come from the params
    xyzn = x
    B, C, N = x.shape
    x_bnc = jnp.transpose(x, (0, 2, 1))                         # (B, N, 6)

    # --- edge conv block 1 --------------------------------------------------
    # TODO(synk): the original calls knn(x[:, 6:]) (dim9=True), an empty slice
    # for this 6-channel input; we compute KNN on all 6 channels instead of
    # reproducing that bug.
    idx = pallas_knn(x_bnc, k)
    x1 = edge_block(x_bnc, idx, params["conv1"], params["conv2"])   # (B, N, 64)

    # --- edge conv block 2 --------------------------------------------------
    idx = pallas_knn(x1, k)
    x2 = edge_block(x1, idx, params["conv3"], params["conv4"])

    # --- edge conv block 3 --------------------------------------------------
    idx = pallas_knn(x2, k)
    x3 = edge_block(x2, idx, params["conv5"], None)

    # --- global feature -----------------------------------------------------
    x_cat = jnp.concatenate([x1, x2, x3], axis=-1)              # (B, N, 192) f32
    x_cat_bf = x_cat.astype(jnp.bfloat16)
    gmax = pallas_conv6_global_max(x_cat_bf, params["conv6"])   # (B, emb)

    # conv7's global-feature term as a per-batch bias (tiny matmul, done once
    # per batch instead of once per point).
    graw = jnp.dot(gmax.astype(jnp.bfloat16), params["conv7"]["w_g"],
                   preferred_element_type=jnp.float32)          # (B, 512)
    gbias = graw[:, None, :]                                    # (B, 1, 512)

    # --- head (conv7 -> conv8 -> dropout(id) -> conv9) ----------------------
    f = pallas_head(x_cat_bf, gbias, params["conv7"], params["conv8"],
                    params["conv9"])                            # (B, N, nf)

    f_bcn = jnp.transpose(f, (0, 2, 1))                         # (B, nf, N)
    x1_bcn = jnp.transpose(x1, (0, 2, 1))
    x2_bcn = jnp.transpose(x2, (0, 2, 1))
    x3_bcn = jnp.transpose(x3, (0, 2, 1))

    x_out = f_bcn                                  # torch.clone(f_out)
    logits = f_bcn                                 # torch.cat([f_out], dim=0)
    # TODO(synk): register_hook / retain_grad are autograd-only; forward output.
    activations = (x1_bcn, x2_bcn, x3_bcn, f_bcn)
    return x_out, logits, activations, xyzn


# ----------------------------------------------------------------------------
# main
# ----------------------------------------------------------------------------
if __name__ == "__main__":
    B, C, N = 2, 6, 32          # xyz + normals ("xyzn"), 32 points
    K_NN = 8                    # args.k
    EMB_DIMS = 64               # args.emb_dims (small for the test)
    NUM_FEATURES = 5            # args.num_features

    key = jax.random.PRNGKey(0)
    kx, kp = jax.random.split(key)
    x = jax.random.normal(kx, (B, C, N), dtype=jnp.float32)
    params = init_params(kp, emb_dims=EMB_DIMS, num_features=NUM_FEATURES)

    fwd = jax.jit(functools.partial(dgcnn_semseg_forward, k=K_NN,
                                    emb_dims=EMB_DIMS))
    x_out, logits, activations, xyzn = fwd(x, params)
    jax.block_until_ready((x_out, logits, activations, xyzn))

    assert x_out.shape == (B, NUM_FEATURES, N)
    assert logits.shape == (B, NUM_FEATURES, N)
    assert activations[0].shape == (B, 64, N)
    assert xyzn.shape == (B, C, N)
    print("KERNEL_OK")
</pallas_src>

<mosaic_0001>
module attributes {stable_mosaic.version = 11 : i64} {
  func.func @_pairwise_dist_kernel(%arg0: i32, %arg1: i32, %arg2: memref<1x32x6xf32, #tpu.memory_space<vmem>>, %arg3: memref<1x32x6xf32, #tpu.memory_space<vmem>>, %arg4: memref<1x1x32xf32, #tpu.memory_space<vmem>>, %arg5: memref<1x32x32xf32, #tpu.memory_space<vmem>>) attributes {dimension_semantics = [#tpu.dimension_semantics<parallel>, #tpu.dimension_semantics<parallel>], iteration_bounds = array<i64: 2, 1>, scalar_prefetch = 0 : i64, scratch_operands = 0 : i64, tpu.core_type = #tpu.core_type<tc>, window_params = [{transform_indices = @transform_0, window_bounds = array<i64: 1, 32, 6>}, {transform_indices = @transform_1, window_bounds = array<i64: 1, 32, 6>}, {transform_indices = @transform_2, window_bounds = array<i64: 1, 1, 32>}, {transform_indices = @transform_3, window_bounds = array<i64: 1, 32, 32>}]} {
    %c0 = arith.constant 0 : index
    %c0_0 = arith.constant 0 : index
    %c0_1 = arith.constant 0 : index
    %0 = vector.load %arg2[%c0, %c0_0, %c0_1] : memref<1x32x6xf32, #tpu.memory_space<vmem>>, vector<1x32x6xf32>
    %1 = vector.shape_cast %0 : vector<1x32x6xf32> to vector<32x6xf32>
    %c0_2 = arith.constant 0 : index
    %c0_3 = arith.constant 0 : index
    %c0_4 = arith.constant 0 : index
    %2 = vector.load %arg3[%c0_2, %c0_3, %c0_4] : memref<1x32x6xf32, #tpu.memory_space<vmem>>, vector<1x32x6xf32>
    %3 = vector.shape_cast %2 : vector<1x32x6xf32> to vector<32x6xf32>
    %cst = arith.constant dense<0.000000e+00> : vector<32x32xf32>
    %4 = tpu.matmul %1, %3, %cst {dimension_numbers = #tpu.dot_dimension_numbers<[1], [1], [0], [0], [0, 0, 1, 0], [], []>} : vector<32x6xf32>, vector<32x6xf32>, vector<32x32xf32> -> vector<32x32xf32>
    %5 = arith.mulf %1, %1 : vector<32x6xf32>
    %cst_5 = arith.constant dense<0.000000e+00> : vector<32xf32>
    %6 = vector.multi_reduction <add>, %5, %cst_5 [1] : vector<32x6xf32> to vector<32xf32>
    %7 = vector.shape_cast %6 : vector<32xf32> to vector<32x1xf32>
    %cst_6 = arith.constant 2.000000e+00 : f32
    %8 = vector.broadcast %cst_6 : f32 to vector<32x32xf32>
    %9 = arith.mulf %8, %4 : vector<32x32xf32>
    %10 = vector.broadcast %7 : vector<32x1xf32> to vector<32x32xf32>
    %11 = arith.subf %9, %10 : vector<32x32xf32>
    %c0_7 = arith.constant 0 : index
    %c0_8 = arith.constant 0 : index
    %c0_9 = arith.constant 0 : index
    %12 = vector.load %arg4[%c0_7, %c0_8, %c0_9] : memref<1x1x32xf32, #tpu.memory_space<vmem>>, vector<1x1x32xf32>
    %13 = vector.shape_cast %12 : vector<1x1x32xf32> to vector<1x32xf32>
    %14 = vector.broadcast %13 : vector<1x32xf32> to vector<32x32xf32>
    %15 = arith.subf %11, %14 : vector<32x32xf32>
    %c0_10 = arith.constant 0 : index
    %c0_11 = arith.constant 0 : index
    %c0_12 = arith.constant 0 : index
    %16 = vector.load %arg5[%c0_10, %c0_11, %c0_12] : memref<1x32x32xf32, #tpu.memory_space<vmem>>, vector<1x32x32xf32>
    %17 = vector.shape_cast %16 : vector<1x32x32xf32> to vector<32x32xf32>
    %18 = vector.shape_cast %15 : vector<32x32xf32> to vector<1x32x32xf32>
    tpu.vector_store %arg5[%c0_10, %c0_11, %c0_12], %18 {strides = array<i32>} : memref<1x32x32xf32, #tpu.memory_space<vmem>>, vector<1x32x32xf32>,
    return
  }
  func.func @transform_0(%arg0: i32, %arg1: i32) -> (i32, i32, i32) {
    %c0_i32 = arith.constant 0 : i32
    %c0_i32_0 = arith.constant 0 : i32
    return %arg0, %arg1, %c0_i32 : i32, i32, i32
  }
  func.func @transform_1(%arg0: i32, %arg1: i32) -> (i32, i32, i32) {
    %c0_i32 = arith.constant 0 : i32
    %c0_i32_0 = arith.constant 0 : i32
    %c0_i32_1 = arith.constant 0 : i32
    return %arg0, %c0_i32, %c0_i32_0 : i32, i32, i32
  }
  func.func @transform_2(%arg0: i32, %arg1: i32) -> (i32, i32, i32) {
    %c0_i32 = arith.constant 0 : i32
    %c0_i32_0 = arith.constant 0 : i32
    %c0_i32_1 = arith.constant 0 : i32
    return %arg0, %c0_i32, %c0_i32_0 : i32, i32, i32
  }
  func.func @transform_3(%arg0: i32, %arg1: i32) -> (i32, i32, i32) {
    %c0_i32 = arith.constant 0 : i32
    %c0_i32_0 = arith.constant 0 : i32
    return %arg0, %arg1, %c0_i32 : i32, i32, i32
  }
}

module attributes {stable_mosaic.version = 11 : i64} {
  func.func @_edge_conv_max_kernel(%arg0: i32, %arg1: memref<8x64x6xbf16, #tpu.memory_space<vmem>>, %arg2: memref<64x6xbf16, #tpu.memory_space<vmem>>, %arg3: memref<6x64xbf16, #tpu.memory_space<vmem>>, %arg4: memref<6x64xbf16, #tpu.memory_space<vmem>>, %arg5: memref<1x64xf32, #tpu.memory_space<vmem>>, %arg6: memref<1x64xf32, #tpu.memory_space<vmem>>, %arg7: memref<64x64xbf16, #tpu.memory_space<vmem>>, %arg8: memref<1x64xf32, #tpu.memory_space<vmem>>, %arg9: memref<1x64xf32, #tpu.memory_space<vmem>>, %arg10: memref<64x64xf32, #tpu.memory_space<vmem>>) attributes {dimension_semantics = [#tpu.dimension_semantics<parallel>], iteration_bounds = array<i64: 1>, scalar_prefetch = 0 : i64, scratch_operands = 0 : i64, tpu.core_type = #tpu.core_type<tc>, window_params = [{transform_indices = @transform_0, window_bounds = array<i64: 8, 64, 6>}, {transform_indices = @transform_1, window_bounds = array<i64: 64, 6>}, {pipeline_mode = #tpu.pipeline_mode<synchronous>, transform_indices = @transform_2, window_bounds = array<i64: 6, 64>}, {pipeline_mode = #tpu.pipeline_mode<synchronous>, transform_indices = @transform_3, window_bounds = array<i64: 6, 64>}, {pipeline_mode = #tpu.pipeline_mode<synchronous>, transform_indices = @transform_4, window_bounds = array<i64: 1, 64>}, {pipeline_mode = #tpu.pipeline_mode<synchronous>, transform_indices = @transform_5, window_bounds = array<i64: 1, 64>}, {pipeline_mode = #tpu.pipeline_mode<synchronous>, transform_indices = @transform_6, window_bounds = array<i64: 64, 64>}, {pipeline_mode = #tpu.pipeline_mode<synchronous>, transform_indices = @transform_7, window_bounds = array<i64: 1, 64>}, {pipeline_mode = #tpu.pipeline_mode<synchronous>, transform_indices = @transform_8, window_bounds = array<i64: 1, 64>}, {transform_indices = @transform_9, window_bounds = array<i64: 64, 64>}]} {
    %c0 = arith.constant 0 : index
    %c0_0 = arith.constant 0 : index
    %0 = vector.load %arg3[%c0, %c0_0] : memref<6x64xbf16, #tpu.memory_space<vmem>>, vector<6x64xbf16>
    %c0_1 = arith.constant 0 : index
    %c0_2 = arith.constant 0 : index
    %1 = vector.load %arg5[%c0_1, %c0_2] : memref<1x64xf32, #tpu.memory_space<vmem>>, vector<1x64xf32>
    %c0_3 = arith.constant 0 : index
    %c0_4 = arith.constant 0 : index
    %2 = vector.load %arg6[%c0_3, %c0_4] : memref<1x64xf32, #tpu.memory_space<vmem>>, vector<1x64xf32>
    %c0_5 = arith.constant 0 : index
    %c0_6 = arith.constant 0 : index
    %3 = vector.load %arg2[%c0_5, %c0_6] : memref<64x6xbf16, #tpu.memory_space<vmem>>, vector<64x6xbf16>
    %c0_7 = arith.constant 0 : index
    %c0_8 = arith.constant 0 : index
    %4 = vector.load %arg4[%c0_7, %c0_8] : memref<6x64xbf16, #tpu.memory_space<vmem>>, vector<6x64xbf16>
    %cst = arith.constant dense<0.000000e+00> : vector<64x64xf32>
    %5 = tpu.matmul %3, %4, %cst {dimension_numbers = #tpu.dot_dimension_numbers<[1], [0], [0], [1], [0, 0, 1, 1], [], []>} : vector<64x6xbf16>, vector<6x64xbf16>, vector<64x64xf32> -> vector<64x64xf32>
    %c0_9 = arith.constant 0 : index
    %c0_10 = arith.constant 0 : index
    %6 = vector.load %arg7[%c0_9, %c0_10] : memref<64x64xbf16, #tpu.memory_space<vmem>>, vector<64x64xbf16>
    %c0_11 = arith.constant 0 : index
    %c0_12 = arith.constant 0 : index
    %7 = vector.load %arg8[%c0_11, %c0_12] : memref<1x64xf32, #tpu.memory_space<vmem>>, vector<1x64xf32>
    %c0_13 = arith.constant 0 : index
    %c0_14 = arith.constant 0 : index
    %8 = vector.load %arg9[%c0_13, %c0_14] : memref<1x64xf32, #tpu.memory_space<vmem>>, vector<1x64xf32>
    %c0_15 = arith.constant 0 : index
    %c0_16 = arith.constant 0 : index
    %c0_17 = arith.constant 0 : index
    %9 = vector.load %arg1[%c0_15, %c0_16, %c0_17] : memref<8x64x6xbf16, #tpu.memory_space<vmem>>, vector<1x64x6xbf16>
    %10 = vector.shape_cast %9 : vector<1x64x6xbf16> to vector<64x6xbf16>
    %cst_18 = arith.constant dense<0.000000e+00> : vector<64x64xf32>
    %11 = tpu.matmul %10, %0, %cst_18 {dimension_numbers = #tpu.dot_dimension_numbers<[1], [0], [0], [1], [0, 0, 1, 1], [], []>} : vector<64x6xbf16>, vector<6x64xbf16>, vector<64x64xf32> -> vector<64x64xf32>
    %12 = arith.addf %11, %5 : vector<64x64xf32>
    %13 = vector.broadcast %1 : vector<1x64xf32> to vector<64x64xf32>
    %14 = arith.mulf %12, %13 : vector<64x64xf32>
    %15 = vector.broadcast %2 : vector<1x64xf32> to vector<64x64xf32>
    %16 = arith.addf %14, %15 : vector<64x64xf32>
    %cst_19 = arith.constant 0.000000e+00 : f32
    %17 = vector.broadcast %cst_19 : f32 to vector<64x64xf32>
    %18 = arith.cmpf oge, %16, %17 : vector<64x64xf32>
    %cst_20 = arith.constant 2.000000e-01 : f32
    %19 = vector.broadcast %cst_20 : f32 to vector<64x64xf32>
    %20 = arith.mulf %19, %16 : vector<64x64xf32>
    %21 = arith.select %18, %16, %20 : vector<64x64xi1>, vector<64x64xf32>
    %22 = arith.truncf %21 : vector<64x64xf32> to vector<64x64xbf16>
    %cst_21 = arith.constant dense<0.000000e+00> : vector<64x64xf32>
    %23 = tpu.matmul %22, %6, %cst_21 {dimension_numbers = #tpu.dot_dimension_numbers<[1], [0], [0], [1], [0, 0, 1, 1], [], []>} : vector<64x64xbf16>, vector<64x64xbf16>, vector<64x64xf32> -> vector<64x64xf32>
    %24 = vector.broadcast %7 : vector<1x64xf32> to vector<64x64xf32>
    %25 = arith.mulf %23, %24 : vector<64x64xf32>
    %26 = vector.broadcast %8 : vector<1x64xf32> to vector<64x64xf32>
    %27 = arith.addf %25, %26 : vector<64x64xf32>
    %cst_22 = arith.constant 0.000000e+00 : f32
    %28 = vector.broadcast %cst_22 : f32 to vector<64x64xf32>
    %29 = arith.cmpf oge, %27, %28 : vector<64x64xf32>
    %cst_23 = arith.constant 2.000000e-01 : f32
    %30 = vector.broadcast %cst_23 : f32 to vector<64x64xf32>
    %31 = arith.mulf %30, %27 : vector<64x64xf32>
    %32 = arith.select %29, %27, %31 : vector<64x64xi1>, vector<64x64xf32>
    %c1 = arith.constant 1 : index
    %c0_24 = arith.constant 0 : index
    %c0_25 = arith.constant 0 : index
    %33 = vector.load %arg1[%c1, %c0_24, %c0_25] : memref<8x64x6xbf16, #tpu.memory_space<vmem>>, vector<1x64x6xbf16>
    %34 = vector.shape_cast %33 : vector<1x64x6xbf16> to vector<64x6xbf16>
    %cst_26 = arith.constant dense<0.000000e+00> : vector<64x64xf32>
    %35 = tpu.matmul %34, %0, %cst_26 {dimension_numbers = #tpu.dot_dimension_numbers<[1], [0], [0], [1], [0, 0, 1, 1], [], []>} : vector<64x6xbf16>, vector<6x64xbf16>, vector<64x64xf32> -> vector<64x64xf32>
    %36 = arith.addf %35, %5 : vector<64x64xf32>
    %37 = vector.broadcast %1 : vector<1x64xf32> to vector<64x64xf32>
    %38 = arith.mulf %36, %37 : vector<64x64xf32>
    %39 = vector.broadcast %2 : vector<1x64xf32> to vector<64x64xf32>
    %40 = arith.addf %38, %39 : vector<64x64xf32>
    %cst_27 = arith.constant 0.000000e+00 : f32
    %41 = vector.broadcast %cst_27 : f32 to vector<64x64xf32>
    %42 = arith.cmpf oge, %40, %41 : vector<64x64xf32>
    %cst_28 = arith.constant 2.000000e-01 : f32
    %43 = vector.broadcast %cst_28 : f32 to vector<64x64xf32>
    %44 = arith.mulf %43, %40 : vector<64x64xf32>
    %45 = arith.select %42, %40, %44 : vector<64x64xi1>, vector<64x64xf32>
    %46 = arith.truncf %45 : vector<64x64xf32> to vector<64x64xbf16>
    %cst_29 = arith.constant dense<0.000000e+00> : vector<64x64xf32>
    %47 = tpu.matmul %46, %6, %cst_29 {dimension_numbers = #tpu.dot_dimension_numbers<[1], [0], [0], [1], [0, 0, 1, 1], [], []>} : vector<64x64xbf16>, vector<64x64xbf16>, vector<64x64xf32> -> vector<64x64xf32>
    %48 = vector.broadcast %7 : vector<1x64xf32> to vector<64x64xf32>
    %49 = arith.mulf %47, %48 : vector<64x64xf32>
    %50 = vector.broadcast %8 : vector<1x64xf32> to vector<64x64xf32>
    %51 = arith.addf %49, %50 : vector<64x64xf32>
    %cst_30 = arith.constant 0.000000e+00 : f32
    %52 = vector.broadcast %cst_30 : f32 to vector<64x64xf32>
    %53 = arith.cmpf oge, %51, %52 : vector<64x64xf32>
    %cst_31 = arith.constant 2.000000e-01 : f32
    %54 = vector.broadcast %cst_31 : f32 to vector<64x64xf32>
    %55 = arith.mulf %54, %51 : vector<64x64xf32>
    %56 = arith.select %53, %51, %55 : vector<64x64xi1>, vector<64x64xf32>
    %57 = arith.maximumf %32, %56 : vector<64x64xf32>
    %c2 = arith.constant 2 : index
    %c0_32 = arith.constant 0 : index
    %c0_33 = arith.constant 0 : index
    %58 = vector.load %arg1[%c2, %c0_32, %c0_33] : memref<8x64x6xbf16, #tpu.memory_space<vmem>>, vector<1x64x6xbf16>
    %59 = vector.shape_cast %58 : vector<1x64x6xbf16> to vector<64x6xbf16>
    %cst_34 = arith.constant dense<0.000000e+00> : vector<64x64xf32>
    %60 = tpu.matmul %59, %0, %cst_34 {dimension_numbers = #tpu.dot_dimension_numbers<[1], [0], [0], [1], [0, 0, 1, 1], [], []>} : vector<64x6xbf16>, vector<6x64xbf16>, vector<64x64xf32> -> vector<64x64xf32>
    %61 = arith.addf %60, %5 : vector<64x64xf32>
    %62 = vector.broadcast %1 : vector<1x64xf32> to vector<64x64xf32>
    %63 = arith.mulf %61, %62 : vector<64x64xf32>
    %64 = vector.broadcast %2 : vector<1x64xf32> to vector<64x64xf32>
    %65 = arith.addf %63, %64 : vector<64x64xf32>
    %cst_35 = arith.constant 0.000000e+00 : f32
    %66 = vector.broadcast %cst_35 : f32 to vector<64x64xf32>
    %67 = arith.cmpf oge, %65, %66 : vector<64x64xf32>
    %cst_36 = arith.constant 2.000000e-01 : f32
    %68 = vector.broadcast %cst_36 : f32 to vector<64x64xf32>
    %69 = arith.mulf %68, %65 : vector<64x64xf32>
    %70 = arith.select %67, %65, %69 : vector<64x64xi1>, vector<64x64xf32>
    %71 = arith.truncf %70 : vector<64x64xf32> to vector<64x64xbf16>
    %cst_37 = arith.constant dense<0.000000e+00> : vector<64x64xf32>
    %72 = tpu.matmul %71, %6, %cst_37 {dimension_numbers = #tpu.dot_dimension_numbers<[1], [0], [0], [1], [0, 0, 1, 1], [], []>} : vector<64x64xbf16>, vector<64x64xbf16>, vector<64x64xf32> -> vector<64x64xf32>
    %73 = vector.broadcast %7 : vector<1x64xf32> to vector<64x64xf32>
    %74 = arith.mulf %72, %73 : vector<64x64xf32>
    %75 = vector.broadcast %8 : vector<1x64xf32> to vector<64x64xf32>
    %76 = arith.addf %74, %75 : vector<64x64xf32>
    %cst_38 = arith.constant 0.000000e+00 : f32
    %77 = vector.broadcast %cst_38 : f32 to vector<64x64xf32>
    %78 = arith.cmpf oge, %76, %77 : vector<64x64xf32>
    %cst_39 = arith.constant 2.000000e-01 : f32
    %79 = vector.broadcast %cst_39 : f32 to vector<64x64xf32>
    %80 = arith.mulf %79, %76 : vector<64x64xf32>
    %81 = arith.select %78, %76, %80 : vector<64x64xi1>, vector<64x64xf32>
    %82 = arith.maximumf %57, %81 : vector<64x64xf32>
    %c3 = arith.constant 3 : index
    %c0_40 = arith.constant 0 : index
    %c0_41 = arith.constant 0 : index
    %83 = vector.load %arg1[%c3, %c0_40, %c0_41] : memref<8x64x6xbf16, #tpu.memory_space<vmem>>, vector<1x64x6xbf16>
    %84 = vector.shape_cast %83 : vector<1x64x6xbf16> to vector<64x6xbf16>
    %cst_42 = arith.constant dense<0.000000e+00> : vector<64x64xf32>
    %85 = tpu.matmul %84, %0, %cst_42 {dimension_numbers = #tpu.dot_dimension_numbers<[1], [0], [0], [1], [0, 0, 1, 1], [], []>} : vector<64x6xbf16>, vector<6x64xbf16>, vector<64x64xf32> -> vector<64x64xf32>
    %86 = arith.addf %85, %5 : vector<64x64xf32>
    %87 = vector.broadcast %1 : vector<1x64xf32> to vector<64x64xf32>
    %88 = arith.mulf %86, %87 : vector<64x64xf32>
    %89 = vector.broadcast %2 : vector<1x64xf32> to vector<64x64xf32>
    %90 = arith.addf %88, %89 : vector<64x64xf32>
    %cst_43 = arith.constant 0.000000e+00 : f32
    %91 = vector.broadcast %cst_43 : f32 to vector<64x64xf32>
    %92 = arith.cmpf oge, %90, %91 : vector<64x64xf32>
    %cst_44 = arith.constant 2.000000e-01 : f32
    %93 = vector.broadcast %cst_44 : f32 to vector<64x64xf32>
    %94 = arith.mulf %93, %90 : vector<64x64xf32>
    %95 = arith.select %92, %90, %94 : vector<64x64xi1>, vector<64x64xf32>
    %96 = arith.truncf %95 : vector<64x64xf32> to vector<64x64xbf16>
    %cst_45 = arith.constant dense<0.000000e+00> : vector<64x64xf32>
    %97 = tpu.matmul %96, %6, %cst_45 {dimension_numbers = #tpu.dot_dimension_numbers<[1], [0], [0], [1], [0, 0, 1, 1], [], []>} : vector<64x64xbf16>, vector<64x64xbf16>, vector<64x64xf32> -> vector<64x64xf32>
    %98 = vector.broadcast %7 : vector<1x64xf32> to vector<64x64xf32>
    %99 = arith.mulf %97, %98 : vector<64x64xf32>
    %100 = vector.broadcast %8 : vector<1x64xf32> to vector<64x64xf32>
    %101 = arith.addf %99, %100 : vector<64x64xf32>
    %cst_46 = arith.constant 0.000000e+00 : f32
    %102 = vector.broadcast %cst_46 : f32 to vector<64x64xf32>
    %103 = arith.cmpf oge, %101, %102 : vector<64x64xf32>
    %cst_47 = arith.constant 2.000000e-01 : f32
    %104 = vector.broadcast %cst_47 : f32 to vector<64x64xf32>
    %105 = arith.mulf %104, %101 : vector<64x64xf32>
    %106 = arith.select %103, %101, %105 : vector<64x64xi1>, vector<64x64xf32>
    %107 = arith.maximumf %82, %106 : vector<64x64xf32>
    %c4 = arith.constant 4 : index
    %c0_48 = arith.constant 0 : index
    %c0_49 = arith.constant 0 : index
    %108 = vector.load %arg1[%c4, %c0_48, %c0_49] : memref<8x64x6xbf16, #tpu.memory_space<vmem>>, vector<1x64x6xbf16>
    %109 = vector.shape_cast %108 : vector<1x64x6xbf16> to vector<64x6xbf16>
    %cst_50 = arith.constant dense<0.000000e+00> : vector<64x64xf32>
    %110 = tpu.matmul %109, %0, %cst_50 {dimension_numbers = #tpu.dot_dimension_numbers<[1], [0], [0], [1], [0, 0, 1, 1], [], []>} : vector<64x6xbf16>, vector<6x64xbf16>, vector<64x64xf32> -> vector<64x64xf32>
    %111 = arith.addf %110, %5 : vector<64x64xf32>
    %112 = vector.broadcast %1 : vector<1x64xf32> to vector<64x64xf32>
    %113 = arith.mulf %111, %112 : vector<64x64xf32>
    %114 = vector.broadcast %2 : vector<1x64xf32> to vector<64x64xf32>
    %115 = arith.addf %113, %114 : vector<64x64xf32>
    %cst_51 = arith.constant 0.000000e+00 : f32
    %116 = vector.broadcast %cst_51 : f32 to vector<64x64xf32>
    %117 = arith.cmpf oge, %115, %116 : vector<64x64xf32>
    %cst_52 = arith.constant 2.000000e-01 : f32
    %118 = vector.broadcast %cst_52 : f32 to vector<64x64xf32>
    %119 = arith.mulf %118, %115 : vector<64x64xf32>
    %120 = arith.select %117, %115, %119 : vector<64x64xi1>, vector<64x64xf32>
    %121 = arith.truncf %120 : vector<64x64xf32> to vector<64x64xbf16>
    %cst_53 = arith.constant dense<0.000000e+00> : vector<64x64xf32>
    %122 = tpu.matmul %121, %6, %cst_53 {dimension_numbers = #tpu.dot_dimension_numbers<[1], [0], [0], [1], [0, 0, 1, 1], [], []>} : vector<64x64xbf16>, vector<64x64xbf16>, vector<64x64xf32> -> vector<64x64xf32>
    %123 = vector.broadcast %7 : vector<1x64xf32> to vector<64x64xf32>
    %124 = arith.mulf %122, %123 : vector<64x64xf32>
    %125 = vector.broadcast %8 : vector<1x64xf32> to vector<64x64xf32>
    %126 = arith.addf %124, %125 : vector<64x64xf32>
    %cst_54 = arith.constant 0.000000e+00 : f32
    %127 = vector.broadcast %cst_54 : f32 to vector<64x64xf32>
    %128 = arith.cmpf oge, %126, %127 : vector<64x64xf32>
    %cst_55 = arith.constant 2.000000e-01 : f32
    %129 = vector.broadcast %cst_55 : f32 to vector<64x64xf32>
    %130 = arith.mulf %129, %126 : vector<64x64xf32>
    %131 = arith.select %128, %126, %130 : vector<64x64xi1>, vector<64x64xf32>
    %132 = arith.maximumf %107, %131 : vector<64x64xf32>
    %c5 = arith.constant 5 : index
    %c0_56 = arith.constant 0 : index
    %c0_57 = arith.constant 0 : index
    %133 = vector.load %arg1[%c5, %c0_56, %c0_57] : memref<8x64x6xbf16, #tpu.memory_space<vmem>>, vector<1x64x6xbf16>
    %134 = vector.shape_cast %133 : vector<1x64x6xbf16> to vector<64x6xbf16>
    %cst_58 = arith.constant dense<0.000000e+00> : vector<64x64xf32>
    %135 = tpu.matmul %134, %0, %cst_58 {dimension_numbers = #tpu.dot_dimension_numbers<[1], [0], [0], [1], [0, 0, 1, 1], [], []>} : vector<64x6xbf16>, vector<6x64xbf16>, vector<64x64xf32> -> vector<64x64xf32>
    %136 = arith.addf %135, %5 : vector<64x64xf32>
    %137 = vector.broadcast %1 : vector<1x64xf32> to vector<64x64xf32>
    %138 = arith.mulf %136, %137 : vector<64x64xf32>
    %139 = vector.broadcast %2 : vector<1x64xf32> to vector<64x64xf32>
    %140 = arith.addf %138, %139 : vector<64x64xf32>
    %cst_59 = arith.constant 0.000000e+00 : f32
    %141 = vector.broadcast %cst_59 : f32 to vector<64x64xf32>
    %142 = arith.cmpf oge, %140, %141 : vector<64x64xf32>
    %cst_60 = arith.constant 2.000000e-01 : f32
    %143 = vector.broadcast %cst_60 : f32 to vector<64x64xf32>
    %144 = arith.mulf %143, %140 : vector<64x64xf32>
    %145 = arith.select %142, %140, %144 : vector<64x64xi1>, vector<64x64xf32>
    %146 = arith.truncf %145 : vector<64x64xf32> to vector<64x64xbf16>
    %cst_61 = arith.constant dense<0.000000e+00> : vector<64x64xf32>
    %147 = tpu.matmul %146, %6, %cst_61 {dimension_numbers = #tpu.dot_dimension_numbers<[1], [0], [0], [1], [0, 0, 1, 1], [], []>} : vector<64x64xbf16>, vector<64x64xbf16>, vector<64x64xf32> -> vector<64x64xf32>
    %148 = vector.broadcast %7 : vector<1x64xf32> to vector<64x64xf32>
    %149 = arith.mulf %147, %148 : vector<64x64xf32>
    %150 = vector.broadcast %8 : vector<1x64xf32> to vector<64x64xf32>
    %151 = arith.addf %149, %150 : vector<64x64xf32>
    %cst_62 = arith.constant 0.000000e+00 : f32
    %152 = vector.broadcast %cst_62 : f32 to vector<64x64xf32>
    %153 = arith.cmpf oge, %151, %152 : vector<64x64xf32>
    %cst_63 = arith.constant 2.000000e-01 : f32
    %154 = vector.broadcast %cst_63 : f32 to vector<64x64xf32>
    %155 = arith.mulf %154, %151 : vector<64x64xf32>
    %156 = arith.select %153, %151, %155 : vector<64x64xi1>, vector<64x64xf32>
    %157 = arith.maximumf %132, %156 : vector<64x64xf32>
    %c6 = arith.constant 6 : index
    %c0_64 = arith.constant 0 : index
    %c0_65 = arith.constant 0 : index
    %158 = vector.load %arg1[%c6, %c0_64, %c0_65] : memref<8x64x6xbf16, #tpu.memory_space<vmem>>, vector<1x64x6xbf16>
    %159 = vector.shape_cast %158 : vector<1x64x6xbf16> to vector<64x6xbf16>
    %cst_66 = arith.constant dense<0.000000e+00> : vector<64x64xf32>
    %160 = tpu.matmul %159, %0, %cst_66 {dimension_numbers = #tpu.dot_dimension_numbers<[1], [0], [0], [1], [0, 0, 1, 1], [], []>} : vector<64x6xbf16>, vector<6x64xbf16>, vector<64x64xf32> -> vector<64x64xf32>
    %161 = arith.addf %160, %5 : vector<64x64xf32>
    %162 = vector.broadcast %1 : vector<1x64xf32> to vector<64x64xf32>
    %163 = arith.mulf %161, %162 : vector<64x64xf32>
    %164 = vector.broadcast %2 : vector<1x64xf32> to vector<64x64xf32>
    %165 = arith.addf %163, %164 : vector<64x64xf32>
    %cst_67 = arith.constant 0.000000e+00 : f32
    %166 = vector.broadcast %cst_67 : f32 to vector<64x64xf32>
    %167 = arith.cmpf oge, %165, %166 : vector<64x64xf32>
    %cst_68 = arith.constant 2.000000e-01 : f32
    %168 = vector.broadcast %cst_68 : f32 to vector<64x64xf32>
    %169 = arith.mulf %168, %165 : vector<64x64xf32>
    %170 = arith.select %167, %165, %169 : vector<64x64xi1>, vector<64x64xf32>
    %171 = arith.truncf %170 : vector<64x64xf32> to vector<64x64xbf16>
    %cst_69 = arith.constant dense<0.000000e+00> : vector<64x64xf32>
    %172 = tpu.matmul %171, %6, %cst_69 {dimension_numbers = #tpu.dot_dimension_numbers<[1], [0], [0], [1], [0, 0, 1, 1], [], []>} : vector<64x64xbf16>, vector<64x64xbf16>, vector<64x64xf32> -> vector<64x64xf32>
    %173 = vector.broadcast %7 : vector<1x64xf32> to vector<64x64xf32>
    %174 = arith.mulf %172, %173 : vector<64x64xf32>
    %175 = vector.broadcast %8 : vector<1x64xf32> to vector<64x64xf32>
    %176 = arith.addf %174, %175 : vector<64x64xf32>
    %cst_70 = arith.constant 0.000000e+00 : f32
    %177 = vector.broadcast %cst_70 : f32 to vector<64x64xf32>
    %178 = arith.cmpf oge, %176, %177 : vector<64x64xf32>
    %cst_71 = arith.constant 2.000000e-01 : f32
    %179 = vector.broadcast %cst_71 : f32 to vector<64x64xf32>
    %180 = arith.mulf %179, %176 : vector<64x64xf32>
    %181 = arith.select %178, %176, %180 : vector<64x64xi1>, vector<64x64xf32>
    %182 = arith.maximumf %157, %181 : vector<64x64xf32>
    %c7 = arith.constant 7 : index
    %c0_72 = arith.constant 0 : index
    %c0_73 = arith.constant 0 : index
    %183 = vector.load %arg1[%c7, %c0_72, %c0_73] : memref<8x64x6xbf16, #tpu.memory_space<vmem>>, vector<1x64x6xbf16>
    %184 = vector.shape_cast %183 : vector<1x64x6xbf16> to vector<64x6xbf16>
    %cst_74 = arith.constant dense<0.000000e+00> : vector<64x64xf32>
    %185 = tpu.matmul %184, %0, %cst_74 {dimension_numbers = #tpu.dot_dimension_numbers<[1], [0], [0], [1], [0, 0, 1, 1], [], []>} : vector<64x6xbf16>, vector<6x64xbf16>, vector<64x64xf32> -> vector<64x64xf32>
    %186 = arith.addf %185, %5 : vector<64x64xf32>
    %187 = vector.broadcast %1 : vector<1x64xf32> to vector<64x64xf32>
    %188 = arith.mulf %186, %187 : vector<64x64xf32>
    %189 = vector.broadcast %2 : vector<1x64xf32> to vector<64x64xf32>
    %190 = arith.addf %188, %189 : vector<64x64xf32>
    %cst_75 = arith.constant 0.000000e+00 : f32
    %191 = vector.broadcast %cst_75 : f32 to vector<64x64xf32>
    %192 = arith.cmpf oge, %190, %191 : vector<64x64xf32>
    %cst_76 = arith.constant 2.000000e-01 : f32
    %193 = vector.broadcast %cst_76 : f32 to vector<64x64xf32>
    %194 = arith.mulf %193, %190 : vector<64x64xf32>
    %195 = arith.select %192, %190, %194 : vector<64x64xi1>, vector<64x64xf32>
    %196 = arith.truncf %195 : vector<64x64xf32> to vector<64x64xbf16>
    %cst_77 = arith.constant dense<0.000000e+00> : vector<64x64xf32>
    %197 = tpu.matmul %196, %6, %cst_77 {dimension_numbers = #tpu.dot_dimension_numbers<[1], [0], [0], [1], [0, 0, 1, 1], [], []>} : vector<64x64xbf16>, vector<64x64xbf16>, vector<64x64xf32> -> vector<64x64xf32>
    %198 = vector.broadcast %7 : vector<1x64xf32> to vector<64x64xf32>
    %199 = arith.mulf %197, %198 : vector<64x64xf32>
    %200 = vector.broadcast %8 : vector<1x64xf32> to vector<64x64xf32>
    %201 = arith.addf %199, %200 : vector<64x64xf32>
    %cst_78 = arith.constant 0.000000e+00 : f32
    %202 = vector.broadcast %cst_78 : f32 to vector<64x64xf32>
    %203 = arith.cmpf oge, %201, %202 : vector<64x64xf32>
    %cst_79 = arith.constant 2.000000e-01 : f32
    %204 = vector.broadcast %cst_79 : f32 to vector<64x64xf32>
    %205 = arith.mulf %204, %201 : vector<64x64xf32>
    %206 = arith.select %203, %201, %205 : vector<64x64xi1>, vector<64x64xf32>
    %207 = arith.maximumf %182, %206 : vector<64x64xf32>
    %c0_80 = arith.constant 0 : index
    %c0_81 = arith.constant 0 : index
    %208 = vector.load %arg10[%c0_80, %c0_81] : memref<64x64xf32, #tpu.memory_space<vmem>>, vector<64x64xf32>
    tpu.vector_store %arg10[%c0_80, %c0_81], %207 {strides = array<i32>} : memref<64x64xf32, #tpu.memory_space<vmem>>, vector<64x64xf32>,
    return
  }
  func.func @transform_0(%arg0: i32) -> (i32, i32, i32) {
    %c0_i32 = arith.constant 0 : i32
    %c0_i32_0 = arith.constant 0 : i32
    %c0_i32_1 = arith.constant 0 : i32
    return %c0_i32, %arg0, %c0_i32_0 : i32, i32, i32
  }
  func.func @transform_1(%arg0: i32) -> (i32, i32) {
    %c0_i32 = arith.constant 0 : i32
    %c0_i32_0 = arith.constant 0 : i32
    return %arg0, %c0_i32 : i32, i32
  }
  func.func @transform_2(%arg0: i32) -> (i32, i32) {
    %c0_i32 = arith.constant 0 : i32
    %c0_i32_0 = arith.constant 0 : i32
    %c0_i32_1 = arith.constant 0 : i32
    return %c0_i32, %c0_i32_0 : i32, i32
  }
  func.func @transform_3(%arg0: i32) -> (i32, i32) {
    %c0_i32 = arith.constant 0 : i32
    %c0_i32_0 = arith.constant 0 : i32
    %c0_i32_1 = arith.constant 0 : i32
    return %c0_i32, %c0_i32_0 : i32, i32
  }
  func.func @transform_4(%arg0: i32) -> (i32, i32) {
    %c0_i32 = arith.constant 0 : i32
    %c0_i32_0 = arith.constant 0 : i32
    %c0_i32_1 = arith.constant 0 : i32
    return %c0_i32, %c0_i32_0 : i32, i32
  }
  func.func @transform_5(%arg0: i32) -> (i32, i32) {
    %c0_i32 = arith.constant 0 : i32
    %c0_i32_0 = arith.constant 0 : i32
    %c0_i32_1 = arith.constant 0 : i32
    return %c0_i32, %c0_i32_0 : i32, i32
  }
  func.func @transform_6(%arg0: i32) -> (i32, i32) {
    %c0_i32 = arith.constant 0 : i32
    %c0_i32_0 = arith.constant 0 : i32
    %c0_i32_1 = arith.constant 0 : i32
    return %c0_i32, %c0_i32_0 : i32, i32
  }
  func.func @transform_7(%arg0: i32) -> (i32, i32) {
    %c0_i32 = arith.constant 0 : i32
    %c0_i32_0 = arith.constant 0 : i32
    %c0_i32_1 = arith.constant 0 : i32
    return %c0_i32, %c0_i32_0 : i32, i32
  }
  func.func @transform_8(%arg0: i32) -> (i32, i32) {
    %c0_i32 = arith.constant 0 : i32
    %c0_i32_0 = arith.constant 0 : i32
    %c0_i32_1 = arith.constant 0 : i32
    return %c0_i32, %c0_i32_0 : i32, i32
  }
  func.func @transform_9(%arg0: i32) -> (i32, i32) {
    %c0_i32 = arith.constant 0 : i32
    %c0_i32_0 = arith.constant 0 : i32
    return %arg0, %c0_i32 : i32, i32
  }
}

module attributes {stable_mosaic.version = 11 : i64} {
  func.func @_pairwise_dist_kernel(%arg0: i32, %arg1: i32, %arg2: memref<1x32x64xf32, #tpu.memory_space<vmem>>, %arg3: memref<1x32x64xf32, #tpu.memory_space<vmem>>, %arg4: memref<1x1x32xf32, #tpu.memory_space<vmem>>, %arg5: memref<1x32x32xf32, #tpu.memory_space<vmem>>) attributes {dimension_semantics = [#tpu.dimension_semantics<parallel>, #tpu.dimension_semantics<parallel>], iteration_bounds = array<i64: 2, 1>, scalar_prefetch = 0 : i64, scratch_operands = 0 : i64, tpu.core_type = #tpu.core_type<tc>, window_params = [{transform_indices = @transform_0, window_bounds = array<i64: 1, 32, 64>}, {transform_indices = @transform_1, window_bounds = array<i64: 1, 32, 64>}, {transform_indices = @transform_2, window_bounds = array<i64: 1, 1, 32>}, {transform_indices = @transform_3, window_bounds = array<i64: 1, 32, 32>}]} {
    %c0 = arith.constant 0 : index
    %c0_0 = arith.constant 0 : index
    %c0_1 = arith.constant 0 : index
    %0 = vector.load %arg2[%c0, %c0_0, %c0_1] : memref<1x32x64xf32, #tpu.memory_space<vmem>>, vector<1x32x64xf32>
    %1 = vector.shape_cast %0 : vector<1x32x64xf32> to vector<32x64xf32>
    %c0_2 = arith.constant 0 : index
    %c0_3 = arith.constant 0 : index
    %c0_4 = arith.constant 0 : index
    %2 = vector.load %arg3[%c0_2, %c0_3, %c0_4] : memref<1x32x64xf32, #tpu.memory_space<vmem>>, vector<1x32x64xf32>
    %3 = vector.shape_cast %2 : vector<1x32x64xf32> to vector<32x64xf32>
    %cst = arith.constant dense<0.000000e+00> : vector<32x32xf32>
    %4 = tpu.matmul %1, %3, %cst {dimension_numbers = #tpu.dot_dimension_numbers<[1], [1], [0], [0], [0, 0, 1, 0], [], []>} : vector<32x64xf32>, vector<32x64xf32>, vector<32x32xf32> -> vector<32x32xf32>
    %5 = arith.mulf %1, %1 : vector<32x64xf32>
    %cst_5 = arith.constant dense<0.000000e+00> : vector<32xf32>
    %6 = vector.multi_reduction <add>, %5, %cst_5 [1] : vector<32x64xf32> to vector<32xf32>
    %7 = vector.shape_cast %6 : vector<32xf32> to vector<32x1xf32>
    %cst_6 = arith.constant 2.000000e+00 : f32
    %8 = vector.broadcast %cst_6 : f32 to vector<32x32xf32>
    %9 = arith.mulf %8, %4 : vector<32x32xf32>
    %10 = vector.broadcast %7 : vector<32x1xf32> to vector<32x32xf32>
    %11 = arith.subf %9, %10 : vector<32x32xf32>
    %c0_7 = arith.constant 0 : index
    %c0_8 = arith.constant 0 : index
    %c0_9 = arith.constant 0 : index
    %12 = vector.load %arg4[%c0_7, %c0_8, %c0_9] : memref<1x1x32xf32, #tpu.memory_space<vmem>>, vector<1x1x32xf32>
    %13 = vector.shape_cast %12 : vector<1x1x32xf32> to vector<1x32xf32>
    %14 = vector.broadcast %13 : vector<1x32xf32> to vector<32x32xf32>
    %15 = arith.subf %11, %14 : vector<32x32xf32>
    %c0_10 = arith.constant 0 : index
    %c0_11 = arith.constant 0 : index
    %c0_12 = arith.constant 0 : index
    %16 = vector.load %arg5[%c0_10, %c0_11, %c0_12] : memref<1x32x32xf32, #tpu.memory_space<vmem>>, vector<1x32x32xf32>
    %17 = vector.shape_cast %16 : vector<1x32x32xf32> to vector<32x32xf32>
    %18 = vector.shape_cast %15 : vector<32x32xf32> to vector<1x32x32xf32>
    tpu.vector_store %arg5[%c0_10, %c0_11, %c0_12], %18 {strides = array<i32>} : memref<1x32x32xf32, #tpu.memory_space<vmem>>, vector<1x32x32xf32>,
    return
  }
  func.func @transform_0(%arg0: i32, %arg1: i32) -> (i32, i32, i32) {
    %c0_i32 = arith.constant 0 : i32
    %c0_i32_0 = arith.constant 0 : i32
    return %arg0, %arg1, %c0_i32 : i32, i32, i32
  }
  func.func @transform_1(%arg0: i32, %arg1: i32) -> (i32, i32, i32) {
    %c0_i32 = arith.constant 0 : i32
    %c0_i32_0 = arith.constant 0 : i32
    %c0_i32_1 = arith.constant 0 : i32
    return %arg0, %c0_i32, %c0_i32_0 : i32, i32, i32
  }
  func.func @transform_2(%arg0: i32, %arg1: i32) -> (i32, i32, i32) {
    %c0_i32 = arith.constant 0 : i32
    %c0_i32_0 = arith.constant 0 : i32
    %c0_i32_1 = arith.constant 0 : i32
    return %arg0, %c0_i32, %c0_i32_0 : i32, i32, i32
  }
  func.func @transform_3(%arg0: i32, %arg1: i32) -> (i32, i32, i32) {
    %c0_i32 = arith.constant 0 : i32
    %c0_i32_0 = arith.constant 0 : i32
    return %arg0, %arg1, %c0_i32 : i32, i32, i32
  }
}

module attributes {stable_mosaic.version = 11 : i64} {
  func.func @_edge_conv_max_kernel(%arg0: i32, %arg1: memref<8x64x64xbf16, #tpu.memory_space<vmem>>, %arg2: memref<64x64xbf16, #tpu.memory_space<vmem>>, %arg3: memref<64x64xbf16, #tpu.memory_space<vmem>>, %arg4: memref<64x64xbf16, #tpu.memory_space<vmem>>, %arg5: memref<1x64xf32, #tpu.memory_space<vmem>>, %arg6: memref<1x64xf32, #tpu.memory_space<vmem>>, %arg7: memref<64x64xbf16, #tpu.memory_space<vmem>>, %arg8: memref<1x64xf32, #tpu.memory_space<vmem>>, %arg9: memref<1x64xf32, #tpu.memory_space<vmem>>, %arg10: memref<64x64xf32, #tpu.memory_space<vmem>>) attributes {dimension_semantics = [#tpu.dimension_semantics<parallel>], iteration_bounds = array<i64: 1>, scalar_prefetch = 0 : i64, scratch_operands = 0 : i64, tpu.core_type = #tpu.core_type<tc>, window_params = [{transform_indices = @transform_0, window_bounds = array<i64: 8, 64, 64>}, {transform_indices = @transform_1, window_bounds = array<i64: 64, 64>}, {pipeline_mode = #tpu.pipeline_mode<synchronous>, transform_indices = @transform_2, window_bounds = array<i64: 64, 64>}, {pipeline_mode = #tpu.pipeline_mode<synchronous>, transform_indices = @transform_3, window_bounds = array<i64: 64, 64>}, {pipeline_mode = #tpu.pipeline_mode<synchronous>, transform_indices = @transform_4, window_bounds = array<i64: 1, 64>}, {pipeline_mode = #tpu.pipeline_mode<synchronous>, transform_indices = @transform_5, window_bounds = array<i64: 1, 64>}, {pipeline_mode = #tpu.pipeline_mode<synchronous>, transform_indices = @transform_6, window_bounds = array<i64: 64, 64>}, {pipeline_mode = #tpu.pipeline_mode<synchronous>, transform_indices = @transform_7, window_bounds = array<i64: 1, 64>}, {pipeline_mode = #tpu.pipeline_mode<synchronous>, transform_indices = @transform_8, window_bounds = array<i64: 1, 64>}, {transform_indices = @transform_9, window_bounds = array<i64: 64, 64>}]} {
    %c0 = arith.constant 0 : index
    %c0_0 = arith.constant 0 : index
    %0 = vector.load %arg3[%c0, %c0_0] : memref<64x64xbf16, #tpu.memory_space<vmem>>, vector<64x64xbf16>
    %c0_1 = arith.constant 0 : index
    %c0_2 = arith.constant 0 : index
    %1 = vector.load %arg5[%c0_1, %c0_2] : memref<1x64xf32, #tpu.memory_space<vmem>>, vector<1x64xf32>
    %c0_3 = arith.constant 0 : index
    %c0_4 = arith.constant 0 : index
    %2 = vector.load %arg6[%c0_3, %c0_4] : memref<1x64xf32, #tpu.memory_space<vmem>>, vector<1x64xf32>
    %c0_5 = arith.constant 0 : index
    %c0_6 = arith.constant 0 : index
    %3 = vector.load %arg2[%c0_5, %c0_6] : memref<64x64xbf16, #tpu.memory_space<vmem>>, vector<64x64xbf16>
    %c0_7 = arith.constant 0 : index
    %c0_8 = arith.constant 0 : index
    %4 = vector.load %arg4[%c0_7, %c0_8] : memref<64x64xbf16, #tpu.memory_space<vmem>>, vector<64x64xbf16>
    %cst = arith.constant dense<0.000000e+00> : vector<64x64xf32>
    %5 = tpu.matmul %3, %4, %cst {dimension_numbers = #tpu.dot_dimension_numbers<[1], [0], [0], [1], [0, 0, 1, 1], [], []>} : vector<64x64xbf16>, vector<64x64xbf16>, vector<64x64xf32> -> vector<64x64xf32>
    %c0_9 = arith.constant 0 : index
    %c0_10 = arith.constant 0 : index
    %6 = vector.load %arg7[%c0_9, %c0_10] : memref<64x64xbf16, #tpu.memory_space<vmem>>, vector<64x64xbf16>
    %c0_11 = arith.constant 0 : index
    %c0_12 = arith.constant 0 : index
    %7 = vector.load %arg8[%c0_11, %c0_12] : memref<1x64xf32, #tpu.memory_space<vmem>>, vector<1x64xf32>
    %c0_13 = arith.constant 0 : index
    %c0_14 = arith.constant 0 : index
    %8 = vector.load %arg9[%c0_13, %c0_14] : memref<1x64xf32, #tpu.memory_space<vmem>>, vector<1x64xf32>
    %c0_15 = arith.constant 0 : index
    %c0_16 = arith.constant 0 : index
    %c0_17 = arith.constant 0 : index
    %9 = vector.load %arg1[%c0_15, %c0_16, %c0_17] : memref<8x64x64xbf16, #tpu.memory_space<vmem>>, vector<1x64x64xbf16>
    %10 = vector.shape_cast %9 : vector<1x64x64xbf16> to vector<64x64xbf16>
    %cst_18 = arith.constant dense<0.000000e+00> : vector<64x64xf32>
    %11 = tpu.matmul %10, %0, %cst_18 {dimension_numbers = #tpu.dot_dimension_numbers<[1], [0], [0], [1], [0, 0, 1, 1], [], []>} : vector<64x64xbf16>, vector<64x64xbf16>, vector<64x64xf32> -> vector<64x64xf32>
    %12 = arith.addf %11, %5 : vector<64x64xf32>
    %13 = vector.broadcast %1 : vector<1x64xf32> to vector<64x64xf32>
    %14 = arith.mulf %12, %13 : vector<64x64xf32>
    %15 = vector.broadcast %2 : vector<1x64xf32> to vector<64x64xf32>
    %16 = arith.addf %14, %15 : vector<64x64xf32>
    %cst_19 = arith.constant 0.000000e+00 : f32
    %17 = vector.broadcast %cst_19 : f32 to vector<64x64xf32>
    %18 = arith.cmpf oge, %16, %17 : vector<64x64xf32>
    %cst_20 = arith.constant 2.000000e-01 : f32
    %19 = vector.broadcast %cst_20 : f32 to vector<64x64xf32>
    %20 = arith.mulf %19, %16 : vector<64x64xf32>
    %21 = arith.select %18, %16, %20 : vector<64x64xi1>, vector<64x64xf32>
    %22 = arith.truncf %21 : vector<64x64xf32> to vector<64x64xbf16>
    %cst_21 = arith.constant dense<0.000000e+00> : vector<64x64xf32>
    %23 = tpu.matmul %22, %6, %cst_21 {dimension_numbers = #tpu.dot_dimension_numbers<[1], [0], [0], [1], [0, 0, 1, 1], [], []>} : vector<64x64xbf16>, vector<64x64xbf16>, vector<64x64xf32> -> vector<64x64xf32>
    %24 = vector.broadcast %7 : vector<1x64xf32> to vector<64x64xf32>
    %25 = arith.mulf %23, %24 : vector<64x64xf32>
    %26 = vector.broadcast %8 : vector<1x64xf32> to vector<64x64xf32>
    %27 = arith.addf %25, %26 : vector<64x64xf32>
    %cst_22 = arith.constant 0.000000e+00 : f32
    %28 = vector.broadcast %cst_22 : f32 to vector<64x64xf32>
    %29 = arith.cmpf oge, %27, %28 : vector<64x64xf32>
    %cst_23 = arith.constant 2.000000e-01 : f32
    %30 = vector.broadcast %cst_23 : f32 to vector<64x64xf32>
    %31 = arith.mulf %30, %27 : vector<64x64xf32>
    %32 = arith.select %29, %27, %31 : vector<64x64xi1>, vector<64x64xf32>
    %c1 = arith.constant 1 : index
    %c0_24 = arith.constant 0 : index
    %c0_25 = arith.constant 0 : index
    %33 = vector.load %arg1[%c1, %c0_24, %c0_25] : memref<8x64x64xbf16, #tpu.memory_space<vmem>>, vector<1x64x64xbf16>
    %34 = vector.shape_cast %33 : vector<1x64x64xbf16> to vector<64x64xbf16>
    %cst_26 = arith.constant dense<0.000000e+00> : vector<64x64xf32>
    %35 = tpu.matmul %34, %0, %cst_26 {dimension_numbers = #tpu.dot_dimension_numbers<[1], [0], [0], [1], [0, 0, 1, 1], [], []>} : vector<64x64xbf16>, vector<64x64xbf16>, vector<64x64xf32> -> vector<64x64xf32>
    %36 = arith.addf %35, %5 : vector<64x64xf32>
    %37 = vector.broadcast %1 : vector<1x64xf32> to vector<64x64xf32>
    %38 = arith.mulf %36, %37 : vector<64x64xf32>
    %39 = vector.broadcast %2 : vector<1x64xf32> to vector<64x64xf32>
    %40 = arith.addf %38, %39 : vector<64x64xf32>
    %cst_27 = arith.constant 0.000000e+00 : f32
    %41 = vector.broadcast %cst_27 : f32 to vector<64x64xf32>
    %42 = arith.cmpf oge, %40, %41 : vector<64x64xf32>
    %cst_28 = arith.constant 2.000000e-01 : f32
    %43 = vector.broadcast %cst_28 : f32 to vector<64x64xf32>
    %44 = arith.mulf %43, %40 : vector<64x64xf32>
    %45 = arith.select %42, %40, %44 : vector<64x64xi1>, vector<64x64xf32>
    %46 = arith.truncf %45 : vector<64x64xf32> to vector<64x64xbf16>
    %cst_29 = arith.constant dense<0.000000e+00> : vector<64x64xf32>
    %47 = tpu.matmul %46, %6, %cst_29 {dimension_numbers = #tpu.dot_dimension_numbers<[1], [0], [0], [1], [0, 0, 1, 1], [], []>} : vector<64x64xbf16>, vector<64x64xbf16>, vector<64x64xf32> -> vector<64x64xf32>
    %48 = vector.broadcast %7 : vector<1x64xf32> to vector<64x64xf32>
    %49 = arith.mulf %47, %48 : vector<64x64xf32>
    %50 = vector.broadcast %8 : vector<1x64xf32> to vector<64x64xf32>
    %51 = arith.addf %49, %50 : vector<64x64xf32>
    %cst_30 = arith.constant 0.000000e+00 : f32
    %52 = vector.broadcast %cst_30 : f32 to vector<64x64xf32>
    %53 = arith.cmpf oge, %51, %52 : vector<64x64xf32>
    %cst_31 = arith.constant 2.000000e-01 : f32
    %54 = vector.broadcast %cst_31 : f32 to vector<64x64xf32>
    %55 = arith.mulf %54, %51 : vector<64x64xf32>
    %56 = arith.select %53, %51, %55 : vector<64x64xi1>, vector<64x64xf32>
    %57 = arith.maximumf %32, %56 : vector<64x64xf32>
    %c2 = arith.constant 2 : index
    %c0_32 = arith.constant 0 : index
    %c0_33 = arith.constant 0 : index
    %58 = vector.load %arg1[%c2, %c0_32, %c0_33] : memref<8x64x64xbf16, #tpu.memory_space<vmem>>, vector<1x64x64xbf16>
    %59 = vector.shape_cast %58 : vector<1x64x64xbf16> to vector<64x64xbf16>
    %cst_34 = arith.constant dense<0.000000e+00> : vector<64x64xf32>
    %60 = tpu.matmul %59, %0, %cst_34 {dimension_numbers = #tpu.dot_dimension_numbers<[1], [0], [0], [1], [0, 0, 1, 1], [], []>} : vector<64x64xbf16>, vector<64x64xbf16>, vector<64x64xf32> -> vector<64x64xf32>
    %61 = arith.addf %60, %5 : vector<64x64xf32>
    %62 = vector.broadcast %1 : vector<1x64xf32> to vector<64x64xf32>
    %63 = arith.mulf %61, %62 : vector<64x64xf32>
    %64 = vector.broadcast %2 : vector<1x64xf32> to vector<64x64xf32>
    %65 = arith.addf %63, %64 : vector<64x64xf32>
    %cst_35 = arith.constant 0.000000e+00 : f32
    %66 = vector.broadcast %cst_35 : f32 to vector<64x64xf32>
    %67 = arith.cmpf oge, %65, %66 : vector<64x64xf32>
    %cst_36 = arith.constant 2.000000e-01 : f32
    %68 = vector.broadcast %cst_36 : f32 to vector<64x64xf32>
    %69 = arith.mulf %68, %65 : vector<64x64xf32>
    %70 = arith.select %67, %65, %69 : vector<64x64xi1>, vector<64x64xf32>
    %71 = arith.truncf %70 : vector<64x64xf32> to vector<64x64xbf16>
    %cst_37 = arith.constant dense<0.000000e+00> : vector<64x64xf32>
    %72 = tpu.matmul %71, %6, %cst_37 {dimension_numbers = #tpu.dot_dimension_numbers<[1], [0], [0], [1], [0, 0, 1, 1], [], []>} : vector<64x64xbf16>, vector<64x64xbf16>, vector<64x64xf32> -> vector<64x64xf32>
    %73 = vector.broadcast %7 : vector<1x64xf32> to vector<64x64xf32>
    %74 = arith.mulf %72, %73 : vector<64x64xf32>
    %75 = vector.broadcast %8 : vector<1x64xf32> to vector<64x64xf32>
    %76 = arith.addf %74, %75 : vector<64x64xf32>
    %cst_38 = arith.constant 0.000000e+00 : f32
    %77 = vector.broadcast %cst_38 : f32 to vector<64x64xf32>
    %78 = arith.cmpf oge, %76, %77 : vector<64x64xf32>
    %cst_39 = arith.constant 2.000000e-01 : f32
    %79 = vector.broadcast %cst_39 : f32 to vector<64x64xf32>
    %80 = arith.mulf %79, %76 : vector<64x64xf32>
    %81 = arith.select %78, %76, %80 : vector<64x64xi1>, vector<64x64xf32>
    %82 = arith.maximumf %57, %81 : vector<64x64xf32>
    %c3 = arith.constant 3 : index
    %c0_40 = arith.constant 0 : index
    %c0_41 = arith.constant 0 : index
    %83 = vector.load %arg1[%c3, %c0_40, %c0_41] : memref<8x64x64xbf16, #tpu.memory_space<vmem>>, vector<1x64x64xbf16>
    %84 = vector.shape_cast %83 : vector<1x64x64xbf16> to vector<64x64xbf16>
    %cst_42 = arith.constant dense<0.000000e+00> : vector<64x64xf32>
    %85 = tpu.matmul %84, %0, %cst_42 {dimension_numbers = #tpu.dot_dimension_numbers<[1], [0], [0], [1], [0, 0, 1, 1], [], []>} : vector<64x64xbf16>, vector<64x64xbf16>, vector<64x64xf32> -> vector<64x64xf32>
    %86 = arith.addf %85, %5 : vector<64x64xf32>
    %87 = vector.broadcast %1 : vector<1x64xf32> to vector<64x64xf32>
    %88 = arith.mulf %86, %87 : vector<64x64xf32>
    %89 = vector.broadcast %2 : vector<1x64xf32> to vector<64x64xf32>
    %90 = arith.addf %88, %89 : vector<64x64xf32>
    %cst_43 = arith.constant 0.000000e+00 : f32
    %91 = vector.broadcast %cst_43 : f32 to vector<64x64xf32>
    %92 = arith.cmpf oge, %90, %91 : vector<64x64xf32>
    %cst_44 = arith.constant 2.000000e-01 : f32
    %93 = vector.broadcast %cst_44 : f32 to vector<64x64xf32>
    %94 = arith.mulf %93, %90 : vector<64x64xf32>
    %95 = arith.select %92, %90, %94 : vector<64x64xi1>, vector<64x64xf32>
    %96 = arith.truncf %95 : vector<64x64xf32> to vector<64x64xbf16>
    %cst_45 = arith.constant dense<0.000000e+00> : vector<64x64xf32>
    %97 = tpu.matmul %96, %6, %cst_45 {dimension_numbers = #tpu.dot_dimension_numbers<[1], [0], [0], [1], [0, 0, 1, 1], [], []>} : vector<64x64xbf16>, vector<64x64xbf16>, vector<64x64xf32> -> vector<64x64xf32>
    %98 = vector.broadcast %7 : vector<1x64xf32> to vector<64x64xf32>
    %99 = arith.mulf %97, %98 : vector<64x64xf32>
    %100 = vector.broadcast %8 : vector<1x64xf32> to vector<64x64xf32>
    %101 = arith.addf %99, %100 : vector<64x64xf32>
    %cst_46 = arith.constant 0.000000e+00 : f32
    %102 = vector.broadcast %cst_46 : f32 to vector<64x64xf32>
    %103 = arith.cmpf oge, %101, %102 : vector<64x64xf32>
    %cst_47 = arith.constant 2.000000e-01 : f32
    %104 = vector.broadcast %cst_47 : f32 to vector<64x64xf32>
    %105 = arith.mulf %104, %101 : vector<64x64xf32>
    %106 = arith.select %103, %101, %105 : vector<64x64xi1>, vector<64x64xf32>
    %107 = arith.maximumf %82, %106 : vector<64x64xf32>
    %c4 = arith.constant 4 : index
    %c0_48 = arith.constant 0 : index
    %c0_49 = arith.constant 0 : index
    %108 = vector.load %arg1[%c4, %c0_48, %c0_49] : memref<8x64x64xbf16, #tpu.memory_space<vmem>>, vector<1x64x64xbf16>
    %109 = vector.shape_cast %108 : vector<1x64x64xbf16> to vector<64x64xbf16>
    %cst_50 = arith.constant dense<0.000000e+00> : vector<64x64xf32>
    %110 = tpu.matmul %109, %0, %cst_50 {dimension_numbers = #tpu.dot_dimension_numbers<[1], [0], [0], [1], [0, 0, 1, 1], [], []>} : vector<64x64xbf16>, vector<64x64xbf16>, vector<64x64xf32> -> vector<64x64xf32>
    %111 = arith.addf %110, %5 : vector<64x64xf32>
    %112 = vector.broadcast %1 : vector<1x64xf32> to vector<64x64xf32>
    %113 = arith.mulf %111, %112 : vector<64x64xf32>
    %114 = vector.broadcast %2 : vector<1x64xf32> to vector<64x64xf32>
    %115 = arith.addf %113, %114 : vector<64x64xf32>
    %cst_51 = arith.constant 0.000000e+00 : f32
    %116 = vector.broadcast %cst_51 : f32 to vector<64x64xf32>
    %117 = arith.cmpf oge, %115, %116 : vector<64x64xf32>
    %cst_52 = arith.constant 2.000000e-01 : f32
    %118 = vector.broadcast %cst_52 : f32 to vector<64x64xf32>
    %119 = arith.mulf %118, %115 : vector<64x64xf32>
    %120 = arith.select %117, %115, %119 : vector<64x64xi1>, vector<64x64xf32>
    %121 = arith.truncf %120 : vector<64x64xf32> to vector<64x64xbf16>
    %cst_53 = arith.constant dense<0.000000e+00> : vector<64x64xf32>
    %122 = tpu.matmul %121, %6, %cst_53 {dimension_numbers = #tpu.dot_dimension_numbers<[1], [0], [0], [1], [0, 0, 1, 1], [], []>} : vector<64x64xbf16>, vector<64x64xbf16>, vector<64x64xf32> -> vector<64x64xf32>
    %123 = vector.broadcast %7 : vector<1x64xf32> to vector<64x64xf32>
    %124 = arith.mulf %122, %123 : vector<64x64xf32>
    %125 = vector.broadcast %8 : vector<1x64xf32> to vector<64x64xf32>
    %126 = arith.addf %124, %125 : vector<64x64xf32>
    %cst_54 = arith.constant 0.000000e+00 : f32
    %127 = vector.broadcast %cst_54 : f32 to vector<64x64xf32>
    %128 = arith.cmpf oge, %126, %127 : vector<64x64xf32>
    %cst_55 = arith.constant 2.000000e-01 : f32
    %129 = vector.broadcast %cst_55 : f32 to vector<64x64xf32>
    %130 = arith.mulf %129, %126 : vector<64x64xf32>
    %131 = arith.select %128, %126, %130 : vector<64x64xi1>, vector<64x64xf32>
    %132 = arith.maximumf %107, %131 : vector<64x64xf32>
    %c5 = arith.constant 5 : index
    %c0_56 = arith.constant 0 : index
    %c0_57 = arith.constant 0 : index
    %133 = vector.load %arg1[%c5, %c0_56, %c0_57] : memref<8x64x64xbf16, #tpu.memory_space<vmem>>, vector<1x64x64xbf16>
    %134 = vector.shape_cast %133 : vector<1x64x64xbf16> to vector<64x64xbf16>
    %cst_58 = arith.constant dense<0.000000e+00> : vector<64x64xf32>
    %135 = tpu.matmul %134, %0, %cst_58 {dimension_numbers = #tpu.dot_dimension_numbers<[1], [0], [0], [1], [0, 0, 1, 1], [], []>} : vector<64x64xbf16>, vector<64x64xbf16>, vector<64x64xf32> -> vector<64x64xf32>
    %136 = arith.addf %135, %5 : vector<64x64xf32>
    %137 = vector.broadcast %1 : vector<1x64xf32> to vector<64x64xf32>
    %138 = arith.mulf %136, %137 : vector<64x64xf32>
    %139 = vector.broadcast %2 : vector<1x64xf32> to vector<64x64xf32>
    %140 = arith.addf %138, %139 : vector<64x64xf32>
    %cst_59 = arith.constant 0.000000e+00 : f32
    %141 = vector.broadcast %cst_59 : f32 to vector<64x64xf32>
    %142 = arith.cmpf oge, %140, %141 : vector<64x64xf32>
    %cst_60 = arith.constant 2.000000e-01 : f32
    %143 = vector.broadcast %cst_60 : f32 to vector<64x64xf32>
    %144 = arith.mulf %143, %140 : vector<64x64xf32>
    %145 = arith.select %142, %140, %144 : vector<64x64xi1>, vector<64x64xf32>
    %146 = arith.truncf %145 : vector<64x64xf32> to vector<64x64xbf16>
    %cst_61 = arith.constant dense<0.000000e+00> : vector<64x64xf32>
    %147 = tpu.matmul %146, %6, %cst_61 {dimension_numbers = #tpu.dot_dimension_numbers<[1], [0], [0], [1], [0, 0, 1, 1], [], []>} : vector<64x64xbf16>, vector<64x64xbf16>, vector<64x64xf32> -> vector<64x64xf32>
    %148 = vector.broadcast %7 : vector<1x64xf32> to vector<64x64xf32>
    %149 = arith.mulf %147, %148 : vector<64x64xf32>
    %150 = vector.broadcast %8 : vector<1x64xf32> to vector<64x64xf32>
    %151 = arith.addf %149, %150 : vector<64x64xf32>
    %cst_62 = arith.constant 0.000000e+00 : f32
    %152 = vector.broadcast %cst_62 : f32 to vector<64x64xf32>
    %153 = arith.cmpf oge, %151, %152 : vector<64x64xf32>
    %cst_63 = arith.constant 2.000000e-01 : f32
    %154 = vector.broadcast %cst_63 : f32 to vector<64x64xf32>
    %155 = arith.mulf %154, %151 : vector<64x64xf32>
    %156 = arith.select %153, %151, %155 : vector<64x64xi1>, vector<64x64xf32>
    %157 = arith.maximumf %132, %156 : vector<64x64xf32>
    %c6 = arith.constant 6 : index
    %c0_64 = arith.constant 0 : index
    %c0_65 = arith.constant 0 : index
    %158 = vector.load %arg1[%c6, %c0_64, %c0_65] : memref<8x64x64xbf16, #tpu.memory_space<vmem>>, vector<1x64x64xbf16>
    %159 = vector.shape_cast %158 : vector<1x64x64xbf16> to vector<64x64xbf16>
    %cst_66 = arith.constant dense<0.000000e+00> : vector<64x64xf32>
    %160 = tpu.matmul %159, %0, %cst_66 {dimension_numbers = #tpu.dot_dimension_numbers<[1], [0], [0], [1], [0, 0, 1, 1], [], []>} : vector<64x64xbf16>, vector<64x64xbf16>, vector<64x64xf32> -> vector<64x64xf32>
    %161 = arith.addf %160, %5 : vector<64x64xf32>
    %162 = vector.broadcast %1 : vector<1x64xf32> to vector<64x64xf32>
    %163 = arith.mulf %161, %162 : vector<64x64xf32>
    %164 = vector.broadcast %2 : vector<1x64xf32> to vector<64x64xf32>
    %165 = arith.addf %163, %164 : vector<64x64xf32>
    %cst_67 = arith.constant 0.000000e+00 : f32
    %166 = vector.broadcast %cst_67 : f32 to vector<64x64xf32>
    %167 = arith.cmpf oge, %165, %166 : vector<64x64xf32>
    %cst_68 = arith.constant 2.000000e-01 : f32
    %168 = vector.broadcast %cst_68 : f32 to vector<64x64xf32>
    %169 = arith.mulf %168, %165 : vector<64x64xf32>
    %170 = arith.select %167, %165, %169 : vector<64x64xi1>, vector<64x64xf32>
    %171 = arith.truncf %170 : vector<64x64xf32> to vector<64x64xbf16>
    %cst_69 = arith.constant dense<0.000000e+00> : vector<64x64xf32>
    %172 = tpu.matmul %171, %6, %cst_69 {dimension_numbers = #tpu.dot_dimension_numbers<[1], [0], [0], [1], [0, 0, 1, 1], [], []>} : vector<64x64xbf16>, vector<64x64xbf16>, vector<64x64xf32> -> vector<64x64xf32>
    %173 = vector.broadcast %7 : vector<1x64xf32> to vector<64x64xf32>
    %174 = arith.mulf %172, %173 : vector<64x64xf32>
    %175 = vector.broadcast %8 : vector<1x64xf32> to vector<64x64xf32>
    %176 = arith.addf %174, %175 : vector<64x64xf32>
    %cst_70 = arith.constant 0.000000e+00 : f32
    %177 = vector.broadcast %cst_70 : f32 to vector<64x64xf32>
    %178 = arith.cmpf oge, %176, %177 : vector<64x64xf32>
    %cst_71 = arith.constant 2.000000e-01 : f32
    %179 = vector.broadcast %cst_71 : f32 to vector<64x64xf32>
    %180 = arith.mulf %179, %176 : vector<64x64xf32>
    %181 = arith.select %178, %176, %180 : vector<64x64xi1>, vector<64x64xf32>
    %182 = arith.maximumf %157, %181 : vector<64x64xf32>
    %c7 = arith.constant 7 : index
    %c0_72 = arith.constant 0 : index
    %c0_73 = arith.constant 0 : index
    %183 = vector.load %arg1[%c7, %c0_72, %c0_73] : memref<8x64x64xbf16, #tpu.memory_space<vmem>>, vector<1x64x64xbf16>
    %184 = vector.shape_cast %183 : vector<1x64x64xbf16> to vector<64x64xbf16>
    %cst_74 = arith.constant dense<0.000000e+00> : vector<64x64xf32>
    %185 = tpu.matmul %184, %0, %cst_74 {dimension_numbers = #tpu.dot_dimension_numbers<[1], [0], [0], [1], [0, 0, 1, 1], [], []>} : vector<64x64xbf16>, vector<64x64xbf16>, vector<64x64xf32> -> vector<64x64xf32>
    %186 = arith.addf %185, %5 : vector<64x64xf32>
    %187 = vector.broadcast %1 : vector<1x64xf32> to vector<64x64xf32>
    %188 = arith.mulf %186, %187 : vector<64x64xf32>
    %189 = vector.broadcast %2 : vector<1x64xf32> to vector<64x64xf32>
    %190 = arith.addf %188, %189 : vector<64x64xf32>
    %cst_75 = arith.constant 0.000000e+00 : f32
    %191 = vector.broadcast %cst_75 : f32 to vector<64x64xf32>
    %192 = arith.cmpf oge, %190, %191 : vector<64x64xf32>
    %cst_76 = arith.constant 2.000000e-01 : f32
    %193 = vector.broadcast %cst_76 : f32 to vector<64x64xf32>
    %194 = arith.mulf %193, %190 : vector<64x64xf32>
    %195 = arith.select %192, %190, %194 : vector<64x64xi1>, vector<64x64xf32>
    %196 = arith.truncf %195 : vector<64x64xf32> to vector<64x64xbf16>
    %cst_77 = arith.constant dense<0.000000e+00> : vector<64x64xf32>
    %197 = tpu.matmul %196, %6, %cst_77 {dimension_numbers = #tpu.dot_dimension_numbers<[1], [0], [0], [1], [0, 0, 1, 1], [], []>} : vector<64x64xbf16>, vector<64x64xbf16>, vector<64x64xf32> -> vector<64x64xf32>
    %198 = vector.broadcast %7 : vector<1x64xf32> to vector<64x64xf32>
    %199 = arith.mulf %197, %198 : vector<64x64xf32>
    %200 = vector.broadcast %8 : vector<1x64xf32> to vector<64x64xf32>
    %201 = arith.addf %199, %200 : vector<64x64xf32>
    %cst_78 = arith.constant 0.000000e+00 : f32
    %202 = vector.broadcast %cst_78 : f32 to vector<64x64xf32>
    %203 = arith.cmpf oge, %201, %202 : vector<64x64xf32>
    %cst_79 = arith.constant 2.000000e-01 : f32
    %204 = vector.broadcast %cst_79 : f32 to vector<64x64xf32>
    %205 = arith.mulf %204, %201 : vector<64x64xf32>
    %206 = arith.select %203, %201, %205 : vector<64x64xi1>, vector<64x64xf32>
    %207 = arith.maximumf %182, %206 : vector<64x64xf32>
    %c0_80 = arith.constant 0 : index
    %c0_81 = arith.constant 0 : index
    %208 = vector.load %arg10[%c0_80, %c0_81] : memref<64x64xf32, #tpu.memory_space<vmem>>, vector<64x64xf32>
    tpu.vector_store %arg10[%c0_80, %c0_81], %207 {strides = array<i32>} : memref<64x64xf32, #tpu.memory_space<vmem>>, vector<64x64xf32>,
    return
  }
  func.func @transform_0(%arg0: i32) -> (i32, i32, i32) {
    %c0_i32 = arith.constant 0 : i32
    %c0_i32_0 = arith.constant 0 : i32
    %c0_i32_1 = arith.constant 0 : i32
    return %c0_i32, %arg0, %c0_i32_0 : i32, i32, i32
  }
  func.func @transform_1(%arg0: i32) -> (i32, i32) {
    %c0_i32 = arith.constant 0 : i32
    %c0_i32_0 = arith.constant 0 : i32
    return %arg0, %c0_i32 : i32, i32
  }
  func.func @transform_2(%arg0: i32) -> (i32, i32) {
    %c0_i32 = arith.constant 0 : i32
    %c0_i32_0 = arith.constant 0 : i32
    %c0_i32_1 = arith.constant 0 : i32
    return %c0_i32, %c0_i32_0 : i32, i32
  }
  func.func @transform_3(%arg0: i32) -> (i32, i32) {
    %c0_i32 = arith.constant 0 : i32
    %c0_i32_0 = arith.constant 0 : i32
    %c0_i32_1 = arith.constant 0 : i32
    return %c0_i32, %c0_i32_0 : i32, i32
  }
  func.func @transform_4(%arg0: i32) -> (i32, i32) {
    %c0_i32 = arith.constant 0 : i32
    %c0_i32_0 = arith.constant 0 : i32
    %c0_i32_1 = arith.constant 0 : i32
    return %c0_i32, %c0_i32_0 : i32, i32
  }
  func.func @transform_5(%arg0: i32) -> (i32, i32) {
    %c0_i32 = arith.constant 0 : i32
    %c0_i32_0 = arith.constant 0 : i32
    %c0_i32_1 = arith.constant 0 : i32
    return %c0_i32, %c0_i32_0 : i32, i32
  }
  func.func @transform_6(%arg0: i32) -> (i32, i32) {
    %c0_i32 = arith.constant 0 : i32
    %c0_i32_0 = arith.constant 0 : i32
    %c0_i32_1 = arith.constant 0 : i32
    return %c0_i32, %c0_i32_0 : i32, i32
  }
  func.func @transform_7(%arg0: i32) -> (i32, i32) {
    %c0_i32 = arith.constant 0 : i32
    %c0_i32_0 = arith.constant 0 : i32
    %c0_i32_1 = arith.constant 0 : i32
    return %c0_i32, %c0_i32_0 : i32, i32
  }
  func.func @transform_8(%arg0: i32) -> (i32, i32) {
    %c0_i32 = arith.constant 0 : i32
    %c0_i32_0 = arith.constant 0 : i32
    %c0_i32_1 = arith.constant 0 : i32
    return %c0_i32, %c0_i32_0 : i32, i32
  }
  func.func @transform_9(%arg0: i32) -> (i32, i32) {
    %c0_i32 = arith.constant 0 : i32
    %c0_i32_0 = arith.constant 0 : i32
    return %arg0, %c0_i32 : i32, i32
  }
}

module attributes {stable_mosaic.version = 11 : i64} {
  func.func @_edge_conv_max_kernel(%arg0: i32, %arg1: memref<8x64x64xbf16, #tpu.memory_space<vmem>>, %arg2: memref<64x64xbf16, #tpu.memory_space<vmem>>, %arg3: memref<64x64xbf16, #tpu.memory_space<vmem>>, %arg4: memref<64x64xbf16, #tpu.memory_space<vmem>>, %arg5: memref<1x64xf32, #tpu.memory_space<vmem>>, %arg6: memref<1x64xf32, #tpu.memory_space<vmem>>, %arg7: memref<64x64xf32, #tpu.memory_space<vmem>>) attributes {dimension_semantics = [#tpu.dimension_semantics<parallel>], iteration_bounds = array<i64: 1>, scalar_prefetch = 0 : i64, scratch_operands = 0 : i64, tpu.core_type = #tpu.core_type<tc>, window_params = [{transform_indices = @transform_0, window_bounds = array<i64: 8, 64, 64>}, {transform_indices = @transform_1, window_bounds = array<i64: 64, 64>}, {pipeline_mode = #tpu.pipeline_mode<synchronous>, transform_indices = @transform_2, window_bounds = array<i64: 64, 64>}, {pipeline_mode = #tpu.pipeline_mode<synchronous>, transform_indices = @transform_3, window_bounds = array<i64: 64, 64>}, {pipeline_mode = #tpu.pipeline_mode<synchronous>, transform_indices = @transform_4, window_bounds = array<i64: 1, 64>}, {pipeline_mode = #tpu.pipeline_mode<synchronous>, transform_indices = @transform_5, window_bounds = array<i64: 1, 64>}, {transform_indices = @transform_6, window_bounds = array<i64: 64, 64>}]} {
    %c0 = arith.constant 0 : index
    %c0_0 = arith.constant 0 : index
    %0 = vector.load %arg3[%c0, %c0_0] : memref<64x64xbf16, #tpu.memory_space<vmem>>, vector<64x64xbf16>
    %c0_1 = arith.constant 0 : index
    %c0_2 = arith.constant 0 : index
    %1 = vector.load %arg5[%c0_1, %c0_2] : memref<1x64xf32, #tpu.memory_space<vmem>>, vector<1x64xf32>
    %c0_3 = arith.constant 0 : index
    %c0_4 = arith.constant 0 : index
    %2 = vector.load %arg6[%c0_3, %c0_4] : memref<1x64xf32, #tpu.memory_space<vmem>>, vector<1x64xf32>
    %c0_5 = arith.constant 0 : index
    %c0_6 = arith.constant 0 : index
    %3 = vector.load %arg2[%c0_5, %c0_6] : memref<64x64xbf16, #tpu.memory_space<vmem>>, vector<64x64xbf16>
    %c0_7 = arith.constant 0 : index
    %c0_8 = arith.constant 0 : index
    %4 = vector.load %arg4[%c0_7, %c0_8] : memref<64x64xbf16, #tpu.memory_space<vmem>>, vector<64x64xbf16>
    %cst = arith.constant dense<0.000000e+00> : vector<64x64xf32>
    %5 = tpu.matmul %3, %4, %cst {dimension_numbers = #tpu.dot_dimension_numbers<[1], [0], [0], [1], [0, 0, 1, 1], [], []>} : vector<64x64xbf16>, vector<64x64xbf16>, vector<64x64xf32> -> vector<64x64xf32>
    %c0_9 = arith.constant 0 : index
    %c0_10 = arith.constant 0 : index
    %c0_11 = arith.constant 0 : index
    %6 = vector.load %arg1[%c0_9, %c0_10, %c0_11] : memref<8x64x64xbf16, #tpu.memory_space<vmem>>, vector<1x64x64xbf16>
    %7 = vector.shape_cast %6 : vector<1x64x64xbf16> to vector<64x64xbf16>
    %cst_12 = arith.constant dense<0.000000e+00> : vector<64x64xf32>
    %8 = tpu.matmul %7, %0, %cst_12 {dimension_numbers = #tpu.dot_dimension_numbers<[1], [0], [0], [1], [0, 0, 1, 1], [], []>} : vector<64x64xbf16>, vector<64x64xbf16>, vector<64x64xf32> -> vector<64x64xf32>
    %9 = arith.addf %8, %5 : vector<64x64xf32>
    %10 = vector.broadcast %1 : vector<1x64xf32> to vector<64x64xf32>
    %11 = arith.mulf %9, %10 : vector<64x64xf32>
    %12 = vector.broadcast %2 : vector<1x64xf32> to vector<64x64xf32>
    %13 = arith.addf %11, %12 : vector<64x64xf32>
    %cst_13 = arith.constant 0.000000e+00 : f32
    %14 = vector.broadcast %cst_13 : f32 to vector<64x64xf32>
    %15 = arith.cmpf oge, %13, %14 : vector<64x64xf32>
    %cst_14 = arith.constant 2.000000e-01 : f32
    %16 = vector.broadcast %cst_14 : f32 to vector<64x64xf32>
    %17 = arith.mulf %16, %13 : vector<64x64xf32>
    %18 = arith.select %15, %13, %17 : vector<64x64xi1>, vector<64x64xf32>
    %c1 = arith.constant 1 : index
    %c0_15 = arith.constant 0 : index
    %c0_16 = arith.constant 0 : index
    %19 = vector.load %arg1[%c1, %c0_15, %c0_16] : memref<8x64x64xbf16, #tpu.memory_space<vmem>>, vector<1x64x64xbf16>
    %20 = vector.shape_cast %19 : vector<1x64x64xbf16> to vector<64x64xbf16>
    %cst_17 = arith.constant dense<0.000000e+00> : vector<64x64xf32>
    %21 = tpu.matmul %20, %0, %cst_17 {dimension_numbers = #tpu.dot_dimension_numbers<[1], [0], [0], [1], [0, 0, 1, 1], [], []>} : vector<64x64xbf16>, vector<64x64xbf16>, vector<64x64xf32> -> vector<64x64xf32>
    %22 = arith.addf %21, %5 : vector<64x64xf32>
    %23 = vector.broadcast %1 : vector<1x64xf32> to vector<64x64xf32>
    %24 = arith.mulf %22, %23 : vector<64x64xf32>
    %25 = vector.broadcast %2 : vector<1x64xf32> to vector<64x64xf32>
    %26 = arith.addf %24, %25 : vector<64x64xf32>
    %cst_18 = arith.constant 0.000000e+00 : f32
    %27 = vector.broadcast %cst_18 : f32 to vector<64x64xf32>
    %28 = arith.cmpf oge, %26, %27 : vector<64x64xf32>
    %cst_19 = arith.constant 2.000000e-01 : f32
    %29 = vector.broadcast %cst_19 : f32 to vector<64x64xf32>
    %30 = arith.mulf %29, %26 : vector<64x64xf32>
    %31 = arith.select %28, %26, %30 : vector<64x64xi1>, vector<64x64xf32>
    %32 = arith.maximumf %18, %31 : vector<64x64xf32>
    %c2 = arith.constant 2 : index
    %c0_20 = arith.constant 0 : index
    %c0_21 = arith.constant 0 : index
    %33 = vector.load %arg1[%c2, %c0_20, %c0_21] : memref<8x64x64xbf16, #tpu.memory_space<vmem>>, vector<1x64x64xbf16>
    %34 = vector.shape_cast %33 : vector<1x64x64xbf16> to vector<64x64xbf16>
    %cst_22 = arith.constant dense<0.000000e+00> : vector<64x64xf32>
    %35 = tpu.matmul %34, %0, %cst_22 {dimension_numbers = #tpu.dot_dimension_numbers<[1], [0], [0], [1], [0, 0, 1, 1], [], []>} : vector<64x64xbf16>, vector<64x64xbf16>, vector<64x64xf32> -> vector<64x64xf32>
    %36 = arith.addf %35, %5 : vector<64x64xf32>
    %37 = vector.broadcast %1 : vector<1x64xf32> to vector<64x64xf32>
    %38 = arith.mulf %36, %37 : vector<64x64xf32>
    %39 = vector.broadcast %2 : vector<1x64xf32> to vector<64x64xf32>
    %40 = arith.addf %38, %39 : vector<64x64xf32>
    %cst_23 = arith.constant 0.000000e+00 : f32
    %41 = vector.broadcast %cst_23 : f32 to vector<64x64xf32>
    %42 = arith.cmpf oge, %40, %41 : vector<64x64xf32>
    %cst_24 = arith.constant 2.000000e-01 : f32
    %43 = vector.broadcast %cst_24 : f32 to vector<64x64xf32>
    %44 = arith.mulf %43, %40 : vector<64x64xf32>
    %45 = arith.select %42, %40, %44 : vector<64x64xi1>, vector<64x64xf32>
    %46 = arith.maximumf %32, %45 : vector<64x64xf32>
    %c3 = arith.constant 3 : index
    %c0_25 = arith.constant 0 : index
    %c0_26 = arith.constant 0 : index
    %47 = vector.load %arg1[%c3, %c0_25, %c0_26] : memref<8x64x64xbf16, #tpu.memory_space<vmem>>, vector<1x64x64xbf16>
    %48 = vector.shape_cast %47 : vector<1x64x64xbf16> to vector<64x64xbf16>
    %cst_27 = arith.constant dense<0.000000e+00> : vector<64x64xf32>
    %49 = tpu.matmul %48, %0, %cst_27 {dimension_numbers = #tpu.dot_dimension_numbers<[1], [0], [0], [1], [0, 0, 1, 1], [], []>} : vector<64x64xbf16>, vector<64x64xbf16>, vector<64x64xf32> -> vector<64x64xf32>
    %50 = arith.addf %49, %5 : vector<64x64xf32>
    %51 = vector.broadcast %1 : vector<1x64xf32> to vector<64x64xf32>
    %52 = arith.mulf %50, %51 : vector<64x64xf32>
    %53 = vector.broadcast %2 : vector<1x64xf32> to vector<64x64xf32>
    %54 = arith.addf %52, %53 : vector<64x64xf32>
    %cst_28 = arith.constant 0.000000e+00 : f32
    %55 = vector.broadcast %cst_28 : f32 to vector<64x64xf32>
    %56 = arith.cmpf oge, %54, %55 : vector<64x64xf32>
    %cst_29 = arith.constant 2.000000e-01 : f32
    %57 = vector.broadcast %cst_29 : f32 to vector<64x64xf32>
    %58 = arith.mulf %57, %54 : vector<64x64xf32>
    %59 = arith.select %56, %54, %58 : vector<64x64xi1>, vector<64x64xf32>
    %60 = arith.maximumf %46, %59 : vector<64x64xf32>
    %c4 = arith.constant 4 : index
    %c0_30 = arith.constant 0 : index
    %c0_31 = arith.constant 0 : index
    %61 = vector.load %arg1[%c4, %c0_30, %c0_31] : memref<8x64x64xbf16, #tpu.memory_space<vmem>>, vector<1x64x64xbf16>
    %62 = vector.shape_cast %61 : vector<1x64x64xbf16> to vector<64x64xbf16>
    %cst_32 = arith.constant dense<0.000000e+00> : vector<64x64xf32>
    %63 = tpu.matmul %62, %0, %cst_32 {dimension_numbers = #tpu.dot_dimension_numbers<[1], [0], [0], [1], [0, 0, 1, 1], [], []>} : vector<64x64xbf16>, vector<64x64xbf16>, vector<64x64xf32> -> vector<64x64xf32>
    %64 = arith.addf %63, %5 : vector<64x64xf32>
    %65 = vector.broadcast %1 : vector<1x64xf32> to vector<64x64xf32>
    %66 = arith.mulf %64, %65 : vector<64x64xf32>
    %67 = vector.broadcast %2 : vector<1x64xf32> to vector<64x64xf32>
    %68 = arith.addf %66, %67 : vector<64x64xf32>
    %cst_33 = arith.constant 0.000000e+00 : f32
    %69 = vector.broadcast %cst_33 : f32 to vector<64x64xf32>
    %70 = arith.cmpf oge, %68, %69 : vector<64x64xf32>
    %cst_34 = arith.constant 2.000000e-01 : f32
    %71 = vector.broadcast %cst_34 : f32 to vector<64x64xf32>
    %72 = arith.mulf %71, %68 : vector<64x64xf32>
    %73 = arith.select %70, %68, %72 : vector<64x64xi1>, vector<64x64xf32>
    %74 = arith.maximumf %60, %73 : vector<64x64xf32>
    %c5 = arith.constant 5 : index
    %c0_35 = arith.constant 0 : index
    %c0_36 = arith.constant 0 : index
    %75 = vector.load %arg1[%c5, %c0_35, %c0_36] : memref<8x64x64xbf16, #tpu.memory_space<vmem>>, vector<1x64x64xbf16>
    %76 = vector.shape_cast %75 : vector<1x64x64xbf16> to vector<64x64xbf16>
    %cst_37 = arith.constant dense<0.000000e+00> : vector<64x64xf32>
    %77 = tpu.matmul %76, %0, %cst_37 {dimension_numbers = #tpu.dot_dimension_numbers<[1], [0], [0], [1], [0, 0, 1, 1], [], []>} : vector<64x64xbf16>, vector<64x64xbf16>, vector<64x64xf32> -> vector<64x64xf32>
    %78 = arith.addf %77, %5 : vector<64x64xf32>
    %79 = vector.broadcast %1 : vector<1x64xf32> to vector<64x64xf32>
    %80 = arith.mulf %78, %79 : vector<64x64xf32>
    %81 = vector.broadcast %2 : vector<1x64xf32> to vector<64x64xf32>
    %82 = arith.addf %80, %81 : vector<64x64xf32>
    %cst_38 = arith.constant 0.000000e+00 : f32
    %83 = vector.broadcast %cst_38 : f32 to vector<64x64xf32>
    %84 = arith.cmpf oge, %82, %83 : vector<64x64xf32>
    %cst_39 = arith.constant 2.000000e-01 : f32
    %85 = vector.broadcast %cst_39 : f32 to vector<64x64xf32>
    %86 = arith.mulf %85, %82 : vector<64x64xf32>
    %87 = arith.select %84, %82, %86 : vector<64x64xi1>, vector<64x64xf32>
    %88 = arith.maximumf %74, %87 : vector<64x64xf32>
    %c6 = arith.constant 6 : index
    %c0_40 = arith.constant 0 : index
    %c0_41 = arith.constant 0 : index
    %89 = vector.load %arg1[%c6, %c0_40, %c0_41] : memref<8x64x64xbf16, #tpu.memory_space<vmem>>, vector<1x64x64xbf16>
    %90 = vector.shape_cast %89 : vector<1x64x64xbf16> to vector<64x64xbf16>
    %cst_42 = arith.constant dense<0.000000e+00> : vector<64x64xf32>
    %91 = tpu.matmul %90, %0, %cst_42 {dimension_numbers = #tpu.dot_dimension_numbers<[1], [0], [0], [1], [0, 0, 1, 1], [], []>} : vector<64x64xbf16>, vector<64x64xbf16>, vector<64x64xf32> -> vector<64x64xf32>
    %92 = arith.addf %91, %5 : vector<64x64xf32>
    %93 = vector.broadcast %1 : vector<1x64xf32> to vector<64x64xf32>
    %94 = arith.mulf %92, %93 : vector<64x64xf32>
    %95 = vector.broadcast %2 : vector<1x64xf32> to vector<64x64xf32>
    %96 = arith.addf %94, %95 : vector<64x64xf32>
    %cst_43 = arith.constant 0.000000e+00 : f32
    %97 = vector.broadcast %cst_43 : f32 to vector<64x64xf32>
    %98 = arith.cmpf oge, %96, %97 : vector<64x64xf32>
    %cst_44 = arith.constant 2.000000e-01 : f32
    %99 = vector.broadcast %cst_44 : f32 to vector<64x64xf32>
    %100 = arith.mulf %99, %96 : vector<64x64xf32>
    %101 = arith.select %98, %96, %100 : vector<64x64xi1>, vector<64x64xf32>
    %102 = arith.maximumf %88, %101 : vector<64x64xf32>
    %c7 = arith.constant 7 : index
    %c0_45 = arith.constant 0 : index
    %c0_46 = arith.constant 0 : index
    %103 = vector.load %arg1[%c7, %c0_45, %c0_46] : memref<8x64x64xbf16, #tpu.memory_space<vmem>>, vector<1x64x64xbf16>
    %104 = vector.shape_cast %103 : vector<1x64x64xbf16> to vector<64x64xbf16>
    %cst_47 = arith.constant dense<0.000000e+00> : vector<64x64xf32>
    %105 = tpu.matmul %104, %0, %cst_47 {dimension_numbers = #tpu.dot_dimension_numbers<[1], [0], [0], [1], [0, 0, 1, 1], [], []>} : vector<64x64xbf16>, vector<64x64xbf16>, vector<64x64xf32> -> vector<64x64xf32>
    %106 = arith.addf %105, %5 : vector<64x64xf32>
    %107 = vector.broadcast %1 : vector<1x64xf32> to vector<64x64xf32>
    %108 = arith.mulf %106, %107 : vector<64x64xf32>
    %109 = vector.broadcast %2 : vector<1x64xf32> to vector<64x64xf32>
    %110 = arith.addf %108, %109 : vector<64x64xf32>
    %cst_48 = arith.constant 0.000000e+00 : f32
    %111 = vector.broadcast %cst_48 : f32 to vector<64x64xf32>
    %112 = arith.cmpf oge, %110, %111 : vector<64x64xf32>
    %cst_49 = arith.constant 2.000000e-01 : f32
    %113 = vector.broadcast %cst_49 : f32 to vector<64x64xf32>
    %114 = arith.mulf %113, %110 : vector<64x64xf32>
    %115 = arith.select %112, %110, %114 : vector<64x64xi1>, vector<64x64xf32>
    %116 = arith.maximumf %102, %115 : vector<64x64xf32>
    %c0_50 = arith.constant 0 : index
    %c0_51 = arith.constant 0 : index
    %117 = vector.load %arg7[%c0_50, %c0_51] : memref<64x64xf32, #tpu.memory_space<vmem>>, vector<64x64xf32>
    tpu.vector_store %arg7[%c0_50, %c0_51], %116 {strides = array<i32>} : memref<64x64xf32, #tpu.memory_space<vmem>>, vector<64x64xf32>,
    return
  }
  func.func @transform_0(%arg0: i32) -> (i32, i32, i32) {
    %c0_i32 = arith.constant 0 : i32
    %c0_i32_0 = arith.constant 0 : i32
    %c0_i32_1 = arith.constant 0 : i32
    return %c0_i32, %arg0, %c0_i32_0 : i32, i32, i32
  }
  func.func @transform_1(%arg0: i32) -> (i32, i32) {
    %c0_i32 = arith.constant 0 : i32
    %c0_i32_0 = arith.constant 0 : i32
    return %arg0, %c0_i32 : i32, i32
  }
  func.func @transform_2(%arg0: i32) -> (i32, i32) {
    %c0_i32 = arith.constant 0 : i32
    %c0_i32_0 = arith.constant 0 : i32
    %c0_i32_1 = arith.constant 0 : i32
    return %c0_i32, %c0_i32_0 : i32, i32
  }
  func.func @transform_3(%arg0: i32) -> (i32, i32) {
    %c0_i32 = arith.constant 0 : i32
    %c0_i32_0 = arith.constant 0 : i32
    %c0_i32_1 = arith.constant 0 : i32
    return %c0_i32, %c0_i32_0 : i32, i32
  }
  func.func @transform_4(%arg0: i32) -> (i32, i32) {
    %c0_i32 = arith.constant 0 : i32
    %c0_i32_0 = arith.constant 0 : i32
    %c0_i32_1 = arith.constant 0 : i32
    return %c0_i32, %c0_i32_0 : i32, i32
  }
  func.func @transform_5(%arg0: i32) -> (i32, i32) {
    %c0_i32 = arith.constant 0 : i32
    %c0_i32_0 = arith.constant 0 : i32
    %c0_i32_1 = arith.constant 0 : i32
    return %c0_i32, %c0_i32_0 : i32, i32
  }
  func.func @transform_6(%arg0: i32) -> (i32, i32) {
    %c0_i32 = arith.constant 0 : i32
    %c0_i32_0 = arith.constant 0 : i32
    return %arg0, %c0_i32 : i32, i32
  }
}

module attributes {stable_mosaic.version = 11 : i64} {
  func.func @_conv_global_max_kernel(%arg0: i32, %arg1: i32, %arg2: memref<1x32x192xbf16, #tpu.memory_space<vmem>>, %arg3: memref<192x64xbf16, #tpu.memory_space<vmem>>, %arg4: memref<1x64xf32, #tpu.memory_space<vmem>>, %arg5: memref<1x64xf32, #tpu.memory_space<vmem>>, %arg6: memref<1x1x64xf32, #tpu.memory_space<vmem>>) attributes {dimension_semantics = [#tpu.dimension_semantics<parallel>, #tpu.dimension_semantics<arbitrary>], iteration_bounds = array<i64: 2, 1>, scalar_prefetch = 0 : i64, scratch_operands = 0 : i64, tpu.core_type = #tpu.core_type<tc>, window_params = [{transform_indices = @transform_0, window_bounds = array<i64: 1, 32, 192>}, {pipeline_mode = #tpu.pipeline_mode<synchronous>, transform_indices = @transform_1, window_bounds = array<i64: 192, 64>}, {pipeline_mode = #tpu.pipeline_mode<synchronous>, transform_indices = @transform_2, window_bounds = array<i64: 1, 64>}, {pipeline_mode = #tpu.pipeline_mode<synchronous>, transform_indices = @transform_3, window_bounds = array<i64: 1, 64>}, {transform_indices = @transform_4, window_bounds = array<i64: 1, 1, 64>}]} {
    %c0_i32 = arith.constant 0 : i32
    %0 = arith.cmpi eq, %arg1, %c0_i32 : i32
    %1 = arith.extui %0 : i1 to i32
    %c0_i32_0 = arith.constant 0 : i32
    %2 = arith.cmpi ne, %1, %c0_i32_0 : i32
    scf.if %2 {
      %cst_18 = arith.constant 0xFF800000 : f32
      %26 = vector.broadcast %cst_18 : f32 to vector<1x1x64xf32>
      %c0_19 = arith.constant 0 : index
      %c0_20 = arith.constant 0 : index
      %c0_21 = arith.constant 0 : index
      %27 = vector.load %arg6[%c0_19, %c0_20, %c0_21] : memref<1x1x64xf32, #tpu.memory_space<vmem>>, vector<1x1x64xf32>
      tpu.vector_store %arg6[%c0_19, %c0_20, %c0_21], %26 {strides = array<i32>} : memref<1x1x64xf32, #tpu.memory_space<vmem>>, vector<1x1x64xf32>,
    } else {
    }
    %c0 = arith.constant 0 : index
    %c0_1 = arith.constant 0 : index
    %c0_2 = arith.constant 0 : index
    %3 = vector.load %arg2[%c0, %c0_1, %c0_2] : memref<1x32x192xbf16, #tpu.memory_space<vmem>>, vector<1x32x192xbf16>
    %4 = vector.shape_cast %3 : vector<1x32x192xbf16> to vector<32x192xbf16>
    %c0_3 = arith.constant 0 : index
    %c0_4 = arith.constant 0 : index
    %5 = vector.load %arg3[%c0_3, %c0_4] : memref<192x64xbf16, #tpu.memory_space<vmem>>, vector<192x64xbf16>
    %cst = arith.constant dense<0.000000e+00> : vector<32x64xf32>
    %6 = tpu.matmul %4, %5, %cst {dimension_numbers = #tpu.dot_dimension_numbers<[1], [0], [0], [1], [0, 0, 1, 1], [], []>} : vector<32x192xbf16>, vector<192x64xbf16>, vector<32x64xf32> -> vector<32x64xf32>
    %c0_5 = arith.constant 0 : index
    %c0_6 = arith.constant 0 : index
    %7 = vector.load %arg4[%c0_5, %c0_6] : memref<1x64xf32, #tpu.memory_space<vmem>>, vector<1x64xf32>
    %8 = vector.broadcast %7 : vector<1x64xf32> to vector<32x64xf32>
    %9 = arith.mulf %6, %8 : vector<32x64xf32>
    %c0_7 = arith.constant 0 : index
    %c0_8 = arith.constant 0 : index
    %10 = vector.load %arg5[%c0_7, %c0_8] : memref<1x64xf32, #tpu.memory_space<vmem>>, vector<1x64xf32>
    %11 = vector.broadcast %10 : vector<1x64xf32> to vector<32x64xf32>
    %12 = arith.addf %9, %11 : vector<32x64xf32>
    %cst_9 = arith.constant 0.000000e+00 : f32
    %13 = vector.broadcast %cst_9 : f32 to vector<32x64xf32>
    %14 = arith.cmpf oge, %12, %13 : vector<32x64xf32>
    %cst_10 = arith.constant 2.000000e-01 : f32
    %15 = vector.broadcast %cst_10 : f32 to vector<32x64xf32>
    %16 = arith.mulf %15, %12 : vector<32x64xf32>
    %17 = arith.select %14, %12, %16 : vector<32x64xi1>, vector<32x64xf32>
    %c0_11 = arith.constant 0 : index
    %c0_12 = arith.constant 0 : index
    %c0_13 = arith.constant 0 : index
    %18 = vector.load %arg6[%c0_11, %c0_12, %c0_13] : memref<1x1x64xf32, #tpu.memory_space<vmem>>, vector<1x1x64xf32>
    %19 = vector.shape_cast %18 : vector<1x1x64xf32> to vector<1x64xf32>
    %cst_14 = arith.constant dense<0xFF800000> : vector<64xf32>
    %20 = vector.multi_reduction <maximumf>, %17, %cst_14 [0] : vector<32x64xf32> to vector<64xf32>
    %21 = vector.shape_cast %20 : vector<64xf32> to vector<1x64xf32>
    %22 = arith.maximumf %19, %21 : vector<1x64xf32>
    %c0_15 = arith.constant 0 : index
    %c0_16 = arith.constant 0 : index
    %c0_17 = arith.constant 0 : index
    %23 = vector.load %arg6[%c0_15, %c0_16, %c0_17] : memref<1x1x64xf32, #tpu.memory_space<vmem>>, vector<1x1x64xf32>
    %24 = vector.shape_cast %23 : vector<1x1x64xf32> to vector<1x64xf32>
    %25 = vector.shape_cast %22 : vector<1x64xf32> to vector<1x1x64xf32>
    tpu.vector_store %arg6[%c0_15, %c0_16, %c0_17], %25 {strides = array<i32>} : memref<1x1x64xf32, #tpu.memory_space<vmem>>, vector<1x1x64xf32>,
    return
  }
  func.func @transform_0(%arg0: i32, %arg1: i32) -> (i32, i32, i32) {
    %c0_i32 = arith.constant 0 : i32
    %c0_i32_0 = arith.constant 0 : i32
    return %arg0, %arg1, %c0_i32 : i32, i32, i32
  }
  func.func @transform_1(%arg0: i32, %arg1: i32) -> (i32, i32) {
    %c0_i32 = arith.constant 0 : i32
    %c0_i32_0 = arith.constant 0 : i32
    %c0_i32_1 = arith.constant 0 : i32
    return %c0_i32, %c0_i32_0 : i32, i32
  }
  func.func @transform_2(%arg0: i32, %arg1: i32) -> (i32, i32) {
    %c0_i32 = arith.constant 0 : i32
    %c0_i32_0 = arith.constant 0 : i32
    %c0_i32_1 = arith.constant 0 : i32
    return %c0_i32, %c0_i32_0 : i32, i32
  }
  func.func @transform_3(%arg0: i32, %arg1: i32) -> (i32, i32) {
    %c0_i32 = arith.constant 0 : i32
    %c0_i32_0 = arith.constant 0 : i32
    %c0_i32_1 = arith.constant 0 : i32
    return %c0_i32, %c0_i32_0 : i32, i32
  }
  func.func @transform_4(%arg0: i32, %arg1: i32) -> (i32, i32, i32) {
    %c0_i32 = arith.constant 0 : i32
    %c0_i32_0 = arith.constant 0 : i32
    %c0_i32_1 = arith.constant 0 : i32
    return %arg0, %c0_i32, %c0_i32_0 : i32, i32, i32
  }
}

module attributes {stable_mosaic.version = 11 : i64} {
  func.func @_head_kernel(%arg0: i32, %arg1: i32, %arg2: memref<1x32x192xbf16, #tpu.memory_space<vmem>>, %arg3: memref<1x1x512xf32, #tpu.memory_space<vmem>>, %arg4: memref<192x512xbf16, #tpu.memory_space<vmem>>, %arg5: memref<1x512xf32, #tpu.memory_space<vmem>>, %arg6: memref<1x512xf32, #tpu.memory_space<vmem>>, %arg7: memref<512x256xbf16, #tpu.memory_space<vmem>>, %arg8: memref<1x256xf32, #tpu.memory_space<vmem>>, %arg9: memref<1x256xf32, #tpu.memory_space<vmem>>, %arg10: memref<256x5xbf16, #tpu.memory_space<vmem>>, %arg11: memref<1x32x5xf32, #tpu.memory_space<vmem>>) attributes {dimension_semantics = [#tpu.dimension_semantics<parallel>, #tpu.dimension_semantics<parallel>], iteration_bounds = array<i64: 2, 1>, scalar_prefetch = 0 : i64, scratch_operands = 0 : i64, tpu.core_type = #tpu.core_type<tc>, window_params = [{transform_indices = @transform_0, window_bounds = array<i64: 1, 32, 192>}, {transform_indices = @transform_1, window_bounds = array<i64: 1, 1, 512>}, {pipeline_mode = #tpu.pipeline_mode<synchronous>, transform_indices = @transform_2, window_bounds = array<i64: 192, 512>}, {pipeline_mode = #tpu.pipeline_mode<synchronous>, transform_indices = @transform_3, window_bounds = array<i64: 1, 512>}, {pipeline_mode = #tpu.pipeline_mode<synchronous>, transform_indices = @transform_4, window_bounds = array<i64: 1, 512>}, {pipeline_mode = #tpu.pipeline_mode<synchronous>, transform_indices = @transform_5, window_bounds = array<i64: 512, 256>}, {pipeline_mode = #tpu.pipeline_mode<synchronous>, transform_indices = @transform_6, window_bounds = array<i64: 1, 256>}, {pipeline_mode = #tpu.pipeline_mode<synchronous>, transform_indices = @transform_7, window_bounds = array<i64: 1, 256>}, {pipeline_mode = #tpu.pipeline_mode<synchronous>, transform_indices = @transform_8, window_bounds = array<i64: 256, 5>}, {transform_indices = @transform_9, window_bounds = array<i64: 1, 32, 5>}]} {
    %c0 = arith.constant 0 : index
    %c0_0 = arith.constant 0 : index
    %c0_1 = arith.constant 0 : index
    %0 = vector.load %arg2[%c0, %c0_0, %c0_1] : memref<1x32x192xbf16, #tpu.memory_space<vmem>>, vector<1x32x192xbf16>
    %1 = vector.shape_cast %0 : vector<1x32x192xbf16> to vector<32x192xbf16>
    %c0_2 = arith.constant 0 : index
    %c0_3 = arith.constant 0 : index
    %2 = vector.load %arg4[%c0_2, %c0_3] : memref<192x512xbf16, #tpu.memory_space<vmem>>, vector<192x512xbf16>
    %cst = arith.constant dense<0.000000e+00> : vector<32x512xf32>
    %3 = tpu.matmul %1, %2, %cst {dimension_numbers = #tpu.dot_dimension_numbers<[1], [0], [0], [1], [0, 0, 1, 1], [], []>} : vector<32x192xbf16>, vector<192x512xbf16>, vector<32x512xf32> -> vector<32x512xf32>
    %c0_4 = arith.constant 0 : index
    %c0_5 = arith.constant 0 : index
    %c0_6 = arith.constant 0 : index
    %4 = vector.load %arg3[%c0_4, %c0_5, %c0_6] : memref<1x1x512xf32, #tpu.memory_space<vmem>>, vector<1x1x512xf32>
    %5 = vector.shape_cast %4 : vector<1x1x512xf32> to vector<1x512xf32>
    %6 = vector.broadcast %5 : vector<1x512xf32> to vector<32x512xf32>
    %7 = arith.addf %3, %6 : vector<32x512xf32>
    %c0_7 = arith.constant 0 : index
    %c0_8 = arith.constant 0 : index
    %8 = vector.load %arg5[%c0_7, %c0_8] : memref<1x512xf32, #tpu.memory_space<vmem>>, vector<1x512xf32>
    %9 = vector.broadcast %8 : vector<1x512xf32> to vector<32x512xf32>
    %10 = arith.mulf %7, %9 : vector<32x512xf32>
    %c0_9 = arith.constant 0 : index
    %c0_10 = arith.constant 0 : index
    %11 = vector.load %arg6[%c0_9, %c0_10] : memref<1x512xf32, #tpu.memory_space<vmem>>, vector<1x512xf32>
    %12 = vector.broadcast %11 : vector<1x512xf32> to vector<32x512xf32>
    %13 = arith.addf %10, %12 : vector<32x512xf32>
    %cst_11 = arith.constant 0.000000e+00 : f32
    %14 = vector.broadcast %cst_11 : f32 to vector<32x512xf32>
    %15 = arith.cmpf oge, %13, %14 : vector<32x512xf32>
    %cst_12 = arith.constant 2.000000e-01 : f32
    %16 = vector.broadcast %cst_12 : f32 to vector<32x512xf32>
    %17 = arith.mulf %16, %13 : vector<32x512xf32>
    %18 = arith.select %15, %13, %17 : vector<32x512xi1>, vector<32x512xf32>
    %19 = arith.truncf %18 : vector<32x512xf32> to vector<32x512xbf16>
    %c0_13 = arith.constant 0 : index
    %c0_14 = arith.constant 0 : index
    %20 = vector.load %arg7[%c0_13, %c0_14] : memref<512x256xbf16, #tpu.memory_space<vmem>>, vector<512x256xbf16>
    %cst_15 = arith.constant dense<0.000000e+00> : vector<32x256xf32>
    %21 = tpu.matmul %19, %20, %cst_15 {dimension_numbers = #tpu.dot_dimension_numbers<[1], [0], [0], [1], [0, 0, 1, 1], [], []>} : vector<32x512xbf16>, vector<512x256xbf16>, vector<32x256xf32> -> vector<32x256xf32>
    %c0_16 = arith.constant 0 : index
    %c0_17 = arith.constant 0 : index
    %22 = vector.load %arg8[%c0_16, %c0_17] : memref<1x256xf32, #tpu.memory_space<vmem>>, vector<1x256xf32>
    %23 = vector.broadcast %22 : vector<1x256xf32> to vector<32x256xf32>
    %24 = arith.mulf %21, %23 : vector<32x256xf32>
    %c0_18 = arith.constant 0 : index
    %c0_19 = arith.constant 0 : index
    %25 = vector.load %arg9[%c0_18, %c0_19] : memref<1x256xf32, #tpu.memory_space<vmem>>, vector<1x256xf32>
    %26 = vector.broadcast %25 : vector<1x256xf32> to vector<32x256xf32>
    %27 = arith.addf %24, %26 : vector<32x256xf32>
    %cst_20 = arith.constant 0.000000e+00 : f32
    %28 = vector.broadcast %cst_20 : f32 to vector<32x256xf32>
    %29 = arith.cmpf oge, %27, %28 : vector<32x256xf32>
    %cst_21 = arith.constant 2.000000e-01 : f32
    %30 = vector.broadcast %cst_21 : f32 to vector<32x256xf32>
    %31 = arith.mulf %30, %27 : vector<32x256xf32>
    %32 = arith.select %29, %27, %31 : vector<32x256xi1>, vector<32x256xf32>
    %33 = arith.truncf %32 : vector<32x256xf32> to vector<32x256xbf16>
    %c0_22 = arith.constant 0 : index
    %c0_23 = arith.constant 0 : index
    %34 = vector.load %arg10[%c0_22, %c0_23] : memref<256x5xbf16, #tpu.memory_space<vmem>>, vector<256x5xbf16>
    %cst_24 = arith.constant dense<0.000000e+00> : vector<32x5xf32>
    %35 = tpu.matmul %33, %34, %cst_24 {dimension_numbers = #tpu.dot_dimension_numbers<[1], [0], [0], [1], [0, 0, 1, 1], [], []>} : vector<32x256xbf16>, vector<256x5xbf16>, vector<32x5xf32> -> vector<32x5xf32>
    %c0_25 = arith.constant 0 : index
    %c0_26 = arith.constant 0 : index
    %c0_27 = arith.constant 0 : index
    %36 = vector.load %arg11[%c0_25, %c0_26, %c0_27] : memref<1x32x5xf32, #tpu.memory_space<vmem>>, vector<1x32x5xf32>
    %37 = vector.shape_cast %36 : vector<1x32x5xf32> to vector<32x5xf32>
    %38 = vector.shape_cast %35 : vector<32x5xf32> to vector<1x32x5xf32>
    tpu.vector_store %arg11[%c0_25, %c0_26, %c0_27], %38 {strides = array<i32>} : memref<1x32x5xf32, #tpu.memory_space<vmem>>, vector<1x32x5xf32>,
    return
  }
  func.func @transform_0(%arg0: i32, %arg1: i32) -> (i32, i32, i32) {
    %c0_i32 = arith.constant 0 : i32
    %c0_i32_0 = arith.constant 0 : i32
    return %arg0, %arg1, %c0_i32 : i32, i32, i32
  }
  func.func @transform_1(%arg0: i32, %arg1: i32) -> (i32, i32, i32) {
    %c0_i32 = arith.constant 0 : i32
    %c0_i32_0 = arith.constant 0 : i32
    %c0_i32_1 = arith.constant 0 : i32
    return %arg0, %c0_i32, %c0_i32_0 : i32, i32, i32
  }
  func.func @transform_2(%arg0: i32, %arg1: i32) -> (i32, i32) {
    %c0_i32 = arith.constant 0 : i32
    %c0_i32_0 = arith.constant 0 : i32
    %c0_i32_1 = arith.constant 0 : i32
    return %c0_i32, %c0_i32_0 : i32, i32
  }
  func.func @transform_3(%arg0: i32, %arg1: i32) -> (i32, i32) {
    %c0_i32 = arith.constant 0 : i32
    %c0_i32_0 = arith.constant 0 : i32
    %c0_i32_1 = arith.constant 0 : i32
    return %c0_i32, %c0_i32_0 : i32, i32
  }
  func.func @transform_4(%arg0: i32, %arg1: i32) -> (i32, i32) {
    %c0_i32 = arith.constant 0 : i32
    %c0_i32_0 = arith.constant 0 : i32
    %c0_i32_1 = arith.constant 0 : i32
    return %c0_i32, %c0_i32_0 : i32, i32
  }
  func.func @transform_5(%arg0: i32, %arg1: i32) -> (i32, i32) {
    %c0_i32 = arith.constant 0 : i32
    %c0_i32_0 = arith.constant 0 : i32
    %c0_i32_1 = arith.constant 0 : i32
    return %c0_i32, %c0_i32_0 : i32, i32
  }
  func.func @transform_6(%arg0: i32, %arg1: i32) -> (i32, i32) {
    %c0_i32 = arith.constant 0 : i32
    %c0_i32_0 = arith.constant 0 : i32
    %c0_i32_1 = arith.constant 0 : i32
    return %c0_i32, %c0_i32_0 : i32, i32
  }
  func.func @transform_7(%arg0: i32, %arg1: i32) -> (i32, i32) {
    %c0_i32 = arith.constant 0 : i32
    %c0_i32_0 = arith.constant 0 : i32
    %c0_i32_1 = arith.constant 0 : i32
    return %c0_i32, %c0_i32_0 : i32, i32
  }
  func.func @transform_8(%arg0: i32, %arg1: i32) -> (i32, i32) {
    %c0_i32 = arith.constant 0 : i32
    %c0_i32_0 = arith.constant 0 : i32
    %c0_i32_1 = arith.constant 0 : i32
    return %c0_i32, %c0_i32_0 : i32, i32
  }
  func.func @transform_9(%arg0: i32, %arg1: i32) -> (i32, i32, i32) {
    %c0_i32 = arith.constant 0 : i32
    %c0_i32_0 = arith.constant 0 : i32
    return %arg0, %arg1, %c0_i32 : i32, i32, i32
  }
}

</mosaic_0001>

<llo_original>
// kernel: dgcnn_semseg_forward.8
$region0: #{dgcnn_semseg_forward.8}
  #allocation0 [shape = 'u32[]', space=smem, size = 0x4, offset = 0x4, fixed_abs, tag = 'smem constant byte address 0x4 - core index']
  #allocation1 [shape = 'u32[144,128]{1,0:T(1,128)}', space=vmem, size = 0x12000, scoped, tag = 'internal scratch']
  %s0 = inlined_call_operand.vmem [shape: f32[2,32,6], index: 0, kind: input, shape index: {}, may-alias: {0,1}]
  %s1 = inlined_call_operand.vmem [shape: f32[2,32,6], index: 1, kind: input, shape index: {}, may-alias: {0,1}]
  %s2 = inlined_call_operand.vmem [shape: f32[2,1,32], index: 2, kind: input, shape index: {}]
  %s3 = inlined_call_operand.vmem [shape: f32[2,32,32], index: 3, kind: output, shape index: {}]
  %s4 = sld [smem:[#allocation0]]
  $region45: #{dgcnn_semseg_forward.8} parent=0
    _
  %s6 = ssub.s32 1, %s4
  %s7 = scalar_select 0, %s6, %s4
  loop: start=0, step=1, limit=4
  $region2: #{dgcnn_semseg_forward.8} parent=0 // loop_pre_header
    _
  $region3: #{dgcnn_semseg_forward.8} parent=0 // loop_header
    %s9 = sphi 0, %s13
    %p10 = scmp.ge.s32.totalorder %s9, 4
    %s16 = sphi 0, %s28
    %s17 = sphi 0, %s24
    %s18 = sphi 0, %s16
    %s19 = sphi 0, %s17
    %s20 = sphi 0, %s18
    %s21 = sphi 0, %s19
    %s33 = sphi 0, %s35
    %s36 = sphi 0, %s33
    %s37 = sphi 0, %s36
    %s53 = sphi 0, %s37
    %s59 = sphi 0, %s61
    %s62 = sphi 0, %s59
    %s63 = sphi 0, %s62
    %s79 = sphi 0, %s63
    %s85 = sphi 0, %s87
    %s88 = sphi 0, %s85
    %s89 = sphi 0, %s88
    %s105 = sphi 0, %s89
    %s113 = sphi 0, %s115
    %s116 = sphi 0, %s113
    %s117 = sphi 0, %s116
    %s133 = sphi 0, %s117
  $region4: #{dgcnn_semseg_forward.8} parent=0 // loop_header_branch
    %12 = sbr.rel (%p10) target = $region8
  $region5: #{dgcnn_semseg_forward.8} parent=0 // loop_body
    %s14 = ssub.s32 %s9, 1
    %s15 = ssub.s32 %s9, 2
    %s22 = sadd.s32 1, %s17
    %p23 = scmp.ge.s32.totalorder %s22, 1
    %s24 = scalar_select %p23, 0, %s22
    %s25 = sadd.s32 1, %s16
    %s26 = scalar_select %p23, %s25, %s16
    %p27 = scmp.ge.s32.totalorder %s26, 2
    %s28 = scalar_select %p27, 0, %s26
    %s29 = ssub.s32 %s16, %s28
    %s30 = ssub.s32 %s17, %s24
    %s31 = sor.u32 %s29, %s30
    %p32 = scmp.eq.s32.totalorder %s31, 0
    %s34 = sadd.s32 %s33, 1
    %s35 = scalar_select %p32, %s33, %s34
    %p38 = pneg %p32
    %p39 = scmp.eq.s32.totalorder %s9, 1
    %p40 = por %p38, %p39
    %p41 = scmp.ne.s32.totalorder %s33, %s36
    %p42 = scmp.eq.s32.totalorder %s9, 0
    %p43 = por %p41, %p42
    %p44 = scmp.ne.s32.totalorder %s33, %s36
    %p45 = scmp.eq.s32.totalorder %s14, 1
    %p46 = por %p44, %p45
    %p47 = scmp.ne.s32.totalorder %s36, %s37
    %p48 = scmp.eq.s32.totalorder %s14, 0
    %p49 = por %p47, %p48
    %p50 = scmp.ne.s32.totalorder %s36, %s37
    %p51 = scmp.eq.s32.totalorder %s15, 1
    %p52 = por %p50, %p51
    %p54 = scmp.ne.s32.totalorder %s37, %s53
    %p55 = scmp.eq.s32.totalorder %s15, 0
    %p56 = por %p54, %p55
    %s57 = ssub.s32 %s16, %s28
    %p58 = scmp.eq.s32.totalorder %s57, 0
    %s60 = sadd.s32 %s59, 1
    %s61 = scalar_select %p58, %s59, %s60
    %p64 = pneg %p58
    %p65 = scmp.eq.s32.totalorder %s9, 1
    %p66 = por %p64, %p65
    %p67 = scmp.ne.s32.totalorder %s59, %s62
    %p68 = scmp.eq.s32.totalorder %s9, 0
    %p69 = por %p67, %p68
    %p70 = scmp.ne.s32.totalorder %s59, %s62
    %p71 = scmp.eq.s32.totalorder %s14, 1
    %p72 = por %p70, %p71
    %p73 = scmp.ne.s32.totalorder %s62, %s63
    %p74 = scmp.eq.s32.totalorder %s14, 0
    %p75 = por %p73, %p74
    %p76 = scmp.ne.s32.totalorder %s62, %s63
    %p77 = scmp.eq.s32.totalorder %s15, 1
    %p78 = por %p76, %p77
    %p80 = scmp.ne.s32.totalorder %s63, %s79
    %p81 = scmp.eq.s32.totalorder %s15, 0
    %p82 = por %p80, %p81
    %s83 = ssub.s32 %s16, %s28
    %p84 = scmp.eq.s32.totalorder %s83, 0
    %s86 = sadd.s32 %s85, 1
    %s87 = scalar_select %p84, %s85, %s86
    %p90 = pneg %p84
    %p91 = scmp.eq.s32.totalorder %s9, 1
    %p92 = por %p90, %p91
    %p93 = scmp.ne.s32.totalorder %s85, %s88
    %p94 = scmp.eq.s32.totalorder %s9, 0
    %p95 = por %p93, %p94
    %p96 = scmp.ne.s32.totalorder %s85, %s88
    %p97 = scmp.eq.s32.totalorder %s14, 1
    %p98 = por %p96, %p97
    %p99 = scmp.ne.s32.totalorder %s88, %s89
    %p100 = scmp.eq.s32.totalorder %s14, 0
    %p101 = por %p99, %p100
    %p102 = scmp.ne.s32.totalorder %s88, %s89
    %p103 = scmp.eq.s32.totalorder %s15, 1
    %p104 = por %p102, %p103
    %p106 = scmp.ne.s32.totalorder %s89, %s105
    %p107 = scmp.eq.s32.totalorder %s15, 0
    %p108 = por %p106, %p107
    %s109 = ssub.s32 %s16, %s28
    %s110 = ssub.s32 %s17, %s24
    %s111 = sor.u32 %s109, %s110
    %p112 = scmp.eq.s32.totalorder %s111, 0
    %s114 = sadd.s32 %s113, 1
    %s115 = scalar_select %p112, %s113, %s114
    %p118 = pneg %p112
    %p119 = scmp.eq.s32.totalorder %s9, 1
    %p120 = por %p118, %p119
    %p121 = scmp.ne.s32.totalorder %s113, %s116
    %p122 = scmp.eq.s32.totalorder %s9, 0
    %p123 = por %p121, %p122
    %p124 = scmp.ne.s32.totalorder %s113, %s116
    %p125 = scmp.eq.s32.totalorder %s14, 1
    %p126 = por %p124, %p125
    %p127 = scmp.ne.s32.totalorder %s116, %s117
    %p128 = scmp.eq.s32.totalorder %s14, 0
    %p129 = por %p127, %p128
    %p130 = scmp.ne.s32.totalorder %s116, %s117
    %p131 = scmp.eq.s32.totalorder %s15, 1
    %p132 = por %p130, %p131
    %p134 = scmp.ne.s32.totalorder %s117, %s133
    %p135 = scmp.eq.s32.totalorder %s15, 0
    %p136 = por %p134, %p135
    %p137 = scmp.le.s32.totalorder 1, %s9
    %p138 = scmp.lt.s32.totalorder %s9, 3
    %p139 = pnand %p137, %p138
    %p140 = pneg %p139
    // Predicated region
    $region9: #{dgcnn_semseg_forward.8} parent=5 // pred_check
      _
    $region10: #{dgcnn_semseg_forward.8} parent=5 // pred_check_branch
      %142 = sbr.rel (%p139) target = $region12
    $region11: #{dgcnn_semseg_forward.8} parent=5 // pred_region
      %s143 = ssub.s32 %s9, 1
    $region12: #{dgcnn_semseg_forward.8} parent=5 // pred_fallthru
      _
    %p144 = scmp.lt.s32.totalorder %s9, 2
    // Predicated region
    $region13: #{dgcnn_semseg_forward.8} parent=5 // pred_check
      %p145 = pneg %p144
    $region14: #{dgcnn_semseg_forward.8} parent=5 // pred_check_branch
      %147 = sbr.rel (%p145) target = $region16
    $region15: #{dgcnn_semseg_forward.8} parent=5 // pred_region
      // Predicated region
      $region17: #{dgcnn_semseg_forward.8} parent=15 // pred_check
        %p148 = pneg %p43
      $region18: #{dgcnn_semseg_forward.8} parent=15 // pred_check_branch
        %150 = sbr.rel (%p148) target = $region20
      $region19: #{dgcnn_semseg_forward.8} parent=15 // pred_region
        %s151 = smul.u32 4, %s17
        %p152 = scmp.lt.s32.totalorder %s16, 1
        %s153 = scalar_select %p152, %s16, 1
        %p154 = scmp.lt.s32.totalorder %s151, 3
        %s155 = scalar_select %p154, %s151, 3
        %s156 = smul.addr %s153, 4
        %s157 = sadd.s32 %s155, %s156
        %s158 = smul.addr %s157, 8
        %s159 = scalar_lea.vmem %s0, %s158
        %s160 = smul.u32 4, %s17
      $region20: #{dgcnn_semseg_forward.8} parent=15 // pred_fallthru
        _
      // Predicated region
      $region21: #{dgcnn_semseg_forward.8} parent=15 // pred_check
        %p161 = pneg %p69
      $region22: #{dgcnn_semseg_forward.8} parent=15 // pred_check_branch
        %163 = sbr.rel (%p161) target = $region24
      $region23: #{dgcnn_semseg_forward.8} parent=15 // pred_region
        %p164 = scmp.lt.s32.totalorder %s16, 1
        %s165 = scalar_select %p164, %s16, 1
        %s166 = smul.addr %s165, 4
        %s167 = smul.addr %s166, 8
        %s168 = scalar_lea.vmem %s1, %s167
      $region24: #{dgcnn_semseg_forward.8} parent=15 // pred_fallthru
        _
      // Predicated region
      $region25: #{dgcnn_semseg_forward.8} parent=15 // pred_check
        %p169 = pneg %p95
      $region26: #{dgcnn_semseg_forward.8} parent=15 // pred_check_branch
        %171 = sbr.rel (%p169) target = $region28
      $region27: #{dgcnn_semseg_forward.8} parent=15 // pred_region
        %p172 = scmp.lt.s32.totalorder %s16, 1
        %s173 = scalar_select %p172, %s16, 1
        %s174 = scalar_lea.vmem %s2, %s173
      $region28: #{dgcnn_semseg_forward.8} parent=15 // pred_fallthru
        _
    $region16: #{dgcnn_semseg_forward.8} parent=5 // pred_fallthru
      _
    %p175 = scmp.le.s32.totalorder 1, %s9
    %p176 = scmp.lt.s32.totalorder %s9, 3
    %p177 = pnand %p175, %p176
    %p178 = pneg %p177
    // Predicated region
    $region29: #{dgcnn_semseg_forward.8} parent=5 // pred_check
      _
    $region30: #{dgcnn_semseg_forward.8} parent=5 // pred_check_branch
      %180 = sbr.rel (%p177) target = $region32
    $region31: #{dgcnn_semseg_forward.8} parent=5 // pred_region
      %s181 = ssub.s32 %s9, 1
      %s182 = smul.u32 4, %s19
      %p183 = scmp.lt.s32.totalorder %s18, 1
      %s184 = scalar_select %p183, %s18, 1
      %p185 = scmp.lt.s32.totalorder %s182, 3
      %s186 = scalar_select %p185, %s182, 3
      %s187 = smul.addr %s184, 4
      %s188 = sadd.s32 %s186, %s187
      %s189 = smul.addr %s188, 8
      %s190 = scalar_lea.vmem %s0, %s189
      %p191 = pneg %p49
      %p192 = pneg %p46
      %p193 = scmp.lt.s32.totalorder %s18, 1
      %s194 = scalar_select %p193, %s18, 1
      %s195 = smul.addr %s194, 4
      %s196 = smul.addr %s195, 8
      %s197 = scalar_lea.vmem %s1, %s196
      %p198 = pneg %p75
      %p199 = pneg %p72
      %p200 = scmp.lt.s32.totalorder %s18, 1
      %s201 = scalar_select %p200, %s18, 1
      %s202 = scalar_lea.vmem %s2, %s201
      %p203 = pneg %p101
      %p204 = pneg %p98
      %p205 = pneg %p129
      %p206 = pneg %p126
      %s207 = smul.u32 4, %s19
      %p208 = scmp.lt.s32.totalorder %s18, 1
      %s209 = scalar_select %p208, %s18, 1
      %p210 = scmp.lt.s32.totalorder %s207, 3
      %s211 = scalar_select %p210, %s207, 3
      %s212 = smul.addr %s209, 4
      %s213 = sadd.s32 %s211, %s212
      %s214 = smul.addr %s213, 8
      %s215 = scalar_lea.vmem %s3, %s214
      %s216 = smul.u32 4, %s19
      %p217 = scmp.lt.s32.totalorder %s18, 1
      %s218 = scalar_select %p217, %s18, 1
      %p219 = scmp.lt.s32.totalorder %s216, 3
      %s220 = scalar_select %p219, %s216, 3
      %s221 = smul.addr %s218, 4
      %s222 = sadd.s32 %s220, %s221
      %s223 = smul.addr %s222, 8
      %s224 = scalar_lea.vmem %s0, %s223
      %s225 = smul.u32 4, %s19
      %p226 = scmp.lt.s32.totalorder %s18, 1
      %s227 = scalar_select %p226, %s18, 1
      %s228 = smul.addr %s227, 4
      %s229 = smul.addr %s228, 8
      %s230 = scalar_lea.vmem %s1, %s229
      %p231 = scmp.lt.s32.totalorder %s18, 1
      %s232 = scalar_select %p231, %s18, 1
      %s233 = scalar_lea.vmem %s2, %s232
      %s234 = smul.u32 4, %s19
      %p235 = scmp.lt.s32.totalorder %s18, 1
      %s236 = scalar_select %p235, %s18, 1
      %p237 = scmp.lt.s32.totalorder %s234, 3
      %s238 = scalar_select %p237, %s234, 3
      %s239 = smul.addr %s236, 4
      %s240 = sadd.s32 %s238, %s239
      %s241 = smul.addr %s240, 8
      %s242 = scalar_lea.vmem %s3, %s241
      %s243 = smul.u32 4, %s19
      %v244 = vld [vmem:[%s224] sm:$0xff]
      %v245 = vld [vmem:[%s224 + $0x8] sm:$0xff]
      %v246 = vld [vmem:[%s224 + $0x10] sm:$0xff]
      %v247 = vld [vmem:[%s224 + $0x18] sm:$0xff]
      %v248 = vld [vmem:[%s230] sm:$0xff]
      %v249 = vld [vmem:[%s230 + $0x8] sm:$0xff]
      %v250 = vld [vmem:[%s230 + $0x10] sm:$0xff]
      %v251 = vld [vmem:[%s230 + $0x18] sm:$0xff]
      %vm252 = vcmask 48128
      %v254 = vsel %vm252, %v244, 0
      %v257 = vsel %vm252, %v245, 0
      %v260 = vsel %vm252, %v246, 0
      %v263 = vsel %vm252, %v247, 0
      %v266 = vsel %vm252, %v248, 0
      %v269 = vsel %vm252, %v249, 0
      %v272 = vsel %vm252, %v250, 0
      %v275 = vsel %vm252, %v251, 0
      %277 = vmatprep.subr.mxu0 0.0
      %278 = vmatpush1.xpose.msra.mxu0 0.0
      %279 = vmatprep.subr.mxu0 0.0
      %280 = vmatpush1.xpose.msra.mxu0 0.0
      %281 = vmatprep.subr.mxu0 0.0
      %282 = vmatpush1.xpose.msra.mxu0 0.0
      %283 = vmatprep.subr.mxu0 0.0
      %284 = vmatpush1.xpose.msra.mxu0 0.0
      %285 = vmatprep.subr.mxu0 0.0
      %286 = vmatpush1.xpose.msra.mxu0 0.0
      %287 = vmatprep.subr.mxu0 0.0
      %288 = vmatpush1.xpose.msra.mxu0 0.0
      %289 = vmatprep.subr.mxu0 0.0
      %290 = vmatpush1.xpose.msra.mxu0 0.0
      %291 = vmatprep.subr.mxu0 0.0
      %292 = vmatpush1.xpose.msra.mxu0 0.0
      %293 = vmatprep.subr.mxu0 0.0
      %294 = vmatpush1.xpose.msra.mxu0 0.0
      %295 = vmatprep.subr.mxu0 0.0
      %296 = vmatpush1.xpose.msra.mxu0 0.0
      %297 = vmatprep.subr.mxu0 0.0
      %298 = vmatpush1.xpose.msra.mxu0 0.0
      %299 = vmatprep.subr.mxu0 0.0
      %300 = vmatpush1.xpose.msra.mxu0 0.0
      %301 = vmatprep.subr.mxu0 0.0
      %302 = vmatpush1.xpose.msra.mxu0 %v275
      %303 = vmatprep.subr.mxu0 0.0
      %304 = vmatpush1.xpose.msra.mxu0 %v272
      %305 = vmatprep.subr.mxu0 0.0
      %306 = vmatpush1.xpose.msra.mxu0 %v269
      %307 = vmatprep.subr.mxu0 0.0
      %308 = vmatpush1.xpose.msra.mxu0 %v266
      %309 = vmatprep.subr.mxu0 0.0
      %310 = vmatpush2.xpose.msra.mxu0 0.0
      %311 = vmatprep.subr.mxu0 0.0
      %312 = vmatpush2.xpose.msra.mxu0 0.0
      %313 = vmatprep.subr.mxu0 0.0
      %314 = vmatpush2.xpose.msra.mxu0 0.0
      %315 = vmatprep.subr.mxu0 0.0
      %316 = vmatpush2.xpose.msra.mxu0 0.0
      %317 = vmatprep.subr.mxu0 0.0
      %318 = vmatpush2.xpose.msra.mxu0 0.0
      %319 = vmatprep.subr.mxu0 0.0
      %320 = vmatpush2.xpose.msra.mxu0 0.0
      %321 = vmatprep.subr.mxu0 0.0
      %322 = vmatpush2.xpose.msra.mxu0 0.0
      %323 = vmatprep.subr.mxu0 0.0
      %324 = vmatpush2.xpose.msra.mxu0 0.0
      %325 = vmatprep.subr.mxu0 0.0
      %326 = vmatpush2.xpose.msra.mxu0 0.0
      %327 = vmatprep.subr.mxu0 0.0
      %328 = vmatpush2.xpose.msra.mxu0 0.0
      %329 = vmatprep.subr.mxu0 0.0
      %330 = vmatpush2.xpose.msra.mxu0 0.0
      %331 = vmatprep.subr.mxu0 0.0
      %332 = vmatpush2.xpose.msra.mxu0 0.0
      %333 = vmatprep.subr.mxu0 0.0
      %334 = vmatpush2.xpose.msra.mxu0 0.0
      %335 = vmatprep.subr.mxu0 0.0
      %336 = vmatpush2.xpose.msra.mxu0 0.0
      %337 = vmatprep.subr.mxu0 0.0
      %338 = vmatpush2.xpose.msra.mxu0 0.0
      %339 = vmatprep.subr.mxu0 0.0
      %340 = vmatpush2.xpose.msra.mxu0 0.0
      %341 = vmatprep.mubr.f32.mxu0 0.0
      %342 = vmatmul.mubr.f32.gmra.mxu0 %v254
      %v343 = vpop.f32.mrf.mxu0
      %v344 = vadd.f32 0.0, %v343
      %v345 = vpop.f32.mrf.mxu0
      %346 = vmatprep.mubr.f32.mxu0 0.0
      %347 = vmatmul.mubr.f32.gmra.mxu0 %v257
      %v348 = vpop.f32.mrf.mxu0
      %v349 = vadd.f32 0.0, %v348
      %v350 = vpop.f32.mrf.mxu0
      %351 = vmatprep.mubr.f32.mxu0 0.0
      %352 = vmatmul.mubr.f32.gmra.mxu0 %v260
      %v353 = vpop.f32.mrf.mxu0
      %v354 = vadd.f32 0.0, %v353
      %v355 = vpop.f32.mrf.mxu0
      %356 = vmatprep.mubr.f32.mxu0 0.0
      %357 = vmatmul.mubr.f32.gmra.mxu0 %v263
      %v358 = vpop.f32.mrf.mxu0
      %v359 = vadd.f32 0.0, %v358
      %v360 = vpop.f32.mrf.mxu0
      %361 = vdwg.mxu0
      %v362 = vmul.f32 %v244, %v244
      %v363 = vmul.f32 %v245, %v245
      %v364 = vmul.f32 %v246, %v246
      %v365 = vmul.f32 %v247, %v247
      %v366 = vsel %vm252, %v362, 0.0
      %367 = vadd.xlane.f32.xlu0 %v366
      %v368 = vpop.xlane.xlu0 %367
      %v369 = vsel %vm252, %v363, 0.0
      %370 = vadd.xlane.f32.xlu0 %v369
      %v371 = vpop.xlane.xlu0 %370
      %v372 = vsel %vm252, %v364, 0.0
      %373 = vadd.xlane.f32.xlu0 %v372
      %v374 = vpop.xlane.xlu0 %373
      %v375 = vsel %vm252, %v365, 0.0
      %376 = vadd.xlane.f32.xlu0 %v375
      %v377 = vpop.xlane.xlu0 %376
      %v378 = vmul.f32 %v344, 2.0
      %v379 = vmul.f32 %v349, 2.0
      %v380 = vmul.f32 %v354, 2.0
      %v381 = vmul.f32 %v359, 2.0
      %v382 = vsub.f32 %v378, %v368
      %v383 = vsub.f32 %v379, %v371
      %v384 = vsub.f32 %v380, %v374
      %v385 = vsub.f32 %v381, %v377
      %v386 = vld [vmem:[%s233] sm:$0x1]
      %v388 = vlaneseq
      %v389 = vshrl.u32 %v388, 7
      %v390 = vsub.s32 0, %v389
      %v391 = vrot.slane %v386, %v390
      %v393 = vsub.f32 %v382, %v391
      %v394 = vsub.f32 %v383, %v391
      %v395 = vsub.f32 %v384, %v391
      %v396 = vsub.f32 %v385, %v391
      %vm397 = vcmask 261120
      %398 = vst.msk [vmem:[%s242] sm:$0xff] %vm397, %v393
      %399 = vst.msk [vmem:[%s242 + $0x8] sm:$0xff] %vm397, %v394
      %400 = vst.msk [vmem:[%s242 + $0x10] sm:$0xff] %vm397, %v395
      %401 = vst.msk [vmem:[%s242 + $0x18] sm:$0xff] %vm397, %v396
      %s402 = smul.u32 4, %s19
      %p403 = scmp.lt.s32.totalorder %s18, 1
      %s404 = scalar_select %p403, %s18, 1
      %p405 = scmp.lt.s32.totalorder %s402, 3
      %s406 = scalar_select %p405, %s402, 3
      %s407 = smul.addr %s404, 4
      %s408 = sadd.s32 %s406, %s407
      %s409 = smul.addr %s408, 8
      %s410 = scalar_lea.vmem %s3, %s409
      // Predicated region
      $region33: #{dgcnn_semseg_forward.8} parent=31 // pred_check
        %p411 = pneg %p126
      $region34: #{dgcnn_semseg_forward.8} parent=31 // pred_check_branch
        %413 = sbr.rel (%p411) target = $region36
      $region35: #{dgcnn_semseg_forward.8} parent=31 // pred_region
        %s414 = smul.u32 4, %s19
      $region36: #{dgcnn_semseg_forward.8} parent=31 // pred_fallthru
        _
    $region32: #{dgcnn_semseg_forward.8} parent=5 // pred_fallthru
      _
    %p415 = scmp.le.s32.totalorder 2, %s9
    // Predicated region
    $region37: #{dgcnn_semseg_forward.8} parent=5 // pred_check
      %p416 = pneg %p415
    $region38: #{dgcnn_semseg_forward.8} parent=5 // pred_check_branch
      %418 = sbr.rel (%p416) target = $region40
    $region39: #{dgcnn_semseg_forward.8} parent=5 // pred_region
      %s419 = ssub.s32 %s9, 2
      // Predicated region
      $region41: #{dgcnn_semseg_forward.8} parent=39 // pred_check
        %p420 = pneg %p132
      $region42: #{dgcnn_semseg_forward.8} parent=39 // pred_check_branch
        %422 = sbr.rel (%p420) target = $region44
      $region43: #{dgcnn_semseg_forward.8} parent=39 // pred_region
        %s423 = smul.u32 4, %s21
        %p424 = scmp.lt.s32.totalorder %s20, 1
        %s425 = scalar_select %p424, %s20, 1
        %p426 = scmp.lt.s32.totalorder %s423, 3
        %s427 = scalar_select %p426, %s423, 3
        %s428 = smul.addr %s425, 4
        %s429 = sadd.s32 %s427, %s428
        %s430 = smul.addr %s429, 8
        %s431 = scalar_lea.vmem %s3, %s430
      $region44: #{dgcnn_semseg_forward.8} parent=39 // pred_fallthru
        _
    $region40: #{dgcnn_semseg_forward.8} parent=5 // pred_fallthru
      _
  $region6: #{dgcnn_semseg_forward.8} parent=0 // loop_footer
    %s13 = sadd.s32 1, %s9
  $region7: #{dgcnn_semseg_forward.8} parent=0 // loop_footer_branch
    %8 = sbr.rel target = $region3
  $region8: #{dgcnn_semseg_forward.8} parent=0 // loop_exit
    _

// kernel: dgcnn_semseg_forward.10
$region0: #{dgcnn_semseg_forward.10}
  #allocation0 [shape = 'u32[]', space=smem, size = 0x4, offset = 0x4, fixed_abs, tag = 'smem constant byte address 0x4 - core index']
  #allocation1 [shape = 'u32[144,128]{1,0:T(1,128)}', space=vmem, size = 0x12000, scoped, tag = 'internal scratch']
  %s0 = inlined_call_operand.vmem [shape: f32[2,32,64], index: 0, kind: input, shape index: {}, may-alias: {0,1}]
  %s1 = inlined_call_operand.vmem [shape: f32[2,32,64], index: 1, kind: input, shape index: {}, may-alias: {0,1}]
  %s2 = inlined_call_operand.vmem [shape: f32[2,1,32], index: 2, kind: input, shape index: {}]
  %s3 = inlined_call_operand.vmem [shape: f32[2,32,32], index: 3, kind: output, shape index: {}]
  %s4 = sld [smem:[#allocation0]]
  $region45: #{dgcnn_semseg_forward.10} parent=0
    _
  %s6 = ssub.s32 1, %s4
  %s7 = scalar_select 0, %s6, %s4
  loop: start=0, step=1, limit=4
  $region2: #{dgcnn_semseg_forward.10} parent=0 // loop_pre_header
    _
  $region3: #{dgcnn_semseg_forward.10} parent=0 // loop_header
    %s9 = sphi 0, %s13
    %p10 = scmp.ge.s32.totalorder %s9, 4
    %s16 = sphi 0, %s28
    %s17 = sphi 0, %s24
    %s18 = sphi 0, %s16
    %s19 = sphi 0, %s17
    %s20 = sphi 0, %s18
    %s21 = sphi 0, %s19
    %s33 = sphi 0, %s35
    %s36 = sphi 0, %s33
    %s37 = sphi 0, %s36
    %s53 = sphi 0, %s37
    %s59 = sphi 0, %s61
    %s62 = sphi 0, %s59
    %s63 = sphi 0, %s62
    %s79 = sphi 0, %s63
    %s85 = sphi 0, %s87
    %s88 = sphi 0, %s85
    %s89 = sphi 0, %s88
    %s105 = sphi 0, %s89
    %s113 = sphi 0, %s115
    %s116 = sphi 0, %s113
    %s117 = sphi 0, %s116
    %s133 = sphi 0, %s117
  $region4: #{dgcnn_semseg_forward.10} parent=0 // loop_header_branch
    %12 = sbr.rel (%p10) target = $region8
  $region5: #{dgcnn_semseg_forward.10} parent=0 // loop_body
    %s14 = ssub.s32 %s9, 1
    %s15 = ssub.s32 %s9, 2
    %s22 = sadd.s32 1, %s17
    %p23 = scmp.ge.s32.totalorder %s22, 1
    %s24 = scalar_select %p23, 0, %s22
    %s25 = sadd.s32 1, %s16
    %s26 = scalar_select %p23, %s25, %s16
    %p27 = scmp.ge.s32.totalorder %s26, 2
    %s28 = scalar_select %p27, 0, %s26
    %s29 = ssub.s32 %s16, %s28
    %s30 = ssub.s32 %s17, %s24
    %s31 = sor.u32 %s29, %s30
    %p32 = scmp.eq.s32.totalorder %s31, 0
    %s34 = sadd.s32 %s33, 1
    %s35 = scalar_select %p32, %s33, %s34
    %p38 = pneg %p32
    %p39 = scmp.eq.s32.totalorder %s9, 1
    %p40 = por %p38, %p39
    %p41 = scmp.ne.s32.totalorder %s33, %s36
    %p42 = scmp.eq.s32.totalorder %s9, 0
    %p43 = por %p41, %p42
    %p44 = scmp.ne.s32.totalorder %s33, %s36
    %p45 = scmp.eq.s32.totalorder %s14, 1
    %p46 = por %p44, %p45
    %p47 = scmp.ne.s32.totalorder %s36, %s37
    %p48 = scmp.eq.s32.totalorder %s14, 0
    %p49 = por %p47, %p48
    %p50 = scmp.ne.s32.totalorder %s36, %s37
    %p51 = scmp.eq.s32.totalorder %s15, 1
    %p52 = por %p50, %p51
    %p54 = scmp.ne.s32.totalorder %s37, %s53
    %p55 = scmp.eq.s32.totalorder %s15, 0
    %p56 = por %p54, %p55
    %s57 = ssub.s32 %s16, %s28
    %p58 = scmp.eq.s32.totalorder %s57, 0
    %s60 = sadd.s32 %s59, 1
    %s61 = scalar_select %p58, %s59, %s60
    %p64 = pneg %p58
    %p65 = scmp.eq.s32.totalorder %s9, 1
    %p66 = por %p64, %p65
    %p67 = scmp.ne.s32.totalorder %s59, %s62
    %p68 = scmp.eq.s32.totalorder %s9, 0
    %p69 = por %p67, %p68
    %p70 = scmp.ne.s32.totalorder %s59, %s62
    %p71 = scmp.eq.s32.totalorder %s14, 1
    %p72 = por %p70, %p71
    %p73 = scmp.ne.s32.totalorder %s62, %s63
    %p74 = scmp.eq.s32.totalorder %s14, 0
    %p75 = por %p73, %p74
    %p76 = scmp.ne.s32.totalorder %s62, %s63
    %p77 = scmp.eq.s32.totalorder %s15, 1
    %p78 = por %p76, %p77
    %p80 = scmp.ne.s32.totalorder %s63, %s79
    %p81 = scmp.eq.s32.totalorder %s15, 0
    %p82 = por %p80, %p81
    %s83 = ssub.s32 %s16, %s28
    %p84 = scmp.eq.s32.totalorder %s83, 0
    %s86 = sadd.s32 %s85, 1
    %s87 = scalar_select %p84, %s85, %s86
    %p90 = pneg %p84
    %p91 = scmp.eq.s32.totalorder %s9, 1
    %p92 = por %p90, %p91
    %p93 = scmp.ne.s32.totalorder %s85, %s88
    %p94 = scmp.eq.s32.totalorder %s9, 0
    %p95 = por %p93, %p94
    %p96 = scmp.ne.s32.totalorder %s85, %s88
    %p97 = scmp.eq.s32.totalorder %s14, 1
    %p98 = por %p96, %p97
    %p99 = scmp.ne.s32.totalorder %s88, %s89
    %p100 = scmp.eq.s32.totalorder %s14, 0
    %p101 = por %p99, %p100
    %p102 = scmp.ne.s32.totalorder %s88, %s89
    %p103 = scmp.eq.s32.totalorder %s15, 1
    %p104 = por %p102, %p103
    %p106 = scmp.ne.s32.totalorder %s89, %s105
    %p107 = scmp.eq.s32.totalorder %s15, 0
    %p108 = por %p106, %p107
    %s109 = ssub.s32 %s16, %s28
    %s110 = ssub.s32 %s17, %s24
    %s111 = sor.u32 %s109, %s110
    %p112 = scmp.eq.s32.totalorder %s111, 0
    %s114 = sadd.s32 %s113, 1
    %s115 = scalar_select %p112, %s113, %s114
    %p118 = pneg %p112
    %p119 = scmp.eq.s32.totalorder %s9, 1
    %p120 = por %p118, %p119
    %p121 = scmp.ne.s32.totalorder %s113, %s116
    %p122 = scmp.eq.s32.totalorder %s9, 0
    %p123 = por %p121, %p122
    %p124 = scmp.ne.s32.totalorder %s113, %s116
    %p125 = scmp.eq.s32.totalorder %s14, 1
    %p126 = por %p124, %p125
    %p127 = scmp.ne.s32.totalorder %s116, %s117
    %p128 = scmp.eq.s32.totalorder %s14, 0
    %p129 = por %p127, %p128
    %p130 = scmp.ne.s32.totalorder %s116, %s117
    %p131 = scmp.eq.s32.totalorder %s15, 1
    %p132 = por %p130, %p131
    %p134 = scmp.ne.s32.totalorder %s117, %s133
    %p135 = scmp.eq.s32.totalorder %s15, 0
    %p136 = por %p134, %p135
    %p137 = scmp.le.s32.totalorder 1, %s9
    %p138 = scmp.lt.s32.totalorder %s9, 3
    %p139 = pnand %p137, %p138
    %p140 = pneg %p139
    // Predicated region
    $region9: #{dgcnn_semseg_forward.10} parent=5 // pred_check
      _
    $region10: #{dgcnn_semseg_forward.10} parent=5 // pred_check_branch
      %142 = sbr.rel (%p139) target = $region12
    $region11: #{dgcnn_semseg_forward.10} parent=5 // pred_region
      %s143 = ssub.s32 %s9, 1
    $region12: #{dgcnn_semseg_forward.10} parent=5 // pred_fallthru
      _
    %p144 = scmp.lt.s32.totalorder %s9, 2
    // Predicated region
    $region13: #{dgcnn_semseg_forward.10} parent=5 // pred_check
      %p145 = pneg %p144
    $region14: #{dgcnn_semseg_forward.10} parent=5 // pred_check_branch
      %147 = sbr.rel (%p145) target = $region16
    $region15: #{dgcnn_semseg_forward.10} parent=5 // pred_region
      // Predicated region
      $region17: #{dgcnn_semseg_forward.10} parent=15 // pred_check
        %p148 = pneg %p43
      $region18: #{dgcnn_semseg_forward.10} parent=15 // pred_check_branch
        %150 = sbr.rel (%p148) target = $region20
      $region19: #{dgcnn_semseg_forward.10} parent=15 // pred_region
        %s151 = smul.u32 4, %s17
        %p152 = scmp.lt.s32.totalorder %s16, 1
        %s153 = scalar_select %p152, %s16, 1
        %p154 = scmp.lt.s32.totalorder %s151, 3
        %s155 = scalar_select %p154, %s151, 3
        %s156 = smul.addr %s153, 4
        %s157 = sadd.s32 %s155, %s156
        %s158 = smul.addr %s157, 8
        %s159 = scalar_lea.vmem %s0, %s158
        %s160 = smul.u32 4, %s17
      $region20: #{dgcnn_semseg_forward.10} parent=15 // pred_fallthru
        _
      // Predicated region
      $region21: #{dgcnn_semseg_forward.10} parent=15 // pred_check
        %p161 = pneg %p69
      $region22: #{dgcnn_semseg_forward.10} parent=15 // pred_check_branch
        %163 = sbr.rel (%p161) target = $region24
      $region23: #{dgcnn_semseg_forward.10} parent=15 // pred_region
        %p164 = scmp.lt.s32.totalorder %s16, 1
        %s165 = scalar_select %p164, %s16, 1
        %s166 = smul.addr %s165, 4
        %s167 = smul.addr %s166, 8
        %s168 = scalar_lea.vmem %s1, %s167
      $region24: #{dgcnn_semseg_forward.10} parent=15 // pred_fallthru
        _
      // Predicated region
      $region25: #{dgcnn_semseg_forward.10} parent=15 // pred_check
        %p169 = pneg %p95
      $region26: #{dgcnn_semseg_forward.10} parent=15 // pred_check_branch
        %171 = sbr.rel (%p169) target = $region28
      $region27: #{dgcnn_semseg_forward.10} parent=15 // pred_region
        %p172 = scmp.lt.s32.totalorder %s16, 1
        %s173 = scalar_select %p172, %s16, 1
        %s174 = scalar_lea.vmem %s2, %s173
      $region28: #{dgcnn_semseg_forward.10} parent=15 // pred_fallthru
        _
    $region16: #{dgcnn_semseg_forward.10} parent=5 // pred_fallthru
      _
    %p175 = scmp.le.s32.totalorder 1, %s9
    %p176 = scmp.lt.s32.totalorder %s9, 3
    %p177 = pnand %p175, %p176
    %p178 = pneg %p177
    // Predicated region
    $region29: #{dgcnn_semseg_forward.10} parent=5 // pred_check
      _
    $region30: #{dgcnn_semseg_forward.10} parent=5 // pred_check_branch
      %180 = sbr.rel (%p177) target = $region32
    $region31: #{dgcnn_semseg_forward.10} parent=5 // pred_region
      %s181 = ssub.s32 %s9, 1
      %s182 = smul.u32 4, %s19
      %p183 = scmp.lt.s32.totalorder %s18, 1
      %s184 = scalar_select %p183, %s18, 1
      %p185 = scmp.lt.s32.totalorder %s182, 3
      %s186 = scalar_select %p185, %s182, 3
      %s187 = smul.addr %s184, 4
      %s188 = sadd.s32 %s186, %s187
      %s189 = smul.addr %s188, 8
      %s190 = scalar_lea.vmem %s0, %s189
      %p191 = pneg %p49
      %p192 = pneg %p46
      %p193 = scmp.lt.s32.totalorder %s18, 1
      %s194 = scalar_select %p193, %s18, 1
      %s195 = smul.addr %s194, 4
      %s196 = smul.addr %s195, 8
      %s197 = scalar_lea.vmem %s1, %s196
      %p198 = pneg %p75
      %p199 = pneg %p72
      %p200 = scmp.lt.s32.totalorder %s18, 1
      %s201 = scalar_select %p200, %s18, 1
      %s202 = scalar_lea.vmem %s2, %s201
      %p203 = pneg %p101
      %p204 = pneg %p98
      %p205 = pneg %p129
      %p206 = pneg %p126
      %s207 = smul.u32 4, %s19
      %p208 = scmp.lt.s32.totalorder %s18, 1
      %s209 = scalar_select %p208, %s18, 1
      %p210 = scmp.lt.s32.totalorder %s207, 3
      %s211 = scalar_select %p210, %s207, 3
      %s212 = smul.addr %s209, 4
      %s213 = sadd.s32 %s211, %s212
      %s214 = smul.addr %s213, 8
      %s215 = scalar_lea.vmem %s3, %s214
      %s216 = smul.u32 4, %s19
      %p217 = scmp.lt.s32.totalorder %s18, 1
      %s218 = scalar_select %p217, %s18, 1
      %p219 = scmp.lt.s32.totalorder %s216, 3
      %s220 = scalar_select %p219, %s216, 3
      %s221 = smul.addr %s218, 4
      %s222 = sadd.s32 %s220, %s221
      %s223 = smul.addr %s222, 8
      %s224 = scalar_lea.vmem %s0, %s223
      %s225 = smul.u32 4, %s19
      %p226 = scmp.lt.s32.totalorder %s18, 1
      %s227 = scalar_select %p226, %s18, 1
      %s228 = smul.addr %s227, 4
      %s229 = smul.addr %s228, 8
      %s230 = scalar_lea.vmem %s1, %s229
      %p231 = scmp.lt.s32.totalorder %s18, 1
      %s232 = scalar_select %p231, %s18, 1
      %s233 = scalar_lea.vmem %s2, %s232
      %s234 = smul.u32 4, %s19
      %p235 = scmp.lt.s32.totalorder %s18, 1
      %s236 = scalar_select %p235, %s18, 1
      %p237 = scmp.lt.s32.totalorder %s234, 3
      %s238 = scalar_select %p237, %s234, 3
      %s239 = smul.addr %s236, 4
      %s240 = sadd.s32 %s238, %s239
      %s241 = smul.addr %s240, 8
      %s242 = scalar_lea.vmem %s3, %s241
      %s243 = smul.u32 4, %s19
      %v244 = vld [vmem:[%s224] sm:$0xff]
      %v245 = vld [vmem:[%s224 + $0x8] sm:$0xff]
      %v246 = vld [vmem:[%s224 + $0x10] sm:$0xff]
      %v247 = vld [vmem:[%s224 + $0x18] sm:$0xff]
      %v248 = vld [vmem:[%s230] sm:$0xff]
      %v249 = vld [vmem:[%s230 + $0x8] sm:$0xff]
      %v250 = vld [vmem:[%s230 + $0x10] sm:$0xff]
      %v251 = vld [vmem:[%s230 + $0x18] sm:$0xff]
      %vm252 = vcmask 523264
      %v254 = vsel %vm252, %v244, 0
      %v257 = vsel %vm252, %v245, 0
      %v260 = vsel %vm252, %v246, 0
      %v263 = vsel %vm252, %v247, 0
      %v266 = vsel %vm252, %v248, 0
      %v269 = vsel %vm252, %v249, 0
      %v272 = vsel %vm252, %v250, 0
      %v275 = vsel %vm252, %v251, 0
      %277 = vmatprep.subr.mxu0 0.0
      %278 = vmatpush1.xpose.msra.mxu0 0.0
      %279 = vmatprep.subr.mxu0 0.0
      %280 = vmatpush1.xpose.msra.mxu0 0.0
      %281 = vmatprep.subr.mxu0 0.0
      %282 = vmatpush1.xpose.msra.mxu0 0.0
      %283 = vmatprep.subr.mxu0 0.0
      %284 = vmatpush1.xpose.msra.mxu0 0.0
      %285 = vmatprep.subr.mxu0 0.0
      %286 = vmatpush1.xpose.msra.mxu0 0.0
      %287 = vmatprep.subr.mxu0 0.0
      %288 = vmatpush1.xpose.msra.mxu0 0.0
      %289 = vmatprep.subr.mxu0 0.0
      %290 = vmatpush1.xpose.msra.mxu0 0.0
      %291 = vmatprep.subr.mxu0 0.0
      %292 = vmatpush1.xpose.msra.mxu0 0.0
      %293 = vmatprep.subr.mxu0 0.0
      %294 = vmatpush1.xpose.msra.mxu0 0.0
      %295 = vmatprep.subr.mxu0 0.0
      %296 = vmatpush1.xpose.msra.mxu0 0.0
      %297 = vmatprep.subr.mxu0 0.0
      %298 = vmatpush1.xpose.msra.mxu0 0.0
      %299 = vmatprep.subr.mxu0 0.0
      %300 = vmatpush1.xpose.msra.mxu0 0.0
      %301 = vmatprep.subr.mxu0 0.0
      %302 = vmatpush1.xpose.msra.mxu0 %v275
      %303 = vmatprep.subr.mxu0 0.0
      %304 = vmatpush1.xpose.msra.mxu0 %v272
      %305 = vmatprep.subr.mxu0 0.0
      %306 = vmatpush1.xpose.msra.mxu0 %v269
      %307 = vmatprep.subr.mxu0 0.0
      %308 = vmatpush1.xpose.msra.mxu0 %v266
      %309 = vmatprep.subr.mxu0 0.0
      %310 = vmatpush2.xpose.msra.mxu0 0.0
      %311 = vmatprep.subr.mxu0 0.0
      %312 = vmatpush2.xpose.msra.mxu0 0.0
      %313 = vmatprep.subr.mxu0 0.0
      %314 = vmatpush2.xpose.msra.mxu0 0.0
      %315 = vmatprep.subr.mxu0 0.0
      %316 = vmatpush2.xpose.msra.mxu0 0.0
      %317 = vmatprep.subr.mxu0 0.0
      %318 = vmatpush2.xpose.msra.mxu0 0.0
      %319 = vmatprep.subr.mxu0 0.0
      %320 = vmatpush2.xpose.msra.mxu0 0.0
      %321 = vmatprep.subr.mxu0 0.0
      %322 = vmatpush2.xpose.msra.mxu0 0.0
      %323 = vmatprep.subr.mxu0 0.0
      %324 = vmatpush2.xpose.msra.mxu0 0.0
      %325 = vmatprep.subr.mxu0 0.0
      %326 = vmatpush2.xpose.msra.mxu0 0.0
      %327 = vmatprep.subr.mxu0 0.0
      %328 = vmatpush2.xpose.msra.mxu0 0.0
      %329 = vmatprep.subr.mxu0 0.0
      %330 = vmatpush2.xpose.msra.mxu0 0.0
      %331 = vmatprep.subr.mxu0 0.0
      %332 = vmatpush2.xpose.msra.mxu0 0.0
      %333 = vmatprep.subr.mxu0 0.0
      %334 = vmatpush2.xpose.msra.mxu0 0.0
      %335 = vmatprep.subr.mxu0 0.0
      %336 = vmatpush2.xpose.msra.mxu0 0.0
      %337 = vmatprep.subr.mxu0 0.0
      %338 = vmatpush2.xpose.msra.mxu0 0.0
      %339 = vmatprep.subr.mxu0 0.0
      %340 = vmatpush2.xpose.msra.mxu0 0.0
      %341 = vmatprep.mubr.f32.mxu0 0.0
      %342 = vmatmul.mubr.f32.gmra.mxu0 %v254
      %v343 = vpop.f32.mrf.mxu0
      %v344 = vadd.f32 0.0, %v343
      %v345 = vpop.f32.mrf.mxu0
      %346 = vmatprep.mubr.f32.mxu0 0.0
      %347 = vmatmul.mubr.f32.gmra.mxu0 %v257
      %v348 = vpop.f32.mrf.mxu0
      %v349 = vadd.f32 0.0, %v348
      %v350 = vpop.f32.mrf.mxu0
      %351 = vmatprep.mubr.f32.mxu0 0.0
      %352 = vmatmul.mubr.f32.gmra.mxu0 %v260
      %v353 = vpop.f32.mrf.mxu0
      %v354 = vadd.f32 0.0, %v353
      %v355 = vpop.f32.mrf.mxu0
      %356 = vmatprep.mubr.f32.mxu0 0.0
      %357 = vmatmul.mubr.f32.gmra.mxu0 %v263
      %v358 = vpop.f32.mrf.mxu0
      %v359 = vadd.f32 0.0, %v358
      %v360 = vpop.f32.mrf.mxu0
      %361 = vdwg.mxu0
      %v362 = vmul.f32 %v244, %v244
      %v363 = vmul.f32 %v245, %v245
      %v364 = vmul.f32 %v246, %v246
      %v365 = vmul.f32 %v247, %v247
      %v366 = vsel %vm252, %v362, 0.0
      %367 = vadd.xlane.f32.xlu0 %v366
      %v368 = vpop.xlane.xlu0 %367
      %v369 = vsel %vm252, %v363, 0.0
      %370 = vadd.xlane.f32.xlu0 %v369
      %v371 = vpop.xlane.xlu0 %370
      %v372 = vsel %vm252, %v364, 0.0
      %373 = vadd.xlane.f32.xlu0 %v372
      %v374 = vpop.xlane.xlu0 %373
      %v375 = vsel %vm252, %v365, 0.0
      %376 = vadd.xlane.f32.xlu0 %v375
      %v377 = vpop.xlane.xlu0 %376
      %v378 = vmul.f32 %v344, 2.0
      %v379 = vmul.f32 %v349, 2.0
      %v380 = vmul.f32 %v354, 2.0
      %v381 = vmul.f32 %v359, 2.0
      %v382 = vsub.f32 %v378, %v368
      %v383 = vsub.f32 %v379, %v371
      %v384 = vsub.f32 %v380, %v374
      %v385 = vsub.f32 %v381, %v377
      %v386 = vld [vmem:[%s233] sm:$0x1]
      %v388 = vlaneseq
      %v389 = vshrl.u32 %v388, 7
      %v390 = vsub.s32 0, %v389
      %v391 = vrot.slane %v386, %v390
      %v393 = vsub.f32 %v382, %v391
      %v394 = vsub.f32 %v383, %v391
      %v395 = vsub.f32 %v384, %v391
      %v396 = vsub.f32 %v385, %v391
      %vm397 = vcmask 261120
      %398 = vst.msk [vmem:[%s242] sm:$0xff] %vm397, %v393
      %399 = vst.msk [vmem:[%s242 + $0x8] sm:$0xff] %vm397, %v394
      %400 = vst.msk [vmem:[%s242 + $0x10] sm:$0xff] %vm397, %v395
      %401 = vst.msk [vmem:[%s242 + $0x18] sm:$0xff] %vm397, %v396
      %s402 = smul.u32 4, %s19
      %p403 = scmp.lt.s32.totalorder %s18, 1
      %s404 = scalar_select %p403, %s18, 1
      %p405 = scmp.lt.s32.totalorder %s402, 3
      %s406 = scalar_select %p405, %s402, 3
      %s407 = smul.addr %s404, 4
      %s408 = sadd.s32 %s406, %s407
      %s409 = smul.addr %s408, 8
      %s410 = scalar_lea.vmem %s3, %s409
      // Predicated region
      $region33: #{dgcnn_semseg_forward.10} parent=31 // pred_check
        %p411 = pneg %p126
      $region34: #{dgcnn_semseg_forward.10} parent=31 // pred_check_branch
        %413 = sbr.rel (%p411) target = $region36
      $region35: #{dgcnn_semseg_forward.10} parent=31 // pred_region
        %s414 = smul.u32 4, %s19
      $region36: #{dgcnn_semseg_forward.10} parent=31 // pred_fallthru
        _
    $region32: #{dgcnn_semseg_forward.10} parent=5 // pred_fallthru
      _
    %p415 = scmp.le.s32.totalorder 2, %s9
    // Predicated region
    $region37: #{dgcnn_semseg_forward.10} parent=5 // pred_check
      %p416 = pneg %p415
    $region38: #{dgcnn_semseg_forward.10} parent=5 // pred_check_branch
      %418 = sbr.rel (%p416) target = $region40
    $region39: #{dgcnn_semseg_forward.10} parent=5 // pred_region
      %s419 = ssub.s32 %s9, 2
      // Predicated region
      $region41: #{dgcnn_semseg_forward.10} parent=39 // pred_check
        %p420 = pneg %p132
      $region42: #{dgcnn_semseg_forward.10} parent=39 // pred_check_branch
        %422 = sbr.rel (%p420) target = $region44
      $region43: #{dgcnn_semseg_forward.10} parent=39 // pred_region
        %s423 = smul.u32 4, %s21
        %p424 = scmp.lt.s32.totalorder %s20, 1
        %s425 = scalar_select %p424, %s20, 1
        %p426 = scmp.lt.s32.totalorder %s423, 3
        %s427 = scalar_select %p426, %s423, 3
        %s428 = smul.addr %s425, 4
        %s429 = sadd.s32 %s427, %s428
        %s430 = smul.addr %s429, 8
        %s431 = scalar_lea.vmem %s3, %s430
      $region44: #{dgcnn_semseg_forward.10} parent=39 // pred_fallthru
        _
    $region40: #{dgcnn_semseg_forward.10} parent=5 // pred_fallthru
      _
  $region6: #{dgcnn_semseg_forward.10} parent=0 // loop_footer
    %s13 = sadd.s32 1, %s9
  $region7: #{dgcnn_semseg_forward.10} parent=0 // loop_footer_branch
    %8 = sbr.rel target = $region3
  $region8: #{dgcnn_semseg_forward.10} parent=0 // loop_exit
    _

// kernel: dgcnn_semseg_forward.9
$region0: #{dgcnn_semseg_forward.9}
  #allocation0 [shape = 'u32[]', space=smem, size = 0x4, offset = 0x4, fixed_abs, tag = 'smem constant byte address 0x4 - core index']
  #allocation1 [shape = 'u32[144,128]{1,0:T(1,128)}', space=vmem, size = 0x12000, scoped, tag = 'internal scratch']
  %s0 = inlined_call_operand.vmem [shape: bf16[8,64,6], index: 0, kind: input, shape index: {}]
  %s1 = inlined_call_operand.vmem [shape: bf16[64,6], index: 1, kind: input, shape index: {}]
  %s2 = inlined_call_operand.vmem [shape: bf16[6,64], index: 2, kind: input, shape index: {}]
  %s3 = inlined_call_operand.vmem [shape: bf16[6,64], index: 3, kind: input, shape index: {}]
  %s4 = inlined_call_operand.vmem [shape: f32[1,64], index: 4, kind: input, shape index: {}]
  %s5 = inlined_call_operand.vmem [shape: f32[1,64], index: 5, kind: input, shape index: {}]
  %s6 = inlined_call_operand.vmem [shape: bf16[64,64], index: 6, kind: input, shape index: {}]
  %s7 = inlined_call_operand.vmem [shape: f32[1,64], index: 7, kind: input, shape index: {}]
  %s8 = inlined_call_operand.vmem [shape: f32[1,64], index: 8, kind: input, shape index: {}]
  %s9 = inlined_call_operand.vmem [shape: f32[64,64], index: 9, kind: output, shape index: {}]
  %s10 = sld [smem:[#allocation0]]
  $region46: #{dgcnn_semseg_forward.9} parent=0
    _
  %s12 = ssub.s32 1, %s10
  %s13 = scalar_select 0, %s12, %s10
  // Predicated region
  $region2: #{dgcnn_semseg_forward.9} parent=0 // pred_check
    _
  $region3: #{dgcnn_semseg_forward.9} parent=0 // pred_check_branch
    %15 = sbr.rel (0) target = $region5
  $region4: #{dgcnn_semseg_forward.9} parent=0 // pred_region
    _
  $region5: #{dgcnn_semseg_forward.9} parent=0 // pred_fallthru
    _
  // Predicated region
  $region6: #{dgcnn_semseg_forward.9} parent=0 // pred_check
    _
  $region7: #{dgcnn_semseg_forward.9} parent=0 // pred_check_branch
    %17 = sbr.rel (0) target = $region9
  $region8: #{dgcnn_semseg_forward.9} parent=0 // pred_region
    _
  $region9: #{dgcnn_semseg_forward.9} parent=0 // pred_fallthru
    _
  // Predicated region
  $region10: #{dgcnn_semseg_forward.9} parent=0 // pred_check
    _
  $region11: #{dgcnn_semseg_forward.9} parent=0 // pred_check_branch
    %19 = sbr.rel (0) target = $region13
  $region12: #{dgcnn_semseg_forward.9} parent=0 // pred_region
    _
  $region13: #{dgcnn_semseg_forward.9} parent=0 // pred_fallthru
    _
  // Predicated region
  $region14: #{dgcnn_semseg_forward.9} parent=0 // pred_check
    _
  $region15: #{dgcnn_semseg_forward.9} parent=0 // pred_check_branch
    %21 = sbr.rel (0) target = $region17
  $region16: #{dgcnn_semseg_forward.9} parent=0 // pred_region
    _
  $region17: #{dgcnn_semseg_forward.9} parent=0 // pred_fallthru
    _
  // Predicated region
  $region18: #{dgcnn_semseg_forward.9} parent=0 // pred_check
    _
  $region19: #{dgcnn_semseg_forward.9} parent=0 // pred_check_branch
    %23 = sbr.rel (0) target = $region21
  $region20: #{dgcnn_semseg_forward.9} parent=0 // pred_region
    _
  $region21: #{dgcnn_semseg_forward.9} parent=0 // pred_fallthru
    _
  // Predicated region
  $region22: #{dgcnn_semseg_forward.9} parent=0 // pred_check
    _
  $region23: #{dgcnn_semseg_forward.9} parent=0 // pred_check_branch
    %25 = sbr.rel (0) target = $region25
  $region24: #{dgcnn_semseg_forward.9} parent=0 // pred_region
    _
  $region25: #{dgcnn_semseg_forward.9} parent=0 // pred_fallthru
    _
  // Predicated region
  $region26: #{dgcnn_semseg_forward.9} parent=0 // pred_check
    _
  $region27: #{dgcnn_semseg_forward.9} parent=0 // pred_check_branch
    %27 = sbr.rel (0) target = $region29
  $region28: #{dgcnn_semseg_forward.9} parent=0 // pred_region
    _
  $region29: #{dgcnn_semseg_forward.9} parent=0 // pred_fallthru
    _
  // Predicated region
  $region30: #{dgcnn_semseg_forward.9} parent=0 // pred_check
    _
  $region31: #{dgcnn_semseg_forward.9} parent=0 // pred_check_branch
    %29 = sbr.rel (0) target = $region33
  $region32: #{dgcnn_semseg_forward.9} parent=0 // pred_region
    _
  $region33: #{dgcnn_semseg_forward.9} parent=0 // pred_fallthru
    _
  // Predicated region
  $region34: #{dgcnn_semseg_forward.9} parent=0 // pred_check
    _
  $region35: #{dgcnn_semseg_forward.9} parent=0 // pred_check_branch
    %31 = sbr.rel (0) target = $region37
  $region36: #{dgcnn_semseg_forward.9} parent=0 // pred_region
    _
  $region37: #{dgcnn_semseg_forward.9} parent=0 // pred_fallthru
    _
  %v33 = vld [vmem:[%s2] sm:$0x7]
  %v34 = vld [vmem:[%s4] sm:$0x1]
  %v35 = vld [vmem:[%s5] sm:$0x1]
  %v36 = vld [vmem:[%s1] sm:$0xf]
  %v37 = vld [vmem:[%s1 + $0x4] sm:$0xf]
  %v38 = vld [vmem:[%s1 + $0x8] sm:$0xf]
  %v39 = vld [vmem:[%s1 + $0xc] sm:$0xf]
  %v40 = vld [vmem:[%s1 + $0x10] sm:$0xf]
  %v41 = vld [vmem:[%s1 + $0x14] sm:$0xf]
  %v42 = vld [vmem:[%s1 + $0x18] sm:$0xf]
  %v43 = vld [vmem:[%s1 + $0x1c] sm:$0xf]
  %v44 = vld [vmem:[%s3] sm:$0x7]
  %v53 = vunpack.c.l.b16 %v36
  %v54 = vunpack.c.l.b16 %v37
  %v55 = vunpack.c.l.b16 %v38
  %v56 = vunpack.c.l.b16 %v39
  %v57 = vunpack.c.l.b16 %v40
  %v58 = vunpack.c.l.b16 %v41
  %v59 = vunpack.c.l.b16 %v42
  %v60 = vunpack.c.l.b16 %v43
  %v61 = vpack.c.b16 %v54, %v53
  %v62 = vpack.c.b16 %v56, %v55
  %v63 = vpack.c.b16 %v58, %v57
  %v64 = vpack.c.b16 %v60, %v59
  %vm65 = vcmask 48128
  %v67 = vsel %vm65, %v61, 0
  %v70 = vsel %vm65, %v62, 0
  %v73 = vsel %vm65, %v63, 0
  %v76 = vsel %vm65, %v64, 0
  %vm78 = vcmask 1042432
  %v80 = vsel %vm78, %v44, 0
  %82 = vmatprep.subr.bf16.mxu0 0
  %83 = vmatpush1.bf16.msra.mxu0 0
  %84 = vmatprep.subr.bf16.mxu0 0
  %85 = vmatpush1.bf16.msra.mxu0 0
  %86 = vmatprep.subr.bf16.mxu0 0
  %87 = vmatpush1.bf16.msra.mxu0 0
  %88 = vmatprep.subr.bf16.mxu0 0
  %89 = vmatpush1.bf16.msra.mxu0 0
  %90 = vmatprep.subr.bf16.mxu0 0
  %91 = vmatpush1.bf16.msra.mxu0 0
  %92 = vmatprep.subr.bf16.mxu0 0
  %93 = vmatpush1.bf16.msra.mxu0 0
  %94 = vmatprep.subr.bf16.mxu0 0
  %95 = vmatpush1.bf16.msra.mxu0 0
  %96 = vmatprep.subr.bf16.mxu0 0
  %97 = vmatpush1.bf16.msra.mxu0 %v80
  %98 = vmatprep.subr.bf16.mxu0 0
  %99 = vmatpush2.bf16.msra.mxu0 0
  %100 = vmatprep.subr.bf16.mxu0 0
  %101 = vmatpush2.bf16.msra.mxu0 0
  %102 = vmatprep.subr.bf16.mxu0 0
  %103 = vmatpush2.bf16.msra.mxu0 0
  %104 = vmatprep.subr.bf16.mxu0 0
  %105 = vmatpush2.bf16.msra.mxu0 0
  %106 = vmatprep.subr.bf16.mxu0 0
  %107 = vmatpush2.bf16.msra.mxu0 0
  %108 = vmatprep.subr.bf16.mxu0 0
  %109 = vmatpush2.bf16.msra.mxu0 0
  %110 = vmatprep.subr.bf16.mxu0 0
  %111 = vmatpush2.bf16.msra.mxu0 0
  %112 = vmatprep.subr.bf16.mxu0 0
  %113 = vmatpush2.bf16.msra.mxu0 0
  %114 = vmatprep.mubr.bf16.mxu0 0
  %115 = vmatmul.mubr.bf16.gmra.mxu0 %v67
  %v116 = vpop.f32.mrf.mxu0
  %v117 = vadd.f32 0.0, %v116
  %v118 = vpop.f32.mrf.mxu0
  %v119 = vpop.f32.mrf.mxu0
  %v120 = vadd.f32 0.0, %v119
  %v121 = vpop.f32.mrf.mxu0
  %122 = vmatprep.mubr.bf16.mxu0 0
  %123 = vmatmul.mubr.bf16.gmra.mxu0 %v70
  %v124 = vpop.f32.mrf.mxu0
  %v125 = vadd.f32 0.0, %v124
  %v126 = vpop.f32.mrf.mxu0
  %v127 = vpop.f32.mrf.mxu0
  %v128 = vadd.f32 0.0, %v127
  %v129 = vpop.f32.mrf.mxu0
  %130 = vmatprep.mubr.bf16.mxu0 0
  %131 = vmatmul.mubr.bf16.gmra.mxu0 %v73
  %v132 = vpop.f32.mrf.mxu0
  %v133 = vadd.f32 0.0, %v132
  %v134 = vpop.f32.mrf.mxu0
  %v135 = vpop.f32.mrf.mxu0
  %v136 = vadd.f32 0.0, %v135
  %v137 = vpop.f32.mrf.mxu0
  %138 = vmatprep.mubr.bf16.mxu0 0
  %139 = vmatmul.mubr.bf16.gmra.mxu0 %v76
  %v140 = vpop.f32.mrf.mxu0
  %v141 = vadd.f32 0.0, %v140
  %v142 = vpop.f32.mrf.mxu0
  %v143 = vpop.f32.mrf.mxu0
  %v144 = vadd.f32 0.0, %v143
  %v145 = vpop.f32.mrf.mxu0
  %146 = vdwg.mxu0
  %v147 = vld [vmem:[%s6] sm:$0xf]
  %v148 = vld [vmem:[%s6 + $0x4] sm:$0xf]
  %v149 = vld [vmem:[%s6 + $0x8] sm:$0xf]
  %v150 = vld [vmem:[%s6 + $0xc] sm:$0xf]
  %v151 = vld [vmem:[%s6 + $0x10] sm:$0xf]
  %v152 = vld [vmem:[%s6 + $0x14] sm:$0xf]
  %v153 = vld [vmem:[%s6 + $0x18] sm:$0xf]
  %v154 = vld [vmem:[%s6 + $0x1c] sm:$0xf]
  %v155 = vld [vmem:[%s7] sm:$0x1]
  %v156 = vld [vmem:[%s8] sm:$0x1]
  %v157 = vld [vmem:[%s0] sm:$0xf]
  %v158 = vld [vmem:[%s0 + $0x4] sm:$0xf]
  %v159 = vld [vmem:[%s0 + $0x8] sm:$0xf]
  %v160 = vld [vmem:[%s0 + $0xc] sm:$0xf]
  %v161 = vld [vmem:[%s0 + $0x10] sm:$0xf]
  %v162 = vld [vmem:[%s0 + $0x14] sm:$0xf]
  %v163 = vld [vmem:[%s0 + $0x18] sm:$0xf]
  %v164 = vld [vmem:[%s0 + $0x1c] sm:$0xf]
  %v173 = vunpack.c.l.b16 %v157
  %v174 = vunpack.c.l.b16 %v158
  %v175 = vunpack.c.l.b16 %v159
  %v176 = vunpack.c.l.b16 %v160
  %v177 = vunpack.c.l.b16 %v161
  %v178 = vunpack.c.l.b16 %v162
  %v179 = vunpack.c.l.b16 %v163
  %v180 = vunpack.c.l.b16 %v164
  %v181 = vpack.c.b16 %v174, %v173
  %v182 = vpack.c.b16 %v176, %v175
  %v183 = vpack.c.b16 %v178, %v177
  %v184 = vpack.c.b16 %v180, %v179
  %v186 = vsel %vm65, %v181, 0
  %v189 = vsel %vm65, %v182, 0
  %v192 = vsel %vm65, %v183, 0
  %v195 = vsel %vm65, %v184, 0
  %v198 = vsel %vm78, %v33, 0
  %200 = vmatprep.subr.bf16.mxu0 0
  %201 = vmatpush1.bf16.msra.mxu0 0
  %202 = vmatprep.subr.bf16.mxu0 0
  %203 = vmatpush1.bf16.msra.mxu0 0
  %204 = vmatprep.subr.bf16.mxu0 0
  %205 = vmatpush1.bf16.msra.mxu0 0
  %206 = vmatprep.subr.bf16.mxu0 0
  %207 = vmatpush1.bf16.msra.mxu0 0
  %208 = vmatprep.subr.bf16.mxu0 0
  %209 = vmatpush1.bf16.msra.mxu0 0
  %210 = vmatprep.subr.bf16.mxu0 0
  %211 = vmatpush1.bf16.msra.mxu0 0
  %212 = vmatprep.subr.bf16.mxu0 0
  %213 = vmatpush1.bf16.msra.mxu0 0
  %214 = vmatprep.subr.bf16.mxu0 0
  %215 = vmatpush1.bf16.msra.mxu0 %v198
  %216 = vmatprep.subr.bf16.mxu0 0
  %217 = vmatpush2.bf16.msra.mxu0 0
  %218 = vmatprep.subr.bf16.mxu0 0
  %219 = vmatpush2.bf16.msra.mxu0 0
  %220 = vmatprep.subr.bf16.mxu0 0
  %221 = vmatpush2.bf16.msra.mxu0 0
  %222 = vmatprep.subr.bf16.mxu0 0
  %223 = vmatpush2.bf16.msra.mxu0 0
  %224 = vmatprep.subr.bf16.mxu0 0
  %225 = vmatpush2.bf16.msra.mxu0 0
  %226 = vmatprep.subr.bf16.mxu0 0
  %227 = vmatpush2.bf16.msra.mxu0 0
  %228 = vmatprep.subr.bf16.mxu0 0
  %229 = vmatpush2.bf16.msra.mxu0 0
  %230 = vmatprep.subr.bf16.mxu0 0
  %231 = vmatpush2.bf16.msra.mxu0 0
  %232 = vmatprep.mubr.bf16.mxu0 0
  %233 = vmatmul.mubr.bf16.gmra.mxu0 %v186
  %v234 = vpop.f32.mrf.mxu0
  %v235 = vadd.f32 %v117, %v234
  %v236 = vpop.f32.mrf.mxu0
  %v237 = vpop.f32.mrf.mxu0
  %v238 = vadd.f32 %v120, %v237
  %v239 = vpop.f32.mrf.mxu0
  %240 = vmatprep.mubr.bf16.mxu0 0
  %241 = vmatmul.mubr.bf16.gmra.mxu0 %v189
  %v242 = vpop.f32.mrf.mxu0
  %v243 = vadd.f32 %v125, %v242
  %v244 = vpop.f32.mrf.mxu0
  %v245 = vpop.f32.mrf.mxu0
  %v246 = vadd.f32 %v128, %v245
  %v247 = vpop.f32.mrf.mxu0
  %248 = vmatprep.mubr.bf16.mxu0 0
  %249 = vmatmul.mubr.bf16.gmra.mxu0 %v192
  %v250 = vpop.f32.mrf.mxu0
  %v251 = vadd.f32 %v133, %v250
  %v252 = vpop.f32.mrf.mxu0
  %v253 = vpop.f32.mrf.mxu0
  %v254 = vadd.f32 %v136, %v253
  %v255 = vpop.f32.mrf.mxu0
  %256 = vmatprep.mubr.bf16.mxu0 0
  %257 = vmatmul.mubr.bf16.gmra.mxu0 %v195
  %v258 = vpop.f32.mrf.mxu0
  %v259 = vadd.f32 %v141, %v258
  %v260 = vpop.f32.mrf.mxu0
  %v261 = vpop.f32.mrf.mxu0
  %v262 = vadd.f32 %v144, %v261
  %v263 = vpop.f32.mrf.mxu0
  %264 = vdwg.mxu0
  %v266 = vlaneseq
  %v267 = vshrl.u32 %v266, 7
  %v268 = vsub.s32 0, %v267
  %v269 = vrot.slane %v34, %v268
  %v271 = vmul.f32 %v235, %v269
  %v272 = vmul.f32 %v238, %v269
  %v273 = vmul.f32 %v243, %v269
  %v274 = vmul.f32 %v246, %v269
  %v275 = vmul.f32 %v251, %v269
  %v276 = vmul.f32 %v254, %v269
  %v277 = vmul.f32 %v259, %v269
  %v278 = vmul.f32 %v262, %v269
  %v280 = vlaneseq
  %v281 = vshrl.u32 %v280, 7
  %v282 = vsub.s32 0, %v281
  %v283 = vrot.slane %v35, %v282
  %v285 = vadd.f32 %v271, %v283
  %v286 = vadd.f32 %v272, %v283
  %v287 = vadd.f32 %v273, %v283
  %v288 = vadd.f32 %v274, %v283
  %v289 = vadd.f32 %v275, %v283
  %v290 = vadd.f32 %v276, %v283
  %v291 = vadd.f32 %v277, %v283
  %v292 = vadd.f32 %v278, %v283
  %vm293 = vcmp.ge.f32.partialorder %v285, 0.0
  %vm294 = vcmp.ge.f32.partialorder %v286, 0.0
  %vm295 = vcmp.ge.f32.partialorder %v287, 0.0
  %vm296 = vcmp.ge.f32.partialorder %v288, 0.0
  %vm297 = vcmp.ge.f32.partialorder %v289, 0.0
  %vm298 = vcmp.ge.f32.partialorder %v290, 0.0
  %vm299 = vcmp.ge.f32.partialorder %v291, 0.0
  %vm300 = vcmp.ge.f32.partialorder %v292, 0.0
  %v301 = vmul.f32 %v285, 0.2
  %v302 = vmul.f32 %v286, 0.2
  %v303 = vmul.f32 %v287, 0.2
  %v304 = vmul.f32 %v288, 0.2
  %v305 = vmul.f32 %v289, 0.2
  %v306 = vmul.f32 %v290, 0.2
  %v307 = vmul.f32 %v291, 0.2
  %v308 = vmul.f32 %v292, 0.2
  %v309 = vsel %vm293, %v285, %v301
  %v310 = vsel %vm294, %v286, %v302
  %v311 = vsel %vm295, %v287, %v303
  %v312 = vsel %vm296, %v288, %v304
  %v313 = vsel %vm297, %v289, %v305
  %v314 = vsel %vm298, %v290, %v306
  %v315 = vsel %vm299, %v291, %v307
  %v316 = vsel %vm300, %v292, %v308
  %v317 = vpack.c.bf16 %v310, %v309
  %v318 = vpack.c.bf16 %v312, %v311
  %v319 = vpack.c.bf16 %v314, %v313
  %v320 = vpack.c.bf16 %v316, %v315
  %v329 = vunpack.c.l.b16 %v147
  %v330 = vunpack.c.l.b16 %v148
  %v331 = vunpack.c.l.b16 %v149
  %v332 = vunpack.c.l.b16 %v150
  %v333 = vunpack.c.l.b16 %v151
  %v334 = vunpack.c.l.b16 %v152
  %v335 = vunpack.c.l.b16 %v153
  %v336 = vunpack.c.l.b16 %v154
  %v337 = vpack.c.b16 %v330, %v329
  %v338 = vpack.c.b16 %v332, %v331
  %v339 = vpack.c.b16 %v334, %v333
  %v340 = vpack.c.b16 %v336, %v335
  %vm345 = vcmask 523264
  %v347 = vsel %vm345, %v317, 0
  %v350 = vsel %vm345, %v318, 0
  %v353 = vsel %vm345, %v319, 0
  %v356 = vsel %vm345, %v320, 0
  %358 = vmatprep.subr.bf16.mxu0 0
  %359 = vmatpush1.bf16.msra.mxu0 0
  %360 = vmatprep.subr.bf16.mxu0 0
  %361 = vmatpush1.bf16.msra.mxu0 0
  %362 = vmatprep.subr.bf16.mxu0 0
  %363 = vmatpush1.bf16.msra.mxu0 0
  %364 = vmatprep.subr.bf16.mxu0 0
  %365 = vmatpush1.bf16.msra.mxu0 0
  %366 = vmatprep.subr.bf16.mxu0 0
  %367 = vmatpush1.bf16.msra.mxu0 %v340
  %368 = vmatprep.subr.bf16.mxu0 0
  %369 = vmatpush1.bf16.msra.mxu0 %v339
  %370 = vmatprep.subr.bf16.mxu0 0
  %371 = vmatpush1.bf16.msra.mxu0 %v338
  %372 = vmatprep.subr.bf16.mxu0 0
  %373 = vmatpush1.bf16.msra.mxu0 %v337
  %374 = vmatprep.subr.bf16.mxu0 0
  %375 = vmatpush2.bf16.msra.mxu0 0
  %376 = vmatprep.subr.bf16.mxu0 0
  %377 = vmatpush2.bf16.msra.mxu0 0
  %378 = vmatprep.subr.bf16.mxu0 0
  %379 = vmatpush2.bf16.msra.mxu0 0
  %380 = vmatprep.subr.bf16.mxu0 0
  %381 = vmatpush2.bf16.msra.mxu0 0
  %382 = vmatprep.subr.bf16.mxu0 0
  %383 = vmatpush2.bf16.msra.mxu0 0
  %384 = vmatprep.subr.bf16.mxu0 0
  %385 = vmatpush2.bf16.msra.mxu0 0
  %386 = vmatprep.subr.bf16.mxu0 0
  %387 = vmatpush2.bf16.msra.mxu0 0
  %388 = vmatprep.subr.bf16.mxu0 0
  %389 = vmatpush2.bf16.msra.mxu0 0
  %390 = vmatprep.mubr.bf16.mxu0 0
  %391 = vmatmul.mubr.bf16.gmra.mxu0 %v347
  %v392 = vpop.f32.mrf.mxu0
  %v393 = vadd.f32 0.0, %v392
  %v394 = vpop.f32.mrf.mxu0
  %v395 = vpop.f32.mrf.mxu0
  %v396 = vadd.f32 0.0, %v395
  %v397 = vpop.f32.mrf.mxu0
  %398 = vmatprep.mubr.bf16.mxu0 0
  %399 = vmatmul.mubr.bf16.gmra.mxu0 %v350
  %v400 = vpop.f32.mrf.mxu0
  %v401 = vadd.f32 0.0, %v400
  %v402 = vpop.f32.mrf.mxu0
  %v403 = vpop.f32.mrf.mxu0
  %v404 = vadd.f32 0.0, %v403
  %v405 = vpop.f32.mrf.mxu0
  %406 = vmatprep.mubr.bf16.mxu0 0
  %407 = vmatmul.mubr.bf16.gmra.mxu0 %v353
  %v408 = vpop.f32.mrf.mxu0
  %v409 = vadd.f32 0.0, %v408
  %v410 = vpop.f32.mrf.mxu0
  %v411 = vpop.f32.mrf.mxu0
  %v412 = vadd.f32 0.0, %v411
  %v413 = vpop.f32.mrf.mxu0
  %414 = vmatprep.mubr.bf16.mxu0 0
  %415 = vmatmul.mubr.bf16.gmra.mxu0 %v356
  %v416 = vpop.f32.mrf.mxu0
  %v417 = vadd.f32 0.0, %v416
  %v418 = vpop.f32.mrf.mxu0
  %v419 = vpop.f32.mrf.mxu0
  %v420 = vadd.f32 0.0, %v419
  %v421 = vpop.f32.mrf.mxu0
  %422 = vdwg.mxu0
  %v424 = vlaneseq
  %v425 = vshrl.u32 %v424, 7
  %v426 = vsub.s32 0, %v425
  %v427 = vrot.slane %v155, %v426
  %v429 = vmul.f32 %v393, %v427
  %v430 = vmul.f32 %v396, %v427
  %v431 = vmul.f32 %v401, %v427
  %v432 = vmul.f32 %v404, %v427
  %v433 = vmul.f32 %v409, %v427
  %v434 = vmul.f32 %v412, %v427
  %v435 = vmul.f32 %v417, %v427
  %v436 = vmul.f32 %v420, %v427
  %v438 = vlaneseq
  %v439 = vshrl.u32 %v438, 7
  %v440 = vsub.s32 0, %v439
  %v441 = vrot.slane %v156, %v440
  %v443 = vadd.f32 %v429, %v441
  %v444 = vadd.f32 %v430, %v441
  %v445 = vadd.f32 %v431, %v441
  %v446 = vadd.f32 %v432, %v441
  %v447 = vadd.f32 %v433, %v441
  %v448 = vadd.f32 %v434, %v441
  %v449 = vadd.f32 %v435, %v441
  %v450 = vadd.f32 %v436, %v441
  %vm451 = vcmp.ge.f32.partialorder %v443, 0.0
  %vm452 = vcmp.ge.f32.partialorder %v444, 0.0
  %vm453 = vcmp.ge.f32.partialorder %v445, 0.0
  %vm454 = vcmp.ge.f32.partialorder %v446, 0.0
  %vm455 = vcmp.ge.f32.partialorder %v447, 0.0
  %vm456 = vcmp.ge.f32.partialorder %v448, 0.0
  %vm457 = vcmp.ge.f32.partialorder %v449, 0.0
  %vm458 = vcmp.ge.f32.partialorder %v450, 0.0
  %v459 = vmul.f32 %v443, 0.2
  %v460 = vmul.f32 %v444, 0.2
  %v461 = vmul.f32 %v445, 0.2
  %v462 = vmul.f32 %v446, 0.2
  %v463 = vmul.f32 %v447, 0.2
  %v464 = vmul.f32 %v448, 0.2
  %v465 = vmul.f32 %v449, 0.2
  %v466 = vmul.f32 %v450, 0.2
  %v467 = vsel %vm451, %v443, %v459
  %v468 = vsel %vm452, %v444, %v460
  %v469 = vsel %vm453, %v445, %v461
  %v470 = vsel %vm454, %v446, %v462
  %v471 = vsel %vm455, %v447, %v463
  %v472 = vsel %vm456, %v448, %v464
  %v473 = vsel %vm457, %v449, %v465
  %v474 = vsel %vm458, %v450, %v466
  %s475 = scalar_lea.vmem %s0, 32
  %v476 = vld [vmem:[%s475] sm:$0xf]
  %v477 = vld [vmem:[%s475 + $0x4] sm:$0xf]
  %v478 = vld [vmem:[%s475 + $0x8] sm:$0xf]
  %v479 = vld [vmem:[%s475 + $0xc] sm:$0xf]
  %v480 = vld [vmem:[%s475 + $0x10] sm:$0xf]
  %v481 = vld [vmem:[%s475 + $0x14] sm:$0xf]
  %v482 = vld [vmem:[%s475 + $0x18] sm:$0xf]
  %v483 = vld [vmem:[%s475 + $0x1c] sm:$0xf]
  %v492 = vunpack.c.l.b16 %v476
  %v493 = vunpack.c.l.b16 %v477
  %v494 = vunpack.c.l.b16 %v478
  %v495 = vunpack.c.l.b16 %v479
  %v496 = vunpack.c.l.b16 %v480
  %v497 = vunpack.c.l.b16 %v481
  %v498 = vunpack.c.l.b16 %v482
  %v499 = vunpack.c.l.b16 %v483
  %v500 = vpack.c.b16 %v493, %v492
  %v501 = vpack.c.b16 %v495, %v494
  %v502 = vpack.c.b16 %v497, %v496
  %v503 = vpack.c.b16 %v499, %v498
  %v505 = vsel %vm65, %v500, 0
  %v508 = vsel %vm65, %v501, 0
  %v511 = vsel %vm65, %v502, 0
  %v514 = vsel %vm65, %v503, 0
  %516 = vmatprep.subr.bf16.mxu0 0
  %517 = vmatpush1.bf16.msra.mxu0 0
  %518 = vmatprep.subr.bf16.mxu0 0
  %519 = vmatpush1.bf16.msra.mxu0 0
  %520 = vmatprep.subr.bf16.mxu0 0
  %521 = vmatpush1.bf16.msra.mxu0 0
  %522 = vmatprep.subr.bf16.mxu0 0
  %523 = vmatpush1.bf16.msra.mxu0 0
  %524 = vmatprep.subr.bf16.mxu0 0
  %525 = vmatpush1.bf16.msra.mxu0 0
  %526 = vmatprep.subr.bf16.mxu0 0
  %527 = vmatpush1.bf16.msra.mxu0 0
  %528 = vmatprep.subr.bf16.mxu0 0
  %529 = vmatpush1.bf16.msra.mxu0 0
  %530 = vmatprep.subr.bf16.mxu0 0
  %531 = vmatpush1.bf16.msra.mxu0 %v198
  %532 = vmatprep.subr.bf16.mxu0 0
  %533 = vmatpush2.bf16.msra.mxu0 0
  %534 = vmatprep.subr.bf16.mxu0 0
  %535 = vmatpush2.bf16.msra.mxu0 0
  %536 = vmatprep.subr.bf16.mxu0 0
  %537 = vmatpush2.bf16.msra.mxu0 0
  %538 = vmatprep.subr.bf16.mxu0 0
  %539 = vmatpush2.bf16.msra.mxu0 0
  %540 = vmatprep.subr.bf16.mxu0 0
  %541 = vmatpush2.bf16.msra.mxu0 0
  %542 = vmatprep.subr.bf16.mxu0 0
  %543 = vmatpush2.bf16.msra.mxu0 0
  %544 = vmatprep.subr.bf16.mxu0 0
  %545 = vmatpush2.bf16.msra.mxu0 0
  %546 = vmatprep.subr.bf16.mxu0 0
  %547 = vmatpush2.bf16.msra.mxu0 0
  %548 = vmatprep.mubr.bf16.mxu0 0
  %549 = vmatmul.mubr.bf16.gmra.mxu0 %v505
  %v550 = vpop.f32.mrf.mxu0
  %v551 = vadd.f32 %v117, %v550
  %v552 = vpop.f32.mrf.mxu0
  %v553 = vpop.f32.mrf.mxu0
  %v554 = vadd.f32 %v120, %v553
  %v555 = vpop.f32.mrf.mxu0
  %556 = vmatprep.mubr.bf16.mxu0 0
  %557 = vmatmul.mubr.bf16.gmra.mxu0 %v508
  %v558 = vpop.f32.mrf.mxu0
  %v559 = vadd.f32 %v125, %v558
  %v560 = vpop.f32.mrf.mxu0
  %v561 = vpop.f32.mrf.mxu0
  %v562 = vadd.f32 %v128, %v561
  %v563 = vpop.f32.mrf.mxu0
  %564 = vmatprep.mubr.bf16.mxu0 0
  %565 = vmatmul.mubr.bf16.gmra.mxu0 %v511
  %v566 = vpop.f32.mrf.mxu0
  %v567 = vadd.f32 %v133, %v566
  %v568 = vpop.f32.mrf.mxu0
  %v569 = vpop.f32.mrf.mxu0
  %v570 = vadd.f32 %v136, %v569
  %v571 = vpop.f32.mrf.mxu0
  %572 = vmatprep.mubr.bf16.mxu0 0
  %573 = vmatmul.mubr.bf16.gmra.mxu0 %v514
  %v574 = vpop.f32.mrf.mxu0
  %v575 = vadd.f32 %v141, %v574
  %v576 = vpop.f32.mrf.mxu0
  %v577 = vpop.f32.mrf.mxu0
  %v578 = vadd.f32 %v144, %v577
  %v579 = vpop.f32.mrf.mxu0
  %580 = vdwg.mxu0
  %v581 = vmul.f32 %v551, %v269
  %v582 = vmul.f32 %v554, %v269
  %v583 = vmul.f32 %v559, %v269
  %v584 = vmul.f32 %v562, %v269
  %v585 = vmul.f32 %v567, %v269
  %v586 = vmul.f32 %v570, %v269
  %v587 = vmul.f32 %v575, %v269
  %v588 = vmul.f32 %v578, %v269
  %v589 = vadd.f32 %v581, %v283
  %v590 = vadd.f32 %v582, %v283
  %v591 = vadd.f32 %v583, %v283
  %v592 = vadd.f32 %v584, %v283
  %v593 = vadd.f32 %v585, %v283
  %v594 = vadd.f32 %v586, %v283
  %v595 = vadd.f32 %v587, %v283
  %v596 = vadd.f32 %v588, %v283
  %vm597 = vcmp.ge.f32.partialorder %v589, 0.0
  %vm598 = vcmp.ge.f32.partialorder %v590, 0.0
  %vm599 = vcmp.ge.f32.partialorder %v591, 0.0
  %vm600 = vcmp.ge.f32.partialorder %v592, 0.0
  %vm601 = vcmp.ge.f32.partialorder %v593, 0.0
  %vm602 = vcmp.ge.f32.partialorder %v594, 0.0
  %vm603 = vcmp.ge.f32.partialorder %v595, 0.0
  %vm604 = vcmp.ge.f32.partialorder %v596, 0.0
  %v605 = vmul.f32 %v589, 0.2
  %v606 = vmul.f32 %v590, 0.2
  %v607 = vmul.f32 %v591, 0.2
  %v608 = vmul.f32 %v592, 0.2
  %v609 = vmul.f32 %v593, 0.2
  %v610 = vmul.f32 %v594, 0.2
  %v611 = vmul.f32 %v595, 0.2
  %v612 = vmul.f32 %v596, 0.2
  %v613 = vsel %vm597, %v589, %v605
  %v614 = vsel %vm598, %v590, %v606
  %v615 = vsel %vm599, %v591, %v607
  %v616 = vsel %vm600, %v592, %v608
  %v617 = vsel %vm601, %v593, %v609
  %v618 = vsel %vm602, %v594, %v610
  %v619 = vsel %vm603, %v595, %v611
  %v620 = vsel %vm604, %v596, %v612
  %v621 = vpack.c.bf16 %v614, %v613
  %v622 = vpack.c.bf16 %v616, %v615
  %v623 = vpack.c.bf16 %v618, %v617
  %v624 = vpack.c.bf16 %v620, %v619
  %v626 = vsel %vm345, %v621, 0
  %v629 = vsel %vm345, %v622, 0
  %v632 = vsel %vm345, %v623, 0
  %v635 = vsel %vm345, %v624, 0
  %637 = vmatprep.subr.bf16.mxu0 0
  %638 = vmatpush1.bf16.msra.mxu0 0
  %639 = vmatprep.subr.bf16.mxu0 0
  %640 = vmatpush1.bf16.msra.mxu0 0
  %641 = vmatprep.subr.bf16.mxu0 0
  %642 = vmatpush1.bf16.msra.mxu0 0
  %643 = vmatprep.subr.bf16.mxu0 0
  %644 = vmatpush1.bf16.msra.mxu0 0
  %645 = vmatprep.subr.bf16.mxu0 0
  %646 = vmatpush1.bf16.msra.mxu0 %v340
  %647 = vmatprep.subr.bf16.mxu0 0
  %648 = vmatpush1.bf16.msra.mxu0 %v339
  %649 = vmatprep.subr.bf16.mxu0 0
  %650 = vmatpush1.bf16.msra.mxu0 %v338
  %651 = vmatprep.subr.bf16.mxu0 0
  %652 = vmatpush1.bf16.msra.mxu0 %v337
  %653 = vmatprep.subr.bf16.mxu0 0
  %654 = vmatpush2.bf16.msra.mxu0 0
  %655 = vmatprep.subr.bf16.mxu0 0
  %656 = vmatpush2.bf16.msra.mxu0 0
  %657 = vmatprep.subr.bf16.mxu0 0
  %658 = vmatpush2.bf16.msra.mxu0 0
  %659 = vmatprep.subr.bf16.mxu0 0
  %660 = vmatpush2.bf16.msra.mxu0 0
  %661 = vmatprep.subr.bf16.mxu0 0
  %662 = vmatpush2.bf16.msra.mxu0 0
  %663 = vmatprep.subr.bf16.mxu0 0
  %664 = vmatpush2.bf16.msra.mxu0 0
  %665 = vmatprep.subr.bf16.mxu0 0
  %666 = vmatpush2.bf16.msra.mxu0 0
  %667 = vmatprep.subr.bf16.mxu0 0
  %668 = vmatpush2.bf16.msra.mxu0 0
  %669 = vmatprep.mubr.bf16.mxu0 0
  %670 = vmatmul.mubr.bf16.gmra.mxu0 %v626
  %v671 = vpop.f32.mrf.mxu0
  %v672 = vadd.f32 0.0, %v671
  %v673 = vpop.f32.mrf.mxu0
  %v674 = vpop.f32.mrf.mxu0
  %v675 = vadd.f32 0.0, %v674
  %v676 = vpop.f32.mrf.mxu0
  %677 = vmatprep.mubr.bf16.mxu0 0
  %678 = vmatmul.mubr.bf16.gmra.mxu0 %v629
  %v679 = vpop.f32.mrf.mxu0
  %v680 = vadd.f32 0.0, %v679
  %v681 = vpop.f32.mrf.mxu0
  %v682 = vpop.f32.mrf.mxu0
  %v683 = vadd.f32 0.0, %v682
  %v684 = vpop.f32.mrf.mxu0
  %685 = vmatprep.mubr.bf16.mxu0 0
  %686 = vmatmul.mubr.bf16.gmra.mxu0 %v632
  %v687 = vpop.f32.mrf.mxu0
  %v688 = vadd.f32 0.0, %v687
  %v689 = vpop.f32.mrf.mxu0
  %v690 = vpop.f32.mrf.mxu0
  %v691 = vadd.f32 0.0, %v690
  %v692 = vpop.f32.mrf.mxu0
  %693 = vmatprep.mubr.bf16.mxu0 0
  %694 = vmatmul.mubr.bf16.gmra.mxu0 %v635
  %v695 = vpop.f32.mrf.mxu0
  %v696 = vadd.f32 0.0, %v695
  %v697 = vpop.f32.mrf.mxu0
  %v698 = vpop.f32.mrf.mxu0
  %v699 = vadd.f32 0.0, %v698
  %v700 = vpop.f32.mrf.mxu0
  %701 = vdwg.mxu0
  %v702 = vmul.f32 %v672, %v427
  %v703 = vmul.f32 %v675, %v427
  %v704 = vmul.f32 %v680, %v427
  %v705 = vmul.f32 %v683, %v427
  %v706 = vmul.f32 %v688, %v427
  %v707 = vmul.f32 %v691, %v427
  %v708 = vmul.f32 %v696, %v427
  %v709 = vmul.f32 %v699, %v427
  %v710 = vadd.f32 %v702, %v441
  %v711 = vadd.f32 %v703, %v441
  %v712 = vadd.f32 %v704, %v441
  %v713 = vadd.f32 %v705, %v441
  %v714 = vadd.f32 %v706, %v441
  %v715 = vadd.f32 %v707, %v441
  %v716 = vadd.f32 %v708, %v441
  %v717 = vadd.f32 %v709, %v441
  %vm718 = vcmp.ge.f32.partialorder %v710, 0.0
  %vm719 = vcmp.ge.f32.partialorder %v711, 0.0
  %vm720 = vcmp.ge.f32.partialorder %v712, 0.0
  %vm721 = vcmp.ge.f32.partialorder %v713, 0.0
  %vm722 = vcmp.ge.f32.partialorder %v714, 0.0
  %vm723 = vcmp.ge.f32.partialorder %v715, 0.0
  %vm724 = vcmp.ge.f32.partialorder %v716, 0.0
  %vm725 = vcmp.ge.f32.partialorder %v717, 0.0
  %v726 = vmul.f32 %v710, 0.2
  %v727 = vmul.f32 %v711, 0.2
  %v728 = vmul.f32 %v712, 0.2
  %v729 = vmul.f32 %v713, 0.2
  %v730 = vmul.f32 %v714, 0.2
  %v731 = vmul.f32 %v715, 0.2
  %v732 = vmul.f32 %v716, 0.2
  %v733 = vmul.f32 %v717, 0.2
  %v734 = vsel %vm718, %v710, %v726
  %v735 = vsel %vm719, %v711, %v727
  %v736 = vsel %vm720, %v712, %v728
  %v737 = vsel %vm721, %v713, %v729
  %v738 = vsel %vm722, %v714, %v730
  %v739 = vsel %vm723, %v715, %v731
  %v740 = vsel %vm724, %v716, %v732
  %v741 = vsel %vm725, %v717, %v733
  %v742 = vmax.f32 %v467, %v734
  %v743 = vmax.f32 %v468, %v735
  %v744 = vmax.f32 %v469, %v736
  %v745 = vmax.f32 %v470, %v737
  %v746 = vmax.f32 %v471, %v738
  %v747 = vmax.f32 %v472, %v739
  %v748 = vmax.f32 %v473, %v740
  %v749 = vmax.f32 %v474, %v741
  %s750 = scalar_lea.vmem %s0, 64
  %v751 = vld [vmem:[%s750] sm:$0xf]
  %v752 = vld [vmem:[%s750 + $0x4] sm:$0xf]
  %v753 = vld [vmem:[%s750 + $0x8] sm:$0xf]
  %v754 = vld [vmem:[%s750 + $0xc] sm:$0xf]
  %v755 = vld [vmem:[%s750 + $0x10] sm:$0xf]
  %v756 = vld [vmem:[%s750 + $0x14] sm:$0xf]
  %v757 = vld [vmem:[%s750 + $0x18] sm:$0xf]
  %v758 = vld [vmem:[%s750 + $0x1c] sm:$0xf]
  %v767 = vunpack.c.l.b16 %v751
  %v768 = vunpack.c.l.b16 %v752
  %v769 = vunpack.c.l.b16 %v753
  %v770 = vunpack.c.l.b16 %v754
  %v771 = vunpack.c.l.b16 %v755
  %v772 = vunpack.c.l.b16 %v756
  %v773 = vunpack.c.l.b16 %v757
  %v774 = vunpack.c.l.b16 %v758
  %v775 = vpack.c.b16 %v768, %v767
  %v776 = vpack.c.b16 %v770, %v769
  %v777 = vpack.c.b16 %v772, %v771
  %v778 = vpack.c.b16 %v774, %v773
  %v780 = vsel %vm65, %v775, 0
  %v783 = vsel %vm65, %v776, 0
  %v786 = vsel %vm65, %v777, 0
  %v789 = vsel %vm65, %v778, 0
  %791 = vmatprep.subr.bf16.mxu0 0
  %792 = vmatpush1.bf16.msra.mxu0 0
  %793 = vmatprep.subr.bf16.mxu0 0
  %794 = vmatpush1.bf16.msra.mxu0 0
  %795 = vmatprep.subr.bf16.mxu0 0
  %796 = vmatpush1.bf16.msra.mxu0 0
  %797 = vmatprep.subr.bf16.mxu0 0
  %798 = vmatpush1.bf16.msra.mxu0 0
  %799 = vmatprep.subr.bf16.mxu0 0
  %800 = vmatpush1.bf16.msra.mxu0 0
  %801 = vmatprep.subr.bf16.mxu0 0
  %802 = vmatpush1.bf16.msra.mxu0 0
  %803 = vmatprep.subr.bf16.mxu0 0
  %804 = vmatpush1.bf16.msra.mxu0 0
  %805 = vmatprep.subr.bf16.mxu0 0
  %806 = vmatpush1.bf16.msra.mxu0 %v198
  %807 = vmatprep.subr.bf16.mxu0 0
  %808 = vmatpush2.bf16.msra.mxu0 0
  %809 = vmatprep.subr.bf16.mxu0 0
  %810 = vmatpush2.bf16.msra.mxu0 0
  %811 = vmatprep.subr.bf16.mxu0 0
  %812 = vmatpush2.bf16.msra.mxu0 0
  %813 = vmatprep.subr.bf16.mxu0 0
  %814 = vmatpush2.bf16.msra.mxu0 0
  %815 = vmatprep.subr.bf16.mxu0 0
  %816 = vmatpush2.bf16.msra.mxu0 0
  %817 = vmatprep.subr.bf16.mxu0 0
  %818 = vmatpush2.bf16.msra.mxu0 0
  %819 = vmatprep.subr.bf16.mxu0 0
  %820 = vmatpush2.bf16.msra.mxu0 0
  %821 = vmatprep.subr.bf16.mxu0 0
  %822 = vmatpush2.bf16.msra.mxu0 0
  %823 = vmatprep.mubr.bf16.mxu0 0
  %824 = vmatmul.mubr.bf16.gmra.mxu0 %v780
  %v825 = vpop.f32.mrf.mxu0
  %v826 = vadd.f32 %v117, %v825
  %v827 = vpop.f32.mrf.mxu0
  %v828 = vpop.f32.mrf.mxu0
  %v829 = vadd.f32 %v120, %v828
  %v830 = vpop.f32.mrf.mxu0
  %831 = vmatprep.mubr.bf16.mxu0 0
  %832 = vmatmul.mubr.bf16.gmra.mxu0 %v783
  %v833 = vpop.f32.mrf.mxu0
  %v834 = vadd.f32 %v125, %v833
  %v835 = vpop.f32.mrf.mxu0
  %v836 = vpop.f32.mrf.mxu0
  %v837 = vadd.f32 %v128, %v836
  %v838 = vpop.f32.mrf.mxu0
  %839 = vmatprep.mubr.bf16.mxu0 0
  %840 = vmatmul.mubr.bf16.gmra.mxu0 %v786
  %v841 = vpop.f32.mrf.mxu0
  %v842 = vadd.f32 %v133, %v841
  %v843 = vpop.f32.mrf.mxu0
  %v844 = vpop.f32.mrf.mxu0
  %v845 = vadd.f32 %v136, %v844
  %v846 = vpop.f32.mrf.mxu0
  %847 = vmatprep.mubr.bf16.mxu0 0
  %848 = vmatmul.mubr.bf16.gmra.mxu0 %v789
  %v849 = vpop.f32.mrf.mxu0
  %v850 = vadd.f32 %v141, %v849
  %v851 = vpop.f32.mrf.mxu0
  %v852 = vpop.f32.mrf.mxu0
  %v853 = vadd.f32 %v144, %v852
  %v854 = vpop.f32.mrf.mxu0
  %855 = vdwg.mxu0
  %v856 = vmul.f32 %v826, %v269
  %v857 = vmul.f32 %v829, %v269
  %v858 = vmul.f32 %v834, %v269
  %v859 = vmul.f32 %v837, %v269
  %v860 = vmul.f32 %v842, %v269
  %v861 = vmul.f32 %v845, %v269
  %v862 = vmul.f32 %v850, %v269
  %v863 = vmul.f32 %v853, %v269
  %v864 = vadd.f32 %v856, %v283
  %v865 = vadd.f32 %v857, %v283
  %v866 = vadd.f32 %v858, %v283
  %v867 = vadd.f32 %v859, %v283
  %v868 = vadd.f32 %v860, %v283
  %v869 = vadd.f32 %v861, %v283
  %v870 = vadd.f32 %v862, %v283
  %v871 = vadd.f32 %v863, %v283
  %vm872 = vcmp.ge.f32.partialorder %v864, 0.0
  %vm873 = vcmp.ge.f32.partialorder %v865, 0.0
  %vm874 = vcmp.ge.f32.partialorder %v866, 0.0
  %vm875 = vcmp.ge.f32.partialorder %v867, 0.0
  %vm876 = vcmp.ge.f32.partialorder %v868, 0.0
  %vm877 = vcmp.ge.f32.partialorder %v869, 0.0
  %vm878 = vcmp.ge.f32.partialorder %v870, 0.0
  %vm879 = vcmp.ge.f32.partialorder %v871, 0.0
  %v880 = vmul.f32 %v864, 0.2
  %v881 = vmul.f32 %v865, 0.2
  %v882 = vmul.f32 %v866, 0.2
  %v883 = vmul.f32 %v867, 0.2
  %v884 = vmul.f32 %v868, 0.2
  %v885 = vmul.f32 %v869, 0.2
  %v886 = vmul.f32 %v870, 0.2
  %v887 = vmul.f32 %v871, 0.2
  %v888 = vsel %vm872, %v864, %v880
  %v889 = vsel %vm873, %v865, %v881
  %v890 = vsel %vm874, %v866, %v882
  %v891 = vsel %vm875, %v867, %v883
  %v892 = vsel %vm876, %v868, %v884
  %v893 = vsel %vm877, %v869, %v885
  %v894 = vsel %vm878, %v870, %v886
  %v895 = vsel %vm879, %v871, %v887
  %v896 = vpack.c.bf16 %v889, %v888
  %v897 = vpack.c.bf16 %v891, %v890
  %v898 = vpack.c.bf16 %v893, %v892
  %v899 = vpack.c.bf16 %v895, %v894
  %v901 = vsel %vm345, %v896, 0
  %v904 = vsel %vm345, %v897, 0
  %v907 = vsel %vm345, %v898, 0
  %v910 = vsel %vm345, %v899, 0
  %912 = vmatprep.subr.bf16.mxu0 0
  %913 = vmatpush1.bf16.msra.mxu0 0
  %914 = vmatprep.subr.bf16.mxu0 0
  %915 = vmatpush1.bf16.msra.mxu0 0
  %916 = vmatprep.subr.bf16.mxu0 0
  %917 = vmatpush1.bf16.msra.mxu0 0
  %918 = vmatprep.subr.bf16.mxu0 0
  %919 = vmatpush1.bf16.msra.mxu0 0
  %920 = vmatprep.subr.bf16.mxu0 0
  %921 = vmatpush1.bf16.msra.mxu0 %v340
  %922 = vmatprep.subr.bf16.mxu0 0
  %923 = vmatpush1.bf16.msra.mxu0 %v339
  %924 = vmatprep.subr.bf16.mxu0 0
  %925 = vmatpush1.bf16.msra.mxu0 %v338
  %926 = vmatprep.subr.bf16.mxu0 0
  %927 = vmatpush1.bf16.msra.mxu0 %v337
  %928 = vmatprep.subr.bf16.mxu0 0
  %929 = vmatpush2.bf16.msra.mxu0 0
  %930 = vmatprep.subr.bf16.mxu0 0
  %931 = vmatpush2.bf16.msra.mxu0 0
  %932 = vmatprep.subr.bf16.mxu0 0
  %933 = vmatpush2.bf16.msra.mxu0 0
  %934 = vmatprep.subr.bf16.mxu0 0
  %935 = vmatpush2.bf16.msra.mxu0 0
  %936 = vmatprep.subr.bf16.mxu0 0
  %937 = vmatpush2.bf16.msra.mxu0 0
  %938 = vmatprep.subr.bf16.mxu0 0
  %939 = vmatpush2.bf16.msra.mxu0 0
  %940 = vmatprep.subr.bf16.mxu0 0
  %941 = vmatpush2.bf16.msra.mxu0 0
  %942 = vmatprep.subr.bf16.mxu0 0
  %943 = vmatpush2.bf16.msra.mxu0 0
  %944 = vmatprep.mubr.bf16.mxu0 0
  %945 = vmatmul.mubr.bf16.gmra.mxu0 %v901
  %v946 = vpop.f32.mrf.mxu0
  %v947 = vadd.f32 0.0, %v946
  %v948 = vpop.f32.mrf.mxu0
  %v949 = vpop.f32.mrf.mxu0
  %v950 = vadd.f32 0.0, %v949
  %v951 = vpop.f32.mrf.mxu0
  %952 = vmatprep.mubr.bf16.mxu0 0
  %953 = vmatmul.mubr.bf16.gmra.mxu0 %v904
  %v954 = vpop.f32.mrf.mxu0
  %v955 = vadd.f32 0.0, %v954
  %v956 = vpop.f32.mrf.mxu0
  %v957 = vpop.f32.mrf.mxu0
  %v958 = vadd.f32 0.0, %v957
  %v959 = vpop.f32.mrf.mxu0
  %960 = vmatprep.mubr.bf16.mxu0 0
  %961 = vmatmul.mubr.bf16.gmra.mxu0 %v907
  %v962 = vpop.f32.mrf.mxu0
  %v963 = vadd.f32 0.0, %v962
  %v964 = vpop.f32.mrf.mxu0
  %v965 = vpop.f32.mrf.mxu0
  %v966 = vadd.f32 0.0, %v965
  %v967 = vpop.f32.mrf.mxu0
  %968 = vmatprep.mubr.bf16.mxu0 0
  %969 = vmatmul.mubr.bf16.gmra.mxu0 %v910
  %v970 = vpop.f32.mrf.mxu0
  %v971 = vadd.f32 0.0, %v970
  %v972 = vpop.f32.mrf.mxu0
  %v973 = vpop.f32.mrf.mxu0
  %v974 = vadd.f32 0.0, %v973
  %v975 = vpop.f32.mrf.mxu0
  %976 = vdwg.mxu0
  %v977 = vmul.f32 %v947, %v427
  %v978 = vmul.f32 %v950, %v427
  %v979 = vmul.f32 %v955, %v427
  %v980 = vmul.f32 %v958, %v427
  %v981 = vmul.f32 %v963, %v427
  %v982 = vmul.f32 %v966, %v427
  %v983 = vmul.f32 %v971, %v427
  %v984 = vmul.f32 %v974, %v427
  %v985 = vadd.f32 %v977, %v441
  %v986 = vadd.f32 %v978, %v441
  %v987 = vadd.f32 %v979, %v441
  %v988 = vadd.f32 %v980, %v441
  %v989 = vadd.f32 %v981, %v441
  %v990 = vadd.f32 %v982, %v441
  %v991 = vadd.f32 %v983, %v441
  %v992 = vadd.f32 %v984, %v441
  %vm993 = vcmp.ge.f32.partialorder %v985, 0.0
  %vm994 = vcmp.ge.f32.partialorder %v986, 0.0
  %vm995 = vcmp.ge.f32.partialorder %v987, 0.0
  %vm996 = vcmp.ge.f32.partialorder %v988, 0.0
  %vm997 = vcmp.ge.f32.partialorder %v989, 0.0
  %vm998 = vcmp.ge.f32.partialorder %v990, 0.0
  %vm999 = vcmp.ge.f32.partialorder %v991, 0.0
  %vm1000 = vcmp.ge.f32.partialorder %v992, 0.0
  %v1001 = vmul.f32 %v985, 0.2
  %v1002 = vmul.f32 %v986, 0.2
  %v1003 = vmul.f32 %v987, 0.2
  %v1004 = vmul.f32 %v988, 0.2
  %v1005 = vmul.f32 %v989, 0.2
  %v1006 = vmul.f32 %v990, 0.2
  %v1007 = vmul.f32 %v991, 0.2
  %v1008 = vmul.f32 %v992, 0.2
  %v1009 = vsel %vm993, %v985, %v1001
  %v1010 = vsel %vm994, %v986, %v1002
  %v1011 = vsel %vm995, %v987, %v1003
  %v1012 = vsel %vm996, %v988, %v1004
  %v1013 = vsel %vm997, %v989, %v1005
  %v1014 = vsel %vm998, %v990, %v1006
  %v1015 = vsel %vm999, %v991, %v1007
  %v1016 = vsel %vm1000, %v992, %v1008
  %v1017 = vmax.f32 %v742, %v1009
  %v1018 = vmax.f32 %v743, %v1010
  %v1019 = vmax.f32 %v744, %v1011
  %v1020 = vmax.f32 %v745, %v1012
  %v1021 = vmax.f32 %v746, %v1013
  %v1022 = vmax.f32 %v747, %v1014
  %v1023 = vmax.f32 %v748, %v1015
  %v1024 = vmax.f32 %v749, %v1016
  %s1025 = scalar_lea.vmem %s0, 96
  %v1026 = vld [vmem:[%s1025] sm:$0xf]
  %v1027 = vld [vmem:[%s1025 + $0x4] sm:$0xf]
  %v1028 = vld [vmem:[%s1025 + $0x8] sm:$0xf]
  %v1029 = vld [vmem:[%s1025 + $0xc] sm:$0xf]
  %v1030 = vld [vmem:[%s1025 + $0x10] sm:$0xf]
  %v1031 = vld [vmem:[%s1025 + $0x14] sm:$0xf]
  %v1032 = vld [vmem:[%s1025 + $0x18] sm:$0xf]
  %v1033 = vld [vmem:[%s1025 + $0x1c] sm:$0xf]
  %v1042 = vunpack.c.l.b16 %v1026
  %v1043 = vunpack.c.l.b16 %v1027
  %v1044 = vunpack.c.l.b16 %v1028
  %v1045 = vunpack.c.l.b16 %v1029
  %v1046 = vunpack.c.l.b16 %v1030
  %v1047 = vunpack.c.l.b16 %v1031
  %v1048 = vunpack.c.l.b16 %v1032
  %v1049 = vunpack.c.l.b16 %v1033
  %v1050 = vpack.c.b16 %v1043, %v1042
  %v1051 = vpack.c.b16 %v1045, %v1044
  %v1052 = vpack.c.b16 %v1047, %v1046
  %v1053 = vpack.c.b16 %v1049, %v1048
  %v1055 = vsel %vm65, %v1050, 0
  %v1058 = vsel %vm65, %v1051, 0
  %v1061 = vsel %vm65, %v1052, 0
  %v1064 = vsel %vm65, %v1053, 0
  %1066 = vmatprep.subr.bf16.mxu0 0
  %1067 = vmatpush1.bf16.msra.mxu0 0
  %1068 = vmatprep.subr.bf16.mxu0 0
  %1069 = vmatpush1.bf16.msra.mxu0 0
  %1070 = vmatprep.subr.bf16.mxu0 0
  %1071 = vmatpush1.bf16.msra.mxu0 0
  %1072 = vmatprep.subr.bf16.mxu0 0
  %1073 = vmatpush1.bf16.msra.mxu0 0
  %1074 = vmatprep.subr.bf16.mxu0 0
  %1075 = vmatpush1.bf16.msra.mxu0 0
  %1076 = vmatprep.subr.bf16.mxu0 0
  %1077 = vmatpush1.bf16.msra.mxu0 0
  %1078 = vmatprep.subr.bf16.mxu0 0
  %1079 = vmatpush1.bf16.msra.mxu0 0
  %1080 = vmatprep.subr.bf16.mxu0 0
  %1081 = vmatpush1.bf16.msra.mxu0 %v198
  %1082 = vmatprep.subr.bf16.mxu0 0
  %1083 = vmatpush2.bf16.msra.mxu0 0
  %1084 = vmatprep.subr.bf16.mxu0 0
  %1085 = vmatpush2.bf16.msra.mxu0 0
  %1086 = vmatprep.subr.bf16.mxu0 0
  %1087 = vmatpush2.bf16.msra.mxu0 0
  %1088 = vmatprep.subr.bf16.mxu0 0
  %1089 = vmatpush2.bf16.msra.mxu0 0
  %1090 = vmatprep.subr.bf16.mxu0 0
  %1091 = vmatpush2.bf16.msra.mxu0 0
  %1092 = vmatprep.subr.bf16.mxu0 0
  %1093 = vmatpush2.bf16.msra.mxu0 0
  %1094 = vmatprep.subr.bf16.mxu0 0
  %1095 = vmatpush2.bf16.msra.mxu0 0
  %1096 = vmatprep.subr.bf16.mxu0 0
  %1097 = vmatpush2.bf16.msra.mxu0 0
  %1098 = vmatprep.mubr.bf16.mxu0 0
  %1099 = vmatmul.mubr.bf16.gmra.mxu0 %v1055
  %v1100 = vpop.f32.mrf.mxu0
  %v1101 = vadd.f32 %v117, %v1100
  %v1102 = vpop.f32.mrf.mxu0
  %v1103 = vpop.f32.mrf.mxu0
  %v1104 = vadd.f32 %v120, %v1103
  %v1105 = vpop.f32.mrf.mxu0
  %1106 = vmatprep.mubr.bf16.mxu0 0
  %1107 = vmatmul.mubr.bf16.gmra.mxu0 %v1058
  %v1108 = vpop.f32.mrf.mxu0
  %v1109 = vadd.f32 %v125, %v1108
  %v1110 = vpop.f32.mrf.mxu0
  %v1111 = vpop.f32.mrf.mxu0
  %v1112 = vadd.f32 %v128, %v1111
  %v1113 = vpop.f32.mrf.mxu0
  %1114 = vmatprep.mubr.bf16.mxu0 0
  %1115 = vmatmul.mubr.bf16.gmra.mxu0 %v1061
  %v1116 = vpop.f32.mrf.mxu0
  %v1117 = vadd.f32 %v133, %v1116
  %v1118 = vpop.f32.mrf.mxu0
  %v1119 = vpop.f32.mrf.mxu0
  %v1120 = vadd.f32 %v136, %v1119
  %v1121 = vpop.f32.mrf.mxu0
  %1122 = vmatprep.mubr.bf16.mxu0 0
  %1123 = vmatmul.mubr.bf16.gmra.mxu0 %v1064
  %v1124 = vpop.f32.mrf.mxu0
  %v1125 = vadd.f32 %v141, %v1124
  %v1126 = vpop.f32.mrf.mxu0
  %v1127 = vpop.f32.mrf.mxu0
  %v1128 = vadd.f32 %v144, %v1127
  %v1129 = vpop.f32.mrf.mxu0
  %1130 = vdwg.mxu0
  %v1131 = vmul.f32 %v1101, %v269
  %v1132 = vmul.f32 %v1104, %v269
  %v1133 = vmul.f32 %v1109, %v269
  %v1134 = vmul.f32 %v1112, %v269
  %v1135 = vmul.f32 %v1117, %v269
  %v1136 = vmul.f32 %v1120, %v269
  %v1137 = vmul.f32 %v1125, %v269
  %v1138 = vmul.f32 %v1128, %v269
  %v1139 = vadd.f32 %v1131, %v283
  %v1140 = vadd.f32 %v1132, %v283
  %v1141 = vadd.f32 %v1133, %v283
  %v1142 = vadd.f32 %v1134, %v283
  %v1143 = vadd.f32 %v1135, %v283
  %v1144 = vadd.f32 %v1136, %v283
  %v1145 = vadd.f32 %v1137, %v283
  %v1146 = vadd.f32 %v1138, %v283
  %vm1147 = vcmp.ge.f32.partialorder %v1139, 0.0
  %vm1148 = vcmp.ge.f32.partialorder %v1140, 0.0
  %vm1149 = vcmp.ge.f32.partialorder %v1141, 0.0
  %vm1150 = vcmp.ge.f32.partialorder %v1142, 0.0
  %vm1151 = vcmp.ge.f32.partialorder %v1143, 0.0
  %vm1152 = vcmp.ge.f32.partialorder %v1144, 0.0
  %vm1153 = vcmp.ge.f32.partialorder %v1145, 0.0
  %vm1154 = vcmp.ge.f32.partialorder %v1146, 0.0
  %v1155 = vmul.f32 %v1139, 0.2
  %v1156 = vmul.f32 %v1140, 0.2
  %v1157 = vmul.f32 %v1141, 0.2
  %v1158 = vmul.f32 %v1142, 0.2
  %v1159 = vmul.f32 %v1143, 0.2
  %v1160 = vmul.f32 %v1144, 0.2
  %v1161 = vmul.f32 %v1145, 0.2
  %v1162 = vmul.f32 %v1146, 0.2
  %v1163 = vsel %vm1147, %v1139, %v1155
  %v1164 = vsel %vm1148, %v1140, %v1156
  %v1165 = vsel %vm1149, %v1141, %v1157
  %v1166 = vsel %vm1150, %v1142, %v1158
  %v1167 = vsel %vm1151, %v1143, %v1159
  %v1168 = vsel %vm1152, %v1144, %v1160
  %v1169 = vsel %vm1153, %v1145, %v1161
  %v1170 = vsel %vm1154, %v1146, %v1162
  %v1171 = vpack.c.bf16 %v1164, %v1163
  %v1172 = vpack.c.bf16 %v1166, %v1165
  %v1173 = vpack.c.bf16 %v1168, %v1167
  %v1174 = vpack.c.bf16 %v1170, %v1169
  %v1176 = vsel %vm345, %v1171, 0
  %v1179 = vsel %vm345, %v1172, 0
  %v1182 = vsel %vm345, %v1173, 0
  %v1185 = vsel %vm345, %v1174, 0
  %1187 = vmatprep.subr.bf16.mxu0 0
  %1188 = vmatpush1.bf16.msra.mxu0 0
  %1189 = vmatprep.subr.bf16.mxu0 0
  %1190 = vmatpush1.bf16.msra.mxu0 0
  %1191 = vmatprep.subr.bf16.mxu0 0
  %1192 = vmatpush1.bf16.msra.mxu0 0
  %1193 = vmatprep.subr.bf16.mxu0 0
  %1194 = vmatpush1.bf16.msra.mxu0 0
  %1195 = vmatprep.subr.bf16.mxu0 0
  %1196 = vmatpush1.bf16.msra.mxu0 %v340
  %1197 = vmatprep.subr.bf16.mxu0 0
  %1198 = vmatpush1.bf16.msra.mxu0 %v339
  %1199 = vmatprep.subr.bf16.mxu0 0
  %1200 = vmatpush1.bf16.msra.mxu0 %v338
  %1201 = vmatprep.subr.bf16.mxu0 0
  %1202 = vmatpush1.bf16.msra.mxu0 %v337
  %1203 = vmatprep.subr.bf16.mxu0 0
  %1204 = vmatpush2.bf16.msra.mxu0 0
  %1205 = vmatprep.subr.bf16.mxu0 0
  %1206 = vmatpush2.bf16.msra.mxu0 0
  %1207 = vmatprep.subr.bf16.mxu0 0
  %1208 = vmatpush2.bf16.msra.mxu0 0
  %1209 = vmatprep.subr.bf16.mxu0 0
  %1210 = vmatpush2.bf16.msra.mxu0 0
  %1211 = vmatprep.subr.bf16.mxu0 0
  %1212 = vmatpush2.bf16.msra.mxu0 0
  %1213 = vmatprep.subr.bf16.mxu0 0
  %1214 = vmatpush2.bf16.msra.mxu0 0
  %1215 = vmatprep.subr.bf16.mxu0 0
  %1216 = vmatpush2.bf16.msra.mxu0 0
  %1217 = vmatprep.subr.bf16.mxu0 0
  %1218 = vmatpush2.bf16.msra.mxu0 0
  %1219 = vmatprep.mubr.bf16.mxu0 0
  %1220 = vmatmul.mubr.bf16.gmra.mxu0 %v1176
  %v1221 = vpop.f32.mrf.mxu0
  %v1222 = vadd.f32 0.0, %v1221
  %v1223 = vpop.f32.mrf.mxu0
  %v1224 = vpop.f32.mrf.mxu0
  %v1225 = vadd.f32 0.0, %v1224
  %v1226 = vpop.f32.mrf.mxu0
  %1227 = vmatprep.mubr.bf16.mxu0 0
  %1228 = vmatmul.mubr.bf16.gmra.mxu0 %v1179
  %v1229 = vpop.f32.mrf.mxu0
  %v1230 = vadd.f32 0.0, %v1229
  %v1231 = vpop.f32.mrf.mxu0
  %v1232 = vpop.f32.mrf.mxu0
  %v1233 = vadd.f32 0.0, %v1232
  %v1234 = vpop.f32.mrf.mxu0
  %1235 = vmatprep.mubr.bf16.mxu0 0
  %1236 = vmatmul.mubr.bf16.gmra.mxu0 %v1182
  %v1237 = vpop.f32.mrf.mxu0
  %v1238 = vadd.f32 0.0, %v1237
  %v1239 = vpop.f32.mrf.mxu0
  %v1240 = vpop.f32.mrf.mxu0
  %v1241 = vadd.f32 0.0, %v1240
  %v1242 = vpop.f32.mrf.mxu0
  %1243 = vmatprep.mubr.bf16.mxu0 0
  %1244 = vmatmul.mubr.bf16.gmra.mxu0 %v1185
  %v1245 = vpop.f32.mrf.mxu0
  %v1246 = vadd.f32 0.0, %v1245
  %v1247 = vpop.f32.mrf.mxu0
  %v1248 = vpop.f32.mrf.mxu0
  %v1249 = vadd.f32 0.0, %v1248
  %v1250 = vpop.f32.mrf.mxu0
  %1251 = vdwg.mxu0
  %v1252 = vmul.f32 %v1222, %v427
  %v1253 = vmul.f32 %v1225, %v427
  %v1254 = vmul.f32 %v1230, %v427
  %v1255 = vmul.f32 %v1233, %v427
  %v1256 = vmul.f32 %v1238, %v427
  %v1257 = vmul.f32 %v1241, %v427
  %v1258 = vmul.f32 %v1246, %v427
  %v1259 = vmul.f32 %v1249, %v427
  %v1260 = vadd.f32 %v1252, %v441
  %v1261 = vadd.f32 %v1253, %v441
  %v1262 = vadd.f32 %v1254, %v441
  %v1263 = vadd.f32 %v1255, %v441
  %v1264 = vadd.f32 %v1256, %v441
  %v1265 = vadd.f32 %v1257, %v441
  %v1266 = vadd.f32 %v1258, %v441
  %v1267 = vadd.f32 %v1259, %v441
  %vm1268 = vcmp.ge.f32.partialorder %v1260, 0.0
  %vm1269 = vcmp.ge.f32.partialorder %v1261, 0.0
  %vm1270 = vcmp.ge.f32.partialorder %v1262, 0.0
  %vm1271 = vcmp.ge.f32.partialorder %v1263, 0.0
  %vm1272 = vcmp.ge.f32.partialorder %v1264, 0.0
  %vm1273 = vcmp.ge.f32.partialorder %v1265, 0.0
  %vm1274 = vcmp.ge.f32.partialorder %v1266, 0.0
  %vm1275 = vcmp.ge.f32.partialorder %v1267, 0.0
  %v1276 = vmul.f32 %v1260, 0.2
  %v1277 = vmul.f32 %v1261, 0.2
  %v1278 = vmul.f32 %v1262, 0.2
  %v1279 = vmul.f32 %v1263, 0.2
  %v1280 = vmul.f32 %v1264, 0.2
  %v1281 = vmul.f32 %v1265, 0.2
  %v1282 = vmul.f32 %v1266, 0.2
  %v1283 = vmul.f32 %v1267, 0.2
  %v1284 = vsel %vm1268, %v1260, %v1276
  %v1285 = vsel %vm1269, %v1261, %v1277
  %v1286 = vsel %vm1270, %v1262, %v1278
  %v1287 = vsel %vm1271, %v1263, %v1279
  %v1288 = vsel %vm1272, %v1264, %v1280
  %v1289 = vsel %vm1273, %v1265, %v1281
  %v1290 = vsel %vm1274, %v1266, %v1282
  %v1291 = vsel %vm1275, %v1267, %v1283
  %v1292 = vmax.f32 %v1017, %v1284
  %v1293 = vmax.f32 %v1018, %v1285
  %v1294 = vmax.f32 %v1019, %v1286
  %v1295 = vmax.f32 %v1020, %v1287
  %v1296 = vmax.f32 %v1021, %v1288
  %v1297 = vmax.f32 %v1022, %v1289
  %v1298 = vmax.f32 %v1023, %v1290
  %v1299 = vmax.f32 %v1024, %v1291
  %s1300 = scalar_lea.vmem %s0, 128
  %v1301 = vld [vmem:[%s1300] sm:$0xf]
  %v1302 = vld [vmem:[%s1300 + $0x4] sm:$0xf]
  %v1303 = vld [vmem:[%s1300 + $0x8] sm:$0xf]
  %v1304 = vld [vmem:[%s1300 + $0xc] sm:$0xf]
  %v1305 = vld [vmem:[%s1300 + $0x10] sm:$0xf]
  %v1306 = vld [vmem:[%s1300 + $0x14] sm:$0xf]
  %v1307 = vld [vmem:[%s1300 + $0x18] sm:$0xf]
  %v1308 = vld [vmem:[%s1300 + $0x1c] sm:$0xf]
  %v1317 = vunpack.c.l.b16 %v1301
  %v1318 = vunpack.c.l.b16 %v1302
  %v1319 = vunpack.c.l.b16 %v1303
  %v1320 = vunpack.c.l.b16 %v1304
  %v1321 = vunpack.c.l.b16 %v1305
  %v1322 = vunpack.c.l.b16 %v1306
  %v1323 = vunpack.c.l.b16 %v1307
  %v1324 = vunpack.c.l.b16 %v1308
  %v1325 = vpack.c.b16 %v1318, %v1317
  %v1326 = vpack.c.b16 %v1320, %v1319
  %v1327 = vpack.c.b16 %v1322, %v1321
  %v1328 = vpack.c.b16 %v1324, %v1323
  %v1330 = vsel %vm65, %v1325, 0
  %v1333 = vsel %vm65, %v1326, 0
  %v1336 = vsel %vm65, %v1327, 0
  %v1339 = vsel %vm65, %v1328, 0
  %1341 = vmatprep.subr.bf16.mxu0 0
  %1342 = vmatpush1.bf16.msra.mxu0 0
  %1343 = vmatprep.subr.bf16.mxu0 0
  %1344 = vmatpush1.bf16.msra.mxu0 0
  %1345 = vmatprep.subr.bf16.mxu0 0
  %1346 = vmatpush1.bf16.msra.mxu0 0
  %1347 = vmatprep.subr.bf16.mxu0 0
  %1348 = vmatpush1.bf16.msra.mxu0 0
  %1349 = vmatprep.subr.bf16.mxu0 0
  %1350 = vmatpush1.bf16.msra.mxu0 0
  %1351 = vmatprep.subr.bf16.mxu0 0
  %1352 = vmatpush1.bf16.msra.mxu0 0
  %1353 = vmatprep.subr.bf16.mxu0 0
  %1354 = vmatpush1.bf16.msra.mxu0 0
  %1355 = vmatprep.subr.bf16.mxu0 0
  %1356 = vmatpush1.bf16.msra.mxu0 %v198
  %1357 = vmatprep.subr.bf16.mxu0 0
  %1358 = vmatpush2.bf16.msra.mxu0 0
  %1359 = vmatprep.subr.bf16.mxu0 0
  %1360 = vmatpush2.bf16.msra.mxu0 0
  %1361 = vmatprep.subr.bf16.mxu0 0
  %1362 = vmatpush2.bf16.msra.mxu0 0
  %1363 = vmatprep.subr.bf16.mxu0 0
  %1364 = vmatpush2.bf16.msra.mxu0 0
  %1365 = vmatprep.subr.bf16.mxu0 0
  %1366 = vmatpush2.bf16.msra.mxu0 0
  %1367 = vmatprep.subr.bf16.mxu0 0
  %1368 = vmatpush2.bf16.msra.mxu0 0
  %1369 = vmatprep.subr.bf16.mxu0 0
  %1370 = vmatpush2.bf16.msra.mxu0 0
  %1371 = vmatprep.subr.bf16.mxu0 0
  %1372 = vmatpush2.bf16.msra.mxu0 0
  %1373 = vmatprep.mubr.bf16.mxu0 0
  %1374 = vmatmul.mubr.bf16.gmra.mxu0 %v1330
  %v1375 = vpop.f32.mrf.mxu0
  %v1376 = vadd.f32 %v117, %v1375
  %v1377 = vpop.f32.mrf.mxu0
  %v1378 = vpop.f32.mrf.mxu0
  %v1379 = vadd.f32 %v120, %v1378
  %v1380 = vpop.f32.mrf.mxu0
  %1381 = vmatprep.mubr.bf16.mxu0 0
  %1382 = vmatmul.mubr.bf16.gmra.mxu0 %v1333
  %v1383 = vpop.f32.mrf.mxu0
  %v1384 = vadd.f32 %v125, %v1383
  %v1385 = vpop.f32.mrf.mxu0
  %v1386 = vpop.f32.mrf.mxu0
  %v1387 = vadd.f32 %v128, %v1386
  %v1388 = vpop.f32.mrf.mxu0
  %1389 = vmatprep.mubr.bf16.mxu0 0
  %1390 = vmatmul.mubr.bf16.gmra.mxu0 %v1336
  %v1391 = vpop.f32.mrf.mxu0
  %v1392 = vadd.f32 %v133, %v1391
  %v1393 = vpop.f32.mrf.mxu0
  %v1394 = vpop.f32.mrf.mxu0
  %v1395 = vadd.f32 %v136, %v1394
  %v1396 = vpop.f32.mrf.mxu0
  %1397 = vmatprep.mubr.bf16.mxu0 0
  %1398 = vmatmul.mubr.bf16.gmra.mxu0 %v1339
  %v1399 = vpop.f32.mrf.mxu0
  %v1400 = vadd.f32 %v141, %v1399
  %v1401 = vpop.f32.mrf.mxu0
  %v1402 = vpop.f32.mrf.mxu0
  %v1403 = vadd.f32 %v144, %v1402
  %v1404 = vpop.f32.mrf.mxu0
  %1405 = vdwg.mxu0
  %v1406 = vmul.f32 %v1376, %v269
  %v1407 = vmul.f32 %v1379, %v269
  %v1408 = vmul.f32 %v1384, %v269
  %v1409 = vmul.f32 %v1387, %v269
  %v1410 = vmul.f32 %v1392, %v269
  %v1411 = vmul.f32 %v1395, %v269
  %v1412 = vmul.f32 %v1400, %v269
  %v1413 = vmul.f32 %v1403, %v269
  %v1414 = vadd.f32 %v1406, %v283
  %v1415 = vadd.f32 %v1407, %v283
  %v1416 = vadd.f32 %v1408, %v283
  %v1417 = vadd.f32 %v1409, %v283
  %v1418 = vadd.f32 %v1410, %v283
  %v1419 = vadd.f32 %v1411, %v283
  %v1420 = vadd.f32 %v1412, %v283
  %v1421 = vadd.f32 %v1413, %v283
  %vm1422 = vcmp.ge.f32.partialorder %v1414, 0.0
  %vm1423 = vcmp.ge.f32.partialorder %v1415, 0.0
  %vm1424 = vcmp.ge.f32.partialorder %v1416, 0.0
  %vm1425 = vcmp.ge.f32.partialorder %v1417, 0.0
  %vm1426 = vcmp.ge.f32.partialorder %v1418, 0.0
  %vm1427 = vcmp.ge.f32.partialorder %v1419, 0.0
  %vm1428 = vcmp.ge.f32.partialorder %v1420, 0.0
  %vm1429 = vcmp.ge.f32.partialorder %v1421, 0.0
  %v1430 = vmul.f32 %v1414, 0.2
  %v1431 = vmul.f32 %v1415, 0.2
  %v1432 = vmul.f32 %v1416, 0.2
  %v1433 = vmul.f32 %v1417, 0.2
  %v1434 = vmul.f32 %v1418, 0.2
  %v1435 = vmul.f32 %v1419, 0.2
  %v1436 = vmul.f32 %v1420, 0.2
  %v1437 = vmul.f32 %v1421, 0.2
  %v1438 = vsel %vm1422, %v1414, %v1430
  %v1439 = vsel %vm1423, %v1415, %v1431
  %v1440 = vsel %vm1424, %v1416, %v1432
  %v1441 = vsel %vm1425, %v1417, %v1433
  %v1442 = vsel %vm1426, %v1418, %v1434
  %v1443 = vsel %vm1427, %v1419, %v1435
  %v1444 = vsel %vm1428, %v1420, %v1436
  %v1445 = vsel %vm1429, %v1421, %v1437
  %v1446 = vpack.c.bf16 %v1439, %v1438
  %v1447 = vpack.c.bf16 %v1441, %v1440
  %v1448 = vpack.c.bf16 %v1443, %v1442
  %v1449 = vpack.c.bf16 %v1445, %v1444
  %v1451 = vsel %vm345, %v1446, 0
  %v1454 = vsel %vm345, %v1447, 0
  %v1457 = vsel %vm345, %v1448, 0
  %v1460 = vsel %vm345, %v1449, 0
  %1462 = vmatprep.subr.bf16.mxu0 0
  %1463 = vmatpush1.bf16.msra.mxu0 0
  %1464 = vmatprep.subr.bf16.mxu0 0
  %1465 = vmatpush1.bf16.msra.mxu0 0
  %1466 = vmatprep.subr.bf16.mxu0 0
  %1467 = vmatpush1.bf16.msra.mxu0 0
  %1468 = vmatprep.subr.bf16.mxu0 0
  %1469 = vmatpush1.bf16.msra.mxu0 0
  %1470 = vmatprep.subr.bf16.mxu0 0
  %1471 = vmatpush1.bf16.msra.mxu0 %v340
  %1472 = vmatprep.subr.bf16.mxu0 0
  %1473 = vmatpush1.bf16.msra.mxu0 %v339
  %1474 = vmatprep.subr.bf16.mxu0 0
  %1475 = vmatpush1.bf16.msra.mxu0 %v338
  %1476 = vmatprep.subr.bf16.mxu0 0
  %1477 = vmatpush1.bf16.msra.mxu0 %v337
  %1478 = vmatprep.subr.bf16.mxu0 0
  %1479 = vmatpush2.bf16.msra.mxu0 0
  %1480 = vmatprep.subr.bf16.mxu0 0
  %1481 = vmatpush2.bf16.msra.mxu0 0
  %1482 = vmatprep.subr.bf16.mxu0 0
  %1483 = vmatpush2.bf16.msra.mxu0 0
  %1484 = vmatprep.subr.bf16.mxu0 0
  %1485 = vmatpush2.bf16.msra.mxu0 0
  %1486 = vmatprep.subr.bf16.mxu0 0
  %1487 = vmatpush2.bf16.msra.mxu0 0
  %1488 = vmatprep.subr.bf16.mxu0 0
  %1489 = vmatpush2.bf16.msra.mxu0 0
  %1490 = vmatprep.subr.bf16.mxu0 0
  %1491 = vmatpush2.bf16.msra.mxu0 0
  %1492 = vmatprep.subr.bf16.mxu0 0
  %1493 = vmatpush2.bf16.msra.mxu0 0
  %1494 = vmatprep.mubr.bf16.mxu0 0
  %1495 = vmatmul.mubr.bf16.gmra.mxu0 %v1451
  %v1496 = vpop.f32.mrf.mxu0
  %v1497 = vadd.f32 0.0, %v1496
  %v1498 = vpop.f32.mrf.mxu0
  %v1499 = vpop.f32.mrf.mxu0
  %v1500 = vadd.f32 0.0, %v1499
  %v1501 = vpop.f32.mrf.mxu0
  %1502 = vmatprep.mubr.bf16.mxu0 0
  %1503 = vmatmul.mubr.bf16.gmra.mxu0 %v1454
  %v1504 = vpop.f32.mrf.mxu0
  %v1505 = vadd.f32 0.0, %v1504
  %v1506 = vpop.f32.mrf.mxu0
  %v1507 = vpop.f32.mrf.mxu0
  %v1508 = vadd.f32 0.0, %v1507
  %v1509 = vpop.f32.mrf.mxu0
  %1510 = vmatprep.mubr.bf16.mxu0 0
  %1511 = vmatmul.mubr.bf16.gmra.mxu0 %v1457
  %v1512 = vpop.f32.mrf.mxu0
  %v1513 = vadd.f32 0.0, %v1512
  %v1514 = vpop.f32.mrf.mxu0
  %v1515 = vpop.f32.mrf.mxu0
  %v1516 = vadd.f32 0.0, %v1515
  %v1517 = vpop.f32.mrf.mxu0
  %1518 = vmatprep.mubr.bf16.mxu0 0
  %1519 = vmatmul.mubr.bf16.gmra.mxu0 %v1460
  %v1520 = vpop.f32.mrf.mxu0
  %v1521 = vadd.f32 0.0, %v1520
  %v1522 = vpop.f32.mrf.mxu0
  %v1523 = vpop.f32.mrf.mxu0
  %v1524 = vadd.f32 0.0, %v1523
  %v1525 = vpop.f32.mrf.mxu0
  %1526 = vdwg.mxu0
  %v1527 = vmul.f32 %v1497, %v427
  %v1528 = vmul.f32 %v1500, %v427
  %v1529 = vmul.f32 %v1505, %v427
  %v1530 = vmul.f32 %v1508, %v427
  %v1531 = vmul.f32 %v1513, %v427
  %v1532 = vmul.f32 %v1516, %v427
  %v1533 = vmul.f32 %v1521, %v427
  %v1534 = vmul.f32 %v1524, %v427
  %v1535 = vadd.f32 %v1527, %v441
  %v1536 = vadd.f32 %v1528, %v441
  %v1537 = vadd.f32 %v1529, %v441
  %v1538 = vadd.f32 %v1530, %v441
  %v1539 = vadd.f32 %v1531, %v441
  %v1540 = vadd.f32 %v1532, %v441
  %v1541 = vadd.f32 %v1533, %v441
  %v1542 = vadd.f32 %v1534, %v441
  %vm1543 = vcmp.ge.f32.partialorder %v1535, 0.0
  %vm1544 = vcmp.ge.f32.partialorder %v1536, 0.0
  %vm1545 = vcmp.ge.f32.partialorder %v1537, 0.0
  %vm1546 = vcmp.ge.f32.partialorder %v1538, 0.0
  %vm1547 = vcmp.ge.f32.partialorder %v1539, 0.0
  %vm1548 = vcmp.ge.f32.partialorder %v1540, 0.0
  %vm1549 = vcmp.ge.f32.partialorder %v1541, 0.0
  %vm1550 = vcmp.ge.f32.partialorder %v1542, 0.0
  %v1551 = vmul.f32 %v1535, 0.2
  %v1552 = vmul.f32 %v1536, 0.2
  %v1553 = vmul.f32 %v1537, 0.2
  %v1554 = vmul.f32 %v1538, 0.2
  %v1555 = vmul.f32 %v1539, 0.2
  %v1556 = vmul.f32 %v1540, 0.2
  %v1557 = vmul.f32 %v1541, 0.2
  %v1558 = vmul.f32 %v1542, 0.2
  %v1559 = vsel %vm1543, %v1535, %v1551
  %v1560 = vsel %vm1544, %v1536, %v1552
  %v1561 = vsel %vm1545, %v1537, %v1553
  %v1562 = vsel %vm1546, %v1538, %v1554
  %v1563 = vsel %vm1547, %v1539, %v1555
  %v1564 = vsel %vm1548, %v1540, %v1556
  %v1565 = vsel %vm1549, %v1541, %v1557
  %v1566 = vsel %vm1550, %v1542, %v1558
  %v1567 = vmax.f32 %v1292, %v1559
  %v1568 = vmax.f32 %v1293, %v1560
  %v1569 = vmax.f32 %v1294, %v1561
  %v1570 = vmax.f32 %v1295, %v1562
  %v1571 = vmax.f32 %v1296, %v1563
  %v1572 = vmax.f32 %v1297, %v1564
  %v1573 = vmax.f32 %v1298, %v1565
  %v1574 = vmax.f32 %v1299, %v1566
  %s1575 = scalar_lea.vmem %s0, 160
  %v1576 = vld [vmem:[%s1575] sm:$0xf]
  %v1577 = vld [vmem:[%s1575 + $0x4] sm:$0xf]
  %v1578 = vld [vmem:[%s1575 + $0x8] sm:$0xf]
  %v1579 = vld [vmem:[%s1575 + $0xc] sm:$0xf]
  %v1580 = vld [vmem:[%s1575 + $0x10] sm:$0xf]
  %v1581 = vld [vmem:[%s1575 + $0x14] sm:$0xf]
  %v1582 = vld [vmem:[%s1575 + $0x18] sm:$0xf]
  %v1583 = vld [vmem:[%s1575 + $0x1c] sm:$0xf]
  %v1592 = vunpack.c.l.b16 %v1576
  %v1593 = vunpack.c.l.b16 %v1577
  %v1594 = vunpack.c.l.b16 %v1578
  %v1595 = vunpack.c.l.b16 %v1579
  %v1596 = vunpack.c.l.b16 %v1580
  %v1597 = vunpack.c.l.b16 %v1581
  %v1598 = vunpack.c.l.b16 %v1582
  %v1599 = vunpack.c.l.b16 %v1583
  %v1600 = vpack.c.b16 %v1593, %v1592
  %v1601 = vpack.c.b16 %v1595, %v1594
  %v1602 = vpack.c.b16 %v1597, %v1596
  %v1603 = vpack.c.b16 %v1599, %v1598
  %v1605 = vsel %vm65, %v1600, 0
  %v1608 = vsel %vm65, %v1601, 0
  %v1611 = vsel %vm65, %v1602, 0
  %v1614 = vsel %vm65, %v1603, 0
  %1616 = vmatprep.subr.bf16.mxu0 0
  %1617 = vmatpush1.bf16.msra.mxu0 0
  %1618 = vmatprep.subr.bf16.mxu0 0
  %1619 = vmatpush1.bf16.msra.mxu0 0
  %1620 = vmatprep.subr.bf16.mxu0 0
  %1621 = vmatpush1.bf16.msra.mxu0 0
  %1622 = vmatprep.subr.bf16.mxu0 0
  %1623 = vmatpush1.bf16.msra.mxu0 0
  %1624 = vmatprep.subr.bf16.mxu0 0
  %1625 = vmatpush1.bf16.msra.mxu0 0
  %1626 = vmatprep.subr.bf16.mxu0 0
  %1627 = vmatpush1.bf16.msra.mxu0 0
  %1628 = vmatprep.subr.bf16.mxu0 0
  %1629 = vmatpush1.bf16.msra.mxu0 0
  %1630 = vmatprep.subr.bf16.mxu0 0
  %1631 = vmatpush1.bf16.msra.mxu0 %v198
  %1632 = vmatprep.subr.bf16.mxu0 0
  %1633 = vmatpush2.bf16.msra.mxu0 0
  %1634 = vmatprep.subr.bf16.mxu0 0
  %1635 = vmatpush2.bf16.msra.mxu0 0
  %1636 = vmatprep.subr.bf16.mxu0 0
  %1637 = vmatpush2.bf16.msra.mxu0 0
  %1638 = vmatprep.subr.bf16.mxu0 0
  %1639 = vmatpush2.bf16.msra.mxu0 0
  %1640 = vmatprep.subr.bf16.mxu0 0
  %1641 = vmatpush2.bf16.msra.mxu0 0
  %1642 = vmatprep.subr.bf16.mxu0 0
  %1643 = vmatpush2.bf16.msra.mxu0 0
  %1644 = vmatprep.subr.bf16.mxu0 0
  %1645 = vmatpush2.bf16.msra.mxu0 0
  %1646 = vmatprep.subr.bf16.mxu0 0
  %1647 = vmatpush2.bf16.msra.mxu0 0
  %1648 = vmatprep.mubr.bf16.mxu0 0
  %1649 = vmatmul.mubr.bf16.gmra.mxu0 %v1605
  %v1650 = vpop.f32.mrf.mxu0
  %v1651 = vadd.f32 %v117, %v1650
  %v1652 = vpop.f32.mrf.mxu0
  %v1653 = vpop.f32.mrf.mxu0
  %v1654 = vadd.f32 %v120, %v1653
  %v1655 = vpop.f32.mrf.mxu0
  %1656 = vmatprep.mubr.bf16.mxu0 0
  %1657 = vmatmul.mubr.bf16.gmra.mxu0 %v1608
  %v1658 = vpop.f32.mrf.mxu0
  %v1659 = vadd.f32 %v125, %v1658
  %v1660 = vpop.f32.mrf.mxu0
  %v1661 = vpop.f32.mrf.mxu0
  %v1662 = vadd.f32 %v128, %v1661
  %v1663 = vpop.f32.mrf.mxu0
  %1664 = vmatprep.mubr.bf16.mxu0 0
  %1665 = vmatmul.mubr.bf16.gmra.mxu0 %v1611
  %v1666 = vpop.f32.mrf.mxu0
  %v1667 = vadd.f32 %v133, %v1666
  %v1668 = vpop.f32.mrf.mxu0
  %v1669 = vpop.f32.mrf.mxu0
  %v1670 = vadd.f32 %v136, %v1669
  %v1671 = vpop.f32.mrf.mxu0
  %1672 = vmatprep.mubr.bf16.mxu0 0
  %1673 = vmatmul.mubr.bf16.gmra.mxu0 %v1614
  %v1674 = vpop.f32.mrf.mxu0
  %v1675 = vadd.f32 %v141, %v1674
  %v1676 = vpop.f32.mrf.mxu0
  %v1677 = vpop.f32.mrf.mxu0
  %v1678 = vadd.f32 %v144, %v1677
  %v1679 = vpop.f32.mrf.mxu0
  %1680 = vdwg.mxu0
  %v1681 = vmul.f32 %v1651, %v269
  %v1682 = vmul.f32 %v1654, %v269
  %v1683 = vmul.f32 %v1659, %v269
  %v1684 = vmul.f32 %v1662, %v269
  %v1685 = vmul.f32 %v1667, %v269
  %v1686 = vmul.f32 %v1670, %v269
  %v1687 = vmul.f32 %v1675, %v269
  %v1688 = vmul.f32 %v1678, %v269
  %v1689 = vadd.f32 %v1681, %v283
  %v1690 = vadd.f32 %v1682, %v283
  %v1691 = vadd.f32 %v1683, %v283
  %v1692 = vadd.f32 %v1684, %v283
  %v1693 = vadd.f32 %v1685, %v283
  %v1694 = vadd.f32 %v1686, %v283
  %v1695 = vadd.f32 %v1687, %v283
  %v1696 = vadd.f32 %v1688, %v283
  %vm1697 = vcmp.ge.f32.partialorder %v1689, 0.0
  %vm1698 = vcmp.ge.f32.partialorder %v1690, 0.0
  %vm1699 = vcmp.ge.f32.partialorder %v1691, 0.0
  %vm1700 = vcmp.ge.f32.partialorder %v1692, 0.0
  %vm1701 = vcmp.ge.f32.partialorder %v1693, 0.0
  %vm1702 = vcmp.ge.f32.partialorder %v1694, 0.0
  %vm1703 = vcmp.ge.f32.partialorder %v1695, 0.0
  %vm1704 = vcmp.ge.f32.partialorder %v1696, 0.0
  %v1705 = vmul.f32 %v1689, 0.2
  %v1706 = vmul.f32 %v1690, 0.2
  %v1707 = vmul.f32 %v1691, 0.2
  %v1708 = vmul.f32 %v1692, 0.2
  %v1709 = vmul.f32 %v1693, 0.2
  %v1710 = vmul.f32 %v1694, 0.2
  %v1711 = vmul.f32 %v1695, 0.2
  %v1712 = vmul.f32 %v1696, 0.2
  %v1713 = vsel %vm1697, %v1689, %v1705
  %v1714 = vsel %vm1698, %v1690, %v1706
  %v1715 = vsel %vm1699, %v1691, %v1707
  %v1716 = vsel %vm1700, %v1692, %v1708
  %v1717 = vsel %vm1701, %v1693, %v1709
  %v1718 = vsel %vm1702, %v1694, %v1710
  %v1719 = vsel %vm1703, %v1695, %v1711
  %v1720 = vsel %vm1704, %v1696, %v1712
  %v1721 = vpack.c.bf16 %v1714, %v1713
  %v1722 = vpack.c.bf16 %v1716, %v1715
  %v1723 = vpack.c.bf16 %v1718, %v1717
  %v1724 = vpack.c.bf16 %v1720, %v1719
  %v1726 = vsel %vm345, %v1721, 0
  %v1729 = vsel %vm345, %v1722, 0
  %v1732 = vsel %vm345, %v1723, 0
  %v1735 = vsel %vm345, %v1724, 0
  %1737 = vmatprep.subr.bf16.mxu0 0
  %1738 = vmatpush1.bf16.msra.mxu0 0
  %1739 = vmatprep.subr.bf16.mxu0 0
  %1740 = vmatpush1.bf16.msra.mxu0 0
  %1741 = vmatprep.subr.bf16.mxu0 0
  %1742 = vmatpush1.bf16.msra.mxu0 0
  %1743 = vmatprep.subr.bf16.mxu0 0
  %1744 = vmatpush1.bf16.msra.mxu0 0
  %1745 = vmatprep.subr.bf16.mxu0 0
  %1746 = vmatpush1.bf16.msra.mxu0 %v340
  %1747 = vmatprep.subr.bf16.mxu0 0
  %1748 = vmatpush1.bf16.msra.mxu0 %v339
  %1749 = vmatprep.subr.bf16.mxu0 0
  %1750 = vmatpush1.bf16.msra.mxu0 %v338
  %1751 = vmatprep.subr.bf16.mxu0 0
  %1752 = vmatpush1.bf16.msra.mxu0 %v337
  %1753 = vmatprep.subr.bf16.mxu0 0
  %1754 = vmatpush2.bf16.msra.mxu0 0
  %1755 = vmatprep.subr.bf16.mxu0 0
  %1756 = vmatpush2.bf16.msra.mxu0 0
  %1757 = vmatprep.subr.bf16.mxu0 0
  %1758 = vmatpush2.bf16.msra.mxu0 0
  %1759 = vmatprep.subr.bf16.mxu0 0
  %1760 = vmatpush2.bf16.msra.mxu0 0
  %1761 = vmatprep.subr.bf16.mxu0 0
  %1762 = vmatpush2.bf16.msra.mxu0 0
  %1763 = vmatprep.subr.bf16.mxu0 0
  %1764 = vmatpush2.bf16.msra.mxu0 0
  %1765 = vmatprep.subr.bf16.mxu0 0
  %1766 = vmatpush2.bf16.msra.mxu0 0
  %1767 = vmatprep.subr.bf16.mxu0 0
  %1768 = vmatpush2.bf16.msra.mxu0 0
  %1769 = vmatprep.mubr.bf16.mxu0 0
  %1770 = vmatmul.mubr.bf16.gmra.mxu0 %v1726
  %v1771 = vpop.f32.mrf.mxu0
  %v1772 = vadd.f32 0.0, %v1771
  %v1773 = vpop.f32.mrf.mxu0
  %v1774 = vpop.f32.mrf.mxu0
  %v1775 = vadd.f32 0.0, %v1774
  %v1776 = vpop.f32.mrf.mxu0
  %1777 = vmatprep.mubr.bf16.mxu0 0
  %1778 = vmatmul.mubr.bf16.gmra.mxu0 %v1729
  %v1779 = vpop.f32.mrf.mxu0
  %v1780 = vadd.f32 0.0, %v1779
  %v1781 = vpop.f32.mrf.mxu0
  %v1782 = vpop.f32.mrf.mxu0
  %v1783 = vadd.f32 0.0, %v1782
  %v1784 = vpop.f32.mrf.mxu0
  %1785 = vmatprep.mubr.bf16.mxu0 0
  %1786 = vmatmul.mubr.bf16.gmra.mxu0 %v1732
  %v1787 = vpop.f32.mrf.mxu0
  %v1788 = vadd.f32 0.0, %v1787
  %v1789 = vpop.f32.mrf.mxu0
  %v1790 = vpop.f32.mrf.mxu0
  %v1791 = vadd.f32 0.0, %v1790
  %v1792 = vpop.f32.mrf.mxu0
  %1793 = vmatprep.mubr.bf16.mxu0 0
  %1794 = vmatmul.mubr.bf16.gmra.mxu0 %v1735
  %v1795 = vpop.f32.mrf.mxu0
  %v1796 = vadd.f32 0.0, %v1795
  %v1797 = vpop.f32.mrf.mxu0
  %v1798 = vpop.f32.mrf.mxu0
  %v1799 = vadd.f32 0.0, %v1798
  %v1800 = vpop.f32.mrf.mxu0
  %1801 = vdwg.mxu0
  %v1802 = vmul.f32 %v1772, %v427
  %v1803 = vmul.f32 %v1775, %v427
  %v1804 = vmul.f32 %v1780, %v427
  %v1805 = vmul.f32 %v1783, %v427
  %v1806 = vmul.f32 %v1788, %v427
  %v1807 = vmul.f32 %v1791, %v427
  %v1808 = vmul.f32 %v1796, %v427
  %v1809 = vmul.f32 %v1799, %v427
  %v1810 = vadd.f32 %v1802, %v441
  %v1811 = vadd.f32 %v1803, %v441
  %v1812 = vadd.f32 %v1804, %v441
  %v1813 = vadd.f32 %v1805, %v441
  %v1814 = vadd.f32 %v1806, %v441
  %v1815 = vadd.f32 %v1807, %v441
  %v1816 = vadd.f32 %v1808, %v441
  %v1817 = vadd.f32 %v1809, %v441
  %vm1818 = vcmp.ge.f32.partialorder %v1810, 0.0
  %vm1819 = vcmp.ge.f32.partialorder %v1811, 0.0
  %vm1820 = vcmp.ge.f32.partialorder %v1812, 0.0
  %vm1821 = vcmp.ge.f32.partialorder %v1813, 0.0
  %vm1822 = vcmp.ge.f32.partialorder %v1814, 0.0
  %vm1823 = vcmp.ge.f32.partialorder %v1815, 0.0
  %vm1824 = vcmp.ge.f32.partialorder %v1816, 0.0
  %vm1825 = vcmp.ge.f32.partialorder %v1817, 0.0
  %v1826 = vmul.f32 %v1810, 0.2
  %v1827 = vmul.f32 %v1811, 0.2
  %v1828 = vmul.f32 %v1812, 0.2
  %v1829 = vmul.f32 %v1813, 0.2
  %v1830 = vmul.f32 %v1814, 0.2
  %v1831 = vmul.f32 %v1815, 0.2
  %v1832 = vmul.f32 %v1816, 0.2
  %v1833 = vmul.f32 %v1817, 0.2
  %v1834 = vsel %vm1818, %v1810, %v1826
  %v1835 = vsel %vm1819, %v1811, %v1827
  %v1836 = vsel %vm1820, %v1812, %v1828
  %v1837 = vsel %vm1821, %v1813, %v1829
  %v1838 = vsel %vm1822, %v1814, %v1830
  %v1839 = vsel %vm1823, %v1815, %v1831
  %v1840 = vsel %vm1824, %v1816, %v1832
  %v1841 = vsel %vm1825, %v1817, %v1833
  %v1842 = vmax.f32 %v1567, %v1834
  %v1843 = vmax.f32 %v1568, %v1835
  %v1844 = vmax.f32 %v1569, %v1836
  %v1845 = vmax.f32 %v1570, %v1837
  %v1846 = vmax.f32 %v1571, %v1838
  %v1847 = vmax.f32 %v1572, %v1839
  %v1848 = vmax.f32 %v1573, %v1840
  %v1849 = vmax.f32 %v1574, %v1841
  %s1850 = scalar_lea.vmem %s0, 192
  %v1851 = vld [vmem:[%s1850] sm:$0xf]
  %v1852 = vld [vmem:[%s1850 + $0x4] sm:$0xf]
  %v1853 = vld [vmem:[%s1850 + $0x8] sm:$0xf]
  %v1854 = vld [vmem:[%s1850 + $0xc] sm:$0xf]
  %v1855 = vld [vmem:[%s1850 + $0x10] sm:$0xf]
  %v1856 = vld [vmem:[%s1850 + $0x14] sm:$0xf]
  %v1857 = vld [vmem:[%s1850 + $0x18] sm:$0xf]
  %v1858 = vld [vmem:[%s1850 + $0x1c] sm:$0xf]
  %v1867 = vunpack.c.l.b16 %v1851
  %v1868 = vunpack.c.l.b16 %v1852
  %v1869 = vunpack.c.l.b16 %v1853
  %v1870 = vunpack.c.l.b16 %v1854
  %v1871 = vunpack.c.l.b16 %v1855
  %v1872 = vunpack.c.l.b16 %v1856
  %v1873 = vunpack.c.l.b16 %v1857
  %v1874 = vunpack.c.l.b16 %v1858
  %v1875 = vpack.c.b16 %v1868, %v1867
  %v1876 = vpack.c.b16 %v1870, %v1869
  %v1877 = vpack.c.b16 %v1872, %v1871
  %v1878 = vpack.c.b16 %v1874, %v1873
  %v1880 = vsel %vm65, %v1875, 0
  %v1883 = vsel %vm65, %v1876, 0
  %v1886 = vsel %vm65, %v1877, 0
  %v1889 = vsel %vm65, %v1878, 0
  %1891 = vmatprep.subr.bf16.mxu0 0
  %1892 = vmatpush1.bf16.msra.mxu0 0
  %1893 = vmatprep.subr.bf16.mxu0 0
  %1894 = vmatpush1.bf16.msra.mxu0 0
  %1895 = vmatprep.subr.bf16.mxu0 0
  %1896 = vmatpush1.bf16.msra.mxu0 0
  %1897 = vmatprep.subr.bf16.mxu0 0
  %1898 = vmatpush1.bf16.msra.mxu0 0
  %1899 = vmatprep.subr.bf16.mxu0 0
  %1900 = vmatpush1.bf16.msra.mxu0 0
  %1901 = vmatprep.subr.bf16.mxu0 0
  %1902 = vmatpush1.bf16.msra.mxu0 0
  %1903 = vmatprep.subr.bf16.mxu0 0
  %1904 = vmatpush1.bf16.msra.mxu0 0
  %1905 = vmatprep.subr.bf16.mxu0 0
  %1906 = vmatpush1.bf16.msra.mxu0 %v198
  %1907 = vmatprep.subr.bf16.mxu0 0
  %1908 = vmatpush2.bf16.msra.mxu0 0
  %1909 = vmatprep.subr.bf16.mxu0 0
  %1910 = vmatpush2.bf16.msra.mxu0 0
  %1911 = vmatprep.subr.bf16.mxu0 0
  %1912 = vmatpush2.bf16.msra.mxu0 0
  %1913 = vmatprep.subr.bf16.mxu0 0
  %1914 = vmatpush2.bf16.msra.mxu0 0
  %1915 = vmatprep.subr.bf16.mxu0 0
  %1916 = vmatpush2.bf16.msra.mxu0 0
  %1917 = vmatprep.subr.bf16.mxu0 0
  %1918 = vmatpush2.bf16.msra.mxu0 0
  %1919 = vmatprep.subr.bf16.mxu0 0
  %1920 = vmatpush2.bf16.msra.mxu0 0
  %1921 = vmatprep.subr.bf16.mxu0 0
  %1922 = vmatpush2.bf16.msra.mxu0 0
  %1923 = vmatprep.mubr.bf16.mxu0 0
  %1924 = vmatmul.mubr.bf16.gmra.mxu0 %v1880
  %v1925 = vpop.f32.mrf.mxu0
  %v1926 = vadd.f32 %v117, %v1925
  %v1927 = vpop.f32.mrf.mxu0
  %v1928 = vpop.f32.mrf.mxu0
  %v1929 = vadd.f32 %v120, %v1928
  %v1930 = vpop.f32.mrf.mxu0
  %1931 = vmatprep.mubr.bf16.mxu0 0
  %1932 = vmatmul.mubr.bf16.gmra.mxu0 %v1883
  %v1933 = vpop.f32.mrf.mxu0
  %v1934 = vadd.f32 %v125, %v1933
  %v1935 = vpop.f32.mrf.mxu0
  %v1936 = vpop.f32.mrf.mxu0
  %v1937 = vadd.f32 %v128, %v1936
  %v1938 = vpop.f32.mrf.mxu0
  %1939 = vmatprep.mubr.bf16.mxu0 0
  %1940 = vmatmul.mubr.bf16.gmra.mxu0 %v1886
  %v1941 = vpop.f32.mrf.mxu0
  %v1942 = vadd.f32 %v133, %v1941
  %v1943 = vpop.f32.mrf.mxu0
  %v1944 = vpop.f32.mrf.mxu0
  %v1945 = vadd.f32 %v136, %v1944
  %v1946 = vpop.f32.mrf.mxu0
  %1947 = vmatprep.mubr.bf16.mxu0 0
  %1948 = vmatmul.mubr.bf16.gmra.mxu0 %v1889
  %v1949 = vpop.f32.mrf.mxu0
  %v1950 = vadd.f32 %v141, %v1949
  %v1951 = vpop.f32.mrf.mxu0
  %v1952 = vpop.f32.mrf.mxu0
  %v1953 = vadd.f32 %v144, %v1952
  %v1954 = vpop.f32.mrf.mxu0
  %1955 = vdwg.mxu0
  %v1956 = vmul.f32 %v1926, %v269
  %v1957 = vmul.f32 %v1929, %v269
  %v1958 = vmul.f32 %v1934, %v269
  %v1959 = vmul.f32 %v1937, %v269
  %v1960 = vmul.f32 %v1942, %v269
  %v1961 = vmul.f32 %v1945, %v269
  %v1962 = vmul.f32 %v1950, %v269
  %v1963 = vmul.f32 %v1953, %v269
  %v1964 = vadd.f32 %v1956, %v283
  %v1965 = vadd.f32 %v1957, %v283
  %v1966 = vadd.f32 %v1958, %v283
  %v1967 = vadd.f32 %v1959, %v283
  %v1968 = vadd.f32 %v1960, %v283
  %v1969 = vadd.f32 %v1961, %v283
  %v1970 = vadd.f32 %v1962, %v283
  %v1971 = vadd.f32 %v1963, %v283
  %vm1972 = vcmp.ge.f32.partialorder %v1964, 0.0
  %vm1973 = vcmp.ge.f32.partialorder %v1965, 0.0
  %vm1974 = vcmp.ge.f32.partialorder %v1966, 0.0
  %vm1975 = vcmp.ge.f32.partialorder %v1967, 0.0
  %vm1976 = vcmp.ge.f32.partialorder %v1968, 0.0
  %vm1977 = vcmp.ge.f32.partialorder %v1969, 0.0
  %vm1978 = vcmp.ge.f32.partialorder %v1970, 0.0
  %vm1979 = vcmp.ge.f32.partialorder %v1971, 0.0
  %v1980 = vmul.f32 %v1964, 0.2
  %v1981 = vmul.f32 %v1965, 0.2
  %v1982 = vmul.f32 %v1966, 0.2
  %v1983 = vmul.f32 %v1967, 0.2
  %v1984 = vmul.f32 %v1968, 0.2
  %v1985 = vmul.f32 %v1969, 0.2
  %v1986 = vmul.f32 %v1970, 0.2
  %v1987 = vmul.f32 %v1971, 0.2
  %v1988 = vsel %vm1972, %v1964, %v1980
  %v1989 = vsel %vm1973, %v1965, %v1981
  %v1990 = vsel %vm1974, %v1966, %v1982
  %v1991 = vsel %vm1975, %v1967, %v1983
  %v1992 = vsel %vm1976, %v1968, %v1984
  %v1993 = vsel %vm1977, %v1969, %v1985
  %v1994 = vsel %vm1978, %v1970, %v1986
  %v1995 = vsel %vm1979, %v1971, %v1987
  %v1996 = vpack.c.bf16 %v1989, %v1988
  %v1997 = vpack.c.bf16 %v1991, %v1990
  %v1998 = vpack.c.bf16 %v1993, %v1992
  %v1999 = vpack.c.bf16 %v1995, %v1994
  %v2001 = vsel %vm345, %v1996, 0
  %v2004 = vsel %vm345, %v1997, 0
  %v2007 = vsel %vm345, %v1998, 0
  %v2010 = vsel %vm345, %v1999, 0
  %2012 = vmatprep.subr.bf16.mxu0 0
  %2013 = vmatpush1.bf16.msra.mxu0 0
  %2014 = vmatprep.subr.bf16.mxu0 0
  %2015 = vmatpush1.bf16.msra.mxu0 0
  %2016 = vmatprep.subr.bf16.mxu0 0
  %2017 = vmatpush1.bf16.msra.mxu0 0
  %2018 = vmatprep.subr.bf16.mxu0 0
  %2019 = vmatpush1.bf16.msra.mxu0 0
  %2020 = vmatprep.subr.bf16.mxu0 0
  %2021 = vmatpush1.bf16.msra.mxu0 %v340
  %2022 = vmatprep.subr.bf16.mxu0 0
  %2023 = vmatpush1.bf16.msra.mxu0 %v339
  %2024 = vmatprep.subr.bf16.mxu0 0
  %2025 = vmatpush1.bf16.msra.mxu0 %v338
  %2026 = vmatprep.subr.bf16.mxu0 0
  %2027 = vmatpush1.bf16.msra.mxu0 %v337
  %2028 = vmatprep.subr.bf16.mxu0 0
  %2029 = vmatpush2.bf16.msra.mxu0 0
  %2030 = vmatprep.subr.bf16.mxu0 0
  %2031 = vmatpush2.bf16.msra.mxu0 0
  %2032 = vmatprep.subr.bf16.mxu0 0
  %2033 = vmatpush2.bf16.msra.mxu0 0
  %2034 = vmatprep.subr.bf16.mxu0 0
  %2035 = vmatpush2.bf16.msra.mxu0 0
  %2036 = vmatprep.subr.bf16.mxu0 0
  %2037 = vmatpush2.bf16.msra.mxu0 0
  %2038 = vmatprep.subr.bf16.mxu0 0
  %2039 = vmatpush2.bf16.msra.mxu0 0
  %2040 = vmatprep.subr.bf16.mxu0 0
  %2041 = vmatpush2.bf16.msra.mxu0 0
  %2042 = vmatprep.subr.bf16.mxu0 0
  %2043 = vmatpush2.bf16.msra.mxu0 0
  %2044 = vmatprep.mubr.bf16.mxu0 0
  %2045 = vmatmul.mubr.bf16.gmra.mxu0 %v2001
  %v2046 = vpop.f32.mrf.mxu0
  %v2047 = vadd.f32 0.0, %v2046
  %v2048 = vpop.f32.mrf.mxu0
  %v2049 = vpop.f32.mrf.mxu0
  %v2050 = vadd.f32 0.0, %v2049
  %v2051 = vpop.f32.mrf.mxu0
  %2052 = vmatprep.mubr.bf16.mxu0 0
  %2053 = vmatmul.mubr.bf16.gmra.mxu0 %v2004
  %v2054 = vpop.f32.mrf.mxu0
  %v2055 = vadd.f32 0.0, %v2054
  %v2056 = vpop.f32.mrf.mxu0
  %v2057 = vpop.f32.mrf.mxu0
  %v2058 = vadd.f32 0.0, %v2057
  %v2059 = vpop.f32.mrf.mxu0
  %2060 = vmatprep.mubr.bf16.mxu0 0
  %2061 = vmatmul.mubr.bf16.gmra.mxu0 %v2007
  %v2062 = vpop.f32.mrf.mxu0
  %v2063 = vadd.f32 0.0, %v2062
  %v2064 = vpop.f32.mrf.mxu0
  %v2065 = vpop.f32.mrf.mxu0
  %v2066 = vadd.f32 0.0, %v2065
  %v2067 = vpop.f32.mrf.mxu0
  %2068 = vmatprep.mubr.bf16.mxu0 0
  %2069 = vmatmul.mubr.bf16.gmra.mxu0 %v2010
  %v2070 = vpop.f32.mrf.mxu0
  %v2071 = vadd.f32 0.0, %v2070
  %v2072 = vpop.f32.mrf.mxu0
  %v2073 = vpop.f32.mrf.mxu0
  %v2074 = vadd.f32 0.0, %v2073
  %v2075 = vpop.f32.mrf.mxu0
  %2076 = vdwg.mxu0
  %v2077 = vmul.f32 %v2047, %v427
  %v2078 = vmul.f32 %v2050, %v427
  %v2079 = vmul.f32 %v2055, %v427
  %v2080 = vmul.f32 %v2058, %v427
  %v2081 = vmul.f32 %v2063, %v427
  %v2082 = vmul.f32 %v2066, %v427
  %v2083 = vmul.f32 %v2071, %v427
  %v2084 = vmul.f32 %v2074, %v427
  %v2085 = vadd.f32 %v2077, %v441
  %v2086 = vadd.f32 %v2078, %v441
  %v2087 = vadd.f32 %v2079, %v441
  %v2088 = vadd.f32 %v2080, %v441
  %v2089 = vadd.f32 %v2081, %v441
  %v2090 = vadd.f32 %v2082, %v441
  %v2091 = vadd.f32 %v2083, %v441
  %v2092 = vadd.f32 %v2084, %v441
  %vm2093 = vcmp.ge.f32.partialorder %v2085, 0.0
  %vm2094 = vcmp.ge.f32.partialorder %v2086, 0.0
  %vm2095 = vcmp.ge.f32.partialorder %v2087, 0.0
  %vm2096 = vcmp.ge.f32.partialorder %v2088, 0.0
  %vm2097 = vcmp.ge.f32.partialorder %v2089, 0.0
  %vm2098 = vcmp.ge.f32.partialorder %v2090, 0.0
  %vm2099 = vcmp.ge.f32.partialorder %v2091, 0.0
  %vm2100 = vcmp.ge.f32.partialorder %v2092, 0.0
  %v2101 = vmul.f32 %v2085, 0.2
  %v2102 = vmul.f32 %v2086, 0.2
  %v2103 = vmul.f32 %v2087, 0.2
  %v2104 = vmul.f32 %v2088, 0.2
  %v2105 = vmul.f32 %v2089, 0.2
  %v2106 = vmul.f32 %v2090, 0.2
  %v2107 = vmul.f32 %v2091, 0.2
  %v2108 = vmul.f32 %v2092, 0.2
  %v2109 = vsel %vm2093, %v2085, %v2101
  %v2110 = vsel %vm2094, %v2086, %v2102
  %v2111 = vsel %vm2095, %v2087, %v2103
  %v2112 = vsel %vm2096, %v2088, %v2104
  %v2113 = vsel %vm2097, %v2089, %v2105
  %v2114 = vsel %vm2098, %v2090, %v2106
  %v2115 = vsel %vm2099, %v2091, %v2107
  %v2116 = vsel %vm2100, %v2092, %v2108
  %v2117 = vmax.f32 %v1842, %v2109
  %v2118 = vmax.f32 %v1843, %v2110
  %v2119 = vmax.f32 %v1844, %v2111
  %v2120 = vmax.f32 %v1845, %v2112
  %v2121 = vmax.f32 %v1846, %v2113
  %v2122 = vmax.f32 %v1847, %v2114
  %v2123 = vmax.f32 %v1848, %v2115
  %v2124 = vmax.f32 %v1849, %v2116
  %s2125 = scalar_lea.vmem %s0, 224
  %v2126 = vld [vmem:[%s2125] sm:$0xf]
  %v2127 = vld [vmem:[%s2125 + $0x4] sm:$0xf]
  %v2128 = vld [vmem:[%s2125 + $0x8] sm:$0xf]
  %v2129 = vld [vmem:[%s2125 + $0xc] sm:$0xf]
  %v2130 = vld [vmem:[%s2125 + $0x10] sm:$0xf]
  %v2131 = vld [vmem:[%s2125 + $0x14] sm:$0xf]
  %v2132 = vld [vmem:[%s2125 + $0x18] sm:$0xf]
  %v2133 = vld [vmem:[%s2125 + $0x1c] sm:$0xf]
  %v2142 = vunpack.c.l.b16 %v2126
  %v2143 = vunpack.c.l.b16 %v2127
  %v2144 = vunpack.c.l.b16 %v2128
  %v2145 = vunpack.c.l.b16 %v2129
  %v2146 = vunpack.c.l.b16 %v2130
  %v2147 = vunpack.c.l.b16 %v2131
  %v2148 = vunpack.c.l.b16 %v2132
  %v2149 = vunpack.c.l.b16 %v2133
  %v2150 = vpack.c.b16 %v2143, %v2142
  %v2151 = vpack.c.b16 %v2145, %v2144
  %v2152 = vpack.c.b16 %v2147, %v2146
  %v2153 = vpack.c.b16 %v2149, %v2148
  %v2155 = vsel %vm65, %v2150, 0
  %v2158 = vsel %vm65, %v2151, 0
  %v2161 = vsel %vm65, %v2152, 0
  %v2164 = vsel %vm65, %v2153, 0
  %2166 = vmatprep.subr.bf16.mxu0 0
  %2167 = vmatpush1.bf16.msra.mxu0 0
  %2168 = vmatprep.subr.bf16.mxu0 0
  %2169 = vmatpush1.bf16.msra.mxu0 0
  %2170 = vmatprep.subr.bf16.mxu0 0
  %2171 = vmatpush1.bf16.msra.mxu0 0
  %2172 = vmatprep.subr.bf16.mxu0 0
  %2173 = vmatpush1.bf16.msra.mxu0 0
  %2174 = vmatprep.subr.bf16.mxu0 0
  %2175 = vmatpush1.bf16.msra.mxu0 0
  %2176 = vmatprep.subr.bf16.mxu0 0
  %2177 = vmatpush1.bf16.msra.mxu0 0
  %2178 = vmatprep.subr.bf16.mxu0 0
  %2179 = vmatpush1.bf16.msra.mxu0 0
  %2180 = vmatprep.subr.bf16.mxu0 0
  %2181 = vmatpush1.bf16.msra.mxu0 %v198
  %2182 = vmatprep.subr.bf16.mxu0 0
  %2183 = vmatpush2.bf16.msra.mxu0 0
  %2184 = vmatprep.subr.bf16.mxu0 0
  %2185 = vmatpush2.bf16.msra.mxu0 0
  %2186 = vmatprep.subr.bf16.mxu0 0
  %2187 = vmatpush2.bf16.msra.mxu0 0
  %2188 = vmatprep.subr.bf16.mxu0 0
  %2189 = vmatpush2.bf16.msra.mxu0 0
  %2190 = vmatprep.subr.bf16.mxu0 0
  %2191 = vmatpush2.bf16.msra.mxu0 0
  %2192 = vmatprep.subr.bf16.mxu0 0
  %2193 = vmatpush2.bf16.msra.mxu0 0
  %2194 = vmatprep.subr.bf16.mxu0 0
  %2195 = vmatpush2.bf16.msra.mxu0 0
  %2196 = vmatprep.subr.bf16.mxu0 0
  %2197 = vmatpush2.bf16.msra.mxu0 0
  %2198 = vmatprep.mubr.bf16.mxu0 0
  %2199 = vmatmul.mubr.bf16.gmra.mxu0 %v2155
  %v2200 = vpop.f32.mrf.mxu0
  %v2201 = vadd.f32 %v117, %v2200
  %v2202 = vpop.f32.mrf.mxu0
  %v2203 = vpop.f32.mrf.mxu0
  %v2204 = vadd.f32 %v120, %v2203
  %v2205 = vpop.f32.mrf.mxu0
  %2206 = vmatprep.mubr.bf16.mxu0 0
  %2207 = vmatmul.mubr.bf16.gmra.mxu0 %v2158
  %v2208 = vpop.f32.mrf.mxu0
  %v2209 = vadd.f32 %v125, %v2208
  %v2210 = vpop.f32.mrf.mxu0
  %v2211 = vpop.f32.mrf.mxu0
  %v2212 = vadd.f32 %v128, %v2211
  %v2213 = vpop.f32.mrf.mxu0
  %2214 = vmatprep.mubr.bf16.mxu0 0
  %2215 = vmatmul.mubr.bf16.gmra.mxu0 %v2161
  %v2216 = vpop.f32.mrf.mxu0
  %v2217 = vadd.f32 %v133, %v2216
  %v2218 = vpop.f32.mrf.mxu0
  %v2219 = vpop.f32.mrf.mxu0
  %v2220 = vadd.f32 %v136, %v2219
  %v2221 = vpop.f32.mrf.mxu0
  %2222 = vmatprep.mubr.bf16.mxu0 0
  %2223 = vmatmul.mubr.bf16.gmra.mxu0 %v2164
  %v2224 = vpop.f32.mrf.mxu0
  %v2225 = vadd.f32 %v141, %v2224
  %v2226 = vpop.f32.mrf.mxu0
  %v2227 = vpop.f32.mrf.mxu0
  %v2228 = vadd.f32 %v144, %v2227
  %v2229 = vpop.f32.mrf.mxu0
  %2230 = vdwg.mxu0
  %v2231 = vmul.f32 %v2201, %v269
  %v2232 = vmul.f32 %v2204, %v269
  %v2233 = vmul.f32 %v2209, %v269
  %v2234 = vmul.f32 %v2212, %v269
  %v2235 = vmul.f32 %v2217, %v269
  %v2236 = vmul.f32 %v2220, %v269
  %v2237 = vmul.f32 %v2225, %v269
  %v2238 = vmul.f32 %v2228, %v269
  %v2239 = vadd.f32 %v2231, %v283
  %v2240 = vadd.f32 %v2232, %v283
  %v2241 = vadd.f32 %v2233, %v283
  %v2242 = vadd.f32 %v2234, %v283
  %v2243 = vadd.f32 %v2235, %v283
  %v2244 = vadd.f32 %v2236, %v283
  %v2245 = vadd.f32 %v2237, %v283
  %v2246 = vadd.f32 %v2238, %v283
  %vm2247 = vcmp.ge.f32.partialorder %v2239, 0.0
  %vm2248 = vcmp.ge.f32.partialorder %v2240, 0.0
  %vm2249 = vcmp.ge.f32.partialorder %v2241, 0.0
  %vm2250 = vcmp.ge.f32.partialorder %v2242, 0.0
  %vm2251 = vcmp.ge.f32.partialorder %v2243, 0.0
  %vm2252 = vcmp.ge.f32.partialorder %v2244, 0.0
  %vm2253 = vcmp.ge.f32.partialorder %v2245, 0.0
  %vm2254 = vcmp.ge.f32.partialorder %v2246, 0.0
  %v2255 = vmul.f32 %v2239, 0.2
  %v2256 = vmul.f32 %v2240, 0.2
  %v2257 = vmul.f32 %v2241, 0.2
  %v2258 = vmul.f32 %v2242, 0.2
  %v2259 = vmul.f32 %v2243, 0.2
  %v2260 = vmul.f32 %v2244, 0.2
  %v2261 = vmul.f32 %v2245, 0.2
  %v2262 = vmul.f32 %v2246, 0.2
  %v2263 = vsel %vm2247, %v2239, %v2255
  %v2264 = vsel %vm2248, %v2240, %v2256
  %v2265 = vsel %vm2249, %v2241, %v2257
  %v2266 = vsel %vm2250, %v2242, %v2258
  %v2267 = vsel %vm2251, %v2243, %v2259
  %v2268 = vsel %vm2252, %v2244, %v2260
  %v2269 = vsel %vm2253, %v2245, %v2261
  %v2270 = vsel %vm2254, %v2246, %v2262
  %v2271 = vpack.c.bf16 %v2264, %v2263
  %v2272 = vpack.c.bf16 %v2266, %v2265
  %v2273 = vpack.c.bf16 %v2268, %v2267
  %v2274 = vpack.c.bf16 %v2270, %v2269
  %v2276 = vsel %vm345, %v2271, 0
  %v2279 = vsel %vm345, %v2272, 0
  %v2282 = vsel %vm345, %v2273, 0
  %v2285 = vsel %vm345, %v2274, 0
  %2287 = vmatprep.subr.bf16.mxu0 0
  %2288 = vmatpush1.bf16.msra.mxu0 0
  %2289 = vmatprep.subr.bf16.mxu0 0
  %2290 = vmatpush1.bf16.msra.mxu0 0
  %2291 = vmatprep.subr.bf16.mxu0 0
  %2292 = vmatpush1.bf16.msra.mxu0 0
  %2293 = vmatprep.subr.bf16.mxu0 0
  %2294 = vmatpush1.bf16.msra.mxu0 0
  %2295 = vmatprep.subr.bf16.mxu0 0
  %2296 = vmatpush1.bf16.msra.mxu0 %v340
  %2297 = vmatprep.subr.bf16.mxu0 0
  %2298 = vmatpush1.bf16.msra.mxu0 %v339
  %2299 = vmatprep.subr.bf16.mxu0 0
  %2300 = vmatpush1.bf16.msra.mxu0 %v338
  %2301 = vmatprep.subr.bf16.mxu0 0
  %2302 = vmatpush1.bf16.msra.mxu0 %v337
  %2303 = vmatprep.subr.bf16.mxu0 0
  %2304 = vmatpush2.bf16.msra.mxu0 0
  %2305 = vmatprep.subr.bf16.mxu0 0
  %2306 = vmatpush2.bf16.msra.mxu0 0
  %2307 = vmatprep.subr.bf16.mxu0 0
  %2308 = vmatpush2.bf16.msra.mxu0 0
  %2309 = vmatprep.subr.bf16.mxu0 0
  %2310 = vmatpush2.bf16.msra.mxu0 0
  %2311 = vmatprep.subr.bf16.mxu0 0
  %2312 = vmatpush2.bf16.msra.mxu0 0
  %2313 = vmatprep.subr.bf16.mxu0 0
  %2314 = vmatpush2.bf16.msra.mxu0 0
  %2315 = vmatprep.subr.bf16.mxu0 0
  %2316 = vmatpush2.bf16.msra.mxu0 0
  %2317 = vmatprep.subr.bf16.mxu0 0
  %2318 = vmatpush2.bf16.msra.mxu0 0
  %2319 = vmatprep.mubr.bf16.mxu0 0
  %2320 = vmatmul.mubr.bf16.gmra.mxu0 %v2276
  %v2321 = vpop.f32.mrf.mxu0
  %v2322 = vadd.f32 0.0, %v2321
  %v2323 = vpop.f32.mrf.mxu0
  %v2324 = vpop.f32.mrf.mxu0
  %v2325 = vadd.f32 0.0, %v2324
  %v2326 = vpop.f32.mrf.mxu0
  %2327 = vmatprep.mubr.bf16.mxu0 0
  %2328 = vmatmul.mubr.bf16.gmra.mxu0 %v2279
  %v2329 = vpop.f32.mrf.mxu0
  %v2330 = vadd.f32 0.0, %v2329
  %v2331 = vpop.f32.mrf.mxu0
  %v2332 = vpop.f32.mrf.mxu0
  %v2333 = vadd.f32 0.0, %v2332
  %v2334 = vpop.f32.mrf.mxu0
  %2335 = vmatprep.mubr.bf16.mxu0 0
  %2336 = vmatmul.mubr.bf16.gmra.mxu0 %v2282
  %v2337 = vpop.f32.mrf.mxu0
  %v2338 = vadd.f32 0.0, %v2337
  %v2339 = vpop.f32.mrf.mxu0
  %v2340 = vpop.f32.mrf.mxu0
  %v2341 = vadd.f32 0.0, %v2340
  %v2342 = vpop.f32.mrf.mxu0
  %2343 = vmatprep.mubr.bf16.mxu0 0
  %2344 = vmatmul.mubr.bf16.gmra.mxu0 %v2285
  %v2345 = vpop.f32.mrf.mxu0
  %v2346 = vadd.f32 0.0, %v2345
  %v2347 = vpop.f32.mrf.mxu0
  %v2348 = vpop.f32.mrf.mxu0
  %v2349 = vadd.f32 0.0, %v2348
  %v2350 = vpop.f32.mrf.mxu0
  %2351 = vdwg.mxu0
  %v2352 = vmul.f32 %v2322, %v427
  %v2353 = vmul.f32 %v2325, %v427
  %v2354 = vmul.f32 %v2330, %v427
  %v2355 = vmul.f32 %v2333, %v427
  %v2356 = vmul.f32 %v2338, %v427
  %v2357 = vmul.f32 %v2341, %v427
  %v2358 = vmul.f32 %v2346, %v427
  %v2359 = vmul.f32 %v2349, %v427
  %v2360 = vadd.f32 %v2352, %v441
  %v2361 = vadd.f32 %v2353, %v441
  %v2362 = vadd.f32 %v2354, %v441
  %v2363 = vadd.f32 %v2355, %v441
  %v2364 = vadd.f32 %v2356, %v441
  %v2365 = vadd.f32 %v2357, %v441
  %v2366 = vadd.f32 %v2358, %v441
  %v2367 = vadd.f32 %v2359, %v441
  %vm2368 = vcmp.ge.f32.partialorder %v2360, 0.0
  %vm2369 = vcmp.ge.f32.partialorder %v2361, 0.0
  %vm2370 = vcmp.ge.f32.partialorder %v2362, 0.0
  %vm2371 = vcmp.ge.f32.partialorder %v2363, 0.0
  %vm2372 = vcmp.ge.f32.partialorder %v2364, 0.0
  %vm2373 = vcmp.ge.f32.partialorder %v2365, 0.0
  %vm2374 = vcmp.ge.f32.partialorder %v2366, 0.0
  %vm2375 = vcmp.ge.f32.partialorder %v2367, 0.0
  %v2376 = vmul.f32 %v2360, 0.2
  %v2377 = vmul.f32 %v2361, 0.2
  %v2378 = vmul.f32 %v2362, 0.2
  %v2379 = vmul.f32 %v2363, 0.2
  %v2380 = vmul.f32 %v2364, 0.2
  %v2381 = vmul.f32 %v2365, 0.2
  %v2382 = vmul.f32 %v2366, 0.2
  %v2383 = vmul.f32 %v2367, 0.2
  %v2384 = vsel %vm2368, %v2360, %v2376
  %v2385 = vsel %vm2369, %v2361, %v2377
  %v2386 = vsel %vm2370, %v2362, %v2378
  %v2387 = vsel %vm2371, %v2363, %v2379
  %v2388 = vsel %vm2372, %v2364, %v2380
  %v2389 = vsel %vm2373, %v2365, %v2381
  %v2390 = vsel %vm2374, %v2366, %v2382
  %v2391 = vsel %vm2375, %v2367, %v2383
  %v2392 = vmax.f32 %v2117, %v2384
  %v2393 = vmax.f32 %v2118, %v2385
  %v2394 = vmax.f32 %v2119, %v2386
  %v2395 = vmax.f32 %v2120, %v2387
  %v2396 = vmax.f32 %v2121, %v2388
  %v2397 = vmax.f32 %v2122, %v2389
  %v2398 = vmax.f32 %v2123, %v2390
  %v2399 = vmax.f32 %v2124, %v2391
  %2400 = vst.msk [vmem:[%s9] sm:$0xff] %vm345, %v2392
  %2401 = vst.msk [vmem:[%s9 + $0x8] sm:$0xff] %vm345, %v2393
  %2402 = vst.msk [vmem:[%s9 + $0x10] sm:$0xff] %vm345, %v2394
  %2403 = vst.msk [vmem:[%s9 + $0x18] sm:$0xff] %vm345, %v2395
  %2404 = vst.msk [vmem:[%s9 + $0x20] sm:$0xff] %vm345, %v2396
  %2405 = vst.msk [vmem:[%s9 + $0x28] sm:$0xff] %vm345, %v2397
  %2406 = vst.msk [vmem:[%s9 + $0x30] sm:$0xff] %vm345, %v2398
  %2407 = vst.msk [vmem:[%s9 + $0x38] sm:$0xff] %vm345, %v2399
  // Predicated region
  $region38: #{dgcnn_semseg_forward.9} parent=0 // pred_check
    _
  $region39: #{dgcnn_semseg_forward.9} parent=0 // pred_check_branch
    %2409 = sbr.rel (0) target = $region41
  $region40: #{dgcnn_semseg_forward.9} parent=0 // pred_region
    _
  $region41: #{dgcnn_semseg_forward.9} parent=0 // pred_fallthru
    _
  // Predicated region
  $region42: #{dgcnn_semseg_forward.9} parent=0 // pred_check
    _
  $region43: #{dgcnn_semseg_forward.9} parent=0 // pred_check_branch
    %2411 = sbr.rel (0) target = $region45
  $region44: #{dgcnn_semseg_forward.9} parent=0 // pred_region
    _
  $region45: #{dgcnn_semseg_forward.9} parent=0 // pred_fallthru
    _

// kernel: dgcnn_semseg_forward.11
$region0: #{dgcnn_semseg_forward.11}
  #allocation0 [shape = 'u32[]', space=smem, size = 0x4, offset = 0x4, fixed_abs, tag = 'smem constant byte address 0x4 - core index']
  #allocation1 [shape = 'u32[144,128]{1,0:T(1,128)}', space=vmem, size = 0x12000, scoped, tag = 'internal scratch']
  %s0 = inlined_call_operand.vmem [shape: bf16[8,64,64], index: 0, kind: input, shape index: {}]
  %s1 = inlined_call_operand.vmem [shape: bf16[64,64], index: 1, kind: input, shape index: {}]
  %s2 = inlined_call_operand.vmem [shape: bf16[64,64], index: 2, kind: input, shape index: {}]
  %s3 = inlined_call_operand.vmem [shape: bf16[64,64], index: 3, kind: input, shape index: {}]
  %s4 = inlined_call_operand.vmem [shape: f32[1,64], index: 4, kind: input, shape index: {}]
  %s5 = inlined_call_operand.vmem [shape: f32[1,64], index: 5, kind: input, shape index: {}]
  %s6 = inlined_call_operand.vmem [shape: bf16[64,64], index: 6, kind: input, shape index: {}]
  %s7 = inlined_call_operand.vmem [shape: f32[1,64], index: 7, kind: input, shape index: {}]
  %s8 = inlined_call_operand.vmem [shape: f32[1,64], index: 8, kind: input, shape index: {}]
  %s9 = inlined_call_operand.vmem [shape: f32[64,64], index: 9, kind: output, shape index: {}]
  %s10 = sld [smem:[#allocation0]]
  $region46: #{dgcnn_semseg_forward.11} parent=0
    _
  %s12 = ssub.s32 1, %s10
  %s13 = scalar_select 0, %s12, %s10
  // Predicated region
  $region2: #{dgcnn_semseg_forward.11} parent=0 // pred_check
    _
  $region3: #{dgcnn_semseg_forward.11} parent=0 // pred_check_branch
    %15 = sbr.rel (0) target = $region5
  $region4: #{dgcnn_semseg_forward.11} parent=0 // pred_region
    _
  $region5: #{dgcnn_semseg_forward.11} parent=0 // pred_fallthru
    _
  // Predicated region
  $region6: #{dgcnn_semseg_forward.11} parent=0 // pred_check
    _
  $region7: #{dgcnn_semseg_forward.11} parent=0 // pred_check_branch
    %17 = sbr.rel (0) target = $region9
  $region8: #{dgcnn_semseg_forward.11} parent=0 // pred_region
    _
  $region9: #{dgcnn_semseg_forward.11} parent=0 // pred_fallthru
    _
  // Predicated region
  $region10: #{dgcnn_semseg_forward.11} parent=0 // pred_check
    _
  $region11: #{dgcnn_semseg_forward.11} parent=0 // pred_check_branch
    %19 = sbr.rel (0) target = $region13
  $region12: #{dgcnn_semseg_forward.11} parent=0 // pred_region
    _
  $region13: #{dgcnn_semseg_forward.11} parent=0 // pred_fallthru
    _
  // Predicated region
  $region14: #{dgcnn_semseg_forward.11} parent=0 // pred_check
    _
  $region15: #{dgcnn_semseg_forward.11} parent=0 // pred_check_branch
    %21 = sbr.rel (0) target = $region17
  $region16: #{dgcnn_semseg_forward.11} parent=0 // pred_region
    _
  $region17: #{dgcnn_semseg_forward.11} parent=0 // pred_fallthru
    _
  // Predicated region
  $region18: #{dgcnn_semseg_forward.11} parent=0 // pred_check
    _
  $region19: #{dgcnn_semseg_forward.11} parent=0 // pred_check_branch
    %23 = sbr.rel (0) target = $region21
  $region20: #{dgcnn_semseg_forward.11} parent=0 // pred_region
    _
  $region21: #{dgcnn_semseg_forward.11} parent=0 // pred_fallthru
    _
  // Predicated region
  $region22: #{dgcnn_semseg_forward.11} parent=0 // pred_check
    _
  $region23: #{dgcnn_semseg_forward.11} parent=0 // pred_check_branch
    %25 = sbr.rel (0) target = $region25
  $region24: #{dgcnn_semseg_forward.11} parent=0 // pred_region
    _
  $region25: #{dgcnn_semseg_forward.11} parent=0 // pred_fallthru
    _
  // Predicated region
  $region26: #{dgcnn_semseg_forward.11} parent=0 // pred_check
    _
  $region27: #{dgcnn_semseg_forward.11} parent=0 // pred_check_branch
    %27 = sbr.rel (0) target = $region29
  $region28: #{dgcnn_semseg_forward.11} parent=0 // pred_region
    _
  $region29: #{dgcnn_semseg_forward.11} parent=0 // pred_fallthru
    _
  // Predicated region
  $region30: #{dgcnn_semseg_forward.11} parent=0 // pred_check
    _
  $region31: #{dgcnn_semseg_forward.11} parent=0 // pred_check_branch
    %29 = sbr.rel (0) target = $region33
  $region32: #{dgcnn_semseg_forward.11} parent=0 // pred_region
    _
  $region33: #{dgcnn_semseg_forward.11} parent=0 // pred_fallthru
    _
  // Predicated region
  $region34: #{dgcnn_semseg_forward.11} parent=0 // pred_check
    _
  $region35: #{dgcnn_semseg_forward.11} parent=0 // pred_check_branch
    %31 = sbr.rel (0) target = $region37
  $region36: #{dgcnn_semseg_forward.11} parent=0 // pred_region
    _
  $region37: #{dgcnn_semseg_forward.11} parent=0 // pred_fallthru
    _
  %v33 = vld [vmem:[%s2] sm:$0xf]
  %v34 = vld [vmem:[%s2 + $0x4] sm:$0xf]
  %v35 = vld [vmem:[%s2 + $0x8] sm:$0xf]
  %v36 = vld [vmem:[%s2 + $0xc] sm:$0xf]
  %v37 = vld [vmem:[%s2 + $0x10] sm:$0xf]
  %v38 = vld [vmem:[%s2 + $0x14] sm:$0xf]
  %v39 = vld [vmem:[%s2 + $0x18] sm:$0xf]
  %v40 = vld [vmem:[%s2 + $0x1c] sm:$0xf]
  %v41 = vld [vmem:[%s4] sm:$0x1]
  %v42 = vld [vmem:[%s5] sm:$0x1]
  %v43 = vld [vmem:[%s1] sm:$0xf]
  %v44 = vld [vmem:[%s1 + $0x4] sm:$0xf]
  %v45 = vld [vmem:[%s1 + $0x8] sm:$0xf]
  %v46 = vld [vmem:[%s1 + $0xc] sm:$0xf]
  %v47 = vld [vmem:[%s1 + $0x10] sm:$0xf]
  %v48 = vld [vmem:[%s1 + $0x14] sm:$0xf]
  %v49 = vld [vmem:[%s1 + $0x18] sm:$0xf]
  %v50 = vld [vmem:[%s1 + $0x1c] sm:$0xf]
  %v51 = vld [vmem:[%s3] sm:$0xf]
  %v52 = vld [vmem:[%s3 + $0x4] sm:$0xf]
  %v53 = vld [vmem:[%s3 + $0x8] sm:$0xf]
  %v54 = vld [vmem:[%s3 + $0xc] sm:$0xf]
  %v55 = vld [vmem:[%s3 + $0x10] sm:$0xf]
  %v56 = vld [vmem:[%s3 + $0x14] sm:$0xf]
  %v57 = vld [vmem:[%s3 + $0x18] sm:$0xf]
  %v58 = vld [vmem:[%s3 + $0x1c] sm:$0xf]
  %v67 = vunpack.c.l.b16 %v43
  %v68 = vunpack.c.l.b16 %v44
  %v69 = vunpack.c.l.b16 %v45
  %v70 = vunpack.c.l.b16 %v46
  %v71 = vunpack.c.l.b16 %v47
  %v72 = vunpack.c.l.b16 %v48
  %v73 = vunpack.c.l.b16 %v49
  %v74 = vunpack.c.l.b16 %v50
  %v75 = vpack.c.b16 %v68, %v67
  %v76 = vpack.c.b16 %v70, %v69
  %v77 = vpack.c.b16 %v72, %v71
  %v78 = vpack.c.b16 %v74, %v73
  %v87 = vunpack.c.l.b16 %v51
  %v88 = vunpack.c.l.b16 %v52
  %v89 = vunpack.c.l.b16 %v53
  %v90 = vunpack.c.l.b16 %v54
  %v91 = vunpack.c.l.b16 %v55
  %v92 = vunpack.c.l.b16 %v56
  %v93 = vunpack.c.l.b16 %v57
  %v94 = vunpack.c.l.b16 %v58
  %v95 = vpack.c.b16 %v88, %v87
  %v96 = vpack.c.b16 %v90, %v89
  %v97 = vpack.c.b16 %v92, %v91
  %v98 = vpack.c.b16 %v94, %v93
  %vm103 = vcmask 523264
  %v105 = vsel %vm103, %v75, 0
  %v108 = vsel %vm103, %v76, 0
  %v111 = vsel %vm103, %v77, 0
  %v114 = vsel %vm103, %v78, 0
  %116 = vmatprep.subr.bf16.mxu0 0
  %117 = vmatpush1.bf16.msra.mxu0 0
  %118 = vmatprep.subr.bf16.mxu0 0
  %119 = vmatpush1.bf16.msra.mxu0 0
  %120 = vmatprep.subr.bf16.mxu0 0
  %121 = vmatpush1.bf16.msra.mxu0 0
  %122 = vmatprep.subr.bf16.mxu0 0
  %123 = vmatpush1.bf16.msra.mxu0 0
  %124 = vmatprep.subr.bf16.mxu0 0
  %125 = vmatpush1.bf16.msra.mxu0 %v98
  %126 = vmatprep.subr.bf16.mxu0 0
  %127 = vmatpush1.bf16.msra.mxu0 %v97
  %128 = vmatprep.subr.bf16.mxu0 0
  %129 = vmatpush1.bf16.msra.mxu0 %v96
  %130 = vmatprep.subr.bf16.mxu0 0
  %131 = vmatpush1.bf16.msra.mxu0 %v95
  %132 = vmatprep.subr.bf16.mxu0 0
  %133 = vmatpush2.bf16.msra.mxu0 0
  %134 = vmatprep.subr.bf16.mxu0 0
  %135 = vmatpush2.bf16.msra.mxu0 0
  %136 = vmatprep.subr.bf16.mxu0 0
  %137 = vmatpush2.bf16.msra.mxu0 0
  %138 = vmatprep.subr.bf16.mxu0 0
  %139 = vmatpush2.bf16.msra.mxu0 0
  %140 = vmatprep.subr.bf16.mxu0 0
  %141 = vmatpush2.bf16.msra.mxu0 0
  %142 = vmatprep.subr.bf16.mxu0 0
  %143 = vmatpush2.bf16.msra.mxu0 0
  %144 = vmatprep.subr.bf16.mxu0 0
  %145 = vmatpush2.bf16.msra.mxu0 0
  %146 = vmatprep.subr.bf16.mxu0 0
  %147 = vmatpush2.bf16.msra.mxu0 0
  %148 = vmatprep.mubr.bf16.mxu0 0
  %149 = vmatmul.mubr.bf16.gmra.mxu0 %v105
  %v150 = vpop.f32.mrf.mxu0
  %v151 = vadd.f32 0.0, %v150
  %v152 = vpop.f32.mrf.mxu0
  %v153 = vpop.f32.mrf.mxu0
  %v154 = vadd.f32 0.0, %v153
  %v155 = vpop.f32.mrf.mxu0
  %156 = vmatprep.mubr.bf16.mxu0 0
  %157 = vmatmul.mubr.bf16.gmra.mxu0 %v108
  %v158 = vpop.f32.mrf.mxu0
  %v159 = vadd.f32 0.0, %v158
  %v160 = vpop.f32.mrf.mxu0
  %v161 = vpop.f32.mrf.mxu0
  %v162 = vadd.f32 0.0, %v161
  %v163 = vpop.f32.mrf.mxu0
  %164 = vmatprep.mubr.bf16.mxu0 0
  %165 = vmatmul.mubr.bf16.gmra.mxu0 %v111
  %v166 = vpop.f32.mrf.mxu0
  %v167 = vadd.f32 0.0, %v166
  %v168 = vpop.f32.mrf.mxu0
  %v169 = vpop.f32.mrf.mxu0
  %v170 = vadd.f32 0.0, %v169
  %v171 = vpop.f32.mrf.mxu0
  %172 = vmatprep.mubr.bf16.mxu0 0
  %173 = vmatmul.mubr.bf16.gmra.mxu0 %v114
  %v174 = vpop.f32.mrf.mxu0
  %v175 = vadd.f32 0.0, %v174
  %v176 = vpop.f32.mrf.mxu0
  %v177 = vpop.f32.mrf.mxu0
  %v178 = vadd.f32 0.0, %v177
  %v179 = vpop.f32.mrf.mxu0
  %180 = vdwg.mxu0
  %v181 = vld [vmem:[%s6] sm:$0xf]
  %v182 = vld [vmem:[%s6 + $0x4] sm:$0xf]
  %v183 = vld [vmem:[%s6 + $0x8] sm:$0xf]
  %v184 = vld [vmem:[%s6 + $0xc] sm:$0xf]
  %v185 = vld [vmem:[%s6 + $0x10] sm:$0xf]
  %v186 = vld [vmem:[%s6 + $0x14] sm:$0xf]
  %v187 = vld [vmem:[%s6 + $0x18] sm:$0xf]
  %v188 = vld [vmem:[%s6 + $0x1c] sm:$0xf]
  %v189 = vld [vmem:[%s7] sm:$0x1]
  %v190 = vld [vmem:[%s8] sm:$0x1]
  %v191 = vld [vmem:[%s0] sm:$0xf]
  %v192 = vld [vmem:[%s0 + $0x4] sm:$0xf]
  %v193 = vld [vmem:[%s0 + $0x8] sm:$0xf]
  %v194 = vld [vmem:[%s0 + $0xc] sm:$0xf]
  %v195 = vld [vmem:[%s0 + $0x10] sm:$0xf]
  %v196 = vld [vmem:[%s0 + $0x14] sm:$0xf]
  %v197 = vld [vmem:[%s0 + $0x18] sm:$0xf]
  %v198 = vld [vmem:[%s0 + $0x1c] sm:$0xf]
  %v207 = vunpack.c.l.b16 %v191
  %v208 = vunpack.c.l.b16 %v192
  %v209 = vunpack.c.l.b16 %v193
  %v210 = vunpack.c.l.b16 %v194
  %v211 = vunpack.c.l.b16 %v195
  %v212 = vunpack.c.l.b16 %v196
  %v213 = vunpack.c.l.b16 %v197
  %v214 = vunpack.c.l.b16 %v198
  %v215 = vpack.c.b16 %v208, %v207
  %v216 = vpack.c.b16 %v210, %v209
  %v217 = vpack.c.b16 %v212, %v211
  %v218 = vpack.c.b16 %v214, %v213
  %v227 = vunpack.c.l.b16 %v33
  %v228 = vunpack.c.l.b16 %v34
  %v229 = vunpack.c.l.b16 %v35
  %v230 = vunpack.c.l.b16 %v36
  %v231 = vunpack.c.l.b16 %v37
  %v232 = vunpack.c.l.b16 %v38
  %v233 = vunpack.c.l.b16 %v39
  %v234 = vunpack.c.l.b16 %v40
  %v235 = vpack.c.b16 %v228, %v227
  %v236 = vpack.c.b16 %v230, %v229
  %v237 = vpack.c.b16 %v232, %v231
  %v238 = vpack.c.b16 %v234, %v233
  %v244 = vsel %vm103, %v215, 0
  %v247 = vsel %vm103, %v216, 0
  %v250 = vsel %vm103, %v217, 0
  %v253 = vsel %vm103, %v218, 0
  %255 = vmatprep.subr.bf16.mxu0 0
  %256 = vmatpush1.bf16.msra.mxu0 0
  %257 = vmatprep.subr.bf16.mxu0 0
  %258 = vmatpush1.bf16.msra.mxu0 0
  %259 = vmatprep.subr.bf16.mxu0 0
  %260 = vmatpush1.bf16.msra.mxu0 0
  %261 = vmatprep.subr.bf16.mxu0 0
  %262 = vmatpush1.bf16.msra.mxu0 0
  %263 = vmatprep.subr.bf16.mxu0 0
  %264 = vmatpush1.bf16.msra.mxu0 %v238
  %265 = vmatprep.subr.bf16.mxu0 0
  %266 = vmatpush1.bf16.msra.mxu0 %v237
  %267 = vmatprep.subr.bf16.mxu0 0
  %268 = vmatpush1.bf16.msra.mxu0 %v236
  %269 = vmatprep.subr.bf16.mxu0 0
  %270 = vmatpush1.bf16.msra.mxu0 %v235
  %271 = vmatprep.subr.bf16.mxu0 0
  %272 = vmatpush2.bf16.msra.mxu0 0
  %273 = vmatprep.subr.bf16.mxu0 0
  %274 = vmatpush2.bf16.msra.mxu0 0
  %275 = vmatprep.subr.bf16.mxu0 0
  %276 = vmatpush2.bf16.msra.mxu0 0
  %277 = vmatprep.subr.bf16.mxu0 0
  %278 = vmatpush2.bf16.msra.mxu0 0
  %279 = vmatprep.subr.bf16.mxu0 0
  %280 = vmatpush2.bf16.msra.mxu0 0
  %281 = vmatprep.subr.bf16.mxu0 0
  %282 = vmatpush2.bf16.msra.mxu0 0
  %283 = vmatprep.subr.bf16.mxu0 0
  %284 = vmatpush2.bf16.msra.mxu0 0
  %285 = vmatprep.subr.bf16.mxu0 0
  %286 = vmatpush2.bf16.msra.mxu0 0
  %287 = vmatprep.mubr.bf16.mxu0 0
  %288 = vmatmul.mubr.bf16.gmra.mxu0 %v244
  %v289 = vpop.f32.mrf.mxu0
  %v290 = vadd.f32 %v151, %v289
  %v291 = vpop.f32.mrf.mxu0
  %v292 = vpop.f32.mrf.mxu0
  %v293 = vadd.f32 %v154, %v292
  %v294 = vpop.f32.mrf.mxu0
  %295 = vmatprep.mubr.bf16.mxu0 0
  %296 = vmatmul.mubr.bf16.gmra.mxu0 %v247
  %v297 = vpop.f32.mrf.mxu0
  %v298 = vadd.f32 %v159, %v297
  %v299 = vpop.f32.mrf.mxu0
  %v300 = vpop.f32.mrf.mxu0
  %v301 = vadd.f32 %v162, %v300
  %v302 = vpop.f32.mrf.mxu0
  %303 = vmatprep.mubr.bf16.mxu0 0
  %304 = vmatmul.mubr.bf16.gmra.mxu0 %v250
  %v305 = vpop.f32.mrf.mxu0
  %v306 = vadd.f32 %v167, %v305
  %v307 = vpop.f32.mrf.mxu0
  %v308 = vpop.f32.mrf.mxu0
  %v309 = vadd.f32 %v170, %v308
  %v310 = vpop.f32.mrf.mxu0
  %311 = vmatprep.mubr.bf16.mxu0 0
  %312 = vmatmul.mubr.bf16.gmra.mxu0 %v253
  %v313 = vpop.f32.mrf.mxu0
  %v314 = vadd.f32 %v175, %v313
  %v315 = vpop.f32.mrf.mxu0
  %v316 = vpop.f32.mrf.mxu0
  %v317 = vadd.f32 %v178, %v316
  %v318 = vpop.f32.mrf.mxu0
  %319 = vdwg.mxu0
  %v321 = vlaneseq
  %v322 = vshrl.u32 %v321, 7
  %v323 = vsub.s32 0, %v322
  %v324 = vrot.slane %v41, %v323
  %v326 = vmul.f32 %v290, %v324
  %v327 = vmul.f32 %v293, %v324
  %v328 = vmul.f32 %v298, %v324
  %v329 = vmul.f32 %v301, %v324
  %v330 = vmul.f32 %v306, %v324
  %v331 = vmul.f32 %v309, %v324
  %v332 = vmul.f32 %v314, %v324
  %v333 = vmul.f32 %v317, %v324
  %v335 = vlaneseq
  %v336 = vshrl.u32 %v335, 7
  %v337 = vsub.s32 0, %v336
  %v338 = vrot.slane %v42, %v337
  %v340 = vadd.f32 %v326, %v338
  %v341 = vadd.f32 %v327, %v338
  %v342 = vadd.f32 %v328, %v338
  %v343 = vadd.f32 %v329, %v338
  %v344 = vadd.f32 %v330, %v338
  %v345 = vadd.f32 %v331, %v338
  %v346 = vadd.f32 %v332, %v338
  %v347 = vadd.f32 %v333, %v338
  %vm348 = vcmp.ge.f32.partialorder %v340, 0.0
  %vm349 = vcmp.ge.f32.partialorder %v341, 0.0
  %vm350 = vcmp.ge.f32.partialorder %v342, 0.0
  %vm351 = vcmp.ge.f32.partialorder %v343, 0.0
  %vm352 = vcmp.ge.f32.partialorder %v344, 0.0
  %vm353 = vcmp.ge.f32.partialorder %v345, 0.0
  %vm354 = vcmp.ge.f32.partialorder %v346, 0.0
  %vm355 = vcmp.ge.f32.partialorder %v347, 0.0
  %v356 = vmul.f32 %v340, 0.2
  %v357 = vmul.f32 %v341, 0.2
  %v358 = vmul.f32 %v342, 0.2
  %v359 = vmul.f32 %v343, 0.2
  %v360 = vmul.f32 %v344, 0.2
  %v361 = vmul.f32 %v345, 0.2
  %v362 = vmul.f32 %v346, 0.2
  %v363 = vmul.f32 %v347, 0.2
  %v364 = vsel %vm348, %v340, %v356
  %v365 = vsel %vm349, %v341, %v357
  %v366 = vsel %vm350, %v342, %v358
  %v367 = vsel %vm351, %v343, %v359
  %v368 = vsel %vm352, %v344, %v360
  %v369 = vsel %vm353, %v345, %v361
  %v370 = vsel %vm354, %v346, %v362
  %v371 = vsel %vm355, %v347, %v363
  %v372 = vpack.c.bf16 %v365, %v364
  %v373 = vpack.c.bf16 %v367, %v366
  %v374 = vpack.c.bf16 %v369, %v368
  %v375 = vpack.c.bf16 %v371, %v370
  %v384 = vunpack.c.l.b16 %v181
  %v385 = vunpack.c.l.b16 %v182
  %v386 = vunpack.c.l.b16 %v183
  %v387 = vunpack.c.l.b16 %v184
  %v388 = vunpack.c.l.b16 %v185
  %v389 = vunpack.c.l.b16 %v186
  %v390 = vunpack.c.l.b16 %v187
  %v391 = vunpack.c.l.b16 %v188
  %v392 = vpack.c.b16 %v385, %v384
  %v393 = vpack.c.b16 %v387, %v386
  %v394 = vpack.c.b16 %v389, %v388
  %v395 = vpack.c.b16 %v391, %v390
  %v401 = vsel %vm103, %v372, 0
  %v404 = vsel %vm103, %v373, 0
  %v407 = vsel %vm103, %v374, 0
  %v410 = vsel %vm103, %v375, 0
  %412 = vmatprep.subr.bf16.mxu0 0
  %413 = vmatpush1.bf16.msra.mxu0 0
  %414 = vmatprep.subr.bf16.mxu0 0
  %415 = vmatpush1.bf16.msra.mxu0 0
  %416 = vmatprep.subr.bf16.mxu0 0
  %417 = vmatpush1.bf16.msra.mxu0 0
  %418 = vmatprep.subr.bf16.mxu0 0
  %419 = vmatpush1.bf16.msra.mxu0 0
  %420 = vmatprep.subr.bf16.mxu0 0
  %421 = vmatpush1.bf16.msra.mxu0 %v395
  %422 = vmatprep.subr.bf16.mxu0 0
  %423 = vmatpush1.bf16.msra.mxu0 %v394
  %424 = vmatprep.subr.bf16.mxu0 0
  %425 = vmatpush1.bf16.msra.mxu0 %v393
  %426 = vmatprep.subr.bf16.mxu0 0
  %427 = vmatpush1.bf16.msra.mxu0 %v392
  %428 = vmatprep.subr.bf16.mxu0 0
  %429 = vmatpush2.bf16.msra.mxu0 0
  %430 = vmatprep.subr.bf16.mxu0 0
  %431 = vmatpush2.bf16.msra.mxu0 0
  %432 = vmatprep.subr.bf16.mxu0 0
  %433 = vmatpush2.bf16.msra.mxu0 0
  %434 = vmatprep.subr.bf16.mxu0 0
  %435 = vmatpush2.bf16.msra.mxu0 0
  %436 = vmatprep.subr.bf16.mxu0 0
  %437 = vmatpush2.bf16.msra.mxu0 0
  %438 = vmatprep.subr.bf16.mxu0 0
  %439 = vmatpush2.bf16.msra.mxu0 0
  %440 = vmatprep.subr.bf16.mxu0 0
  %441 = vmatpush2.bf16.msra.mxu0 0
  %442 = vmatprep.subr.bf16.mxu0 0
  %443 = vmatpush2.bf16.msra.mxu0 0
  %444 = vmatprep.mubr.bf16.mxu0 0
  %445 = vmatmul.mubr.bf16.gmra.mxu0 %v401
  %v446 = vpop.f32.mrf.mxu0
  %v447 = vadd.f32 0.0, %v446
  %v448 = vpop.f32.mrf.mxu0
  %v449 = vpop.f32.mrf.mxu0
  %v450 = vadd.f32 0.0, %v449
  %v451 = vpop.f32.mrf.mxu0
  %452 = vmatprep.mubr.bf16.mxu0 0
  %453 = vmatmul.mubr.bf16.gmra.mxu0 %v404
  %v454 = vpop.f32.mrf.mxu0
  %v455 = vadd.f32 0.0, %v454
  %v456 = vpop.f32.mrf.mxu0
  %v457 = vpop.f32.mrf.mxu0
  %v458 = vadd.f32 0.0, %v457
  %v459 = vpop.f32.mrf.mxu0
  %460 = vmatprep.mubr.bf16.mxu0 0
  %461 = vmatmul.mubr.bf16.gmra.mxu0 %v407
  %v462 = vpop.f32.mrf.mxu0
  %v463 = vadd.f32 0.0, %v462
  %v464 = vpop.f32.mrf.mxu0
  %v465 = vpop.f32.mrf.mxu0
  %v466 = vadd.f32 0.0, %v465
  %v467 = vpop.f32.mrf.mxu0
  %468 = vmatprep.mubr.bf16.mxu0 0
  %469 = vmatmul.mubr.bf16.gmra.mxu0 %v410
  %v470 = vpop.f32.mrf.mxu0
  %v471 = vadd.f32 0.0, %v470
  %v472 = vpop.f32.mrf.mxu0
  %v473 = vpop.f32.mrf.mxu0
  %v474 = vadd.f32 0.0, %v473
  %v475 = vpop.f32.mrf.mxu0
  %476 = vdwg.mxu0
  %v478 = vlaneseq
  %v479 = vshrl.u32 %v478, 7
  %v480 = vsub.s32 0, %v479
  %v481 = vrot.slane %v189, %v480
  %v483 = vmul.f32 %v447, %v481
  %v484 = vmul.f32 %v450, %v481
  %v485 = vmul.f32 %v455, %v481
  %v486 = vmul.f32 %v458, %v481
  %v487 = vmul.f32 %v463, %v481
  %v488 = vmul.f32 %v466, %v481
  %v489 = vmul.f32 %v471, %v481
  %v490 = vmul.f32 %v474, %v481
  %v492 = vlaneseq
  %v493 = vshrl.u32 %v492, 7
  %v494 = vsub.s32 0, %v493
  %v495 = vrot.slane %v190, %v494
  %v497 = vadd.f32 %v483, %v495
  %v498 = vadd.f32 %v484, %v495
  %v499 = vadd.f32 %v485, %v495
  %v500 = vadd.f32 %v486, %v495
  %v501 = vadd.f32 %v487, %v495
  %v502 = vadd.f32 %v488, %v495
  %v503 = vadd.f32 %v489, %v495
  %v504 = vadd.f32 %v490, %v495
  %vm505 = vcmp.ge.f32.partialorder %v497, 0.0
  %vm506 = vcmp.ge.f32.partialorder %v498, 0.0
  %vm507 = vcmp.ge.f32.partialorder %v499, 0.0
  %vm508 = vcmp.ge.f32.partialorder %v500, 0.0
  %vm509 = vcmp.ge.f32.partialorder %v501, 0.0
  %vm510 = vcmp.ge.f32.partialorder %v502, 0.0
  %vm511 = vcmp.ge.f32.partialorder %v503, 0.0
  %vm512 = vcmp.ge.f32.partialorder %v504, 0.0
  %v513 = vmul.f32 %v497, 0.2
  %v514 = vmul.f32 %v498, 0.2
  %v515 = vmul.f32 %v499, 0.2
  %v516 = vmul.f32 %v500, 0.2
  %v517 = vmul.f32 %v501, 0.2
  %v518 = vmul.f32 %v502, 0.2
  %v519 = vmul.f32 %v503, 0.2
  %v520 = vmul.f32 %v504, 0.2
  %v521 = vsel %vm505, %v497, %v513
  %v522 = vsel %vm506, %v498, %v514
  %v523 = vsel %vm507, %v499, %v515
  %v524 = vsel %vm508, %v500, %v516
  %v525 = vsel %vm509, %v501, %v517
  %v526 = vsel %vm510, %v502, %v518
  %v527 = vsel %vm511, %v503, %v519
  %v528 = vsel %vm512, %v504, %v520
  %s529 = scalar_lea.vmem %s0, 32
  %v530 = vld [vmem:[%s529] sm:$0xf]
  %v531 = vld [vmem:[%s529 + $0x4] sm:$0xf]
  %v532 = vld [vmem:[%s529 + $0x8] sm:$0xf]
  %v533 = vld [vmem:[%s529 + $0xc] sm:$0xf]
  %v534 = vld [vmem:[%s529 + $0x10] sm:$0xf]
  %v535 = vld [vmem:[%s529 + $0x14] sm:$0xf]
  %v536 = vld [vmem:[%s529 + $0x18] sm:$0xf]
  %v537 = vld [vmem:[%s529 + $0x1c] sm:$0xf]
  %v546 = vunpack.c.l.b16 %v530
  %v547 = vunpack.c.l.b16 %v531
  %v548 = vunpack.c.l.b16 %v532
  %v549 = vunpack.c.l.b16 %v533
  %v550 = vunpack.c.l.b16 %v534
  %v551 = vunpack.c.l.b16 %v535
  %v552 = vunpack.c.l.b16 %v536
  %v553 = vunpack.c.l.b16 %v537
  %v554 = vpack.c.b16 %v547, %v546
  %v555 = vpack.c.b16 %v549, %v548
  %v556 = vpack.c.b16 %v551, %v550
  %v557 = vpack.c.b16 %v553, %v552
  %v559 = vsel %vm103, %v554, 0
  %v562 = vsel %vm103, %v555, 0
  %v565 = vsel %vm103, %v556, 0
  %v568 = vsel %vm103, %v557, 0
  %570 = vmatprep.subr.bf16.mxu0 0
  %571 = vmatpush1.bf16.msra.mxu0 0
  %572 = vmatprep.subr.bf16.mxu0 0
  %573 = vmatpush1.bf16.msra.mxu0 0
  %574 = vmatprep.subr.bf16.mxu0 0
  %575 = vmatpush1.bf16.msra.mxu0 0
  %576 = vmatprep.subr.bf16.mxu0 0
  %577 = vmatpush1.bf16.msra.mxu0 0
  %578 = vmatprep.subr.bf16.mxu0 0
  %579 = vmatpush1.bf16.msra.mxu0 %v238
  %580 = vmatprep.subr.bf16.mxu0 0
  %581 = vmatpush1.bf16.msra.mxu0 %v237
  %582 = vmatprep.subr.bf16.mxu0 0
  %583 = vmatpush1.bf16.msra.mxu0 %v236
  %584 = vmatprep.subr.bf16.mxu0 0
  %585 = vmatpush1.bf16.msra.mxu0 %v235
  %586 = vmatprep.subr.bf16.mxu0 0
  %587 = vmatpush2.bf16.msra.mxu0 0
  %588 = vmatprep.subr.bf16.mxu0 0
  %589 = vmatpush2.bf16.msra.mxu0 0
  %590 = vmatprep.subr.bf16.mxu0 0
  %591 = vmatpush2.bf16.msra.mxu0 0
  %592 = vmatprep.subr.bf16.mxu0 0
  %593 = vmatpush2.bf16.msra.mxu0 0
  %594 = vmatprep.subr.bf16.mxu0 0
  %595 = vmatpush2.bf16.msra.mxu0 0
  %596 = vmatprep.subr.bf16.mxu0 0
  %597 = vmatpush2.bf16.msra.mxu0 0
  %598 = vmatprep.subr.bf16.mxu0 0
  %599 = vmatpush2.bf16.msra.mxu0 0
  %600 = vmatprep.subr.bf16.mxu0 0
  %601 = vmatpush2.bf16.msra.mxu0 0
  %602 = vmatprep.mubr.bf16.mxu0 0
  %603 = vmatmul.mubr.bf16.gmra.mxu0 %v559
  %v604 = vpop.f32.mrf.mxu0
  %v605 = vadd.f32 %v151, %v604
  %v606 = vpop.f32.mrf.mxu0
  %v607 = vpop.f32.mrf.mxu0
  %v608 = vadd.f32 %v154, %v607
  %v609 = vpop.f32.mrf.mxu0
  %610 = vmatprep.mubr.bf16.mxu0 0
  %611 = vmatmul.mubr.bf16.gmra.mxu0 %v562
  %v612 = vpop.f32.mrf.mxu0
  %v613 = vadd.f32 %v159, %v612
  %v614 = vpop.f32.mrf.mxu0
  %v615 = vpop.f32.mrf.mxu0
  %v616 = vadd.f32 %v162, %v615
  %v617 = vpop.f32.mrf.mxu0
  %618 = vmatprep.mubr.bf16.mxu0 0
  %619 = vmatmul.mubr.bf16.gmra.mxu0 %v565
  %v620 = vpop.f32.mrf.mxu0
  %v621 = vadd.f32 %v167, %v620
  %v622 = vpop.f32.mrf.mxu0
  %v623 = vpop.f32.mrf.mxu0
  %v624 = vadd.f32 %v170, %v623
  %v625 = vpop.f32.mrf.mxu0
  %626 = vmatprep.mubr.bf16.mxu0 0
  %627 = vmatmul.mubr.bf16.gmra.mxu0 %v568
  %v628 = vpop.f32.mrf.mxu0
  %v629 = vadd.f32 %v175, %v628
  %v630 = vpop.f32.mrf.mxu0
  %v631 = vpop.f32.mrf.mxu0
  %v632 = vadd.f32 %v178, %v631
  %v633 = vpop.f32.mrf.mxu0
  %634 = vdwg.mxu0
  %v635 = vmul.f32 %v605, %v324
  %v636 = vmul.f32 %v608, %v324
  %v637 = vmul.f32 %v613, %v324
  %v638 = vmul.f32 %v616, %v324
  %v639 = vmul.f32 %v621, %v324
  %v640 = vmul.f32 %v624, %v324
  %v641 = vmul.f32 %v629, %v324
  %v642 = vmul.f32 %v632, %v324
  %v643 = vadd.f32 %v635, %v338
  %v644 = vadd.f32 %v636, %v338
  %v645 = vadd.f32 %v637, %v338
  %v646 = vadd.f32 %v638, %v338
  %v647 = vadd.f32 %v639, %v338
  %v648 = vadd.f32 %v640, %v338
  %v649 = vadd.f32 %v641, %v338
  %v650 = vadd.f32 %v642, %v338
  %vm651 = vcmp.ge.f32.partialorder %v643, 0.0
  %vm652 = vcmp.ge.f32.partialorder %v644, 0.0
  %vm653 = vcmp.ge.f32.partialorder %v645, 0.0
  %vm654 = vcmp.ge.f32.partialorder %v646, 0.0
  %vm655 = vcmp.ge.f32.partialorder %v647, 0.0
  %vm656 = vcmp.ge.f32.partialorder %v648, 0.0
  %vm657 = vcmp.ge.f32.partialorder %v649, 0.0
  %vm658 = vcmp.ge.f32.partialorder %v650, 0.0
  %v659 = vmul.f32 %v643, 0.2
  %v660 = vmul.f32 %v644, 0.2
  %v661 = vmul.f32 %v645, 0.2
  %v662 = vmul.f32 %v646, 0.2
  %v663 = vmul.f32 %v647, 0.2
  %v664 = vmul.f32 %v648, 0.2
  %v665 = vmul.f32 %v649, 0.2
  %v666 = vmul.f32 %v650, 0.2
  %v667 = vsel %vm651, %v643, %v659
  %v668 = vsel %vm652, %v644, %v660
  %v669 = vsel %vm653, %v645, %v661
  %v670 = vsel %vm654, %v646, %v662
  %v671 = vsel %vm655, %v647, %v663
  %v672 = vsel %vm656, %v648, %v664
  %v673 = vsel %vm657, %v649, %v665
  %v674 = vsel %vm658, %v650, %v666
  %v675 = vpack.c.bf16 %v668, %v667
  %v676 = vpack.c.bf16 %v670, %v669
  %v677 = vpack.c.bf16 %v672, %v671
  %v678 = vpack.c.bf16 %v674, %v673
  %v680 = vsel %vm103, %v675, 0
  %v683 = vsel %vm103, %v676, 0
  %v686 = vsel %vm103, %v677, 0
  %v689 = vsel %vm103, %v678, 0
  %691 = vmatprep.subr.bf16.mxu0 0
  %692 = vmatpush1.bf16.msra.mxu0 0
  %693 = vmatprep.subr.bf16.mxu0 0
  %694 = vmatpush1.bf16.msra.mxu0 0
  %695 = vmatprep.subr.bf16.mxu0 0
  %696 = vmatpush1.bf16.msra.mxu0 0
  %697 = vmatprep.subr.bf16.mxu0 0
  %698 = vmatpush1.bf16.msra.mxu0 0
  %699 = vmatprep.subr.bf16.mxu0 0
  %700 = vmatpush1.bf16.msra.mxu0 %v395
  %701 = vmatprep.subr.bf16.mxu0 0
  %702 = vmatpush1.bf16.msra.mxu0 %v394
  %703 = vmatprep.subr.bf16.mxu0 0
  %704 = vmatpush1.bf16.msra.mxu0 %v393
  %705 = vmatprep.subr.bf16.mxu0 0
  %706 = vmatpush1.bf16.msra.mxu0 %v392
  %707 = vmatprep.subr.bf16.mxu0 0
  %708 = vmatpush2.bf16.msra.mxu0 0
  %709 = vmatprep.subr.bf16.mxu0 0
  %710 = vmatpush2.bf16.msra.mxu0 0
  %711 = vmatprep.subr.bf16.mxu0 0
  %712 = vmatpush2.bf16.msra.mxu0 0
  %713 = vmatprep.subr.bf16.mxu0 0
  %714 = vmatpush2.bf16.msra.mxu0 0
  %715 = vmatprep.subr.bf16.mxu0 0
  %716 = vmatpush2.bf16.msra.mxu0 0
  %717 = vmatprep.subr.bf16.mxu0 0
  %718 = vmatpush2.bf16.msra.mxu0 0
  %719 = vmatprep.subr.bf16.mxu0 0
  %720 = vmatpush2.bf16.msra.mxu0 0
  %721 = vmatprep.subr.bf16.mxu0 0
  %722 = vmatpush2.bf16.msra.mxu0 0
  %723 = vmatprep.mubr.bf16.mxu0 0
  %724 = vmatmul.mubr.bf16.gmra.mxu0 %v680
  %v725 = vpop.f32.mrf.mxu0
  %v726 = vadd.f32 0.0, %v725
  %v727 = vpop.f32.mrf.mxu0
  %v728 = vpop.f32.mrf.mxu0
  %v729 = vadd.f32 0.0, %v728
  %v730 = vpop.f32.mrf.mxu0
  %731 = vmatprep.mubr.bf16.mxu0 0
  %732 = vmatmul.mubr.bf16.gmra.mxu0 %v683
  %v733 = vpop.f32.mrf.mxu0
  %v734 = vadd.f32 0.0, %v733
  %v735 = vpop.f32.mrf.mxu0
  %v736 = vpop.f32.mrf.mxu0
  %v737 = vadd.f32 0.0, %v736
  %v738 = vpop.f32.mrf.mxu0
  %739 = vmatprep.mubr.bf16.mxu0 0
  %740 = vmatmul.mubr.bf16.gmra.mxu0 %v686
  %v741 = vpop.f32.mrf.mxu0
  %v742 = vadd.f32 0.0, %v741
  %v743 = vpop.f32.mrf.mxu0
  %v744 = vpop.f32.mrf.mxu0
  %v745 = vadd.f32 0.0, %v744
  %v746 = vpop.f32.mrf.mxu0
  %747 = vmatprep.mubr.bf16.mxu0 0
  %748 = vmatmul.mubr.bf16.gmra.mxu0 %v689
  %v749 = vpop.f32.mrf.mxu0
  %v750 = vadd.f32 0.0, %v749
  %v751 = vpop.f32.mrf.mxu0
  %v752 = vpop.f32.mrf.mxu0
  %v753 = vadd.f32 0.0, %v752
  %v754 = vpop.f32.mrf.mxu0
  %755 = vdwg.mxu0
  %v756 = vmul.f32 %v726, %v481
  %v757 = vmul.f32 %v729, %v481
  %v758 = vmul.f32 %v734, %v481
  %v759 = vmul.f32 %v737, %v481
  %v760 = vmul.f32 %v742, %v481
  %v761 = vmul.f32 %v745, %v481
  %v762 = vmul.f32 %v750, %v481
  %v763 = vmul.f32 %v753, %v481
  %v764 = vadd.f32 %v756, %v495
  %v765 = vadd.f32 %v757, %v495
  %v766 = vadd.f32 %v758, %v495
  %v767 = vadd.f32 %v759, %v495
  %v768 = vadd.f32 %v760, %v495
  %v769 = vadd.f32 %v761, %v495
  %v770 = vadd.f32 %v762, %v495
  %v771 = vadd.f32 %v763, %v495
  %vm772 = vcmp.ge.f32.partialorder %v764, 0.0
  %vm773 = vcmp.ge.f32.partialorder %v765, 0.0
  %vm774 = vcmp.ge.f32.partialorder %v766, 0.0
  %vm775 = vcmp.ge.f32.partialorder %v767, 0.0
  %vm776 = vcmp.ge.f32.partialorder %v768, 0.0
  %vm777 = vcmp.ge.f32.partialorder %v769, 0.0
  %vm778 = vcmp.ge.f32.partialorder %v770, 0.0
  %vm779 = vcmp.ge.f32.partialorder %v771, 0.0
  %v780 = vmul.f32 %v764, 0.2
  %v781 = vmul.f32 %v765, 0.2
  %v782 = vmul.f32 %v766, 0.2
  %v783 = vmul.f32 %v767, 0.2
  %v784 = vmul.f32 %v768, 0.2
  %v785 = vmul.f32 %v769, 0.2
  %v786 = vmul.f32 %v770, 0.2
  %v787 = vmul.f32 %v771, 0.2
  %v788 = vsel %vm772, %v764, %v780
  %v789 = vsel %vm773, %v765, %v781
  %v790 = vsel %vm774, %v766, %v782
  %v791 = vsel %vm775, %v767, %v783
  %v792 = vsel %vm776, %v768, %v784
  %v793 = vsel %vm777, %v769, %v785
  %v794 = vsel %vm778, %v770, %v786
  %v795 = vsel %vm779, %v771, %v787
  %v796 = vmax.f32 %v521, %v788
  %v797 = vmax.f32 %v522, %v789
  %v798 = vmax.f32 %v523, %v790
  %v799 = vmax.f32 %v524, %v791
  %v800 = vmax.f32 %v525, %v792
  %v801 = vmax.f32 %v526, %v793
  %v802 = vmax.f32 %v527, %v794
  %v803 = vmax.f32 %v528, %v795
  %s804 = scalar_lea.vmem %s0, 64
  %v805 = vld [vmem:[%s804] sm:$0xf]
  %v806 = vld [vmem:[%s804 + $0x4] sm:$0xf]
  %v807 = vld [vmem:[%s804 + $0x8] sm:$0xf]
  %v808 = vld [vmem:[%s804 + $0xc] sm:$0xf]
  %v809 = vld [vmem:[%s804 + $0x10] sm:$0xf]
  %v810 = vld [vmem:[%s804 + $0x14] sm:$0xf]
  %v811 = vld [vmem:[%s804 + $0x18] sm:$0xf]
  %v812 = vld [vmem:[%s804 + $0x1c] sm:$0xf]
  %v821 = vunpack.c.l.b16 %v805
  %v822 = vunpack.c.l.b16 %v806
  %v823 = vunpack.c.l.b16 %v807
  %v824 = vunpack.c.l.b16 %v808
  %v825 = vunpack.c.l.b16 %v809
  %v826 = vunpack.c.l.b16 %v810
  %v827 = vunpack.c.l.b16 %v811
  %v828 = vunpack.c.l.b16 %v812
  %v829 = vpack.c.b16 %v822, %v821
  %v830 = vpack.c.b16 %v824, %v823
  %v831 = vpack.c.b16 %v826, %v825
  %v832 = vpack.c.b16 %v828, %v827
  %v834 = vsel %vm103, %v829, 0
  %v837 = vsel %vm103, %v830, 0
  %v840 = vsel %vm103, %v831, 0
  %v843 = vsel %vm103, %v832, 0
  %845 = vmatprep.subr.bf16.mxu0 0
  %846 = vmatpush1.bf16.msra.mxu0 0
  %847 = vmatprep.subr.bf16.mxu0 0
  %848 = vmatpush1.bf16.msra.mxu0 0
  %849 = vmatprep.subr.bf16.mxu0 0
  %850 = vmatpush1.bf16.msra.mxu0 0
  %851 = vmatprep.subr.bf16.mxu0 0
  %852 = vmatpush1.bf16.msra.mxu0 0
  %853 = vmatprep.subr.bf16.mxu0 0
  %854 = vmatpush1.bf16.msra.mxu0 %v238
  %855 = vmatprep.subr.bf16.mxu0 0
  %856 = vmatpush1.bf16.msra.mxu0 %v237
  %857 = vmatprep.subr.bf16.mxu0 0
  %858 = vmatpush1.bf16.msra.mxu0 %v236
  %859 = vmatprep.subr.bf16.mxu0 0
  %860 = vmatpush1.bf16.msra.mxu0 %v235
  %861 = vmatprep.subr.bf16.mxu0 0
  %862 = vmatpush2.bf16.msra.mxu0 0
  %863 = vmatprep.subr.bf16.mxu0 0
  %864 = vmatpush2.bf16.msra.mxu0 0
  %865 = vmatprep.subr.bf16.mxu0 0
  %866 = vmatpush2.bf16.msra.mxu0 0
  %867 = vmatprep.subr.bf16.mxu0 0
  %868 = vmatpush2.bf16.msra.mxu0 0
  %869 = vmatprep.subr.bf16.mxu0 0
  %870 = vmatpush2.bf16.msra.mxu0 0
  %871 = vmatprep.subr.bf16.mxu0 0
  %872 = vmatpush2.bf16.msra.mxu0 0
  %873 = vmatprep.subr.bf16.mxu0 0
  %874 = vmatpush2.bf16.msra.mxu0 0
  %875 = vmatprep.subr.bf16.mxu0 0
  %876 = vmatpush2.bf16.msra.mxu0 0
  %877 = vmatprep.mubr.bf16.mxu0 0
  %878 = vmatmul.mubr.bf16.gmra.mxu0 %v834
  %v879 = vpop.f32.mrf.mxu0
  %v880 = vadd.f32 %v151, %v879
  %v881 = vpop.f32.mrf.mxu0
  %v882 = vpop.f32.mrf.mxu0
  %v883 = vadd.f32 %v154, %v882
  %v884 = vpop.f32.mrf.mxu0
  %885 = vmatprep.mubr.bf16.mxu0 0
  %886 = vmatmul.mubr.bf16.gmra.mxu0 %v837
  %v887 = vpop.f32.mrf.mxu0
  %v888 = vadd.f32 %v159, %v887
  %v889 = vpop.f32.mrf.mxu0
  %v890 = vpop.f32.mrf.mxu0
  %v891 = vadd.f32 %v162, %v890
  %v892 = vpop.f32.mrf.mxu0
  %893 = vmatprep.mubr.bf16.mxu0 0
  %894 = vmatmul.mubr.bf16.gmra.mxu0 %v840
  %v895 = vpop.f32.mrf.mxu0
  %v896 = vadd.f32 %v167, %v895
  %v897 = vpop.f32.mrf.mxu0
  %v898 = vpop.f32.mrf.mxu0
  %v899 = vadd.f32 %v170, %v898
  %v900 = vpop.f32.mrf.mxu0
  %901 = vmatprep.mubr.bf16.mxu0 0
  %902 = vmatmul.mubr.bf16.gmra.mxu0 %v843
  %v903 = vpop.f32.mrf.mxu0
  %v904 = vadd.f32 %v175, %v903
  %v905 = vpop.f32.mrf.mxu0
  %v906 = vpop.f32.mrf.mxu0
  %v907 = vadd.f32 %v178, %v906
  %v908 = vpop.f32.mrf.mxu0
  %909 = vdwg.mxu0
  %v910 = vmul.f32 %v880, %v324
  %v911 = vmul.f32 %v883, %v324
  %v912 = vmul.f32 %v888, %v324
  %v913 = vmul.f32 %v891, %v324
  %v914 = vmul.f32 %v896, %v324
  %v915 = vmul.f32 %v899, %v324
  %v916 = vmul.f32 %v904, %v324
  %v917 = vmul.f32 %v907, %v324
  %v918 = vadd.f32 %v910, %v338
  %v919 = vadd.f32 %v911, %v338
  %v920 = vadd.f32 %v912, %v338
  %v921 = vadd.f32 %v913, %v338
  %v922 = vadd.f32 %v914, %v338
  %v923 = vadd.f32 %v915, %v338
  %v924 = vadd.f32 %v916, %v338
  %v925 = vadd.f32 %v917, %v338
  %vm926 = vcmp.ge.f32.partialorder %v918, 0.0
  %vm927 = vcmp.ge.f32.partialorder %v919, 0.0
  %vm928 = vcmp.ge.f32.partialorder %v920, 0.0
  %vm929 = vcmp.ge.f32.partialorder %v921, 0.0
  %vm930 = vcmp.ge.f32.partialorder %v922, 0.0
  %vm931 = vcmp.ge.f32.partialorder %v923, 0.0
  %vm932 = vcmp.ge.f32.partialorder %v924, 0.0
  %vm933 = vcmp.ge.f32.partialorder %v925, 0.0
  %v934 = vmul.f32 %v918, 0.2
  %v935 = vmul.f32 %v919, 0.2
  %v936 = vmul.f32 %v920, 0.2
  %v937 = vmul.f32 %v921, 0.2
  %v938 = vmul.f32 %v922, 0.2
  %v939 = vmul.f32 %v923, 0.2
  %v940 = vmul.f32 %v924, 0.2
  %v941 = vmul.f32 %v925, 0.2
  %v942 = vsel %vm926, %v918, %v934
  %v943 = vsel %vm927, %v919, %v935
  %v944 = vsel %vm928, %v920, %v936
  %v945 = vsel %vm929, %v921, %v937
  %v946 = vsel %vm930, %v922, %v938
  %v947 = vsel %vm931, %v923, %v939
  %v948 = vsel %vm932, %v924, %v940
  %v949 = vsel %vm933, %v925, %v941
  %v950 = vpack.c.bf16 %v943, %v942
  %v951 = vpack.c.bf16 %v945, %v944
  %v952 = vpack.c.bf16 %v947, %v946
  %v953 = vpack.c.bf16 %v949, %v948
  %v955 = vsel %vm103, %v950, 0
  %v958 = vsel %vm103, %v951, 0
  %v961 = vsel %vm103, %v952, 0
  %v964 = vsel %vm103, %v953, 0
  %966 = vmatprep.subr.bf16.mxu0 0
  %967 = vmatpush1.bf16.msra.mxu0 0
  %968 = vmatprep.subr.bf16.mxu0 0
  %969 = vmatpush1.bf16.msra.mxu0 0
  %970 = vmatprep.subr.bf16.mxu0 0
  %971 = vmatpush1.bf16.msra.mxu0 0
  %972 = vmatprep.subr.bf16.mxu0 0
  %973 = vmatpush1.bf16.msra.mxu0 0
  %974 = vmatprep.subr.bf16.mxu0 0
  %975 = vmatpush1.bf16.msra.mxu0 %v395
  %976 = vmatprep.subr.bf16.mxu0 0
  %977 = vmatpush1.bf16.msra.mxu0 %v394
  %978 = vmatprep.subr.bf16.mxu0 0
  %979 = vmatpush1.bf16.msra.mxu0 %v393
  %980 = vmatprep.subr.bf16.mxu0 0
  %981 = vmatpush1.bf16.msra.mxu0 %v392
  %982 = vmatprep.subr.bf16.mxu0 0
  %983 = vmatpush2.bf16.msra.mxu0 0
  %984 = vmatprep.subr.bf16.mxu0 0
  %985 = vmatpush2.bf16.msra.mxu0 0
  %986 = vmatprep.subr.bf16.mxu0 0
  %987 = vmatpush2.bf16.msra.mxu0 0
  %988 = vmatprep.subr.bf16.mxu0 0
  %989 = vmatpush2.bf16.msra.mxu0 0
  %990 = vmatprep.subr.bf16.mxu0 0
  %991 = vmatpush2.bf16.msra.mxu0 0
  %992 = vmatprep.subr.bf16.mxu0 0
  %993 = vmatpush2.bf16.msra.mxu0 0
  %994 = vmatprep.subr.bf16.mxu0 0
  %995 = vmatpush2.bf16.msra.mxu0 0
  %996 = vmatprep.subr.bf16.mxu0 0
  %997 = vmatpush2.bf16.msra.mxu0 0
  %998 = vmatprep.mubr.bf16.mxu0 0
  %999 = vmatmul.mubr.bf16.gmra.mxu0 %v955
  %v1000 = vpop.f32.mrf.mxu0
  %v1001 = vadd.f32 0.0, %v1000
  %v1002 = vpop.f32.mrf.mxu0
  %v1003 = vpop.f32.mrf.mxu0
  %v1004 = vadd.f32 0.0, %v1003
  %v1005 = vpop.f32.mrf.mxu0
  %1006 = vmatprep.mubr.bf16.mxu0 0
  %1007 = vmatmul.mubr.bf16.gmra.mxu0 %v958
  %v1008 = vpop.f32.mrf.mxu0
  %v1009 = vadd.f32 0.0, %v1008
  %v1010 = vpop.f32.mrf.mxu0
  %v1011 = vpop.f32.mrf.mxu0
  %v1012 = vadd.f32 0.0, %v1011
  %v1013 = vpop.f32.mrf.mxu0
  %1014 = vmatprep.mubr.bf16.mxu0 0
  %1015 = vmatmul.mubr.bf16.gmra.mxu0 %v961
  %v1016 = vpop.f32.mrf.mxu0
  %v1017 = vadd.f32 0.0, %v1016
  %v1018 = vpop.f32.mrf.mxu0
  %v1019 = vpop.f32.mrf.mxu0
  %v1020 = vadd.f32 0.0, %v1019
  %v1021 = vpop.f32.mrf.mxu0
  %1022 = vmatprep.mubr.bf16.mxu0 0
  %1023 = vmatmul.mubr.bf16.gmra.mxu0 %v964
  %v1024 = vpop.f32.mrf.mxu0
  %v1025 = vadd.f32 0.0, %v1024
  %v1026 = vpop.f32.mrf.mxu0
  %v1027 = vpop.f32.mrf.mxu0
  %v1028 = vadd.f32 0.0, %v1027
  %v1029 = vpop.f32.mrf.mxu0
  %1030 = vdwg.mxu0
  %v1031 = vmul.f32 %v1001, %v481
  %v1032 = vmul.f32 %v1004, %v481
  %v1033 = vmul.f32 %v1009, %v481
  %v1034 = vmul.f32 %v1012, %v481
  %v1035 = vmul.f32 %v1017, %v481
  %v1036 = vmul.f32 %v1020, %v481
  %v1037 = vmul.f32 %v1025, %v481
  %v1038 = vmul.f32 %v1028, %v481
  %v1039 = vadd.f32 %v1031, %v495
  %v1040 = vadd.f32 %v1032, %v495
  %v1041 = vadd.f32 %v1033, %v495
  %v1042 = vadd.f32 %v1034, %v495
  %v1043 = vadd.f32 %v1035, %v495
  %v1044 = vadd.f32 %v1036, %v495
  %v1045 = vadd.f32 %v1037, %v495
  %v1046 = vadd.f32 %v1038, %v495
  %vm1047 = vcmp.ge.f32.partialorder %v1039, 0.0
  %vm1048 = vcmp.ge.f32.partialorder %v1040, 0.0
  %vm1049 = vcmp.ge.f32.partialorder %v1041, 0.0
  %vm1050 = vcmp.ge.f32.partialorder %v1042, 0.0
  %vm1051 = vcmp.ge.f32.partialorder %v1043, 0.0
  %vm1052 = vcmp.ge.f32.partialorder %v1044, 0.0
  %vm1053 = vcmp.ge.f32.partialorder %v1045, 0.0
  %vm1054 = vcmp.ge.f32.partialorder %v1046, 0.0
  %v1055 = vmul.f32 %v1039, 0.2
  %v1056 = vmul.f32 %v1040, 0.2
  %v1057 = vmul.f32 %v1041, 0.2
  %v1058 = vmul.f32 %v1042, 0.2
  %v1059 = vmul.f32 %v1043, 0.2
  %v1060 = vmul.f32 %v1044, 0.2
  %v1061 = vmul.f32 %v1045, 0.2
  %v1062 = vmul.f32 %v1046, 0.2
  %v1063 = vsel %vm1047, %v1039, %v1055
  %v1064 = vsel %vm1048, %v1040, %v1056
  %v1065 = vsel %vm1049, %v1041, %v1057
  %v1066 = vsel %vm1050, %v1042, %v1058
  %v1067 = vsel %vm1051, %v1043, %v1059
  %v1068 = vsel %vm1052, %v1044, %v1060
  %v1069 = vsel %vm1053, %v1045, %v1061
  %v1070 = vsel %vm1054, %v1046, %v1062
  %v1071 = vmax.f32 %v796, %v1063
  %v1072 = vmax.f32 %v797, %v1064
  %v1073 = vmax.f32 %v798, %v1065
  %v1074 = vmax.f32 %v799, %v1066
  %v1075 = vmax.f32 %v800, %v1067
  %v1076 = vmax.f32 %v801, %v1068
  %v1077 = vmax.f32 %v802, %v1069
  %v1078 = vmax.f32 %v803, %v1070
  %s1079 = scalar_lea.vmem %s0, 96
  %v1080 = vld [vmem:[%s1079] sm:$0xf]
  %v1081 = vld [vmem:[%s1079 + $0x4] sm:$0xf]
  %v1082 = vld [vmem:[%s1079 + $0x8] sm:$0xf]
  %v1083 = vld [vmem:[%s1079 + $0xc] sm:$0xf]
  %v1084 = vld [vmem:[%s1079 + $0x10] sm:$0xf]
  %v1085 = vld [vmem:[%s1079 + $0x14] sm:$0xf]
  %v1086 = vld [vmem:[%s1079 + $0x18] sm:$0xf]
  %v1087 = vld [vmem:[%s1079 + $0x1c] sm:$0xf]
  %v1096 = vunpack.c.l.b16 %v1080
  %v1097 = vunpack.c.l.b16 %v1081
  %v1098 = vunpack.c.l.b16 %v1082
  %v1099 = vunpack.c.l.b16 %v1083
  %v1100 = vunpack.c.l.b16 %v1084
  %v1101 = vunpack.c.l.b16 %v1085
  %v1102 = vunpack.c.l.b16 %v1086
  %v1103 = vunpack.c.l.b16 %v1087
  %v1104 = vpack.c.b16 %v1097, %v1096
  %v1105 = vpack.c.b16 %v1099, %v1098
  %v1106 = vpack.c.b16 %v1101, %v1100
  %v1107 = vpack.c.b16 %v1103, %v1102
  %v1109 = vsel %vm103, %v1104, 0
  %v1112 = vsel %vm103, %v1105, 0
  %v1115 = vsel %vm103, %v1106, 0
  %v1118 = vsel %vm103, %v1107, 0
  %1120 = vmatprep.subr.bf16.mxu0 0
  %1121 = vmatpush1.bf16.msra.mxu0 0
  %1122 = vmatprep.subr.bf16.mxu0 0
  %1123 = vmatpush1.bf16.msra.mxu0 0
  %1124 = vmatprep.subr.bf16.mxu0 0
  %1125 = vmatpush1.bf16.msra.mxu0 0
  %1126 = vmatprep.subr.bf16.mxu0 0
  %1127 = vmatpush1.bf16.msra.mxu0 0
  %1128 = vmatprep.subr.bf16.mxu0 0
  %1129 = vmatpush1.bf16.msra.mxu0 %v238
  %1130 = vmatprep.subr.bf16.mxu0 0
  %1131 = vmatpush1.bf16.msra.mxu0 %v237
  %1132 = vmatprep.subr.bf16.mxu0 0
  %1133 = vmatpush1.bf16.msra.mxu0 %v236
  %1134 = vmatprep.subr.bf16.mxu0 0
  %1135 = vmatpush1.bf16.msra.mxu0 %v235
  %1136 = vmatprep.subr.bf16.mxu0 0
  %1137 = vmatpush2.bf16.msra.mxu0 0
  %1138 = vmatprep.subr.bf16.mxu0 0
  %1139 = vmatpush2.bf16.msra.mxu0 0
  %1140 = vmatprep.subr.bf16.mxu0 0
  %1141 = vmatpush2.bf16.msra.mxu0 0
  %1142 = vmatprep.subr.bf16.mxu0 0
  %1143 = vmatpush2.bf16.msra.mxu0 0
  %1144 = vmatprep.subr.bf16.mxu0 0
  %1145 = vmatpush2.bf16.msra.mxu0 0
  %1146 = vmatprep.subr.bf16.mxu0 0
  %1147 = vmatpush2.bf16.msra.mxu0 0
  %1148 = vmatprep.subr.bf16.mxu0 0
  %1149 = vmatpush2.bf16.msra.mxu0 0
  %1150 = vmatprep.subr.bf16.mxu0 0
  %1151 = vmatpush2.bf16.msra.mxu0 0
  %1152 = vmatprep.mubr.bf16.mxu0 0
  %1153 = vmatmul.mubr.bf16.gmra.mxu0 %v1109
  %v1154 = vpop.f32.mrf.mxu0
  %v1155 = vadd.f32 %v151, %v1154
  %v1156 = vpop.f32.mrf.mxu0
  %v1157 = vpop.f32.mrf.mxu0
  %v1158 = vadd.f32 %v154, %v1157
  %v1159 = vpop.f32.mrf.mxu0
  %1160 = vmatprep.mubr.bf16.mxu0 0
  %1161 = vmatmul.mubr.bf16.gmra.mxu0 %v1112
  %v1162 = vpop.f32.mrf.mxu0
  %v1163 = vadd.f32 %v159, %v1162
  %v1164 = vpop.f32.mrf.mxu0
  %v1165 = vpop.f32.mrf.mxu0
  %v1166 = vadd.f32 %v162, %v1165
  %v1167 = vpop.f32.mrf.mxu0
  %1168 = vmatprep.mubr.bf16.mxu0 0
  %1169 = vmatmul.mubr.bf16.gmra.mxu0 %v1115
  %v1170 = vpop.f32.mrf.mxu0
  %v1171 = vadd.f32 %v167, %v1170
  %v1172 = vpop.f32.mrf.mxu0
  %v1173 = vpop.f32.mrf.mxu0
  %v1174 = vadd.f32 %v170, %v1173
  %v1175 = vpop.f32.mrf.mxu0
  %1176 = vmatprep.mubr.bf16.mxu0 0
  %1177 = vmatmul.mubr.bf16.gmra.mxu0 %v1118
  %v1178 = vpop.f32.mrf.mxu0
  %v1179 = vadd.f32 %v175, %v1178
  %v1180 = vpop.f32.mrf.mxu0
  %v1181 = vpop.f32.mrf.mxu0
  %v1182 = vadd.f32 %v178, %v1181
  %v1183 = vpop.f32.mrf.mxu0
  %1184 = vdwg.mxu0
  %v1185 = vmul.f32 %v1155, %v324
  %v1186 = vmul.f32 %v1158, %v324
  %v1187 = vmul.f32 %v1163, %v324
  %v1188 = vmul.f32 %v1166, %v324
  %v1189 = vmul.f32 %v1171, %v324
  %v1190 = vmul.f32 %v1174, %v324
  %v1191 = vmul.f32 %v1179, %v324
  %v1192 = vmul.f32 %v1182, %v324
  %v1193 = vadd.f32 %v1185, %v338
  %v1194 = vadd.f32 %v1186, %v338
  %v1195 = vadd.f32 %v1187, %v338
  %v1196 = vadd.f32 %v1188, %v338
  %v1197 = vadd.f32 %v1189, %v338
  %v1198 = vadd.f32 %v1190, %v338
  %v1199 = vadd.f32 %v1191, %v338
  %v1200 = vadd.f32 %v1192, %v338
  %vm1201 = vcmp.ge.f32.partialorder %v1193, 0.0
  %vm1202 = vcmp.ge.f32.partialorder %v1194, 0.0
  %vm1203 = vcmp.ge.f32.partialorder %v1195, 0.0
  %vm1204 = vcmp.ge.f32.partialorder %v1196, 0.0
  %vm1205 = vcmp.ge.f32.partialorder %v1197, 0.0
  %vm1206 = vcmp.ge.f32.partialorder %v1198, 0.0
  %vm1207 = vcmp.ge.f32.partialorder %v1199, 0.0
  %vm1208 = vcmp.ge.f32.partialorder %v1200, 0.0
  %v1209 = vmul.f32 %v1193, 0.2
  %v1210 = vmul.f32 %v1194, 0.2
  %v1211 = vmul.f32 %v1195, 0.2
  %v1212 = vmul.f32 %v1196, 0.2
  %v1213 = vmul.f32 %v1197, 0.2
  %v1214 = vmul.f32 %v1198, 0.2
  %v1215 = vmul.f32 %v1199, 0.2
  %v1216 = vmul.f32 %v1200, 0.2
  %v1217 = vsel %vm1201, %v1193, %v1209
  %v1218 = vsel %vm1202, %v1194, %v1210
  %v1219 = vsel %vm1203, %v1195, %v1211
  %v1220 = vsel %vm1204, %v1196, %v1212
  %v1221 = vsel %vm1205, %v1197, %v1213
  %v1222 = vsel %vm1206, %v1198, %v1214
  %v1223 = vsel %vm1207, %v1199, %v1215
  %v1224 = vsel %vm1208, %v1200, %v1216
  %v1225 = vpack.c.bf16 %v1218, %v1217
  %v1226 = vpack.c.bf16 %v1220, %v1219
  %v1227 = vpack.c.bf16 %v1222, %v1221
  %v1228 = vpack.c.bf16 %v1224, %v1223
  %v1230 = vsel %vm103, %v1225, 0
  %v1233 = vsel %vm103, %v1226, 0
  %v1236 = vsel %vm103, %v1227, 0
  %v1239 = vsel %vm103, %v1228, 0
  %1241 = vmatprep.subr.bf16.mxu0 0
  %1242 = vmatpush1.bf16.msra.mxu0 0
  %1243 = vmatprep.subr.bf16.mxu0 0
  %1244 = vmatpush1.bf16.msra.mxu0 0
  %1245 = vmatprep.subr.bf16.mxu0 0
  %1246 = vmatpush1.bf16.msra.mxu0 0
  %1247 = vmatprep.subr.bf16.mxu0 0
  %1248 = vmatpush1.bf16.msra.mxu0 0
  %1249 = vmatprep.subr.bf16.mxu0 0
  %1250 = vmatpush1.bf16.msra.mxu0 %v395
  %1251 = vmatprep.subr.bf16.mxu0 0
  %1252 = vmatpush1.bf16.msra.mxu0 %v394
  %1253 = vmatprep.subr.bf16.mxu0 0
  %1254 = vmatpush1.bf16.msra.mxu0 %v393
  %1255 = vmatprep.subr.bf16.mxu0 0
  %1256 = vmatpush1.bf16.msra.mxu0 %v392
  %1257 = vmatprep.subr.bf16.mxu0 0
  %1258 = vmatpush2.bf16.msra.mxu0 0
  %1259 = vmatprep.subr.bf16.mxu0 0
  %1260 = vmatpush2.bf16.msra.mxu0 0
  %1261 = vmatprep.subr.bf16.mxu0 0
  %1262 = vmatpush2.bf16.msra.mxu0 0
  %1263 = vmatprep.subr.bf16.mxu0 0
  %1264 = vmatpush2.bf16.msra.mxu0 0
  %1265 = vmatprep.subr.bf16.mxu0 0
  %1266 = vmatpush2.bf16.msra.mxu0 0
  %1267 = vmatprep.subr.bf16.mxu0 0
  %1268 = vmatpush2.bf16.msra.mxu0 0
  %1269 = vmatprep.subr.bf16.mxu0 0
  %1270 = vmatpush2.bf16.msra.mxu0 0
  %1271 = vmatprep.subr.bf16.mxu0 0
  %1272 = vmatpush2.bf16.msra.mxu0 0
  %1273 = vmatprep.mubr.bf16.mxu0 0
  %1274 = vmatmul.mubr.bf16.gmra.mxu0 %v1230
  %v1275 = vpop.f32.mrf.mxu0
  %v1276 = vadd.f32 0.0, %v1275
  %v1277 = vpop.f32.mrf.mxu0
  %v1278 = vpop.f32.mrf.mxu0
  %v1279 = vadd.f32 0.0, %v1278
  %v1280 = vpop.f32.mrf.mxu0
  %1281 = vmatprep.mubr.bf16.mxu0 0
  %1282 = vmatmul.mubr.bf16.gmra.mxu0 %v1233
  %v1283 = vpop.f32.mrf.mxu0
  %v1284 = vadd.f32 0.0, %v1283
  %v1285 = vpop.f32.mrf.mxu0
  %v1286 = vpop.f32.mrf.mxu0
  %v1287 = vadd.f32 0.0, %v1286
  %v1288 = vpop.f32.mrf.mxu0
  %1289 = vmatprep.mubr.bf16.mxu0 0
  %1290 = vmatmul.mubr.bf16.gmra.mxu0 %v1236
  %v1291 = vpop.f32.mrf.mxu0
  %v1292 = vadd.f32 0.0, %v1291
  %v1293 = vpop.f32.mrf.mxu0
  %v1294 = vpop.f32.mrf.mxu0
  %v1295 = vadd.f32 0.0, %v1294
  %v1296 = vpop.f32.mrf.mxu0
  %1297 = vmatprep.mubr.bf16.mxu0 0
  %1298 = vmatmul.mubr.bf16.gmra.mxu0 %v1239
  %v1299 = vpop.f32.mrf.mxu0
  %v1300 = vadd.f32 0.0, %v1299
  %v1301 = vpop.f32.mrf.mxu0
  %v1302 = vpop.f32.mrf.mxu0
  %v1303 = vadd.f32 0.0, %v1302
  %v1304 = vpop.f32.mrf.mxu0
  %1305 = vdwg.mxu0
  %v1306 = vmul.f32 %v1276, %v481
  %v1307 = vmul.f32 %v1279, %v481
  %v1308 = vmul.f32 %v1284, %v481
  %v1309 = vmul.f32 %v1287, %v481
  %v1310 = vmul.f32 %v1292, %v481
  %v1311 = vmul.f32 %v1295, %v481
  %v1312 = vmul.f32 %v1300, %v481
  %v1313 = vmul.f32 %v1303, %v481
  %v1314 = vadd.f32 %v1306, %v495
  %v1315 = vadd.f32 %v1307, %v495
  %v1316 = vadd.f32 %v1308, %v495
  %v1317 = vadd.f32 %v1309, %v495
  %v1318 = vadd.f32 %v1310, %v495
  %v1319 = vadd.f32 %v1311, %v495
  %v1320 = vadd.f32 %v1312, %v495
  %v1321 = vadd.f32 %v1313, %v495
  %vm1322 = vcmp.ge.f32.partialorder %v1314, 0.0
  %vm1323 = vcmp.ge.f32.partialorder %v1315, 0.0
  %vm1324 = vcmp.ge.f32.partialorder %v1316, 0.0
  %vm1325 = vcmp.ge.f32.partialorder %v1317, 0.0
  %vm1326 = vcmp.ge.f32.partialorder %v1318, 0.0
  %vm1327 = vcmp.ge.f32.partialorder %v1319, 0.0
  %vm1328 = vcmp.ge.f32.partialorder %v1320, 0.0
  %vm1329 = vcmp.ge.f32.partialorder %v1321, 0.0
  %v1330 = vmul.f32 %v1314, 0.2
  %v1331 = vmul.f32 %v1315, 0.2
  %v1332 = vmul.f32 %v1316, 0.2
  %v1333 = vmul.f32 %v1317, 0.2
  %v1334 = vmul.f32 %v1318, 0.2
  %v1335 = vmul.f32 %v1319, 0.2
  %v1336 = vmul.f32 %v1320, 0.2
  %v1337 = vmul.f32 %v1321, 0.2
  %v1338 = vsel %vm1322, %v1314, %v1330
  %v1339 = vsel %vm1323, %v1315, %v1331
  %v1340 = vsel %vm1324, %v1316, %v1332
  %v1341 = vsel %vm1325, %v1317, %v1333
  %v1342 = vsel %vm1326, %v1318, %v1334
  %v1343 = vsel %vm1327, %v1319, %v1335
  %v1344 = vsel %vm1328, %v1320, %v1336
  %v1345 = vsel %vm1329, %v1321, %v1337
  %v1346 = vmax.f32 %v1071, %v1338
  %v1347 = vmax.f32 %v1072, %v1339
  %v1348 = vmax.f32 %v1073, %v1340
  %v1349 = vmax.f32 %v1074, %v1341
  %v1350 = vmax.f32 %v1075, %v1342
  %v1351 = vmax.f32 %v1076, %v1343
  %v1352 = vmax.f32 %v1077, %v1344
  %v1353 = vmax.f32 %v1078, %v1345
  %s1354 = scalar_lea.vmem %s0, 128
  %v1355 = vld [vmem:[%s1354] sm:$0xf]
  %v1356 = vld [vmem:[%s1354 + $0x4] sm:$0xf]
  %v1357 = vld [vmem:[%s1354 + $0x8] sm:$0xf]
  %v1358 = vld [vmem:[%s1354 + $0xc] sm:$0xf]
  %v1359 = vld [vmem:[%s1354 + $0x10] sm:$0xf]
  %v1360 = vld [vmem:[%s1354 + $0x14] sm:$0xf]
  %v1361 = vld [vmem:[%s1354 + $0x18] sm:$0xf]
  %v1362 = vld [vmem:[%s1354 + $0x1c] sm:$0xf]
  %v1371 = vunpack.c.l.b16 %v1355
  %v1372 = vunpack.c.l.b16 %v1356
  %v1373 = vunpack.c.l.b16 %v1357
  %v1374 = vunpack.c.l.b16 %v1358
  %v1375 = vunpack.c.l.b16 %v1359
  %v1376 = vunpack.c.l.b16 %v1360
  %v1377 = vunpack.c.l.b16 %v1361
  %v1378 = vunpack.c.l.b16 %v1362
  %v1379 = vpack.c.b16 %v1372, %v1371
  %v1380 = vpack.c.b16 %v1374, %v1373
  %v1381 = vpack.c.b16 %v1376, %v1375
  %v1382 = vpack.c.b16 %v1378, %v1377
  %v1384 = vsel %vm103, %v1379, 0
  %v1387 = vsel %vm103, %v1380, 0
  %v1390 = vsel %vm103, %v1381, 0
  %v1393 = vsel %vm103, %v1382, 0
  %1395 = vmatprep.subr.bf16.mxu0 0
  %1396 = vmatpush1.bf16.msra.mxu0 0
  %1397 = vmatprep.subr.bf16.mxu0 0
  %1398 = vmatpush1.bf16.msra.mxu0 0
  %1399 = vmatprep.subr.bf16.mxu0 0
  %1400 = vmatpush1.bf16.msra.mxu0 0
  %1401 = vmatprep.subr.bf16.mxu0 0
  %1402 = vmatpush1.bf16.msra.mxu0 0
  %1403 = vmatprep.subr.bf16.mxu0 0
  %1404 = vmatpush1.bf16.msra.mxu0 %v238
  %1405 = vmatprep.subr.bf16.mxu0 0
  %1406 = vmatpush1.bf16.msra.mxu0 %v237
  %1407 = vmatprep.subr.bf16.mxu0 0
  %1408 = vmatpush1.bf16.msra.mxu0 %v236
  %1409 = vmatprep.subr.bf16.mxu0 0
  %1410 = vmatpush1.bf16.msra.mxu0 %v235
  %1411 = vmatprep.subr.bf16.mxu0 0
  %1412 = vmatpush2.bf16.msra.mxu0 0
  %1413 = vmatprep.subr.bf16.mxu0 0
  %1414 = vmatpush2.bf16.msra.mxu0 0
  %1415 = vmatprep.subr.bf16.mxu0 0
  %1416 = vmatpush2.bf16.msra.mxu0 0
  %1417 = vmatprep.subr.bf16.mxu0 0
  %1418 = vmatpush2.bf16.msra.mxu0 0
  %1419 = vmatprep.subr.bf16.mxu0 0
  %1420 = vmatpush2.bf16.msra.mxu0 0
  %1421 = vmatprep.subr.bf16.mxu0 0
  %1422 = vmatpush2.bf16.msra.mxu0 0
  %1423 = vmatprep.subr.bf16.mxu0 0
  %1424 = vmatpush2.bf16.msra.mxu0 0
  %1425 = vmatprep.subr.bf16.mxu0 0
  %1426 = vmatpush2.bf16.msra.mxu0 0
  %1427 = vmatprep.mubr.bf16.mxu0 0
  %1428 = vmatmul.mubr.bf16.gmra.mxu0 %v1384
  %v1429 = vpop.f32.mrf.mxu0
  %v1430 = vadd.f32 %v151, %v1429
  %v1431 = vpop.f32.mrf.mxu0
  %v1432 = vpop.f32.mrf.mxu0
  %v1433 = vadd.f32 %v154, %v1432
  %v1434 = vpop.f32.mrf.mxu0
  %1435 = vmatprep.mubr.bf16.mxu0 0
  %1436 = vmatmul.mubr.bf16.gmra.mxu0 %v1387
  %v1437 = vpop.f32.mrf.mxu0
  %v1438 = vadd.f32 %v159, %v1437
  %v1439 = vpop.f32.mrf.mxu0
  %v1440 = vpop.f32.mrf.mxu0
  %v1441 = vadd.f32 %v162, %v1440
  %v1442 = vpop.f32.mrf.mxu0
  %1443 = vmatprep.mubr.bf16.mxu0 0
  %1444 = vmatmul.mubr.bf16.gmra.mxu0 %v1390
  %v1445 = vpop.f32.mrf.mxu0
  %v1446 = vadd.f32 %v167, %v1445
  %v1447 = vpop.f32.mrf.mxu0
  %v1448 = vpop.f32.mrf.mxu0
  %v1449 = vadd.f32 %v170, %v1448
  %v1450 = vpop.f32.mrf.mxu0
  %1451 = vmatprep.mubr.bf16.mxu0 0
  %1452 = vmatmul.mubr.bf16.gmra.mxu0 %v1393
  %v1453 = vpop.f32.mrf.mxu0
  %v1454 = vadd.f32 %v175, %v1453
  %v1455 = vpop.f32.mrf.mxu0
  %v1456 = vpop.f32.mrf.mxu0
  %v1457 = vadd.f32 %v178, %v1456
  %v1458 = vpop.f32.mrf.mxu0
  %1459 = vdwg.mxu0
  %v1460 = vmul.f32 %v1430, %v324
  %v1461 = vmul.f32 %v1433, %v324
  %v1462 = vmul.f32 %v1438, %v324
  %v1463 = vmul.f32 %v1441, %v324
  %v1464 = vmul.f32 %v1446, %v324
  %v1465 = vmul.f32 %v1449, %v324
  %v1466 = vmul.f32 %v1454, %v324
  %v1467 = vmul.f32 %v1457, %v324
  %v1468 = vadd.f32 %v1460, %v338
  %v1469 = vadd.f32 %v1461, %v338
  %v1470 = vadd.f32 %v1462, %v338
  %v1471 = vadd.f32 %v1463, %v338
  %v1472 = vadd.f32 %v1464, %v338
  %v1473 = vadd.f32 %v1465, %v338
  %v1474 = vadd.f32 %v1466, %v338
  %v1475 = vadd.f32 %v1467, %v338
  %vm1476 = vcmp.ge.f32.partialorder %v1468, 0.0
  %vm1477 = vcmp.ge.f32.partialorder %v1469, 0.0
  %vm1478 = vcmp.ge.f32.partialorder %v1470, 0.0
  %vm1479 = vcmp.ge.f32.partialorder %v1471, 0.0
  %vm1480 = vcmp.ge.f32.partialorder %v1472, 0.0
  %vm1481 = vcmp.ge.f32.partialorder %v1473, 0.0
  %vm1482 = vcmp.ge.f32.partialorder %v1474, 0.0
  %vm1483 = vcmp.ge.f32.partialorder %v1475, 0.0
  %v1484 = vmul.f32 %v1468, 0.2
  %v1485 = vmul.f32 %v1469, 0.2
  %v1486 = vmul.f32 %v1470, 0.2
  %v1487 = vmul.f32 %v1471, 0.2
  %v1488 = vmul.f32 %v1472, 0.2
  %v1489 = vmul.f32 %v1473, 0.2
  %v1490 = vmul.f32 %v1474, 0.2
  %v1491 = vmul.f32 %v1475, 0.2
  %v1492 = vsel %vm1476, %v1468, %v1484
  %v1493 = vsel %vm1477, %v1469, %v1485
  %v1494 = vsel %vm1478, %v1470, %v1486
  %v1495 = vsel %vm1479, %v1471, %v1487
  %v1496 = vsel %vm1480, %v1472, %v1488
  %v1497 = vsel %vm1481, %v1473, %v1489
  %v1498 = vsel %vm1482, %v1474, %v1490
  %v1499 = vsel %vm1483, %v1475, %v1491
  %v1500 = vpack.c.bf16 %v1493, %v1492
  %v1501 = vpack.c.bf16 %v1495, %v1494
  %v1502 = vpack.c.bf16 %v1497, %v1496
  %v1503 = vpack.c.bf16 %v1499, %v1498
  %v1505 = vsel %vm103, %v1500, 0
  %v1508 = vsel %vm103, %v1501, 0
  %v1511 = vsel %vm103, %v1502, 0
  %v1514 = vsel %vm103, %v1503, 0
  %1516 = vmatprep.subr.bf16.mxu0 0
  %1517 = vmatpush1.bf16.msra.mxu0 0
  %1518 = vmatprep.subr.bf16.mxu0 0
  %1519 = vmatpush1.bf16.msra.mxu0 0
  %1520 = vmatprep.subr.bf16.mxu0 0
  %1521 = vmatpush1.bf16.msra.mxu0 0
  %1522 = vmatprep.subr.bf16.mxu0 0
  %1523 = vmatpush1.bf16.msra.mxu0 0
  %1524 = vmatprep.subr.bf16.mxu0 0
  %1525 = vmatpush1.bf16.msra.mxu0 %v395
  %1526 = vmatprep.subr.bf16.mxu0 0
  %1527 = vmatpush1.bf16.msra.mxu0 %v394
  %1528 = vmatprep.subr.bf16.mxu0 0
  %1529 = vmatpush1.bf16.msra.mxu0 %v393
  %1530 = vmatprep.subr.bf16.mxu0 0
  %1531 = vmatpush1.bf16.msra.mxu0 %v392
  %1532 = vmatprep.subr.bf16.mxu0 0
  %1533 = vmatpush2.bf16.msra.mxu0 0
  %1534 = vmatprep.subr.bf16.mxu0 0
  %1535 = vmatpush2.bf16.msra.mxu0 0
  %1536 = vmatprep.subr.bf16.mxu0 0
  %1537 = vmatpush2.bf16.msra.mxu0 0
  %1538 = vmatprep.subr.bf16.mxu0 0
  %1539 = vmatpush2.bf16.msra.mxu0 0
  %1540 = vmatprep.subr.bf16.mxu0 0
  %1541 = vmatpush2.bf16.msra.mxu0 0
  %1542 = vmatprep.subr.bf16.mxu0 0
  %1543 = vmatpush2.bf16.msra.mxu0 0
  %1544 = vmatprep.subr.bf16.mxu0 0
  %1545 = vmatpush2.bf16.msra.mxu0 0
  %1546 = vmatprep.subr.bf16.mxu0 0
  %1547 = vmatpush2.bf16.msra.mxu0 0
  %1548 = vmatprep.mubr.bf16.mxu0 0
  %1549 = vmatmul.mubr.bf16.gmra.mxu0 %v1505
  %v1550 = vpop.f32.mrf.mxu0
  %v1551 = vadd.f32 0.0, %v1550
  %v1552 = vpop.f32.mrf.mxu0
  %v1553 = vpop.f32.mrf.mxu0
  %v1554 = vadd.f32 0.0, %v1553
  %v1555 = vpop.f32.mrf.mxu0
  %1556 = vmatprep.mubr.bf16.mxu0 0
  %1557 = vmatmul.mubr.bf16.gmra.mxu0 %v1508
  %v1558 = vpop.f32.mrf.mxu0
  %v1559 = vadd.f32 0.0, %v1558
  %v1560 = vpop.f32.mrf.mxu0
  %v1561 = vpop.f32.mrf.mxu0
  %v1562 = vadd.f32 0.0, %v1561
  %v1563 = vpop.f32.mrf.mxu0
  %1564 = vmatprep.mubr.bf16.mxu0 0
  %1565 = vmatmul.mubr.bf16.gmra.mxu0 %v1511
  %v1566 = vpop.f32.mrf.mxu0
  %v1567 = vadd.f32 0.0, %v1566
  %v1568 = vpop.f32.mrf.mxu0
  %v1569 = vpop.f32.mrf.mxu0
  %v1570 = vadd.f32 0.0, %v1569
  %v1571 = vpop.f32.mrf.mxu0
  %1572 = vmatprep.mubr.bf16.mxu0 0
  %1573 = vmatmul.mubr.bf16.gmra.mxu0 %v1514
  %v1574 = vpop.f32.mrf.mxu0
  %v1575 = vadd.f32 0.0, %v1574
  %v1576 = vpop.f32.mrf.mxu0
  %v1577 = vpop.f32.mrf.mxu0
  %v1578 = vadd.f32 0.0, %v1577
  %v1579 = vpop.f32.mrf.mxu0
  %1580 = vdwg.mxu0
  %v1581 = vmul.f32 %v1551, %v481
  %v1582 = vmul.f32 %v1554, %v481
  %v1583 = vmul.f32 %v1559, %v481
  %v1584 = vmul.f32 %v1562, %v481
  %v1585 = vmul.f32 %v1567, %v481
  %v1586 = vmul.f32 %v1570, %v481
  %v1587 = vmul.f32 %v1575, %v481
  %v1588 = vmul.f32 %v1578, %v481
  %v1589 = vadd.f32 %v1581, %v495
  %v1590 = vadd.f32 %v1582, %v495
  %v1591 = vadd.f32 %v1583, %v495
  %v1592 = vadd.f32 %v1584, %v495
  %v1593 = vadd.f32 %v1585, %v495
  %v1594 = vadd.f32 %v1586, %v495
  %v1595 = vadd.f32 %v1587, %v495
  %v1596 = vadd.f32 %v1588, %v495
  %vm1597 = vcmp.ge.f32.partialorder %v1589, 0.0
  %vm1598 = vcmp.ge.f32.partialorder %v1590, 0.0
  %vm1599 = vcmp.ge.f32.partialorder %v1591, 0.0
  %vm1600 = vcmp.ge.f32.partialorder %v1592, 0.0
  %vm1601 = vcmp.ge.f32.partialorder %v1593, 0.0
  %vm1602 = vcmp.ge.f32.partialorder %v1594, 0.0
  %vm1603 = vcmp.ge.f32.partialorder %v1595, 0.0
  %vm1604 = vcmp.ge.f32.partialorder %v1596, 0.0
  %v1605 = vmul.f32 %v1589, 0.2
  %v1606 = vmul.f32 %v1590, 0.2
  %v1607 = vmul.f32 %v1591, 0.2
  %v1608 = vmul.f32 %v1592, 0.2
  %v1609 = vmul.f32 %v1593, 0.2
  %v1610 = vmul.f32 %v1594, 0.2
  %v1611 = vmul.f32 %v1595, 0.2
  %v1612 = vmul.f32 %v1596, 0.2
  %v1613 = vsel %vm1597, %v1589, %v1605
  %v1614 = vsel %vm1598, %v1590, %v1606
  %v1615 = vsel %vm1599, %v1591, %v1607
  %v1616 = vsel %vm1600, %v1592, %v1608
  %v1617 = vsel %vm1601, %v1593, %v1609
  %v1618 = vsel %vm1602, %v1594, %v1610
  %v1619 = vsel %vm1603, %v1595, %v1611
  %v1620 = vsel %vm1604, %v1596, %v1612
  %v1621 = vmax.f32 %v1346, %v1613
  %v1622 = vmax.f32 %v1347, %v1614
  %v1623 = vmax.f32 %v1348, %v1615
  %v1624 = vmax.f32 %v1349, %v1616
  %v1625 = vmax.f32 %v1350, %v1617
  %v1626 = vmax.f32 %v1351, %v1618
  %v1627 = vmax.f32 %v1352, %v1619
  %v1628 = vmax.f32 %v1353, %v1620
  %s1629 = scalar_lea.vmem %s0, 160
  %v1630 = vld [vmem:[%s1629] sm:$0xf]
  %v1631 = vld [vmem:[%s1629 + $0x4] sm:$0xf]
  %v1632 = vld [vmem:[%s1629 + $0x8] sm:$0xf]
  %v1633 = vld [vmem:[%s1629 + $0xc] sm:$0xf]
  %v1634 = vld [vmem:[%s1629 + $0x10] sm:$0xf]
  %v1635 = vld [vmem:[%s1629 + $0x14] sm:$0xf]
  %v1636 = vld [vmem:[%s1629 + $0x18] sm:$0xf]
  %v1637 = vld [vmem:[%s1629 + $0x1c] sm:$0xf]
  %v1646 = vunpack.c.l.b16 %v1630
  %v1647 = vunpack.c.l.b16 %v1631
  %v1648 = vunpack.c.l.b16 %v1632
  %v1649 = vunpack.c.l.b16 %v1633
  %v1650 = vunpack.c.l.b16 %v1634
  %v1651 = vunpack.c.l.b16 %v1635
  %v1652 = vunpack.c.l.b16 %v1636
  %v1653 = vunpack.c.l.b16 %v1637
  %v1654 = vpack.c.b16 %v1647, %v1646
  %v1655 = vpack.c.b16 %v1649, %v1648
  %v1656 = vpack.c.b16 %v1651, %v1650
  %v1657 = vpack.c.b16 %v1653, %v1652
  %v1659 = vsel %vm103, %v1654, 0
  %v1662 = vsel %vm103, %v1655, 0
  %v1665 = vsel %vm103, %v1656, 0
  %v1668 = vsel %vm103, %v1657, 0
  %1670 = vmatprep.subr.bf16.mxu0 0
  %1671 = vmatpush1.bf16.msra.mxu0 0
  %1672 = vmatprep.subr.bf16.mxu0 0
  %1673 = vmatpush1.bf16.msra.mxu0 0
  %1674 = vmatprep.subr.bf16.mxu0 0
  %1675 = vmatpush1.bf16.msra.mxu0 0
  %1676 = vmatprep.subr.bf16.mxu0 0
  %1677 = vmatpush1.bf16.msra.mxu0 0
  %1678 = vmatprep.subr.bf16.mxu0 0
  %1679 = vmatpush1.bf16.msra.mxu0 %v238
  %1680 = vmatprep.subr.bf16.mxu0 0
  %1681 = vmatpush1.bf16.msra.mxu0 %v237
  %1682 = vmatprep.subr.bf16.mxu0 0
  %1683 = vmatpush1.bf16.msra.mxu0 %v236
  %1684 = vmatprep.subr.bf16.mxu0 0
  %1685 = vmatpush1.bf16.msra.mxu0 %v235
  %1686 = vmatprep.subr.bf16.mxu0 0
  %1687 = vmatpush2.bf16.msra.mxu0 0
  %1688 = vmatprep.subr.bf16.mxu0 0
  %1689 = vmatpush2.bf16.msra.mxu0 0
  %1690 = vmatprep.subr.bf16.mxu0 0
  %1691 = vmatpush2.bf16.msra.mxu0 0
  %1692 = vmatprep.subr.bf16.mxu0 0
  %1693 = vmatpush2.bf16.msra.mxu0 0
  %1694 = vmatprep.subr.bf16.mxu0 0
  %1695 = vmatpush2.bf16.msra.mxu0 0
  %1696 = vmatprep.subr.bf16.mxu0 0
  %1697 = vmatpush2.bf16.msra.mxu0 0
  %1698 = vmatprep.subr.bf16.mxu0 0
  %1699 = vmatpush2.bf16.msra.mxu0 0
  %1700 = vmatprep.subr.bf16.mxu0 0
  %1701 = vmatpush2.bf16.msra.mxu0 0
  %1702 = vmatprep.mubr.bf16.mxu0 0
  %1703 = vmatmul.mubr.bf16.gmra.mxu0 %v1659
  %v1704 = vpop.f32.mrf.mxu0
  %v1705 = vadd.f32 %v151, %v1704
  %v1706 = vpop.f32.mrf.mxu0
  %v1707 = vpop.f32.mrf.mxu0
  %v1708 = vadd.f32 %v154, %v1707
  %v1709 = vpop.f32.mrf.mxu0
  %1710 = vmatprep.mubr.bf16.mxu0 0
  %1711 = vmatmul.mubr.bf16.gmra.mxu0 %v1662
  %v1712 = vpop.f32.mrf.mxu0
  %v1713 = vadd.f32 %v159, %v1712
  %v1714 = vpop.f32.mrf.mxu0
  %v1715 = vpop.f32.mrf.mxu0
  %v1716 = vadd.f32 %v162, %v1715
  %v1717 = vpop.f32.mrf.mxu0
  %1718 = vmatprep.mubr.bf16.mxu0 0
  %1719 = vmatmul.mubr.bf16.gmra.mxu0 %v1665
  %v1720 = vpop.f32.mrf.mxu0
  %v1721 = vadd.f32 %v167, %v1720
  %v1722 = vpop.f32.mrf.mxu0
  %v1723 = vpop.f32.mrf.mxu0
  %v1724 = vadd.f32 %v170, %v1723
  %v1725 = vpop.f32.mrf.mxu0
  %1726 = vmatprep.mubr.bf16.mxu0 0
  %1727 = vmatmul.mubr.bf16.gmra.mxu0 %v1668
  %v1728 = vpop.f32.mrf.mxu0
  %v1729 = vadd.f32 %v175, %v1728
  %v1730 = vpop.f32.mrf.mxu0
  %v1731 = vpop.f32.mrf.mxu0
  %v1732 = vadd.f32 %v178, %v1731
  %v1733 = vpop.f32.mrf.mxu0
  %1734 = vdwg.mxu0
  %v1735 = vmul.f32 %v1705, %v324
  %v1736 = vmul.f32 %v1708, %v324
  %v1737 = vmul.f32 %v1713, %v324
  %v1738 = vmul.f32 %v1716, %v324
  %v1739 = vmul.f32 %v1721, %v324
  %v1740 = vmul.f32 %v1724, %v324
  %v1741 = vmul.f32 %v1729, %v324
  %v1742 = vmul.f32 %v1732, %v324
  %v1743 = vadd.f32 %v1735, %v338
  %v1744 = vadd.f32 %v1736, %v338
  %v1745 = vadd.f32 %v1737, %v338
  %v1746 = vadd.f32 %v1738, %v338
  %v1747 = vadd.f32 %v1739, %v338
  %v1748 = vadd.f32 %v1740, %v338
  %v1749 = vadd.f32 %v1741, %v338
  %v1750 = vadd.f32 %v1742, %v338
  %vm1751 = vcmp.ge.f32.partialorder %v1743, 0.0
  %vm1752 = vcmp.ge.f32.partialorder %v1744, 0.0
  %vm1753 = vcmp.ge.f32.partialorder %v1745, 0.0
  %vm1754 = vcmp.ge.f32.partialorder %v1746, 0.0
  %vm1755 = vcmp.ge.f32.partialorder %v1747, 0.0
  %vm1756 = vcmp.ge.f32.partialorder %v1748, 0.0
  %vm1757 = vcmp.ge.f32.partialorder %v1749, 0.0
  %vm1758 = vcmp.ge.f32.partialorder %v1750, 0.0
  %v1759 = vmul.f32 %v1743, 0.2
  %v1760 = vmul.f32 %v1744, 0.2
  %v1761 = vmul.f32 %v1745, 0.2
  %v1762 = vmul.f32 %v1746, 0.2
  %v1763 = vmul.f32 %v1747, 0.2
  %v1764 = vmul.f32 %v1748, 0.2
  %v1765 = vmul.f32 %v1749, 0.2
  %v1766 = vmul.f32 %v1750, 0.2
  %v1767 = vsel %vm1751, %v1743, %v1759
  %v1768 = vsel %vm1752, %v1744, %v1760
  %v1769 = vsel %vm1753, %v1745, %v1761
  %v1770 = vsel %vm1754, %v1746, %v1762
  %v1771 = vsel %vm1755, %v1747, %v1763
  %v1772 = vsel %vm1756, %v1748, %v1764
  %v1773 = vsel %vm1757, %v1749, %v1765
  %v1774 = vsel %vm1758, %v1750, %v1766
  %v1775 = vpack.c.bf16 %v1768, %v1767
  %v1776 = vpack.c.bf16 %v1770, %v1769
  %v1777 = vpack.c.bf16 %v1772, %v1771
  %v1778 = vpack.c.bf16 %v1774, %v1773
  %v1780 = vsel %vm103, %v1775, 0
  %v1783 = vsel %vm103, %v1776, 0
  %v1786 = vsel %vm103, %v1777, 0
  %v1789 = vsel %vm103, %v1778, 0
  %1791 = vmatprep.subr.bf16.mxu0 0
  %1792 = vmatpush1.bf16.msra.mxu0 0
  %1793 = vmatprep.subr.bf16.mxu0 0
  %1794 = vmatpush1.bf16.msra.mxu0 0
  %1795 = vmatprep.subr.bf16.mxu0 0
  %1796 = vmatpush1.bf16.msra.mxu0 0
  %1797 = vmatprep.subr.bf16.mxu0 0
  %1798 = vmatpush1.bf16.msra.mxu0 0
  %1799 = vmatprep.subr.bf16.mxu0 0
  %1800 = vmatpush1.bf16.msra.mxu0 %v395
  %1801 = vmatprep.subr.bf16.mxu0 0
  %1802 = vmatpush1.bf16.msra.mxu0 %v394
  %1803 = vmatprep.subr.bf16.mxu0 0
  %1804 = vmatpush1.bf16.msra.mxu0 %v393
  %1805 = vmatprep.subr.bf16.mxu0 0
  %1806 = vmatpush1.bf16.msra.mxu0 %v392
  %1807 = vmatprep.subr.bf16.mxu0 0
  %1808 = vmatpush2.bf16.msra.mxu0 0
  %1809 = vmatprep.subr.bf16.mxu0 0
  %1810 = vmatpush2.bf16.msra.mxu0 0
  %1811 = vmatprep.subr.bf16.mxu0 0
  %1812 = vmatpush2.bf16.msra.mxu0 0
  %1813 = vmatprep.subr.bf16.mxu0 0
  %1814 = vmatpush2.bf16.msra.mxu0 0
  %1815 = vmatprep.subr.bf16.mxu0 0
  %1816 = vmatpush2.bf16.msra.mxu0 0
  %1817 = vmatprep.subr.bf16.mxu0 0
  %1818 = vmatpush2.bf16.msra.mxu0 0
  %1819 = vmatprep.subr.bf16.mxu0 0
  %1820 = vmatpush2.bf16.msra.mxu0 0
  %1821 = vmatprep.subr.bf16.mxu0 0
  %1822 = vmatpush2.bf16.msra.mxu0 0
  %1823 = vmatprep.mubr.bf16.mxu0 0
  %1824 = vmatmul.mubr.bf16.gmra.mxu0 %v1780
  %v1825 = vpop.f32.mrf.mxu0
  %v1826 = vadd.f32 0.0, %v1825
  %v1827 = vpop.f32.mrf.mxu0
  %v1828 = vpop.f32.mrf.mxu0
  %v1829 = vadd.f32 0.0, %v1828
  %v1830 = vpop.f32.mrf.mxu0
  %1831 = vmatprep.mubr.bf16.mxu0 0
  %1832 = vmatmul.mubr.bf16.gmra.mxu0 %v1783
  %v1833 = vpop.f32.mrf.mxu0
  %v1834 = vadd.f32 0.0, %v1833
  %v1835 = vpop.f32.mrf.mxu0
  %v1836 = vpop.f32.mrf.mxu0
  %v1837 = vadd.f32 0.0, %v1836
  %v1838 = vpop.f32.mrf.mxu0
  %1839 = vmatprep.mubr.bf16.mxu0 0
  %1840 = vmatmul.mubr.bf16.gmra.mxu0 %v1786
  %v1841 = vpop.f32.mrf.mxu0
  %v1842 = vadd.f32 0.0, %v1841
  %v1843 = vpop.f32.mrf.mxu0
  %v1844 = vpop.f32.mrf.mxu0
  %v1845 = vadd.f32 0.0, %v1844
  %v1846 = vpop.f32.mrf.mxu0
  %1847 = vmatprep.mubr.bf16.mxu0 0
  %1848 = vmatmul.mubr.bf16.gmra.mxu0 %v1789
  %v1849 = vpop.f32.mrf.mxu0
  %v1850 = vadd.f32 0.0, %v1849
  %v1851 = vpop.f32.mrf.mxu0
  %v1852 = vpop.f32.mrf.mxu0
  %v1853 = vadd.f32 0.0, %v1852
  %v1854 = vpop.f32.mrf.mxu0
  %1855 = vdwg.mxu0
  %v1856 = vmul.f32 %v1826, %v481
  %v1857 = vmul.f32 %v1829, %v481
  %v1858 = vmul.f32 %v1834, %v481
  %v1859 = vmul.f32 %v1837, %v481
  %v1860 = vmul.f32 %v1842, %v481
  %v1861 = vmul.f32 %v1845, %v481
  %v1862 = vmul.f32 %v1850, %v481
  %v1863 = vmul.f32 %v1853, %v481
  %v1864 = vadd.f32 %v1856, %v495
  %v1865 = vadd.f32 %v1857, %v495
  %v1866 = vadd.f32 %v1858, %v495
  %v1867 = vadd.f32 %v1859, %v495
  %v1868 = vadd.f32 %v1860, %v495
  %v1869 = vadd.f32 %v1861, %v495
  %v1870 = vadd.f32 %v1862, %v495
  %v1871 = vadd.f32 %v1863, %v495
  %vm1872 = vcmp.ge.f32.partialorder %v1864, 0.0
  %vm1873 = vcmp.ge.f32.partialorder %v1865, 0.0
  %vm1874 = vcmp.ge.f32.partialorder %v1866, 0.0
  %vm1875 = vcmp.ge.f32.partialorder %v1867, 0.0
  %vm1876 = vcmp.ge.f32.partialorder %v1868, 0.0
  %vm1877 = vcmp.ge.f32.partialorder %v1869, 0.0
  %vm1878 = vcmp.ge.f32.partialorder %v1870, 0.0
  %vm1879 = vcmp.ge.f32.partialorder %v1871, 0.0
  %v1880 = vmul.f32 %v1864, 0.2
  %v1881 = vmul.f32 %v1865, 0.2
  %v1882 = vmul.f32 %v1866, 0.2
  %v1883 = vmul.f32 %v1867, 0.2
  %v1884 = vmul.f32 %v1868, 0.2
  %v1885 = vmul.f32 %v1869, 0.2
  %v1886 = vmul.f32 %v1870, 0.2
  %v1887 = vmul.f32 %v1871, 0.2
  %v1888 = vsel %vm1872, %v1864, %v1880
  %v1889 = vsel %vm1873, %v1865, %v1881
  %v1890 = vsel %vm1874, %v1866, %v1882
  %v1891 = vsel %vm1875, %v1867, %v1883
  %v1892 = vsel %vm1876, %v1868, %v1884
  %v1893 = vsel %vm1877, %v1869, %v1885
  %v1894 = vsel %vm1878, %v1870, %v1886
  %v1895 = vsel %vm1879, %v1871, %v1887
  %v1896 = vmax.f32 %v1621, %v1888
  %v1897 = vmax.f32 %v1622, %v1889
  %v1898 = vmax.f32 %v1623, %v1890
  %v1899 = vmax.f32 %v1624, %v1891
  %v1900 = vmax.f32 %v1625, %v1892
  %v1901 = vmax.f32 %v1626, %v1893
  %v1902 = vmax.f32 %v1627, %v1894
  %v1903 = vmax.f32 %v1628, %v1895
  %s1904 = scalar_lea.vmem %s0, 192
  %v1905 = vld [vmem:[%s1904] sm:$0xf]
  %v1906 = vld [vmem:[%s1904 + $0x4] sm:$0xf]
  %v1907 = vld [vmem:[%s1904 + $0x8] sm:$0xf]
  %v1908 = vld [vmem:[%s1904 + $0xc] sm:$0xf]
  %v1909 = vld [vmem:[%s1904 + $0x10] sm:$0xf]
  %v1910 = vld [vmem:[%s1904 + $0x14] sm:$0xf]
  %v1911 = vld [vmem:[%s1904 + $0x18] sm:$0xf]
  %v1912 = vld [vmem:[%s1904 + $0x1c] sm:$0xf]
  %v1921 = vunpack.c.l.b16 %v1905
  %v1922 = vunpack.c.l.b16 %v1906
  %v1923 = vunpack.c.l.b16 %v1907
  %v1924 = vunpack.c.l.b16 %v1908
  %v1925 = vunpack.c.l.b16 %v1909
  %v1926 = vunpack.c.l.b16 %v1910
  %v1927 = vunpack.c.l.b16 %v1911
  %v1928 = vunpack.c.l.b16 %v1912
  %v1929 = vpack.c.b16 %v1922, %v1921
  %v1930 = vpack.c.b16 %v1924, %v1923
  %v1931 = vpack.c.b16 %v1926, %v1925
  %v1932 = vpack.c.b16 %v1928, %v1927
  %v1934 = vsel %vm103, %v1929, 0
  %v1937 = vsel %vm103, %v1930, 0
  %v1940 = vsel %vm103, %v1931, 0
  %v1943 = vsel %vm103, %v1932, 0
  %1945 = vmatprep.subr.bf16.mxu0 0
  %1946 = vmatpush1.bf16.msra.mxu0 0
  %1947 = vmatprep.subr.bf16.mxu0 0
  %1948 = vmatpush1.bf16.msra.mxu0 0
  %1949 = vmatprep.subr.bf16.mxu0 0
  %1950 = vmatpush1.bf16.msra.mxu0 0
  %1951 = vmatprep.subr.bf16.mxu0 0
  %1952 = vmatpush1.bf16.msra.mxu0 0
  %1953 = vmatprep.subr.bf16.mxu0 0
  %1954 = vmatpush1.bf16.msra.mxu0 %v238
  %1955 = vmatprep.subr.bf16.mxu0 0
  %1956 = vmatpush1.bf16.msra.mxu0 %v237
  %1957 = vmatprep.subr.bf16.mxu0 0
  %1958 = vmatpush1.bf16.msra.mxu0 %v236
  %1959 = vmatprep.subr.bf16.mxu0 0
  %1960 = vmatpush1.bf16.msra.mxu0 %v235
  %1961 = vmatprep.subr.bf16.mxu0 0
  %1962 = vmatpush2.bf16.msra.mxu0 0
  %1963 = vmatprep.subr.bf16.mxu0 0
  %1964 = vmatpush2.bf16.msra.mxu0 0
  %1965 = vmatprep.subr.bf16.mxu0 0
  %1966 = vmatpush2.bf16.msra.mxu0 0
  %1967 = vmatprep.subr.bf16.mxu0 0
  %1968 = vmatpush2.bf16.msra.mxu0 0
  %1969 = vmatprep.subr.bf16.mxu0 0
  %1970 = vmatpush2.bf16.msra.mxu0 0
  %1971 = vmatprep.subr.bf16.mxu0 0
  %1972 = vmatpush2.bf16.msra.mxu0 0
  %1973 = vmatprep.subr.bf16.mxu0 0
  %1974 = vmatpush2.bf16.msra.mxu0 0
  %1975 = vmatprep.subr.bf16.mxu0 0
  %1976 = vmatpush2.bf16.msra.mxu0 0
  %1977 = vmatprep.mubr.bf16.mxu0 0
  %1978 = vmatmul.mubr.bf16.gmra.mxu0 %v1934
  %v1979 = vpop.f32.mrf.mxu0
  %v1980 = vadd.f32 %v151, %v1979
  %v1981 = vpop.f32.mrf.mxu0
  %v1982 = vpop.f32.mrf.mxu0
  %v1983 = vadd.f32 %v154, %v1982
  %v1984 = vpop.f32.mrf.mxu0
  %1985 = vmatprep.mubr.bf16.mxu0 0
  %1986 = vmatmul.mubr.bf16.gmra.mxu0 %v1937
  %v1987 = vpop.f32.mrf.mxu0
  %v1988 = vadd.f32 %v159, %v1987
  %v1989 = vpop.f32.mrf.mxu0
  %v1990 = vpop.f32.mrf.mxu0
  %v1991 = vadd.f32 %v162, %v1990
  %v1992 = vpop.f32.mrf.mxu0
  %1993 = vmatprep.mubr.bf16.mxu0 0
  %1994 = vmatmul.mubr.bf16.gmra.mxu0 %v1940
  %v1995 = vpop.f32.mrf.mxu0
  %v1996 = vadd.f32 %v167, %v1995
  %v1997 = vpop.f32.mrf.mxu0
  %v1998 = vpop.f32.mrf.mxu0
  %v1999 = vadd.f32 %v170, %v1998
  %v2000 = vpop.f32.mrf.mxu0
  %2001 = vmatprep.mubr.bf16.mxu0 0
  %2002 = vmatmul.mubr.bf16.gmra.mxu0 %v1943
  %v2003 = vpop.f32.mrf.mxu0
  %v2004 = vadd.f32 %v175, %v2003
  %v2005 = vpop.f32.mrf.mxu0
  %v2006 = vpop.f32.mrf.mxu0
  %v2007 = vadd.f32 %v178, %v2006
  %v2008 = vpop.f32.mrf.mxu0
  %2009 = vdwg.mxu0
  %v2010 = vmul.f32 %v1980, %v324
  %v2011 = vmul.f32 %v1983, %v324
  %v2012 = vmul.f32 %v1988, %v324
  %v2013 = vmul.f32 %v1991, %v324
  %v2014 = vmul.f32 %v1996, %v324
  %v2015 = vmul.f32 %v1999, %v324
  %v2016 = vmul.f32 %v2004, %v324
  %v2017 = vmul.f32 %v2007, %v324
  %v2018 = vadd.f32 %v2010, %v338
  %v2019 = vadd.f32 %v2011, %v338
  %v2020 = vadd.f32 %v2012, %v338
  %v2021 = vadd.f32 %v2013, %v338
  %v2022 = vadd.f32 %v2014, %v338
  %v2023 = vadd.f32 %v2015, %v338
  %v2024 = vadd.f32 %v2016, %v338
  %v2025 = vadd.f32 %v2017, %v338
  %vm2026 = vcmp.ge.f32.partialorder %v2018, 0.0
  %vm2027 = vcmp.ge.f32.partialorder %v2019, 0.0
  %vm2028 = vcmp.ge.f32.partialorder %v2020, 0.0
  %vm2029 = vcmp.ge.f32.partialorder %v2021, 0.0
  %vm2030 = vcmp.ge.f32.partialorder %v2022, 0.0
  %vm2031 = vcmp.ge.f32.partialorder %v2023, 0.0
  %vm2032 = vcmp.ge.f32.partialorder %v2024, 0.0
  %vm2033 = vcmp.ge.f32.partialorder %v2025, 0.0
  %v2034 = vmul.f32 %v2018, 0.2
  %v2035 = vmul.f32 %v2019, 0.2
  %v2036 = vmul.f32 %v2020, 0.2
  %v2037 = vmul.f32 %v2021, 0.2
  %v2038 = vmul.f32 %v2022, 0.2
  %v2039 = vmul.f32 %v2023, 0.2
  %v2040 = vmul.f32 %v2024, 0.2
  %v2041 = vmul.f32 %v2025, 0.2
  %v2042 = vsel %vm2026, %v2018, %v2034
  %v2043 = vsel %vm2027, %v2019, %v2035
  %v2044 = vsel %vm2028, %v2020, %v2036
  %v2045 = vsel %vm2029, %v2021, %v2037
  %v2046 = vsel %vm2030, %v2022, %v2038
  %v2047 = vsel %vm2031, %v2023, %v2039
  %v2048 = vsel %vm2032, %v2024, %v2040
  %v2049 = vsel %vm2033, %v2025, %v2041
  %v2050 = vpack.c.bf16 %v2043, %v2042
  %v2051 = vpack.c.bf16 %v2045, %v2044
  %v2052 = vpack.c.bf16 %v2047, %v2046
  %v2053 = vpack.c.bf16 %v2049, %v2048
  %v2055 = vsel %vm103, %v2050, 0
  %v2058 = vsel %vm103, %v2051, 0
  %v2061 = vsel %vm103, %v2052, 0
  %v2064 = vsel %vm103, %v2053, 0
  %2066 = vmatprep.subr.bf16.mxu0 0
  %2067 = vmatpush1.bf16.msra.mxu0 0
  %2068 = vmatprep.subr.bf16.mxu0 0
  %2069 = vmatpush1.bf16.msra.mxu0 0
  %2070 = vmatprep.subr.bf16.mxu0 0
  %2071 = vmatpush1.bf16.msra.mxu0 0
  %2072 = vmatprep.subr.bf16.mxu0 0
  %2073 = vmatpush1.bf16.msra.mxu0 0
  %2074 = vmatprep.subr.bf16.mxu0 0
  %2075 = vmatpush1.bf16.msra.mxu0 %v395
  %2076 = vmatprep.subr.bf16.mxu0 0
  %2077 = vmatpush1.bf16.msra.mxu0 %v394
  %2078 = vmatprep.subr.bf16.mxu0 0
  %2079 = vmatpush1.bf16.msra.mxu0 %v393
  %2080 = vmatprep.subr.bf16.mxu0 0
  %2081 = vmatpush1.bf16.msra.mxu0 %v392
  %2082 = vmatprep.subr.bf16.mxu0 0
  %2083 = vmatpush2.bf16.msra.mxu0 0
  %2084 = vmatprep.subr.bf16.mxu0 0
  %2085 = vmatpush2.bf16.msra.mxu0 0
  %2086 = vmatprep.subr.bf16.mxu0 0
  %2087 = vmatpush2.bf16.msra.mxu0 0
  %2088 = vmatprep.subr.bf16.mxu0 0
  %2089 = vmatpush2.bf16.msra.mxu0 0
  %2090 = vmatprep.subr.bf16.mxu0 0
  %2091 = vmatpush2.bf16.msra.mxu0 0
  %2092 = vmatprep.subr.bf16.mxu0 0
  %2093 = vmatpush2.bf16.msra.mxu0 0
  %2094 = vmatprep.subr.bf16.mxu0 0
  %2095 = vmatpush2.bf16.msra.mxu0 0
  %2096 = vmatprep.subr.bf16.mxu0 0
  %2097 = vmatpush2.bf16.msra.mxu0 0
  %2098 = vmatprep.mubr.bf16.mxu0 0
  %2099 = vmatmul.mubr.bf16.gmra.mxu0 %v2055
  %v2100 = vpop.f32.mrf.mxu0
  %v2101 = vadd.f32 0.0, %v2100
  %v2102 = vpop.f32.mrf.mxu0
  %v2103 = vpop.f32.mrf.mxu0
  %v2104 = vadd.f32 0.0, %v2103
  %v2105 = vpop.f32.mrf.mxu0
  %2106 = vmatprep.mubr.bf16.mxu0 0
  %2107 = vmatmul.mubr.bf16.gmra.mxu0 %v2058
  %v2108 = vpop.f32.mrf.mxu0
  %v2109 = vadd.f32 0.0, %v2108
  %v2110 = vpop.f32.mrf.mxu0
  %v2111 = vpop.f32.mrf.mxu0
  %v2112 = vadd.f32 0.0, %v2111
  %v2113 = vpop.f32.mrf.mxu0
  %2114 = vmatprep.mubr.bf16.mxu0 0
  %2115 = vmatmul.mubr.bf16.gmra.mxu0 %v2061
  %v2116 = vpop.f32.mrf.mxu0
  %v2117 = vadd.f32 0.0, %v2116
  %v2118 = vpop.f32.mrf.mxu0
  %v2119 = vpop.f32.mrf.mxu0
  %v2120 = vadd.f32 0.0, %v2119
  %v2121 = vpop.f32.mrf.mxu0
  %2122 = vmatprep.mubr.bf16.mxu0 0
  %2123 = vmatmul.mubr.bf16.gmra.mxu0 %v2064
  %v2124 = vpop.f32.mrf.mxu0
  %v2125 = vadd.f32 0.0, %v2124
  %v2126 = vpop.f32.mrf.mxu0
  %v2127 = vpop.f32.mrf.mxu0
  %v2128 = vadd.f32 0.0, %v2127
  %v2129 = vpop.f32.mrf.mxu0
  %2130 = vdwg.mxu0
  %v2131 = vmul.f32 %v2101, %v481
  %v2132 = vmul.f32 %v2104, %v481
  %v2133 = vmul.f32 %v2109, %v481
  %v2134 = vmul.f32 %v2112, %v481
  %v2135 = vmul.f32 %v2117, %v481
  %v2136 = vmul.f32 %v2120, %v481
  %v2137 = vmul.f32 %v2125, %v481
  %v2138 = vmul.f32 %v2128, %v481
  %v2139 = vadd.f32 %v2131, %v495
  %v2140 = vadd.f32 %v2132, %v495
  %v2141 = vadd.f32 %v2133, %v495
  %v2142 = vadd.f32 %v2134, %v495
  %v2143 = vadd.f32 %v2135, %v495
  %v2144 = vadd.f32 %v2136, %v495
  %v2145 = vadd.f32 %v2137, %v495
  %v2146 = vadd.f32 %v2138, %v495
  %vm2147 = vcmp.ge.f32.partialorder %v2139, 0.0
  %vm2148 = vcmp.ge.f32.partialorder %v2140, 0.0
  %vm2149 = vcmp.ge.f32.partialorder %v2141, 0.0
  %vm2150 = vcmp.ge.f32.partialorder %v2142, 0.0
  %vm2151 = vcmp.ge.f32.partialorder %v2143, 0.0
  %vm2152 = vcmp.ge.f32.partialorder %v2144, 0.0
  %vm2153 = vcmp.ge.f32.partialorder %v2145, 0.0
  %vm2154 = vcmp.ge.f32.partialorder %v2146, 0.0
  %v2155 = vmul.f32 %v2139, 0.2
  %v2156 = vmul.f32 %v2140, 0.2
  %v2157 = vmul.f32 %v2141, 0.2
  %v2158 = vmul.f32 %v2142, 0.2
  %v2159 = vmul.f32 %v2143, 0.2
  %v2160 = vmul.f32 %v2144, 0.2
  %v2161 = vmul.f32 %v2145, 0.2
  %v2162 = vmul.f32 %v2146, 0.2
  %v2163 = vsel %vm2147, %v2139, %v2155
  %v2164 = vsel %vm2148, %v2140, %v2156
  %v2165 = vsel %vm2149, %v2141, %v2157
  %v2166 = vsel %vm2150, %v2142, %v2158
  %v2167 = vsel %vm2151, %v2143, %v2159
  %v2168 = vsel %vm2152, %v2144, %v2160
  %v2169 = vsel %vm2153, %v2145, %v2161
  %v2170 = vsel %vm2154, %v2146, %v2162
  %v2171 = vmax.f32 %v1896, %v2163
  %v2172 = vmax.f32 %v1897, %v2164
  %v2173 = vmax.f32 %v1898, %v2165
  %v2174 = vmax.f32 %v1899, %v2166
  %v2175 = vmax.f32 %v1900, %v2167
  %v2176 = vmax.f32 %v1901, %v2168
  %v2177 = vmax.f32 %v1902, %v2169
  %v2178 = vmax.f32 %v1903, %v2170
  %s2179 = scalar_lea.vmem %s0, 224
  %v2180 = vld [vmem:[%s2179] sm:$0xf]
  %v2181 = vld [vmem:[%s2179 + $0x4] sm:$0xf]
  %v2182 = vld [vmem:[%s2179 + $0x8] sm:$0xf]
  %v2183 = vld [vmem:[%s2179 + $0xc] sm:$0xf]
  %v2184 = vld [vmem:[%s2179 + $0x10] sm:$0xf]
  %v2185 = vld [vmem:[%s2179 + $0x14] sm:$0xf]
  %v2186 = vld [vmem:[%s2179 + $0x18] sm:$0xf]
  %v2187 = vld [vmem:[%s2179 + $0x1c] sm:$0xf]
  %v2196 = vunpack.c.l.b16 %v2180
  %v2197 = vunpack.c.l.b16 %v2181
  %v2198 = vunpack.c.l.b16 %v2182
  %v2199 = vunpack.c.l.b16 %v2183
  %v2200 = vunpack.c.l.b16 %v2184
  %v2201 = vunpack.c.l.b16 %v2185
  %v2202 = vunpack.c.l.b16 %v2186
  %v2203 = vunpack.c.l.b16 %v2187
  %v2204 = vpack.c.b16 %v2197, %v2196
  %v2205 = vpack.c.b16 %v2199, %v2198
  %v2206 = vpack.c.b16 %v2201, %v2200
  %v2207 = vpack.c.b16 %v2203, %v2202
  %v2209 = vsel %vm103, %v2204, 0
  %v2212 = vsel %vm103, %v2205, 0
  %v2215 = vsel %vm103, %v2206, 0
  %v2218 = vsel %vm103, %v2207, 0
  %2220 = vmatprep.subr.bf16.mxu0 0
  %2221 = vmatpush1.bf16.msra.mxu0 0
  %2222 = vmatprep.subr.bf16.mxu0 0
  %2223 = vmatpush1.bf16.msra.mxu0 0
  %2224 = vmatprep.subr.bf16.mxu0 0
  %2225 = vmatpush1.bf16.msra.mxu0 0
  %2226 = vmatprep.subr.bf16.mxu0 0
  %2227 = vmatpush1.bf16.msra.mxu0 0
  %2228 = vmatprep.subr.bf16.mxu0 0
  %2229 = vmatpush1.bf16.msra.mxu0 %v238
  %2230 = vmatprep.subr.bf16.mxu0 0
  %2231 = vmatpush1.bf16.msra.mxu0 %v237
  %2232 = vmatprep.subr.bf16.mxu0 0
  %2233 = vmatpush1.bf16.msra.mxu0 %v236
  %2234 = vmatprep.subr.bf16.mxu0 0
  %2235 = vmatpush1.bf16.msra.mxu0 %v235
  %2236 = vmatprep.subr.bf16.mxu0 0
  %2237 = vmatpush2.bf16.msra.mxu0 0
  %2238 = vmatprep.subr.bf16.mxu0 0
  %2239 = vmatpush2.bf16.msra.mxu0 0
  %2240 = vmatprep.subr.bf16.mxu0 0
  %2241 = vmatpush2.bf16.msra.mxu0 0
  %2242 = vmatprep.subr.bf16.mxu0 0
  %2243 = vmatpush2.bf16.msra.mxu0 0
  %2244 = vmatprep.subr.bf16.mxu0 0
  %2245 = vmatpush2.bf16.msra.mxu0 0
  %2246 = vmatprep.subr.bf16.mxu0 0
  %2247 = vmatpush2.bf16.msra.mxu0 0
  %2248 = vmatprep.subr.bf16.mxu0 0
  %2249 = vmatpush2.bf16.msra.mxu0 0
  %2250 = vmatprep.subr.bf16.mxu0 0
  %2251 = vmatpush2.bf16.msra.mxu0 0
  %2252 = vmatprep.mubr.bf16.mxu0 0
  %2253 = vmatmul.mubr.bf16.gmra.mxu0 %v2209
  %v2254 = vpop.f32.mrf.mxu0
  %v2255 = vadd.f32 %v151, %v2254
  %v2256 = vpop.f32.mrf.mxu0
  %v2257 = vpop.f32.mrf.mxu0
  %v2258 = vadd.f32 %v154, %v2257
  %v2259 = vpop.f32.mrf.mxu0
  %2260 = vmatprep.mubr.bf16.mxu0 0
  %2261 = vmatmul.mubr.bf16.gmra.mxu0 %v2212
  %v2262 = vpop.f32.mrf.mxu0
  %v2263 = vadd.f32 %v159, %v2262
  %v2264 = vpop.f32.mrf.mxu0
  %v2265 = vpop.f32.mrf.mxu0
  %v2266 = vadd.f32 %v162, %v2265
  %v2267 = vpop.f32.mrf.mxu0
  %2268 = vmatprep.mubr.bf16.mxu0 0
  %2269 = vmatmul.mubr.bf16.gmra.mxu0 %v2215
  %v2270 = vpop.f32.mrf.mxu0
  %v2271 = vadd.f32 %v167, %v2270
  %v2272 = vpop.f32.mrf.mxu0
  %v2273 = vpop.f32.mrf.mxu0
  %v2274 = vadd.f32 %v170, %v2273
  %v2275 = vpop.f32.mrf.mxu0
  %2276 = vmatprep.mubr.bf16.mxu0 0
  %2277 = vmatmul.mubr.bf16.gmra.mxu0 %v2218
  %v2278 = vpop.f32.mrf.mxu0
  %v2279 = vadd.f32 %v175, %v2278
  %v2280 = vpop.f32.mrf.mxu0
  %v2281 = vpop.f32.mrf.mxu0
  %v2282 = vadd.f32 %v178, %v2281
  %v2283 = vpop.f32.mrf.mxu0
  %2284 = vdwg.mxu0
  %v2285 = vmul.f32 %v2255, %v324
  %v2286 = vmul.f32 %v2258, %v324
  %v2287 = vmul.f32 %v2263, %v324
  %v2288 = vmul.f32 %v2266, %v324
  %v2289 = vmul.f32 %v2271, %v324
  %v2290 = vmul.f32 %v2274, %v324
  %v2291 = vmul.f32 %v2279, %v324
  %v2292 = vmul.f32 %v2282, %v324
  %v2293 = vadd.f32 %v2285, %v338
  %v2294 = vadd.f32 %v2286, %v338
  %v2295 = vadd.f32 %v2287, %v338
  %v2296 = vadd.f32 %v2288, %v338
  %v2297 = vadd.f32 %v2289, %v338
  %v2298 = vadd.f32 %v2290, %v338
  %v2299 = vadd.f32 %v2291, %v338
  %v2300 = vadd.f32 %v2292, %v338
  %vm2301 = vcmp.ge.f32.partialorder %v2293, 0.0
  %vm2302 = vcmp.ge.f32.partialorder %v2294, 0.0
  %vm2303 = vcmp.ge.f32.partialorder %v2295, 0.0
  %vm2304 = vcmp.ge.f32.partialorder %v2296, 0.0
  %vm2305 = vcmp.ge.f32.partialorder %v2297, 0.0
  %vm2306 = vcmp.ge.f32.partialorder %v2298, 0.0
  %vm2307 = vcmp.ge.f32.partialorder %v2299, 0.0
  %vm2308 = vcmp.ge.f32.partialorder %v2300, 0.0
  %v2309 = vmul.f32 %v2293, 0.2
  %v2310 = vmul.f32 %v2294, 0.2
  %v2311 = vmul.f32 %v2295, 0.2
  %v2312 = vmul.f32 %v2296, 0.2
  %v2313 = vmul.f32 %v2297, 0.2
  %v2314 = vmul.f32 %v2298, 0.2
  %v2315 = vmul.f32 %v2299, 0.2
  %v2316 = vmul.f32 %v2300, 0.2
  %v2317 = vsel %vm2301, %v2293, %v2309
  %v2318 = vsel %vm2302, %v2294, %v2310
  %v2319 = vsel %vm2303, %v2295, %v2311
  %v2320 = vsel %vm2304, %v2296, %v2312
  %v2321 = vsel %vm2305, %v2297, %v2313
  %v2322 = vsel %vm2306, %v2298, %v2314
  %v2323 = vsel %vm2307, %v2299, %v2315
  %v2324 = vsel %vm2308, %v2300, %v2316
  %v2325 = vpack.c.bf16 %v2318, %v2317
  %v2326 = vpack.c.bf16 %v2320, %v2319
  %v2327 = vpack.c.bf16 %v2322, %v2321
  %v2328 = vpack.c.bf16 %v2324, %v2323
  %v2330 = vsel %vm103, %v2325, 0
  %v2333 = vsel %vm103, %v2326, 0
  %v2336 = vsel %vm103, %v2327, 0
  %v2339 = vsel %vm103, %v2328, 0
  %2341 = vmatprep.subr.bf16.mxu0 0
  %2342 = vmatpush1.bf16.msra.mxu0 0
  %2343 = vmatprep.subr.bf16.mxu0 0
  %2344 = vmatpush1.bf16.msra.mxu0 0
  %2345 = vmatprep.subr.bf16.mxu0 0
  %2346 = vmatpush1.bf16.msra.mxu0 0
  %2347 = vmatprep.subr.bf16.mxu0 0
  %2348 = vmatpush1.bf16.msra.mxu0 0
  %2349 = vmatprep.subr.bf16.mxu0 0
  %2350 = vmatpush1.bf16.msra.mxu0 %v395
  %2351 = vmatprep.subr.bf16.mxu0 0
  %2352 = vmatpush1.bf16.msra.mxu0 %v394
  %2353 = vmatprep.subr.bf16.mxu0 0
  %2354 = vmatpush1.bf16.msra.mxu0 %v393
  %2355 = vmatprep.subr.bf16.mxu0 0
  %2356 = vmatpush1.bf16.msra.mxu0 %v392
  %2357 = vmatprep.subr.bf16.mxu0 0
  %2358 = vmatpush2.bf16.msra.mxu0 0
  %2359 = vmatprep.subr.bf16.mxu0 0
  %2360 = vmatpush2.bf16.msra.mxu0 0
  %2361 = vmatprep.subr.bf16.mxu0 0
  %2362 = vmatpush2.bf16.msra.mxu0 0
  %2363 = vmatprep.subr.bf16.mxu0 0
  %2364 = vmatpush2.bf16.msra.mxu0 0
  %2365 = vmatprep.subr.bf16.mxu0 0
  %2366 = vmatpush2.bf16.msra.mxu0 0
  %2367 = vmatprep.subr.bf16.mxu0 0
  %2368 = vmatpush2.bf16.msra.mxu0 0
  %2369 = vmatprep.subr.bf16.mxu0 0
  %2370 = vmatpush2.bf16.msra.mxu0 0
  %2371 = vmatprep.subr.bf16.mxu0 0
  %2372 = vmatpush2.bf16.msra.mxu0 0
  %2373 = vmatprep.mubr.bf16.mxu0 0
  %2374 = vmatmul.mubr.bf16.gmra.mxu0 %v2330
  %v2375 = vpop.f32.mrf.mxu0
  %v2376 = vadd.f32 0.0, %v2375
  %v2377 = vpop.f32.mrf.mxu0
  %v2378 = vpop.f32.mrf.mxu0
  %v2379 = vadd.f32 0.0, %v2378
  %v2380 = vpop.f32.mrf.mxu0
  %2381 = vmatprep.mubr.bf16.mxu0 0
  %2382 = vmatmul.mubr.bf16.gmra.mxu0 %v2333
  %v2383 = vpop.f32.mrf.mxu0
  %v2384 = vadd.f32 0.0, %v2383
  %v2385 = vpop.f32.mrf.mxu0
  %v2386 = vpop.f32.mrf.mxu0
  %v2387 = vadd.f32 0.0, %v2386
  %v2388 = vpop.f32.mrf.mxu0
  %2389 = vmatprep.mubr.bf16.mxu0 0
  %2390 = vmatmul.mubr.bf16.gmra.mxu0 %v2336
  %v2391 = vpop.f32.mrf.mxu0
  %v2392 = vadd.f32 0.0, %v2391
  %v2393 = vpop.f32.mrf.mxu0
  %v2394 = vpop.f32.mrf.mxu0
  %v2395 = vadd.f32 0.0, %v2394
  %v2396 = vpop.f32.mrf.mxu0
  %2397 = vmatprep.mubr.bf16.mxu0 0
  %2398 = vmatmul.mubr.bf16.gmra.mxu0 %v2339
  %v2399 = vpop.f32.mrf.mxu0
  %v2400 = vadd.f32 0.0, %v2399
  %v2401 = vpop.f32.mrf.mxu0
  %v2402 = vpop.f32.mrf.mxu0
  %v2403 = vadd.f32 0.0, %v2402
  %v2404 = vpop.f32.mrf.mxu0
  %2405 = vdwg.mxu0
  %v2406 = vmul.f32 %v2376, %v481
  %v2407 = vmul.f32 %v2379, %v481
  %v2408 = vmul.f32 %v2384, %v481
  %v2409 = vmul.f32 %v2387, %v481
  %v2410 = vmul.f32 %v2392, %v481
  %v2411 = vmul.f32 %v2395, %v481
  %v2412 = vmul.f32 %v2400, %v481
  %v2413 = vmul.f32 %v2403, %v481
  %v2414 = vadd.f32 %v2406, %v495
  %v2415 = vadd.f32 %v2407, %v495
  %v2416 = vadd.f32 %v2408, %v495
  %v2417 = vadd.f32 %v2409, %v495
  %v2418 = vadd.f32 %v2410, %v495
  %v2419 = vadd.f32 %v2411, %v495
  %v2420 = vadd.f32 %v2412, %v495
  %v2421 = vadd.f32 %v2413, %v495
  %vm2422 = vcmp.ge.f32.partialorder %v2414, 0.0
  %vm2423 = vcmp.ge.f32.partialorder %v2415, 0.0
  %vm2424 = vcmp.ge.f32.partialorder %v2416, 0.0
  %vm2425 = vcmp.ge.f32.partialorder %v2417, 0.0
  %vm2426 = vcmp.ge.f32.partialorder %v2418, 0.0
  %vm2427 = vcmp.ge.f32.partialorder %v2419, 0.0
  %vm2428 = vcmp.ge.f32.partialorder %v2420, 0.0
  %vm2429 = vcmp.ge.f32.partialorder %v2421, 0.0
  %v2430 = vmul.f32 %v2414, 0.2
  %v2431 = vmul.f32 %v2415, 0.2
  %v2432 = vmul.f32 %v2416, 0.2
  %v2433 = vmul.f32 %v2417, 0.2
  %v2434 = vmul.f32 %v2418, 0.2
  %v2435 = vmul.f32 %v2419, 0.2
  %v2436 = vmul.f32 %v2420, 0.2
  %v2437 = vmul.f32 %v2421, 0.2
  %v2438 = vsel %vm2422, %v2414, %v2430
  %v2439 = vsel %vm2423, %v2415, %v2431
  %v2440 = vsel %vm2424, %v2416, %v2432
  %v2441 = vsel %vm2425, %v2417, %v2433
  %v2442 = vsel %vm2426, %v2418, %v2434
  %v2443 = vsel %vm2427, %v2419, %v2435
  %v2444 = vsel %vm2428, %v2420, %v2436
  %v2445 = vsel %vm2429, %v2421, %v2437
  %v2446 = vmax.f32 %v2171, %v2438
  %v2447 = vmax.f32 %v2172, %v2439
  %v2448 = vmax.f32 %v2173, %v2440
  %v2449 = vmax.f32 %v2174, %v2441
  %v2450 = vmax.f32 %v2175, %v2442
  %v2451 = vmax.f32 %v2176, %v2443
  %v2452 = vmax.f32 %v2177, %v2444
  %v2453 = vmax.f32 %v2178, %v2445
  %2454 = vst.msk [vmem:[%s9] sm:$0xff] %vm103, %v2446
  %2455 = vst.msk [vmem:[%s9 + $0x8] sm:$0xff] %vm103, %v2447
  %2456 = vst.msk [vmem:[%s9 + $0x10] sm:$0xff] %vm103, %v2448
  %2457 = vst.msk [vmem:[%s9 + $0x18] sm:$0xff] %vm103, %v2449
  %2458 = vst.msk [vmem:[%s9 + $0x20] sm:$0xff] %vm103, %v2450
  %2459 = vst.msk [vmem:[%s9 + $0x28] sm:$0xff] %vm103, %v2451
  %2460 = vst.msk [vmem:[%s9 + $0x30] sm:$0xff] %vm103, %v2452
  %2461 = vst.msk [vmem:[%s9 + $0x38] sm:$0xff] %vm103, %v2453
  // Predicated region
  $region38: #{dgcnn_semseg_forward.11} parent=0 // pred_check
    _
  $region39: #{dgcnn_semseg_forward.11} parent=0 // pred_check_branch
    %2463 = sbr.rel (0) target = $region41
  $region40: #{dgcnn_semseg_forward.11} parent=0 // pred_region
    _
  $region41: #{dgcnn_semseg_forward.11} parent=0 // pred_fallthru
    _
  // Predicated region
  $region42: #{dgcnn_semseg_forward.11} parent=0 // pred_check
    _
  $region43: #{dgcnn_semseg_forward.11} parent=0 // pred_check_branch
    %2465 = sbr.rel (0) target = $region45
  $region44: #{dgcnn_semseg_forward.11} parent=0 // pred_region
    _
  $region45: #{dgcnn_semseg_forward.11} parent=0 // pred_fallthru
    _

// kernel: dgcnn_semseg_forward.14
$region0: #{dgcnn_semseg_forward.14}
  #allocation0 [shape = 'u32[]', space=smem, size = 0x4, offset = 0x4, fixed_abs, tag = 'smem constant byte address 0x4 - core index']
  #allocation1 [shape = 'u32[144,128]{1,0:T(1,128)}', space=vmem, size = 0x12000, scoped, tag = 'internal scratch']
  %s0 = inlined_call_operand.vmem [shape: bf16[2,32,192], index: 0, kind: input, shape index: {}]
  %s1 = inlined_call_operand.vmem [shape: bf16[192,64], index: 1, kind: input, shape index: {}]
  %s2 = inlined_call_operand.vmem [shape: f32[1,64], index: 2, kind: input, shape index: {}]
  %s3 = inlined_call_operand.vmem [shape: f32[1,64], index: 3, kind: input, shape index: {}]
  %s4 = inlined_call_operand.vmem [shape: f32[2,1,64], index: 4, kind: output, shape index: {}]
  %s5 = sld [smem:[#allocation0]]
  $region53: #{dgcnn_semseg_forward.14} parent=0
    _
  %s7 = ssub.s32 1, %s5
  %s8 = scalar_select 0, %s7, %s5
  loop: start=0, step=1, limit=4
  $region2: #{dgcnn_semseg_forward.14} parent=0 // loop_pre_header
    _
  $region3: #{dgcnn_semseg_forward.14} parent=0 // loop_header
    %s10 = sphi 0, %s14
    %p11 = scmp.ge.s32.totalorder %s10, 4
    %s17 = sphi 0, %s29
    %s18 = sphi 0, %s25
    %s19 = sphi 0, %s17
    %s20 = sphi 0, %s18
    %s21 = sphi 0, %s19
    %s22 = sphi 0, %s20
    %s34 = sphi 0, %s36
    %s37 = sphi 0, %s34
    %s38 = sphi 0, %s37
    %s54 = sphi 0, %s38
    %s58 = sphi 0, %s58
    %s60 = sphi 0, %s58
    %s61 = sphi 0, %s60
    %s75 = sphi 0, %s61
    %s79 = sphi 0, %s79
    %s81 = sphi 0, %s79
    %s82 = sphi 0, %s81
    %s96 = sphi 0, %s82
    %s100 = sphi 0, %s100
    %s102 = sphi 0, %s100
    %s103 = sphi 0, %s102
    %s117 = sphi 0, %s103
    %s123 = sphi 0, %s125
    %s126 = sphi 0, %s123
    %s127 = sphi 0, %s126
    %s143 = sphi 0, %s127
  $region4: #{dgcnn_semseg_forward.14} parent=0 // loop_header_branch
    %13 = sbr.rel (%p11) target = $region8
  $region5: #{dgcnn_semseg_forward.14} parent=0 // loop_body
    %s15 = ssub.s32 %s10, 1
    %s16 = ssub.s32 %s10, 2
    %s23 = sadd.s32 1, %s18
    %p24 = scmp.ge.s32.totalorder %s23, 1
    %s25 = scalar_select %p24, 0, %s23
    %s26 = sadd.s32 1, %s17
    %s27 = scalar_select %p24, %s26, %s17
    %p28 = scmp.ge.s32.totalorder %s27, 2
    %s29 = scalar_select %p28, 0, %s27
    %s30 = ssub.s32 %s17, %s29
    %s31 = ssub.s32 %s18, %s25
    %s32 = sor.u32 %s30, %s31
    %p33 = scmp.eq.s32.totalorder %s32, 0
    %s35 = sadd.s32 %s34, 1
    %s36 = scalar_select %p33, %s34, %s35
    %p39 = pneg %p33
    %p40 = scmp.eq.s32.totalorder %s10, 1
    %p41 = por %p39, %p40
    %p42 = scmp.ne.s32.totalorder %s34, %s37
    %p43 = scmp.eq.s32.totalorder %s10, 0
    %p44 = por %p42, %p43
    %p45 = scmp.ne.s32.totalorder %s34, %s37
    %p46 = scmp.eq.s32.totalorder %s15, 1
    %p47 = por %p45, %p46
    %p48 = scmp.ne.s32.totalorder %s37, %s38
    %p49 = scmp.eq.s32.totalorder %s15, 0
    %p50 = por %p48, %p49
    %p51 = scmp.ne.s32.totalorder %s37, %s38
    %p52 = scmp.eq.s32.totalorder %s16, 1
    %p53 = por %p51, %p52
    %p55 = scmp.ne.s32.totalorder %s38, %s54
    %p56 = scmp.eq.s32.totalorder %s16, 0
    %p57 = por %p55, %p56
    %s59 = sadd.s32 %s58, 1
    %p62 = scmp.eq.s32.totalorder %s10, 1
    %p63 = scmp.ne.s32.totalorder %s58, %s60
    %p64 = scmp.eq.s32.totalorder %s10, 0
    %p65 = por %p63, %p64
    %p66 = scmp.ne.s32.totalorder %s58, %s60
    %p67 = scmp.eq.s32.totalorder %s15, 1
    %p68 = por %p66, %p67
    %p69 = scmp.ne.s32.totalorder %s60, %s61
    %p70 = scmp.eq.s32.totalorder %s15, 0
    %p71 = por %p69, %p70
    %p72 = scmp.ne.s32.totalorder %s60, %s61
    %p73 = scmp.eq.s32.totalorder %s16, 1
    %p74 = por %p72, %p73
    %p76 = scmp.ne.s32.totalorder %s61, %s75
    %p77 = scmp.eq.s32.totalorder %s16, 0
    %p78 = por %p76, %p77
    %s80 = sadd.s32 %s79, 1
    %p83 = scmp.eq.s32.totalorder %s10, 1
    %p84 = scmp.ne.s32.totalorder %s79, %s81
    %p85 = scmp.eq.s32.totalorder %s10, 0
    %p86 = por %p84, %p85
    %p87 = scmp.ne.s32.totalorder %s79, %s81
    %p88 = scmp.eq.s32.totalorder %s15, 1
    %p89 = por %p87, %p88
    %p90 = scmp.ne.s32.totalorder %s81, %s82
    %p91 = scmp.eq.s32.totalorder %s15, 0
    %p92 = por %p90, %p91
    %p93 = scmp.ne.s32.totalorder %s81, %s82
    %p94 = scmp.eq.s32.totalorder %s16, 1
    %p95 = por %p93, %p94
    %p97 = scmp.ne.s32.totalorder %s82, %s96
    %p98 = scmp.eq.s32.totalorder %s16, 0
    %p99 = por %p97, %p98
    %s101 = sadd.s32 %s100, 1
    %p104 = scmp.eq.s32.totalorder %s10, 1
    %p105 = scmp.ne.s32.totalorder %s100, %s102
    %p106 = scmp.eq.s32.totalorder %s10, 0
    %p107 = por %p105, %p106
    %p108 = scmp.ne.s32.totalorder %s100, %s102
    %p109 = scmp.eq.s32.totalorder %s15, 1
    %p110 = por %p108, %p109
    %p111 = scmp.ne.s32.totalorder %s102, %s103
    %p112 = scmp.eq.s32.totalorder %s15, 0
    %p113 = por %p111, %p112
    %p114 = scmp.ne.s32.totalorder %s102, %s103
    %p115 = scmp.eq.s32.totalorder %s16, 1
    %p116 = por %p114, %p115
    %p118 = scmp.ne.s32.totalorder %s103, %s117
    %p119 = scmp.eq.s32.totalorder %s16, 0
    %p120 = por %p118, %p119
    %s121 = ssub.s32 %s17, %s29
    %p122 = scmp.eq.s32.totalorder %s121, 0
    %s124 = sadd.s32 %s123, 1
    %s125 = scalar_select %p122, %s123, %s124
    %p128 = pneg %p122
    %p129 = scmp.eq.s32.totalorder %s10, 1
    %p130 = por %p128, %p129
    %p131 = scmp.ne.s32.totalorder %s123, %s126
    %p132 = scmp.eq.s32.totalorder %s10, 0
    %p133 = por %p131, %p132
    %p134 = scmp.ne.s32.totalorder %s123, %s126
    %p135 = scmp.eq.s32.totalorder %s15, 1
    %p136 = por %p134, %p135
    %p137 = scmp.ne.s32.totalorder %s126, %s127
    %p138 = scmp.eq.s32.totalorder %s15, 0
    %p139 = por %p137, %p138
    %p140 = scmp.ne.s32.totalorder %s126, %s127
    %p141 = scmp.eq.s32.totalorder %s16, 1
    %p142 = por %p140, %p141
    %p144 = scmp.ne.s32.totalorder %s127, %s143
    %p145 = scmp.eq.s32.totalorder %s16, 0
    %p146 = por %p144, %p145
    %p147 = scmp.le.s32.totalorder 1, %s10
    %p148 = scmp.lt.s32.totalorder %s10, 3
    %p149 = pnand %p147, %p148
    %p150 = pneg %p149
    // Predicated region
    $region9: #{dgcnn_semseg_forward.14} parent=5 // pred_check
      _
    $region10: #{dgcnn_semseg_forward.14} parent=5 // pred_check_branch
      %152 = sbr.rel (%p149) target = $region12
    $region11: #{dgcnn_semseg_forward.14} parent=5 // pred_region
      %s153 = ssub.s32 %s10, 1
      // Predicated region
      $region13: #{dgcnn_semseg_forward.14} parent=11 // pred_check
        %p154 = pneg %p71
      $region14: #{dgcnn_semseg_forward.14} parent=11 // pred_check_branch
        %156 = sbr.rel (%p154) target = $region16
      $region15: #{dgcnn_semseg_forward.14} parent=11 // pred_region
        _
      $region16: #{dgcnn_semseg_forward.14} parent=11 // pred_fallthru
        _
      // Predicated region
      $region17: #{dgcnn_semseg_forward.14} parent=11 // pred_check
        %p157 = pneg %p92
      $region18: #{dgcnn_semseg_forward.14} parent=11 // pred_check_branch
        %159 = sbr.rel (%p157) target = $region20
      $region19: #{dgcnn_semseg_forward.14} parent=11 // pred_region
        _
      $region20: #{dgcnn_semseg_forward.14} parent=11 // pred_fallthru
        _
      // Predicated region
      $region21: #{dgcnn_semseg_forward.14} parent=11 // pred_check
        %p160 = pneg %p113
      $region22: #{dgcnn_semseg_forward.14} parent=11 // pred_check_branch
        %162 = sbr.rel (%p160) target = $region24
      $region23: #{dgcnn_semseg_forward.14} parent=11 // pred_region
        _
      $region24: #{dgcnn_semseg_forward.14} parent=11 // pred_fallthru
        _
    $region12: #{dgcnn_semseg_forward.14} parent=5 // pred_fallthru
      _
    %p163 = scmp.lt.s32.totalorder %s10, 2
    // Predicated region
    $region25: #{dgcnn_semseg_forward.14} parent=5 // pred_check
      %p164 = pneg %p163
    $region26: #{dgcnn_semseg_forward.14} parent=5 // pred_check_branch
      %166 = sbr.rel (%p164) target = $region28
    $region27: #{dgcnn_semseg_forward.14} parent=5 // pred_region
      // Predicated region
      $region29: #{dgcnn_semseg_forward.14} parent=27 // pred_check
        %p167 = pneg %p44
      $region30: #{dgcnn_semseg_forward.14} parent=27 // pred_check_branch
        %169 = sbr.rel (%p167) target = $region32
      $region31: #{dgcnn_semseg_forward.14} parent=27 // pred_region
        %s170 = smul.u32 4, %s18
        %p171 = scmp.lt.s32.totalorder %s17, 1
        %s172 = scalar_select %p171, %s17, 1
        %p173 = scmp.lt.s32.totalorder %s170, 3
        %s174 = scalar_select %p173, %s170, 3
        %s175 = smul.addr %s174, 2
        %s176 = smul.addr %s172, 8
        %s177 = sadd.s32 %s175, %s176
        %s178 = smul.addr %s177, 4
        %s179 = scalar_lea.vmem %s0, %s178
        %s180 = smul.u32 4, %s18
      $region32: #{dgcnn_semseg_forward.14} parent=27 // pred_fallthru
        _
    $region28: #{dgcnn_semseg_forward.14} parent=5 // pred_fallthru
      _
    %p181 = scmp.le.s32.totalorder 1, %s10
    %p182 = scmp.lt.s32.totalorder %s10, 3
    %p183 = pnand %p181, %p182
    %p184 = pneg %p183
    // Predicated region
    $region33: #{dgcnn_semseg_forward.14} parent=5 // pred_check
      _
    $region34: #{dgcnn_semseg_forward.14} parent=5 // pred_check_branch
      %186 = sbr.rel (%p183) target = $region36
    $region35: #{dgcnn_semseg_forward.14} parent=5 // pred_region
      %s187 = ssub.s32 %s10, 1
      %s188 = smul.u32 4, %s20
      %p189 = scmp.lt.s32.totalorder %s19, 1
      %s190 = scalar_select %p189, %s19, 1
      %p191 = scmp.lt.s32.totalorder %s188, 3
      %s192 = scalar_select %p191, %s188, 3
      %s193 = smul.addr %s192, 2
      %s194 = smul.addr %s190, 8
      %s195 = sadd.s32 %s193, %s194
      %s196 = smul.addr %s195, 4
      %s197 = scalar_lea.vmem %s0, %s196
      %p198 = pneg %p50
      %p199 = pneg %p47
      %p200 = pneg %p71
      %p201 = pneg %p68
      %p202 = pneg %p92
      %p203 = pneg %p89
      %p204 = pneg %p113
      %p205 = pneg %p110
      %p206 = pneg %p139
      %p207 = pneg %p136
      %p208 = scmp.lt.s32.totalorder %s19, 1
      %s209 = scalar_select %p208, %s19, 1
      %s210 = scalar_lea.vmem %s4, %s209
      %s211 = smul.u32 4, %s20
      %p212 = scmp.lt.s32.totalorder %s19, 1
      %s213 = scalar_select %p212, %s19, 1
      %p214 = scmp.lt.s32.totalorder %s211, 3
      %s215 = scalar_select %p214, %s211, 3
      %s216 = smul.addr %s215, 2
      %s217 = smul.addr %s213, 8
      %s218 = sadd.s32 %s216, %s217
      %s219 = smul.addr %s218, 4
      %s220 = scalar_lea.vmem %s0, %s219
      %s221 = smul.u32 4, %s20
      %p222 = scmp.lt.s32.totalorder %s19, 1
      %s223 = scalar_select %p222, %s19, 1
      %s224 = scalar_lea.vmem %s4, %s223
      %p226 = scmp.eq.s32.totalorder %s20, 0
      // Predicated region
      $region37: #{dgcnn_semseg_forward.14} parent=35 // pred_check
        %p227 = pneg %p226
      $region38: #{dgcnn_semseg_forward.14} parent=35 // pred_check_branch
        %229 = sbr.rel (%p227) target = $region40
      $region39: #{dgcnn_semseg_forward.14} parent=35 // pred_region
        %vm230 = vcmask 516096
        %231 = vst.msk [vmem:[%s224] sm:$0x1] %vm230, -inf
      $region40: #{dgcnn_semseg_forward.14} parent=35 // pred_fallthru
        _
      %v232 = vld [vmem:[%s220] sm:$0xff]
      %v233 = vld [vmem:[%s220 + $0x8] sm:$0xff]
      %v234 = vld [vmem:[%s220 + $0x10] sm:$0xff]
      %v235 = vld [vmem:[%s220 + $0x18] sm:$0xff]
      %v236 = vld [vmem:[%s1] sm:$0xf]
      %v237 = vld [vmem:[%s1 + $0x4] sm:$0xf]
      %v238 = vld [vmem:[%s1 + $0x8] sm:$0xf]
      %v239 = vld [vmem:[%s1 + $0xc] sm:$0xf]
      %v240 = vld [vmem:[%s1 + $0x10] sm:$0xf]
      %v241 = vld [vmem:[%s1 + $0x14] sm:$0xf]
      %v242 = vld [vmem:[%s1 + $0x18] sm:$0xf]
      %v243 = vld [vmem:[%s1 + $0x1c] sm:$0xf]
      %v244 = vld [vmem:[%s1 + $0x20] sm:$0xf]
      %v245 = vld [vmem:[%s1 + $0x24] sm:$0xf]
      %v246 = vld [vmem:[%s1 + $0x28] sm:$0xf]
      %v247 = vld [vmem:[%s1 + $0x2c] sm:$0xf]
      %v248 = vld [vmem:[%s1 + $0x30] sm:$0xf]
      %v249 = vld [vmem:[%s1 + $0x34] sm:$0xf]
      %v250 = vld [vmem:[%s1 + $0x38] sm:$0xf]
      %v251 = vld [vmem:[%s1 + $0x3c] sm:$0xf]
      %v252 = vld [vmem:[%s1 + $0x40] sm:$0xf]
      %v253 = vld [vmem:[%s1 + $0x44] sm:$0xf]
      %v254 = vld [vmem:[%s1 + $0x48] sm:$0xf]
      %v255 = vld [vmem:[%s1 + $0x4c] sm:$0xf]
      %v256 = vld [vmem:[%s1 + $0x50] sm:$0xf]
      %v257 = vld [vmem:[%s1 + $0x54] sm:$0xf]
      %v258 = vld [vmem:[%s1 + $0x58] sm:$0xf]
      %v259 = vld [vmem:[%s1 + $0x5c] sm:$0xf]
      %v264 = vunpack.c.l.b16 %v232
      %v265 = vunpack.c.h.b16 %v232
      %v266 = vunpack.c.l.b16 %v233
      %v267 = vunpack.c.h.b16 %v233
      %v268 = vunpack.c.l.b16 %v234
      %v269 = vunpack.c.h.b16 %v234
      %v270 = vunpack.c.l.b16 %v235
      %v271 = vunpack.c.h.b16 %v235
      %v272 = vpack.c.b16 %v266, %v264
      %v273 = vpack.c.b16 %v267, %v265
      %v274 = vpack.c.b16 %v270, %v268
      %v275 = vpack.c.b16 %v271, %v269
      %v302 = vunpack.c.l.b16 %v236
      %v303 = vunpack.c.l.b16 %v237
      %v304 = vunpack.c.l.b16 %v238
      %v305 = vunpack.c.l.b16 %v239
      %v306 = vunpack.c.l.b16 %v240
      %v307 = vunpack.c.l.b16 %v241
      %v308 = vunpack.c.l.b16 %v242
      %v309 = vunpack.c.l.b16 %v243
      %v310 = vunpack.c.l.b16 %v244
      %v311 = vunpack.c.l.b16 %v245
      %v312 = vunpack.c.l.b16 %v246
      %v313 = vunpack.c.l.b16 %v247
      %v314 = vunpack.c.l.b16 %v248
      %v315 = vunpack.c.l.b16 %v249
      %v316 = vunpack.c.l.b16 %v250
      %v317 = vunpack.c.l.b16 %v251
      %v318 = vunpack.c.l.b16 %v252
      %v319 = vunpack.c.l.b16 %v253
      %v320 = vunpack.c.l.b16 %v254
      %v321 = vunpack.c.l.b16 %v255
      %v322 = vunpack.c.l.b16 %v256
      %v323 = vunpack.c.l.b16 %v257
      %v324 = vunpack.c.l.b16 %v258
      %v325 = vunpack.c.l.b16 %v259
      %v326 = vpack.c.b16 %v303, %v302
      %v327 = vpack.c.b16 %v305, %v304
      %v328 = vpack.c.b16 %v307, %v306
      %v329 = vpack.c.b16 %v309, %v308
      %v330 = vpack.c.b16 %v311, %v310
      %v331 = vpack.c.b16 %v313, %v312
      %v332 = vpack.c.b16 %v315, %v314
      %v333 = vpack.c.b16 %v317, %v316
      %v334 = vpack.c.b16 %v319, %v318
      %v335 = vpack.c.b16 %v321, %v320
      %v336 = vpack.c.b16 %v323, %v322
      %v337 = vpack.c.b16 %v325, %v324
      %vm350 = vcmask 523264
      %v352 = vsel %vm350, %v273, 0
      %v355 = vsel %vm350, %v275, 0
      %357 = vmatprep.subr.bf16.mxu0 0
      %358 = vmatpush1.bf16.msra.mxu0 %v333
      %359 = vmatprep.subr.bf16.mxu0 0
      %360 = vmatpush1.bf16.msra.mxu0 %v332
      %361 = vmatprep.subr.bf16.mxu0 0
      %362 = vmatpush1.bf16.msra.mxu0 %v331
      %363 = vmatprep.subr.bf16.mxu0 0
      %364 = vmatpush1.bf16.msra.mxu0 %v330
      %365 = vmatprep.subr.bf16.mxu0 0
      %366 = vmatpush1.bf16.msra.mxu0 %v329
      %367 = vmatprep.subr.bf16.mxu0 0
      %368 = vmatpush1.bf16.msra.mxu0 %v328
      %369 = vmatprep.subr.bf16.mxu0 0
      %370 = vmatpush1.bf16.msra.mxu0 %v327
      %371 = vmatprep.subr.bf16.mxu0 0
      %372 = vmatpush1.bf16.msra.mxu0 %v326
      %373 = vmatprep.subr.bf16.mxu0 0
      %374 = vmatpush2.bf16.msra.mxu0 0
      %375 = vmatprep.subr.bf16.mxu0 0
      %376 = vmatpush2.bf16.msra.mxu0 0
      %377 = vmatprep.subr.bf16.mxu0 0
      %378 = vmatpush2.bf16.msra.mxu0 0
      %379 = vmatprep.subr.bf16.mxu0 0
      %380 = vmatpush2.bf16.msra.mxu0 0
      %381 = vmatprep.subr.bf16.mxu0 0
      %382 = vmatpush2.bf16.msra.mxu0 %v337
      %383 = vmatprep.subr.bf16.mxu0 0
      %384 = vmatpush2.bf16.msra.mxu0 %v336
      %385 = vmatprep.subr.bf16.mxu0 0
      %386 = vmatpush2.bf16.msra.mxu0 %v335
      %387 = vmatprep.subr.bf16.mxu0 0
      %388 = vmatpush2.bf16.msra.mxu0 %v334
      %389 = vmatprep.mubr.bf16.mxu0 %v352
      %390 = vmatmul.mubr.bf16.gmra.mxu0 %v272
      %v391 = vpop.f32.mrf.mxu0
      %v392 = vadd.f32 0.0, %v391
      %v393 = vpop.f32.mrf.mxu0
      %v394 = vpop.f32.mrf.mxu0
      %v395 = vadd.f32 0.0, %v394
      %v396 = vpop.f32.mrf.mxu0
      %397 = vmatprep.mubr.bf16.mxu0 %v355
      %398 = vmatmul.mubr.bf16.gmra.mxu0 %v274
      %v399 = vpop.f32.mrf.mxu0
      %v400 = vadd.f32 0.0, %v399
      %v401 = vpop.f32.mrf.mxu0
      %v402 = vpop.f32.mrf.mxu0
      %v403 = vadd.f32 0.0, %v402
      %v404 = vpop.f32.mrf.mxu0
      %405 = vdwg.mxu0
      %v406 = vld [vmem:[%s2] sm:$0x1]
      %v408 = vlaneseq
      %v409 = vshrl.u32 %v408, 7
      %v410 = vsub.s32 0, %v409
      %v411 = vrot.slane %v406, %v410
      %v413 = vmul.f32 %v392, %v411
      %v414 = vmul.f32 %v395, %v411
      %v415 = vmul.f32 %v400, %v411
      %v416 = vmul.f32 %v403, %v411
      %v417 = vld [vmem:[%s3] sm:$0x1]
      %v419 = vlaneseq
      %v420 = vshrl.u32 %v419, 7
      %v421 = vsub.s32 0, %v420
      %v422 = vrot.slane %v417, %v421
      %v424 = vadd.f32 %v413, %v422
      %v425 = vadd.f32 %v414, %v422
      %v426 = vadd.f32 %v415, %v422
      %v427 = vadd.f32 %v416, %v422
      %vm428 = vcmp.ge.f32.partialorder %v424, 0.0
      %vm429 = vcmp.ge.f32.partialorder %v425, 0.0
      %vm430 = vcmp.ge.f32.partialorder %v426, 0.0
      %vm431 = vcmp.ge.f32.partialorder %v427, 0.0
      %v432 = vmul.f32 %v424, 0.2
      %v433 = vmul.f32 %v425, 0.2
      %v434 = vmul.f32 %v426, 0.2
      %v435 = vmul.f32 %v427, 0.2
      %v436 = vsel %vm428, %v424, %v432
      %v437 = vsel %vm429, %v425, %v433
      %v438 = vsel %vm430, %v426, %v434
      %v439 = vsel %vm431, %v427, %v435
      %v440 = vld [vmem:[%s224] sm:$0x1]
      %v441 = vsel %vm350, %v436, -inf
      %v442 = vsel %vm350, %v437, -inf
      %v443 = vsel %vm350, %v438, -inf
      %v444 = vsel %vm350, %v439, -inf
      %v445 = vmax.f32 %v441, %v442
      %v446 = vmax.f32 %v443, %v444
      %v447 = vmax.f32 %v445, %v446
      %v448 = vrot.slane %v447, 4
      %v449 = vmax.f32 %v447, %v448
      %v450 = vrot.slane %v449, 2
      %v451 = vmax.f32 %v449, %v450
      %v452 = vrot.slane %v451, 1
      %v453 = vmax.f32 %v451, %v452
      %v454 = vmax.f32 %v440, %v453
      %vm455 = vcmask 516096
      %456 = vst.msk [vmem:[%s224] sm:$0x1] %vm455, %v454
      %p457 = scmp.lt.s32.totalorder %s19, 1
      %s458 = scalar_select %p457, %s19, 1
      %s459 = scalar_lea.vmem %s4, %s458
      // Predicated region
      $region41: #{dgcnn_semseg_forward.14} parent=35 // pred_check
        %p460 = pneg %p136
      $region42: #{dgcnn_semseg_forward.14} parent=35 // pred_check_branch
        %462 = sbr.rel (%p460) target = $region44
      $region43: #{dgcnn_semseg_forward.14} parent=35 // pred_region
        _
      $region44: #{dgcnn_semseg_forward.14} parent=35 // pred_fallthru
        _
    $region36: #{dgcnn_semseg_forward.14} parent=5 // pred_fallthru
      _
    %p463 = scmp.le.s32.totalorder 2, %s10
    // Predicated region
    $region45: #{dgcnn_semseg_forward.14} parent=5 // pred_check
      %p464 = pneg %p463
    $region46: #{dgcnn_semseg_forward.14} parent=5 // pred_check_branch
      %466 = sbr.rel (%p464) target = $region48
    $region47: #{dgcnn_semseg_forward.14} parent=5 // pred_region
      %s467 = ssub.s32 %s10, 2
      // Predicated region
      $region49: #{dgcnn_semseg_forward.14} parent=47 // pred_check
        %p468 = pneg %p142
      $region50: #{dgcnn_semseg_forward.14} parent=47 // pred_check_branch
        %470 = sbr.rel (%p468) target = $region52
      $region51: #{dgcnn_semseg_forward.14} parent=47 // pred_region
        %p471 = scmp.lt.s32.totalorder %s21, 1
        %s472 = scalar_select %p471, %s21, 1
        %s473 = scalar_lea.vmem %s4, %s472
      $region52: #{dgcnn_semseg_forward.14} parent=47 // pred_fallthru
        _
    $region48: #{dgcnn_semseg_forward.14} parent=5 // pred_fallthru
      _
  $region6: #{dgcnn_semseg_forward.14} parent=0 // loop_footer
    %s14 = sadd.s32 1, %s10
  $region7: #{dgcnn_semseg_forward.14} parent=0 // loop_footer_branch
    %9 = sbr.rel target = $region3
  $region8: #{dgcnn_semseg_forward.14} parent=0 // loop_exit
    _

// kernel: dgcnn_semseg_forward.13
$region0: #{dgcnn_semseg_forward.13}
  #allocation0 [shape = 'u32[]', space=smem, size = 0x4, offset = 0x4, fixed_abs, tag = 'smem constant byte address 0x4 - core index']
  #allocation1 [shape = 'u32[144,128]{1,0:T(1,128)}', space=vmem, size = 0x12000, scoped, tag = 'internal scratch']
  %s0 = inlined_call_operand.vmem [shape: bf16[8,64,64], index: 0, kind: input, shape index: {}]
  %s1 = inlined_call_operand.vmem [shape: bf16[64,64], index: 1, kind: input, shape index: {}]
  %s2 = inlined_call_operand.vmem [shape: bf16[64,64], index: 2, kind: input, shape index: {}]
  %s3 = inlined_call_operand.vmem [shape: bf16[64,64], index: 3, kind: input, shape index: {}]
  %s4 = inlined_call_operand.vmem [shape: f32[1,64], index: 4, kind: input, shape index: {}]
  %s5 = inlined_call_operand.vmem [shape: f32[1,64], index: 5, kind: input, shape index: {}]
  %s6 = inlined_call_operand.vmem [shape: f32[64,64], index: 6, kind: output, shape index: {}]
  %s7 = sld [smem:[#allocation0]]
  $region34: #{dgcnn_semseg_forward.13} parent=0
    _
  %s9 = ssub.s32 1, %s7
  %s10 = scalar_select 0, %s9, %s7
  // Predicated region
  $region2: #{dgcnn_semseg_forward.13} parent=0 // pred_check
    _
  $region3: #{dgcnn_semseg_forward.13} parent=0 // pred_check_branch
    %12 = sbr.rel (0) target = $region5
  $region4: #{dgcnn_semseg_forward.13} parent=0 // pred_region
    _
  $region5: #{dgcnn_semseg_forward.13} parent=0 // pred_fallthru
    _
  // Predicated region
  $region6: #{dgcnn_semseg_forward.13} parent=0 // pred_check
    _
  $region7: #{dgcnn_semseg_forward.13} parent=0 // pred_check_branch
    %14 = sbr.rel (0) target = $region9
  $region8: #{dgcnn_semseg_forward.13} parent=0 // pred_region
    _
  $region9: #{dgcnn_semseg_forward.13} parent=0 // pred_fallthru
    _
  // Predicated region
  $region10: #{dgcnn_semseg_forward.13} parent=0 // pred_check
    _
  $region11: #{dgcnn_semseg_forward.13} parent=0 // pred_check_branch
    %16 = sbr.rel (0) target = $region13
  $region12: #{dgcnn_semseg_forward.13} parent=0 // pred_region
    _
  $region13: #{dgcnn_semseg_forward.13} parent=0 // pred_fallthru
    _
  // Predicated region
  $region14: #{dgcnn_semseg_forward.13} parent=0 // pred_check
    _
  $region15: #{dgcnn_semseg_forward.13} parent=0 // pred_check_branch
    %18 = sbr.rel (0) target = $region17
  $region16: #{dgcnn_semseg_forward.13} parent=0 // pred_region
    _
  $region17: #{dgcnn_semseg_forward.13} parent=0 // pred_fallthru
    _
  // Predicated region
  $region18: #{dgcnn_semseg_forward.13} parent=0 // pred_check
    _
  $region19: #{dgcnn_semseg_forward.13} parent=0 // pred_check_branch
    %20 = sbr.rel (0) target = $region21
  $region20: #{dgcnn_semseg_forward.13} parent=0 // pred_region
    _
  $region21: #{dgcnn_semseg_forward.13} parent=0 // pred_fallthru
    _
  // Predicated region
  $region22: #{dgcnn_semseg_forward.13} parent=0 // pred_check
    _
  $region23: #{dgcnn_semseg_forward.13} parent=0 // pred_check_branch
    %22 = sbr.rel (0) target = $region25
  $region24: #{dgcnn_semseg_forward.13} parent=0 // pred_region
    _
  $region25: #{dgcnn_semseg_forward.13} parent=0 // pred_fallthru
    _
  %v24 = vld [vmem:[%s2] sm:$0xf]
  %v25 = vld [vmem:[%s2 + $0x4] sm:$0xf]
  %v26 = vld [vmem:[%s2 + $0x8] sm:$0xf]
  %v27 = vld [vmem:[%s2 + $0xc] sm:$0xf]
  %v28 = vld [vmem:[%s2 + $0x10] sm:$0xf]
  %v29 = vld [vmem:[%s2 + $0x14] sm:$0xf]
  %v30 = vld [vmem:[%s2 + $0x18] sm:$0xf]
  %v31 = vld [vmem:[%s2 + $0x1c] sm:$0xf]
  %v32 = vld [vmem:[%s4] sm:$0x1]
  %v33 = vld [vmem:[%s5] sm:$0x1]
  %v34 = vld [vmem:[%s1] sm:$0xf]
  %v35 = vld [vmem:[%s1 + $0x4] sm:$0xf]
  %v36 = vld [vmem:[%s1 + $0x8] sm:$0xf]
  %v37 = vld [vmem:[%s1 + $0xc] sm:$0xf]
  %v38 = vld [vmem:[%s1 + $0x10] sm:$0xf]
  %v39 = vld [vmem:[%s1 + $0x14] sm:$0xf]
  %v40 = vld [vmem:[%s1 + $0x18] sm:$0xf]
  %v41 = vld [vmem:[%s1 + $0x1c] sm:$0xf]
  %v42 = vld [vmem:[%s3] sm:$0xf]
  %v43 = vld [vmem:[%s3 + $0x4] sm:$0xf]
  %v44 = vld [vmem:[%s3 + $0x8] sm:$0xf]
  %v45 = vld [vmem:[%s3 + $0xc] sm:$0xf]
  %v46 = vld [vmem:[%s3 + $0x10] sm:$0xf]
  %v47 = vld [vmem:[%s3 + $0x14] sm:$0xf]
  %v48 = vld [vmem:[%s3 + $0x18] sm:$0xf]
  %v49 = vld [vmem:[%s3 + $0x1c] sm:$0xf]
  %v58 = vunpack.c.l.b16 %v34
  %v59 = vunpack.c.l.b16 %v35
  %v60 = vunpack.c.l.b16 %v36
  %v61 = vunpack.c.l.b16 %v37
  %v62 = vunpack.c.l.b16 %v38
  %v63 = vunpack.c.l.b16 %v39
  %v64 = vunpack.c.l.b16 %v40
  %v65 = vunpack.c.l.b16 %v41
  %v66 = vpack.c.b16 %v59, %v58
  %v67 = vpack.c.b16 %v61, %v60
  %v68 = vpack.c.b16 %v63, %v62
  %v69 = vpack.c.b16 %v65, %v64
  %v78 = vunpack.c.l.b16 %v42
  %v79 = vunpack.c.l.b16 %v43
  %v80 = vunpack.c.l.b16 %v44
  %v81 = vunpack.c.l.b16 %v45
  %v82 = vunpack.c.l.b16 %v46
  %v83 = vunpack.c.l.b16 %v47
  %v84 = vunpack.c.l.b16 %v48
  %v85 = vunpack.c.l.b16 %v49
  %v86 = vpack.c.b16 %v79, %v78
  %v87 = vpack.c.b16 %v81, %v80
  %v88 = vpack.c.b16 %v83, %v82
  %v89 = vpack.c.b16 %v85, %v84
  %vm94 = vcmask 523264
  %v96 = vsel %vm94, %v66, 0
  %v99 = vsel %vm94, %v67, 0
  %v102 = vsel %vm94, %v68, 0
  %v105 = vsel %vm94, %v69, 0
  %107 = vmatprep.subr.bf16.mxu0 0
  %108 = vmatpush1.bf16.msra.mxu0 0
  %109 = vmatprep.subr.bf16.mxu0 0
  %110 = vmatpush1.bf16.msra.mxu0 0
  %111 = vmatprep.subr.bf16.mxu0 0
  %112 = vmatpush1.bf16.msra.mxu0 0
  %113 = vmatprep.subr.bf16.mxu0 0
  %114 = vmatpush1.bf16.msra.mxu0 0
  %115 = vmatprep.subr.bf16.mxu0 0
  %116 = vmatpush1.bf16.msra.mxu0 %v89
  %117 = vmatprep.subr.bf16.mxu0 0
  %118 = vmatpush1.bf16.msra.mxu0 %v88
  %119 = vmatprep.subr.bf16.mxu0 0
  %120 = vmatpush1.bf16.msra.mxu0 %v87
  %121 = vmatprep.subr.bf16.mxu0 0
  %122 = vmatpush1.bf16.msra.mxu0 %v86
  %123 = vmatprep.subr.bf16.mxu0 0
  %124 = vmatpush2.bf16.msra.mxu0 0
  %125 = vmatprep.subr.bf16.mxu0 0
  %126 = vmatpush2.bf16.msra.mxu0 0
  %127 = vmatprep.subr.bf16.mxu0 0
  %128 = vmatpush2.bf16.msra.mxu0 0
  %129 = vmatprep.subr.bf16.mxu0 0
  %130 = vmatpush2.bf16.msra.mxu0 0
  %131 = vmatprep.subr.bf16.mxu0 0
  %132 = vmatpush2.bf16.msra.mxu0 0
  %133 = vmatprep.subr.bf16.mxu0 0
  %134 = vmatpush2.bf16.msra.mxu0 0
  %135 = vmatprep.subr.bf16.mxu0 0
  %136 = vmatpush2.bf16.msra.mxu0 0
  %137 = vmatprep.subr.bf16.mxu0 0
  %138 = vmatpush2.bf16.msra.mxu0 0
  %139 = vmatprep.mubr.bf16.mxu0 0
  %140 = vmatmul.mubr.bf16.gmra.mxu0 %v96
  %v141 = vpop.f32.mrf.mxu0
  %v142 = vadd.f32 0.0, %v141
  %v143 = vpop.f32.mrf.mxu0
  %v144 = vpop.f32.mrf.mxu0
  %v145 = vadd.f32 0.0, %v144
  %v146 = vpop.f32.mrf.mxu0
  %147 = vmatprep.mubr.bf16.mxu0 0
  %148 = vmatmul.mubr.bf16.gmra.mxu0 %v99
  %v149 = vpop.f32.mrf.mxu0
  %v150 = vadd.f32 0.0, %v149
  %v151 = vpop.f32.mrf.mxu0
  %v152 = vpop.f32.mrf.mxu0
  %v153 = vadd.f32 0.0, %v152
  %v154 = vpop.f32.mrf.mxu0
  %155 = vmatprep.mubr.bf16.mxu0 0
  %156 = vmatmul.mubr.bf16.gmra.mxu0 %v102
  %v157 = vpop.f32.mrf.mxu0
  %v158 = vadd.f32 0.0, %v157
  %v159 = vpop.f32.mrf.mxu0
  %v160 = vpop.f32.mrf.mxu0
  %v161 = vadd.f32 0.0, %v160
  %v162 = vpop.f32.mrf.mxu0
  %163 = vmatprep.mubr.bf16.mxu0 0
  %164 = vmatmul.mubr.bf16.gmra.mxu0 %v105
  %v165 = vpop.f32.mrf.mxu0
  %v166 = vadd.f32 0.0, %v165
  %v167 = vpop.f32.mrf.mxu0
  %v168 = vpop.f32.mrf.mxu0
  %v169 = vadd.f32 0.0, %v168
  %v170 = vpop.f32.mrf.mxu0
  %171 = vdwg.mxu0
  %v172 = vld [vmem:[%s0] sm:$0xf]
  %v173 = vld [vmem:[%s0 + $0x4] sm:$0xf]
  %v174 = vld [vmem:[%s0 + $0x8] sm:$0xf]
  %v175 = vld [vmem:[%s0 + $0xc] sm:$0xf]
  %v176 = vld [vmem:[%s0 + $0x10] sm:$0xf]
  %v177 = vld [vmem:[%s0 + $0x14] sm:$0xf]
  %v178 = vld [vmem:[%s0 + $0x18] sm:$0xf]
  %v179 = vld [vmem:[%s0 + $0x1c] sm:$0xf]
  %v188 = vunpack.c.l.b16 %v172
  %v189 = vunpack.c.l.b16 %v173
  %v190 = vunpack.c.l.b16 %v174
  %v191 = vunpack.c.l.b16 %v175
  %v192 = vunpack.c.l.b16 %v176
  %v193 = vunpack.c.l.b16 %v177
  %v194 = vunpack.c.l.b16 %v178
  %v195 = vunpack.c.l.b16 %v179
  %v196 = vpack.c.b16 %v189, %v188
  %v197 = vpack.c.b16 %v191, %v190
  %v198 = vpack.c.b16 %v193, %v192
  %v199 = vpack.c.b16 %v195, %v194
  %v208 = vunpack.c.l.b16 %v24
  %v209 = vunpack.c.l.b16 %v25
  %v210 = vunpack.c.l.b16 %v26
  %v211 = vunpack.c.l.b16 %v27
  %v212 = vunpack.c.l.b16 %v28
  %v213 = vunpack.c.l.b16 %v29
  %v214 = vunpack.c.l.b16 %v30
  %v215 = vunpack.c.l.b16 %v31
  %v216 = vpack.c.b16 %v209, %v208
  %v217 = vpack.c.b16 %v211, %v210
  %v218 = vpack.c.b16 %v213, %v212
  %v219 = vpack.c.b16 %v215, %v214
  %v225 = vsel %vm94, %v196, 0
  %v228 = vsel %vm94, %v197, 0
  %v231 = vsel %vm94, %v198, 0
  %v234 = vsel %vm94, %v199, 0
  %236 = vmatprep.subr.bf16.mxu0 0
  %237 = vmatpush1.bf16.msra.mxu0 0
  %238 = vmatprep.subr.bf16.mxu0 0
  %239 = vmatpush1.bf16.msra.mxu0 0
  %240 = vmatprep.subr.bf16.mxu0 0
  %241 = vmatpush1.bf16.msra.mxu0 0
  %242 = vmatprep.subr.bf16.mxu0 0
  %243 = vmatpush1.bf16.msra.mxu0 0
  %244 = vmatprep.subr.bf16.mxu0 0
  %245 = vmatpush1.bf16.msra.mxu0 %v219
  %246 = vmatprep.subr.bf16.mxu0 0
  %247 = vmatpush1.bf16.msra.mxu0 %v218
  %248 = vmatprep.subr.bf16.mxu0 0
  %249 = vmatpush1.bf16.msra.mxu0 %v217
  %250 = vmatprep.subr.bf16.mxu0 0
  %251 = vmatpush1.bf16.msra.mxu0 %v216
  %252 = vmatprep.subr.bf16.mxu0 0
  %253 = vmatpush2.bf16.msra.mxu0 0
  %254 = vmatprep.subr.bf16.mxu0 0
  %255 = vmatpush2.bf16.msra.mxu0 0
  %256 = vmatprep.subr.bf16.mxu0 0
  %257 = vmatpush2.bf16.msra.mxu0 0
  %258 = vmatprep.subr.bf16.mxu0 0
  %259 = vmatpush2.bf16.msra.mxu0 0
  %260 = vmatprep.subr.bf16.mxu0 0
  %261 = vmatpush2.bf16.msra.mxu0 0
  %262 = vmatprep.subr.bf16.mxu0 0
  %263 = vmatpush2.bf16.msra.mxu0 0
  %264 = vmatprep.subr.bf16.mxu0 0
  %265 = vmatpush2.bf16.msra.mxu0 0
  %266 = vmatprep.subr.bf16.mxu0 0
  %267 = vmatpush2.bf16.msra.mxu0 0
  %268 = vmatprep.mubr.bf16.mxu0 0
  %269 = vmatmul.mubr.bf16.gmra.mxu0 %v225
  %v270 = vpop.f32.mrf.mxu0
  %v271 = vadd.f32 %v142, %v270
  %v272 = vpop.f32.mrf.mxu0
  %v273 = vpop.f32.mrf.mxu0
  %v274 = vadd.f32 %v145, %v273
  %v275 = vpop.f32.mrf.mxu0
  %276 = vmatprep.mubr.bf16.mxu0 0
  %277 = vmatmul.mubr.bf16.gmra.mxu0 %v228
  %v278 = vpop.f32.mrf.mxu0
  %v279 = vadd.f32 %v150, %v278
  %v280 = vpop.f32.mrf.mxu0
  %v281 = vpop.f32.mrf.mxu0
  %v282 = vadd.f32 %v153, %v281
  %v283 = vpop.f32.mrf.mxu0
  %284 = vmatprep.mubr.bf16.mxu0 0
  %285 = vmatmul.mubr.bf16.gmra.mxu0 %v231
  %v286 = vpop.f32.mrf.mxu0
  %v287 = vadd.f32 %v158, %v286
  %v288 = vpop.f32.mrf.mxu0
  %v289 = vpop.f32.mrf.mxu0
  %v290 = vadd.f32 %v161, %v289
  %v291 = vpop.f32.mrf.mxu0
  %292 = vmatprep.mubr.bf16.mxu0 0
  %293 = vmatmul.mubr.bf16.gmra.mxu0 %v234
  %v294 = vpop.f32.mrf.mxu0
  %v295 = vadd.f32 %v166, %v294
  %v296 = vpop.f32.mrf.mxu0
  %v297 = vpop.f32.mrf.mxu0
  %v298 = vadd.f32 %v169, %v297
  %v299 = vpop.f32.mrf.mxu0
  %300 = vdwg.mxu0
  %v302 = vlaneseq
  %v303 = vshrl.u32 %v302, 7
  %v304 = vsub.s32 0, %v303
  %v305 = vrot.slane %v32, %v304
  %v307 = vmul.f32 %v271, %v305
  %v308 = vmul.f32 %v274, %v305
  %v309 = vmul.f32 %v279, %v305
  %v310 = vmul.f32 %v282, %v305
  %v311 = vmul.f32 %v287, %v305
  %v312 = vmul.f32 %v290, %v305
  %v313 = vmul.f32 %v295, %v305
  %v314 = vmul.f32 %v298, %v305
  %v316 = vlaneseq
  %v317 = vshrl.u32 %v316, 7
  %v318 = vsub.s32 0, %v317
  %v319 = vrot.slane %v33, %v318
  %v321 = vadd.f32 %v307, %v319
  %v322 = vadd.f32 %v308, %v319
  %v323 = vadd.f32 %v309, %v319
  %v324 = vadd.f32 %v310, %v319
  %v325 = vadd.f32 %v311, %v319
  %v326 = vadd.f32 %v312, %v319
  %v327 = vadd.f32 %v313, %v319
  %v328 = vadd.f32 %v314, %v319
  %vm329 = vcmp.ge.f32.partialorder %v321, 0.0
  %vm330 = vcmp.ge.f32.partialorder %v322, 0.0
  %vm331 = vcmp.ge.f32.partialorder %v323, 0.0
  %vm332 = vcmp.ge.f32.partialorder %v324, 0.0
  %vm333 = vcmp.ge.f32.partialorder %v325, 0.0
  %vm334 = vcmp.ge.f32.partialorder %v326, 0.0
  %vm335 = vcmp.ge.f32.partialorder %v327, 0.0
  %vm336 = vcmp.ge.f32.partialorder %v328, 0.0
  %v337 = vmul.f32 %v321, 0.2
  %v338 = vmul.f32 %v322, 0.2
  %v339 = vmul.f32 %v323, 0.2
  %v340 = vmul.f32 %v324, 0.2
  %v341 = vmul.f32 %v325, 0.2
  %v342 = vmul.f32 %v326, 0.2
  %v343 = vmul.f32 %v327, 0.2
  %v344 = vmul.f32 %v328, 0.2
  %v345 = vsel %vm329, %v321, %v337
  %v346 = vsel %vm330, %v322, %v338
  %v347 = vsel %vm331, %v323, %v339
  %v348 = vsel %vm332, %v324, %v340
  %v349 = vsel %vm333, %v325, %v341
  %v350 = vsel %vm334, %v326, %v342
  %v351 = vsel %vm335, %v327, %v343
  %v352 = vsel %vm336, %v328, %v344
  %s353 = scalar_lea.vmem %s0, 32
  %v354 = vld [vmem:[%s353] sm:$0xf]
  %v355 = vld [vmem:[%s353 + $0x4] sm:$0xf]
  %v356 = vld [vmem:[%s353 + $0x8] sm:$0xf]
  %v357 = vld [vmem:[%s353 + $0xc] sm:$0xf]
  %v358 = vld [vmem:[%s353 + $0x10] sm:$0xf]
  %v359 = vld [vmem:[%s353 + $0x14] sm:$0xf]
  %v360 = vld [vmem:[%s353 + $0x18] sm:$0xf]
  %v361 = vld [vmem:[%s353 + $0x1c] sm:$0xf]
  %v370 = vunpack.c.l.b16 %v354
  %v371 = vunpack.c.l.b16 %v355
  %v372 = vunpack.c.l.b16 %v356
  %v373 = vunpack.c.l.b16 %v357
  %v374 = vunpack.c.l.b16 %v358
  %v375 = vunpack.c.l.b16 %v359
  %v376 = vunpack.c.l.b16 %v360
  %v377 = vunpack.c.l.b16 %v361
  %v378 = vpack.c.b16 %v371, %v370
  %v379 = vpack.c.b16 %v373, %v372
  %v380 = vpack.c.b16 %v375, %v374
  %v381 = vpack.c.b16 %v377, %v376
  %v383 = vsel %vm94, %v378, 0
  %v386 = vsel %vm94, %v379, 0
  %v389 = vsel %vm94, %v380, 0
  %v392 = vsel %vm94, %v381, 0
  %394 = vmatprep.subr.bf16.mxu0 0
  %395 = vmatpush1.bf16.msra.mxu0 0
  %396 = vmatprep.subr.bf16.mxu0 0
  %397 = vmatpush1.bf16.msra.mxu0 0
  %398 = vmatprep.subr.bf16.mxu0 0
  %399 = vmatpush1.bf16.msra.mxu0 0
  %400 = vmatprep.subr.bf16.mxu0 0
  %401 = vmatpush1.bf16.msra.mxu0 0
  %402 = vmatprep.subr.bf16.mxu0 0
  %403 = vmatpush1.bf16.msra.mxu0 %v219
  %404 = vmatprep.subr.bf16.mxu0 0
  %405 = vmatpush1.bf16.msra.mxu0 %v218
  %406 = vmatprep.subr.bf16.mxu0 0
  %407 = vmatpush1.bf16.msra.mxu0 %v217
  %408 = vmatprep.subr.bf16.mxu0 0
  %409 = vmatpush1.bf16.msra.mxu0 %v216
  %410 = vmatprep.subr.bf16.mxu0 0
  %411 = vmatpush2.bf16.msra.mxu0 0
  %412 = vmatprep.subr.bf16.mxu0 0
  %413 = vmatpush2.bf16.msra.mxu0 0
  %414 = vmatprep.subr.bf16.mxu0 0
  %415 = vmatpush2.bf16.msra.mxu0 0
  %416 = vmatprep.subr.bf16.mxu0 0
  %417 = vmatpush2.bf16.msra.mxu0 0
  %418 = vmatprep.subr.bf16.mxu0 0
  %419 = vmatpush2.bf16.msra.mxu0 0
  %420 = vmatprep.subr.bf16.mxu0 0
  %421 = vmatpush2.bf16.msra.mxu0 0
  %422 = vmatprep.subr.bf16.mxu0 0
  %423 = vmatpush2.bf16.msra.mxu0 0
  %424 = vmatprep.subr.bf16.mxu0 0
  %425 = vmatpush2.bf16.msra.mxu0 0
  %426 = vmatprep.mubr.bf16.mxu0 0
  %427 = vmatmul.mubr.bf16.gmra.mxu0 %v383
  %v428 = vpop.f32.mrf.mxu0
  %v429 = vadd.f32 %v142, %v428
  %v430 = vpop.f32.mrf.mxu0
  %v431 = vpop.f32.mrf.mxu0
  %v432 = vadd.f32 %v145, %v431
  %v433 = vpop.f32.mrf.mxu0
  %434 = vmatprep.mubr.bf16.mxu0 0
  %435 = vmatmul.mubr.bf16.gmra.mxu0 %v386
  %v436 = vpop.f32.mrf.mxu0
  %v437 = vadd.f32 %v150, %v436
  %v438 = vpop.f32.mrf.mxu0
  %v439 = vpop.f32.mrf.mxu0
  %v440 = vadd.f32 %v153, %v439
  %v441 = vpop.f32.mrf.mxu0
  %442 = vmatprep.mubr.bf16.mxu0 0
  %443 = vmatmul.mubr.bf16.gmra.mxu0 %v389
  %v444 = vpop.f32.mrf.mxu0
  %v445 = vadd.f32 %v158, %v444
  %v446 = vpop.f32.mrf.mxu0
  %v447 = vpop.f32.mrf.mxu0
  %v448 = vadd.f32 %v161, %v447
  %v449 = vpop.f32.mrf.mxu0
  %450 = vmatprep.mubr.bf16.mxu0 0
  %451 = vmatmul.mubr.bf16.gmra.mxu0 %v392
  %v452 = vpop.f32.mrf.mxu0
  %v453 = vadd.f32 %v166, %v452
  %v454 = vpop.f32.mrf.mxu0
  %v455 = vpop.f32.mrf.mxu0
  %v456 = vadd.f32 %v169, %v455
  %v457 = vpop.f32.mrf.mxu0
  %458 = vdwg.mxu0
  %v459 = vmul.f32 %v429, %v305
  %v460 = vmul.f32 %v432, %v305
  %v461 = vmul.f32 %v437, %v305
  %v462 = vmul.f32 %v440, %v305
  %v463 = vmul.f32 %v445, %v305
  %v464 = vmul.f32 %v448, %v305
  %v465 = vmul.f32 %v453, %v305
  %v466 = vmul.f32 %v456, %v305
  %v467 = vadd.f32 %v459, %v319
  %v468 = vadd.f32 %v460, %v319
  %v469 = vadd.f32 %v461, %v319
  %v470 = vadd.f32 %v462, %v319
  %v471 = vadd.f32 %v463, %v319
  %v472 = vadd.f32 %v464, %v319
  %v473 = vadd.f32 %v465, %v319
  %v474 = vadd.f32 %v466, %v319
  %vm475 = vcmp.ge.f32.partialorder %v467, 0.0
  %vm476 = vcmp.ge.f32.partialorder %v468, 0.0
  %vm477 = vcmp.ge.f32.partialorder %v469, 0.0
  %vm478 = vcmp.ge.f32.partialorder %v470, 0.0
  %vm479 = vcmp.ge.f32.partialorder %v471, 0.0
  %vm480 = vcmp.ge.f32.partialorder %v472, 0.0
  %vm481 = vcmp.ge.f32.partialorder %v473, 0.0
  %vm482 = vcmp.ge.f32.partialorder %v474, 0.0
  %v483 = vmul.f32 %v467, 0.2
  %v484 = vmul.f32 %v468, 0.2
  %v485 = vmul.f32 %v469, 0.2
  %v486 = vmul.f32 %v470, 0.2
  %v487 = vmul.f32 %v471, 0.2
  %v488 = vmul.f32 %v472, 0.2
  %v489 = vmul.f32 %v473, 0.2
  %v490 = vmul.f32 %v474, 0.2
  %v491 = vsel %vm475, %v467, %v483
  %v492 = vsel %vm476, %v468, %v484
  %v493 = vsel %vm477, %v469, %v485
  %v494 = vsel %vm478, %v470, %v486
  %v495 = vsel %vm479, %v471, %v487
  %v496 = vsel %vm480, %v472, %v488
  %v497 = vsel %vm481, %v473, %v489
  %v498 = vsel %vm482, %v474, %v490
  %v499 = vmax.f32 %v345, %v491
  %v500 = vmax.f32 %v346, %v492
  %v501 = vmax.f32 %v347, %v493
  %v502 = vmax.f32 %v348, %v494
  %v503 = vmax.f32 %v349, %v495
  %v504 = vmax.f32 %v350, %v496
  %v505 = vmax.f32 %v351, %v497
  %v506 = vmax.f32 %v352, %v498
  %s507 = scalar_lea.vmem %s0, 64
  %v508 = vld [vmem:[%s507] sm:$0xf]
  %v509 = vld [vmem:[%s507 + $0x4] sm:$0xf]
  %v510 = vld [vmem:[%s507 + $0x8] sm:$0xf]
  %v511 = vld [vmem:[%s507 + $0xc] sm:$0xf]
  %v512 = vld [vmem:[%s507 + $0x10] sm:$0xf]
  %v513 = vld [vmem:[%s507 + $0x14] sm:$0xf]
  %v514 = vld [vmem:[%s507 + $0x18] sm:$0xf]
  %v515 = vld [vmem:[%s507 + $0x1c] sm:$0xf]
  %v524 = vunpack.c.l.b16 %v508
  %v525 = vunpack.c.l.b16 %v509
  %v526 = vunpack.c.l.b16 %v510
  %v527 = vunpack.c.l.b16 %v511
  %v528 = vunpack.c.l.b16 %v512
  %v529 = vunpack.c.l.b16 %v513
  %v530 = vunpack.c.l.b16 %v514
  %v531 = vunpack.c.l.b16 %v515
  %v532 = vpack.c.b16 %v525, %v524
  %v533 = vpack.c.b16 %v527, %v526
  %v534 = vpack.c.b16 %v529, %v528
  %v535 = vpack.c.b16 %v531, %v530
  %v537 = vsel %vm94, %v532, 0
  %v540 = vsel %vm94, %v533, 0
  %v543 = vsel %vm94, %v534, 0
  %v546 = vsel %vm94, %v535, 0
  %548 = vmatprep.subr.bf16.mxu0 0
  %549 = vmatpush1.bf16.msra.mxu0 0
  %550 = vmatprep.subr.bf16.mxu0 0
  %551 = vmatpush1.bf16.msra.mxu0 0
  %552 = vmatprep.subr.bf16.mxu0 0
  %553 = vmatpush1.bf16.msra.mxu0 0
  %554 = vmatprep.subr.bf16.mxu0 0
  %555 = vmatpush1.bf16.msra.mxu0 0
  %556 = vmatprep.subr.bf16.mxu0 0
  %557 = vmatpush1.bf16.msra.mxu0 %v219
  %558 = vmatprep.subr.bf16.mxu0 0
  %559 = vmatpush1.bf16.msra.mxu0 %v218
  %560 = vmatprep.subr.bf16.mxu0 0
  %561 = vmatpush1.bf16.msra.mxu0 %v217
  %562 = vmatprep.subr.bf16.mxu0 0
  %563 = vmatpush1.bf16.msra.mxu0 %v216
  %564 = vmatprep.subr.bf16.mxu0 0
  %565 = vmatpush2.bf16.msra.mxu0 0
  %566 = vmatprep.subr.bf16.mxu0 0
  %567 = vmatpush2.bf16.msra.mxu0 0
  %568 = vmatprep.subr.bf16.mxu0 0
  %569 = vmatpush2.bf16.msra.mxu0 0
  %570 = vmatprep.subr.bf16.mxu0 0
  %571 = vmatpush2.bf16.msra.mxu0 0
  %572 = vmatprep.subr.bf16.mxu0 0
  %573 = vmatpush2.bf16.msra.mxu0 0
  %574 = vmatprep.subr.bf16.mxu0 0
  %575 = vmatpush2.bf16.msra.mxu0 0
  %576 = vmatprep.subr.bf16.mxu0 0
  %577 = vmatpush2.bf16.msra.mxu0 0
  %578 = vmatprep.subr.bf16.mxu0 0
  %579 = vmatpush2.bf16.msra.mxu0 0
  %580 = vmatprep.mubr.bf16.mxu0 0
  %581 = vmatmul.mubr.bf16.gmra.mxu0 %v537
  %v582 = vpop.f32.mrf.mxu0
  %v583 = vadd.f32 %v142, %v582
  %v584 = vpop.f32.mrf.mxu0
  %v585 = vpop.f32.mrf.mxu0
  %v586 = vadd.f32 %v145, %v585
  %v587 = vpop.f32.mrf.mxu0
  %588 = vmatprep.mubr.bf16.mxu0 0
  %589 = vmatmul.mubr.bf16.gmra.mxu0 %v540
  %v590 = vpop.f32.mrf.mxu0
  %v591 = vadd.f32 %v150, %v590
  %v592 = vpop.f32.mrf.mxu0
  %v593 = vpop.f32.mrf.mxu0
  %v594 = vadd.f32 %v153, %v593
  %v595 = vpop.f32.mrf.mxu0
  %596 = vmatprep.mubr.bf16.mxu0 0
  %597 = vmatmul.mubr.bf16.gmra.mxu0 %v543
  %v598 = vpop.f32.mrf.mxu0
  %v599 = vadd.f32 %v158, %v598
  %v600 = vpop.f32.mrf.mxu0
  %v601 = vpop.f32.mrf.mxu0
  %v602 = vadd.f32 %v161, %v601
  %v603 = vpop.f32.mrf.mxu0
  %604 = vmatprep.mubr.bf16.mxu0 0
  %605 = vmatmul.mubr.bf16.gmra.mxu0 %v546
  %v606 = vpop.f32.mrf.mxu0
  %v607 = vadd.f32 %v166, %v606
  %v608 = vpop.f32.mrf.mxu0
  %v609 = vpop.f32.mrf.mxu0
  %v610 = vadd.f32 %v169, %v609
  %v611 = vpop.f32.mrf.mxu0
  %612 = vdwg.mxu0
  %v613 = vmul.f32 %v583, %v305
  %v614 = vmul.f32 %v586, %v305
  %v615 = vmul.f32 %v591, %v305
  %v616 = vmul.f32 %v594, %v305
  %v617 = vmul.f32 %v599, %v305
  %v618 = vmul.f32 %v602, %v305
  %v619 = vmul.f32 %v607, %v305
  %v620 = vmul.f32 %v610, %v305
  %v621 = vadd.f32 %v613, %v319
  %v622 = vadd.f32 %v614, %v319
  %v623 = vadd.f32 %v615, %v319
  %v624 = vadd.f32 %v616, %v319
  %v625 = vadd.f32 %v617, %v319
  %v626 = vadd.f32 %v618, %v319
  %v627 = vadd.f32 %v619, %v319
  %v628 = vadd.f32 %v620, %v319
  %vm629 = vcmp.ge.f32.partialorder %v621, 0.0
  %vm630 = vcmp.ge.f32.partialorder %v622, 0.0
  %vm631 = vcmp.ge.f32.partialorder %v623, 0.0
  %vm632 = vcmp.ge.f32.partialorder %v624, 0.0
  %vm633 = vcmp.ge.f32.partialorder %v625, 0.0
  %vm634 = vcmp.ge.f32.partialorder %v626, 0.0
  %vm635 = vcmp.ge.f32.partialorder %v627, 0.0
  %vm636 = vcmp.ge.f32.partialorder %v628, 0.0
  %v637 = vmul.f32 %v621, 0.2
  %v638 = vmul.f32 %v622, 0.2
  %v639 = vmul.f32 %v623, 0.2
  %v640 = vmul.f32 %v624, 0.2
  %v641 = vmul.f32 %v625, 0.2
  %v642 = vmul.f32 %v626, 0.2
  %v643 = vmul.f32 %v627, 0.2
  %v644 = vmul.f32 %v628, 0.2
  %v645 = vsel %vm629, %v621, %v637
  %v646 = vsel %vm630, %v622, %v638
  %v647 = vsel %vm631, %v623, %v639
  %v648 = vsel %vm632, %v624, %v640
  %v649 = vsel %vm633, %v625, %v641
  %v650 = vsel %vm634, %v626, %v642
  %v651 = vsel %vm635, %v627, %v643
  %v652 = vsel %vm636, %v628, %v644
  %v653 = vmax.f32 %v499, %v645
  %v654 = vmax.f32 %v500, %v646
  %v655 = vmax.f32 %v501, %v647
  %v656 = vmax.f32 %v502, %v648
  %v657 = vmax.f32 %v503, %v649
  %v658 = vmax.f32 %v504, %v650
  %v659 = vmax.f32 %v505, %v651
  %v660 = vmax.f32 %v506, %v652
  %s661 = scalar_lea.vmem %s0, 96
  %v662 = vld [vmem:[%s661] sm:$0xf]
  %v663 = vld [vmem:[%s661 + $0x4] sm:$0xf]
  %v664 = vld [vmem:[%s661 + $0x8] sm:$0xf]
  %v665 = vld [vmem:[%s661 + $0xc] sm:$0xf]
  %v666 = vld [vmem:[%s661 + $0x10] sm:$0xf]
  %v667 = vld [vmem:[%s661 + $0x14] sm:$0xf]
  %v668 = vld [vmem:[%s661 + $0x18] sm:$0xf]
  %v669 = vld [vmem:[%s661 + $0x1c] sm:$0xf]
  %v678 = vunpack.c.l.b16 %v662
  %v679 = vunpack.c.l.b16 %v663
  %v680 = vunpack.c.l.b16 %v664
  %v681 = vunpack.c.l.b16 %v665
  %v682 = vunpack.c.l.b16 %v666
  %v683 = vunpack.c.l.b16 %v667
  %v684 = vunpack.c.l.b16 %v668
  %v685 = vunpack.c.l.b16 %v669
  %v686 = vpack.c.b16 %v679, %v678
  %v687 = vpack.c.b16 %v681, %v680
  %v688 = vpack.c.b16 %v683, %v682
  %v689 = vpack.c.b16 %v685, %v684
  %v691 = vsel %vm94, %v686, 0
  %v694 = vsel %vm94, %v687, 0
  %v697 = vsel %vm94, %v688, 0
  %v700 = vsel %vm94, %v689, 0
  %702 = vmatprep.subr.bf16.mxu0 0
  %703 = vmatpush1.bf16.msra.mxu0 0
  %704 = vmatprep.subr.bf16.mxu0 0
  %705 = vmatpush1.bf16.msra.mxu0 0
  %706 = vmatprep.subr.bf16.mxu0 0
  %707 = vmatpush1.bf16.msra.mxu0 0
  %708 = vmatprep.subr.bf16.mxu0 0
  %709 = vmatpush1.bf16.msra.mxu0 0
  %710 = vmatprep.subr.bf16.mxu0 0
  %711 = vmatpush1.bf16.msra.mxu0 %v219
  %712 = vmatprep.subr.bf16.mxu0 0
  %713 = vmatpush1.bf16.msra.mxu0 %v218
  %714 = vmatprep.subr.bf16.mxu0 0
  %715 = vmatpush1.bf16.msra.mxu0 %v217
  %716 = vmatprep.subr.bf16.mxu0 0
  %717 = vmatpush1.bf16.msra.mxu0 %v216
  %718 = vmatprep.subr.bf16.mxu0 0
  %719 = vmatpush2.bf16.msra.mxu0 0
  %720 = vmatprep.subr.bf16.mxu0 0
  %721 = vmatpush2.bf16.msra.mxu0 0
  %722 = vmatprep.subr.bf16.mxu0 0
  %723 = vmatpush2.bf16.msra.mxu0 0
  %724 = vmatprep.subr.bf16.mxu0 0
  %725 = vmatpush2.bf16.msra.mxu0 0
  %726 = vmatprep.subr.bf16.mxu0 0
  %727 = vmatpush2.bf16.msra.mxu0 0
  %728 = vmatprep.subr.bf16.mxu0 0
  %729 = vmatpush2.bf16.msra.mxu0 0
  %730 = vmatprep.subr.bf16.mxu0 0
  %731 = vmatpush2.bf16.msra.mxu0 0
  %732 = vmatprep.subr.bf16.mxu0 0
  %733 = vmatpush2.bf16.msra.mxu0 0
  %734 = vmatprep.mubr.bf16.mxu0 0
  %735 = vmatmul.mubr.bf16.gmra.mxu0 %v691
  %v736 = vpop.f32.mrf.mxu0
  %v737 = vadd.f32 %v142, %v736
  %v738 = vpop.f32.mrf.mxu0
  %v739 = vpop.f32.mrf.mxu0
  %v740 = vadd.f32 %v145, %v739
  %v741 = vpop.f32.mrf.mxu0
  %742 = vmatprep.mubr.bf16.mxu0 0
  %743 = vmatmul.mubr.bf16.gmra.mxu0 %v694
  %v744 = vpop.f32.mrf.mxu0
  %v745 = vadd.f32 %v150, %v744
  %v746 = vpop.f32.mrf.mxu0
  %v747 = vpop.f32.mrf.mxu0
  %v748 = vadd.f32 %v153, %v747
  %v749 = vpop.f32.mrf.mxu0
  %750 = vmatprep.mubr.bf16.mxu0 0
  %751 = vmatmul.mubr.bf16.gmra.mxu0 %v697
  %v752 = vpop.f32.mrf.mxu0
  %v753 = vadd.f32 %v158, %v752
  %v754 = vpop.f32.mrf.mxu0
  %v755 = vpop.f32.mrf.mxu0
  %v756 = vadd.f32 %v161, %v755
  %v757 = vpop.f32.mrf.mxu0
  %758 = vmatprep.mubr.bf16.mxu0 0
  %759 = vmatmul.mubr.bf16.gmra.mxu0 %v700
  %v760 = vpop.f32.mrf.mxu0
  %v761 = vadd.f32 %v166, %v760
  %v762 = vpop.f32.mrf.mxu0
  %v763 = vpop.f32.mrf.mxu0
  %v764 = vadd.f32 %v169, %v763
  %v765 = vpop.f32.mrf.mxu0
  %766 = vdwg.mxu0
  %v767 = vmul.f32 %v737, %v305
  %v768 = vmul.f32 %v740, %v305
  %v769 = vmul.f32 %v745, %v305
  %v770 = vmul.f32 %v748, %v305
  %v771 = vmul.f32 %v753, %v305
  %v772 = vmul.f32 %v756, %v305
  %v773 = vmul.f32 %v761, %v305
  %v774 = vmul.f32 %v764, %v305
  %v775 = vadd.f32 %v767, %v319
  %v776 = vadd.f32 %v768, %v319
  %v777 = vadd.f32 %v769, %v319
  %v778 = vadd.f32 %v770, %v319
  %v779 = vadd.f32 %v771, %v319
  %v780 = vadd.f32 %v772, %v319
  %v781 = vadd.f32 %v773, %v319
  %v782 = vadd.f32 %v774, %v319
  %vm783 = vcmp.ge.f32.partialorder %v775, 0.0
  %vm784 = vcmp.ge.f32.partialorder %v776, 0.0
  %vm785 = vcmp.ge.f32.partialorder %v777, 0.0
  %vm786 = vcmp.ge.f32.partialorder %v778, 0.0
  %vm787 = vcmp.ge.f32.partialorder %v779, 0.0
  %vm788 = vcmp.ge.f32.partialorder %v780, 0.0
  %vm789 = vcmp.ge.f32.partialorder %v781, 0.0
  %vm790 = vcmp.ge.f32.partialorder %v782, 0.0
  %v791 = vmul.f32 %v775, 0.2
  %v792 = vmul.f32 %v776, 0.2
  %v793 = vmul.f32 %v777, 0.2
  %v794 = vmul.f32 %v778, 0.2
  %v795 = vmul.f32 %v779, 0.2
  %v796 = vmul.f32 %v780, 0.2
  %v797 = vmul.f32 %v781, 0.2
  %v798 = vmul.f32 %v782, 0.2
  %v799 = vsel %vm783, %v775, %v791
  %v800 = vsel %vm784, %v776, %v792
  %v801 = vsel %vm785, %v777, %v793
  %v802 = vsel %vm786, %v778, %v794
  %v803 = vsel %vm787, %v779, %v795
  %v804 = vsel %vm788, %v780, %v796
  %v805 = vsel %vm789, %v781, %v797
  %v806 = vsel %vm790, %v782, %v798
  %v807 = vmax.f32 %v653, %v799
  %v808 = vmax.f32 %v654, %v800
  %v809 = vmax.f32 %v655, %v801
  %v810 = vmax.f32 %v656, %v802
  %v811 = vmax.f32 %v657, %v803
  %v812 = vmax.f32 %v658, %v804
  %v813 = vmax.f32 %v659, %v805
  %v814 = vmax.f32 %v660, %v806
  %s815 = scalar_lea.vmem %s0, 128
  %v816 = vld [vmem:[%s815] sm:$0xf]
  %v817 = vld [vmem:[%s815 + $0x4] sm:$0xf]
  %v818 = vld [vmem:[%s815 + $0x8] sm:$0xf]
  %v819 = vld [vmem:[%s815 + $0xc] sm:$0xf]
  %v820 = vld [vmem:[%s815 + $0x10] sm:$0xf]
  %v821 = vld [vmem:[%s815 + $0x14] sm:$0xf]
  %v822 = vld [vmem:[%s815 + $0x18] sm:$0xf]
  %v823 = vld [vmem:[%s815 + $0x1c] sm:$0xf]
  %v832 = vunpack.c.l.b16 %v816
  %v833 = vunpack.c.l.b16 %v817
  %v834 = vunpack.c.l.b16 %v818
  %v835 = vunpack.c.l.b16 %v819
  %v836 = vunpack.c.l.b16 %v820
  %v837 = vunpack.c.l.b16 %v821
  %v838 = vunpack.c.l.b16 %v822
  %v839 = vunpack.c.l.b16 %v823
  %v840 = vpack.c.b16 %v833, %v832
  %v841 = vpack.c.b16 %v835, %v834
  %v842 = vpack.c.b16 %v837, %v836
  %v843 = vpack.c.b16 %v839, %v838
  %v845 = vsel %vm94, %v840, 0
  %v848 = vsel %vm94, %v841, 0
  %v851 = vsel %vm94, %v842, 0
  %v854 = vsel %vm94, %v843, 0
  %856 = vmatprep.subr.bf16.mxu0 0
  %857 = vmatpush1.bf16.msra.mxu0 0
  %858 = vmatprep.subr.bf16.mxu0 0
  %859 = vmatpush1.bf16.msra.mxu0 0
  %860 = vmatprep.subr.bf16.mxu0 0
  %861 = vmatpush1.bf16.msra.mxu0 0
  %862 = vmatprep.subr.bf16.mxu0 0
  %863 = vmatpush1.bf16.msra.mxu0 0
  %864 = vmatprep.subr.bf16.mxu0 0
  %865 = vmatpush1.bf16.msra.mxu0 %v219
  %866 = vmatprep.subr.bf16.mxu0 0
  %867 = vmatpush1.bf16.msra.mxu0 %v218
  %868 = vmatprep.subr.bf16.mxu0 0
  %869 = vmatpush1.bf16.msra.mxu0 %v217
  %870 = vmatprep.subr.bf16.mxu0 0
  %871 = vmatpush1.bf16.msra.mxu0 %v216
  %872 = vmatprep.subr.bf16.mxu0 0
  %873 = vmatpush2.bf16.msra.mxu0 0
  %874 = vmatprep.subr.bf16.mxu0 0
  %875 = vmatpush2.bf16.msra.mxu0 0
  %876 = vmatprep.subr.bf16.mxu0 0
  %877 = vmatpush2.bf16.msra.mxu0 0
  %878 = vmatprep.subr.bf16.mxu0 0
  %879 = vmatpush2.bf16.msra.mxu0 0
  %880 = vmatprep.subr.bf16.mxu0 0
  %881 = vmatpush2.bf16.msra.mxu0 0
  %882 = vmatprep.subr.bf16.mxu0 0
  %883 = vmatpush2.bf16.msra.mxu0 0
  %884 = vmatprep.subr.bf16.mxu0 0
  %885 = vmatpush2.bf16.msra.mxu0 0
  %886 = vmatprep.subr.bf16.mxu0 0
  %887 = vmatpush2.bf16.msra.mxu0 0
  %888 = vmatprep.mubr.bf16.mxu0 0
  %889 = vmatmul.mubr.bf16.gmra.mxu0 %v845
  %v890 = vpop.f32.mrf.mxu0
  %v891 = vadd.f32 %v142, %v890
  %v892 = vpop.f32.mrf.mxu0
  %v893 = vpop.f32.mrf.mxu0
  %v894 = vadd.f32 %v145, %v893
  %v895 = vpop.f32.mrf.mxu0
  %896 = vmatprep.mubr.bf16.mxu0 0
  %897 = vmatmul.mubr.bf16.gmra.mxu0 %v848
  %v898 = vpop.f32.mrf.mxu0
  %v899 = vadd.f32 %v150, %v898
  %v900 = vpop.f32.mrf.mxu0
  %v901 = vpop.f32.mrf.mxu0
  %v902 = vadd.f32 %v153, %v901
  %v903 = vpop.f32.mrf.mxu0
  %904 = vmatprep.mubr.bf16.mxu0 0
  %905 = vmatmul.mubr.bf16.gmra.mxu0 %v851
  %v906 = vpop.f32.mrf.mxu0
  %v907 = vadd.f32 %v158, %v906
  %v908 = vpop.f32.mrf.mxu0
  %v909 = vpop.f32.mrf.mxu0
  %v910 = vadd.f32 %v161, %v909
  %v911 = vpop.f32.mrf.mxu0
  %912 = vmatprep.mubr.bf16.mxu0 0
  %913 = vmatmul.mubr.bf16.gmra.mxu0 %v854
  %v914 = vpop.f32.mrf.mxu0
  %v915 = vadd.f32 %v166, %v914
  %v916 = vpop.f32.mrf.mxu0
  %v917 = vpop.f32.mrf.mxu0
  %v918 = vadd.f32 %v169, %v917
  %v919 = vpop.f32.mrf.mxu0
  %920 = vdwg.mxu0
  %v921 = vmul.f32 %v891, %v305
  %v922 = vmul.f32 %v894, %v305
  %v923 = vmul.f32 %v899, %v305
  %v924 = vmul.f32 %v902, %v305
  %v925 = vmul.f32 %v907, %v305
  %v926 = vmul.f32 %v910, %v305
  %v927 = vmul.f32 %v915, %v305
  %v928 = vmul.f32 %v918, %v305
  %v929 = vadd.f32 %v921, %v319
  %v930 = vadd.f32 %v922, %v319
  %v931 = vadd.f32 %v923, %v319
  %v932 = vadd.f32 %v924, %v319
  %v933 = vadd.f32 %v925, %v319
  %v934 = vadd.f32 %v926, %v319
  %v935 = vadd.f32 %v927, %v319
  %v936 = vadd.f32 %v928, %v319
  %vm937 = vcmp.ge.f32.partialorder %v929, 0.0
  %vm938 = vcmp.ge.f32.partialorder %v930, 0.0
  %vm939 = vcmp.ge.f32.partialorder %v931, 0.0
  %vm940 = vcmp.ge.f32.partialorder %v932, 0.0
  %vm941 = vcmp.ge.f32.partialorder %v933, 0.0
  %vm942 = vcmp.ge.f32.partialorder %v934, 0.0
  %vm943 = vcmp.ge.f32.partialorder %v935, 0.0
  %vm944 = vcmp.ge.f32.partialorder %v936, 0.0
  %v945 = vmul.f32 %v929, 0.2
  %v946 = vmul.f32 %v930, 0.2
  %v947 = vmul.f32 %v931, 0.2
  %v948 = vmul.f32 %v932, 0.2
  %v949 = vmul.f32 %v933, 0.2
  %v950 = vmul.f32 %v934, 0.2
  %v951 = vmul.f32 %v935, 0.2
  %v952 = vmul.f32 %v936, 0.2
  %v953 = vsel %vm937, %v929, %v945
  %v954 = vsel %vm938, %v930, %v946
  %v955 = vsel %vm939, %v931, %v947
  %v956 = vsel %vm940, %v932, %v948
  %v957 = vsel %vm941, %v933, %v949
  %v958 = vsel %vm942, %v934, %v950
  %v959 = vsel %vm943, %v935, %v951
  %v960 = vsel %vm944, %v936, %v952
  %v961 = vmax.f32 %v807, %v953
  %v962 = vmax.f32 %v808, %v954
  %v963 = vmax.f32 %v809, %v955
  %v964 = vmax.f32 %v810, %v956
  %v965 = vmax.f32 %v811, %v957
  %v966 = vmax.f32 %v812, %v958
  %v967 = vmax.f32 %v813, %v959
  %v968 = vmax.f32 %v814, %v960
  %s969 = scalar_lea.vmem %s0, 160
  %v970 = vld [vmem:[%s969] sm:$0xf]
  %v971 = vld [vmem:[%s969 + $0x4] sm:$0xf]
  %v972 = vld [vmem:[%s969 + $0x8] sm:$0xf]
  %v973 = vld [vmem:[%s969 + $0xc] sm:$0xf]
  %v974 = vld [vmem:[%s969 + $0x10] sm:$0xf]
  %v975 = vld [vmem:[%s969 + $0x14] sm:$0xf]
  %v976 = vld [vmem:[%s969 + $0x18] sm:$0xf]
  %v977 = vld [vmem:[%s969 + $0x1c] sm:$0xf]
  %v986 = vunpack.c.l.b16 %v970
  %v987 = vunpack.c.l.b16 %v971
  %v988 = vunpack.c.l.b16 %v972
  %v989 = vunpack.c.l.b16 %v973
  %v990 = vunpack.c.l.b16 %v974
  %v991 = vunpack.c.l.b16 %v975
  %v992 = vunpack.c.l.b16 %v976
  %v993 = vunpack.c.l.b16 %v977
  %v994 = vpack.c.b16 %v987, %v986
  %v995 = vpack.c.b16 %v989, %v988
  %v996 = vpack.c.b16 %v991, %v990
  %v997 = vpack.c.b16 %v993, %v992
  %v999 = vsel %vm94, %v994, 0
  %v1002 = vsel %vm94, %v995, 0
  %v1005 = vsel %vm94, %v996, 0
  %v1008 = vsel %vm94, %v997, 0
  %1010 = vmatprep.subr.bf16.mxu0 0
  %1011 = vmatpush1.bf16.msra.mxu0 0
  %1012 = vmatprep.subr.bf16.mxu0 0
  %1013 = vmatpush1.bf16.msra.mxu0 0
  %1014 = vmatprep.subr.bf16.mxu0 0
  %1015 = vmatpush1.bf16.msra.mxu0 0
  %1016 = vmatprep.subr.bf16.mxu0 0
  %1017 = vmatpush1.bf16.msra.mxu0 0
  %1018 = vmatprep.subr.bf16.mxu0 0
  %1019 = vmatpush1.bf16.msra.mxu0 %v219
  %1020 = vmatprep.subr.bf16.mxu0 0
  %1021 = vmatpush1.bf16.msra.mxu0 %v218
  %1022 = vmatprep.subr.bf16.mxu0 0
  %1023 = vmatpush1.bf16.msra.mxu0 %v217
  %1024 = vmatprep.subr.bf16.mxu0 0
  %1025 = vmatpush1.bf16.msra.mxu0 %v216
  %1026 = vmatprep.subr.bf16.mxu0 0
  %1027 = vmatpush2.bf16.msra.mxu0 0
  %1028 = vmatprep.subr.bf16.mxu0 0
  %1029 = vmatpush2.bf16.msra.mxu0 0
  %1030 = vmatprep.subr.bf16.mxu0 0
  %1031 = vmatpush2.bf16.msra.mxu0 0
  %1032 = vmatprep.subr.bf16.mxu0 0
  %1033 = vmatpush2.bf16.msra.mxu0 0
  %1034 = vmatprep.subr.bf16.mxu0 0
  %1035 = vmatpush2.bf16.msra.mxu0 0
  %1036 = vmatprep.subr.bf16.mxu0 0
  %1037 = vmatpush2.bf16.msra.mxu0 0
  %1038 = vmatprep.subr.bf16.mxu0 0
  %1039 = vmatpush2.bf16.msra.mxu0 0
  %1040 = vmatprep.subr.bf16.mxu0 0
  %1041 = vmatpush2.bf16.msra.mxu0 0
  %1042 = vmatprep.mubr.bf16.mxu0 0
  %1043 = vmatmul.mubr.bf16.gmra.mxu0 %v999
  %v1044 = vpop.f32.mrf.mxu0
  %v1045 = vadd.f32 %v142, %v1044
  %v1046 = vpop.f32.mrf.mxu0
  %v1047 = vpop.f32.mrf.mxu0
  %v1048 = vadd.f32 %v145, %v1047
  %v1049 = vpop.f32.mrf.mxu0
  %1050 = vmatprep.mubr.bf16.mxu0 0
  %1051 = vmatmul.mubr.bf16.gmra.mxu0 %v1002
  %v1052 = vpop.f32.mrf.mxu0
  %v1053 = vadd.f32 %v150, %v1052
  %v1054 = vpop.f32.mrf.mxu0
  %v1055 = vpop.f32.mrf.mxu0
  %v1056 = vadd.f32 %v153, %v1055
  %v1057 = vpop.f32.mrf.mxu0
  %1058 = vmatprep.mubr.bf16.mxu0 0
  %1059 = vmatmul.mubr.bf16.gmra.mxu0 %v1005
  %v1060 = vpop.f32.mrf.mxu0
  %v1061 = vadd.f32 %v158, %v1060
  %v1062 = vpop.f32.mrf.mxu0
  %v1063 = vpop.f32.mrf.mxu0
  %v1064 = vadd.f32 %v161, %v1063
  %v1065 = vpop.f32.mrf.mxu0
  %1066 = vmatprep.mubr.bf16.mxu0 0
  %1067 = vmatmul.mubr.bf16.gmra.mxu0 %v1008
  %v1068 = vpop.f32.mrf.mxu0
  %v1069 = vadd.f32 %v166, %v1068
  %v1070 = vpop.f32.mrf.mxu0
  %v1071 = vpop.f32.mrf.mxu0
  %v1072 = vadd.f32 %v169, %v1071
  %v1073 = vpop.f32.mrf.mxu0
  %1074 = vdwg.mxu0
  %v1075 = vmul.f32 %v1045, %v305
  %v1076 = vmul.f32 %v1048, %v305
  %v1077 = vmul.f32 %v1053, %v305
  %v1078 = vmul.f32 %v1056, %v305
  %v1079 = vmul.f32 %v1061, %v305
  %v1080 = vmul.f32 %v1064, %v305
  %v1081 = vmul.f32 %v1069, %v305
  %v1082 = vmul.f32 %v1072, %v305
  %v1083 = vadd.f32 %v1075, %v319
  %v1084 = vadd.f32 %v1076, %v319
  %v1085 = vadd.f32 %v1077, %v319
  %v1086 = vadd.f32 %v1078, %v319
  %v1087 = vadd.f32 %v1079, %v319
  %v1088 = vadd.f32 %v1080, %v319
  %v1089 = vadd.f32 %v1081, %v319
  %v1090 = vadd.f32 %v1082, %v319
  %vm1091 = vcmp.ge.f32.partialorder %v1083, 0.0
  %vm1092 = vcmp.ge.f32.partialorder %v1084, 0.0
  %vm1093 = vcmp.ge.f32.partialorder %v1085, 0.0
  %vm1094 = vcmp.ge.f32.partialorder %v1086, 0.0
  %vm1095 = vcmp.ge.f32.partialorder %v1087, 0.0
  %vm1096 = vcmp.ge.f32.partialorder %v1088, 0.0
  %vm1097 = vcmp.ge.f32.partialorder %v1089, 0.0
  %vm1098 = vcmp.ge.f32.partialorder %v1090, 0.0
  %v1099 = vmul.f32 %v1083, 0.2
  %v1100 = vmul.f32 %v1084, 0.2
  %v1101 = vmul.f32 %v1085, 0.2
  %v1102 = vmul.f32 %v1086, 0.2
  %v1103 = vmul.f32 %v1087, 0.2
  %v1104 = vmul.f32 %v1088, 0.2
  %v1105 = vmul.f32 %v1089, 0.2
  %v1106 = vmul.f32 %v1090, 0.2
  %v1107 = vsel %vm1091, %v1083, %v1099
  %v1108 = vsel %vm1092, %v1084, %v1100
  %v1109 = vsel %vm1093, %v1085, %v1101
  %v1110 = vsel %vm1094, %v1086, %v1102
  %v1111 = vsel %vm1095, %v1087, %v1103
  %v1112 = vsel %vm1096, %v1088, %v1104
  %v1113 = vsel %vm1097, %v1089, %v1105
  %v1114 = vsel %vm1098, %v1090, %v1106
  %v1115 = vmax.f32 %v961, %v1107
  %v1116 = vmax.f32 %v962, %v1108
  %v1117 = vmax.f32 %v963, %v1109
  %v1118 = vmax.f32 %v964, %v1110
  %v1119 = vmax.f32 %v965, %v1111
  %v1120 = vmax.f32 %v966, %v1112
  %v1121 = vmax.f32 %v967, %v1113
  %v1122 = vmax.f32 %v968, %v1114
  %s1123 = scalar_lea.vmem %s0, 192
  %v1124 = vld [vmem:[%s1123] sm:$0xf]
  %v1125 = vld [vmem:[%s1123 + $0x4] sm:$0xf]
  %v1126 = vld [vmem:[%s1123 + $0x8] sm:$0xf]
  %v1127 = vld [vmem:[%s1123 + $0xc] sm:$0xf]
  %v1128 = vld [vmem:[%s1123 + $0x10] sm:$0xf]
  %v1129 = vld [vmem:[%s1123 + $0x14] sm:$0xf]
  %v1130 = vld [vmem:[%s1123 + $0x18] sm:$0xf]
  %v1131 = vld [vmem:[%s1123 + $0x1c] sm:$0xf]
  %v1140 = vunpack.c.l.b16 %v1124
  %v1141 = vunpack.c.l.b16 %v1125
  %v1142 = vunpack.c.l.b16 %v1126
  %v1143 = vunpack.c.l.b16 %v1127
  %v1144 = vunpack.c.l.b16 %v1128
  %v1145 = vunpack.c.l.b16 %v1129
  %v1146 = vunpack.c.l.b16 %v1130
  %v1147 = vunpack.c.l.b16 %v1131
  %v1148 = vpack.c.b16 %v1141, %v1140
  %v1149 = vpack.c.b16 %v1143, %v1142
  %v1150 = vpack.c.b16 %v1145, %v1144
  %v1151 = vpack.c.b16 %v1147, %v1146
  %v1153 = vsel %vm94, %v1148, 0
  %v1156 = vsel %vm94, %v1149, 0
  %v1159 = vsel %vm94, %v1150, 0
  %v1162 = vsel %vm94, %v1151, 0
  %1164 = vmatprep.subr.bf16.mxu0 0
  %1165 = vmatpush1.bf16.msra.mxu0 0
  %1166 = vmatprep.subr.bf16.mxu0 0
  %1167 = vmatpush1.bf16.msra.mxu0 0
  %1168 = vmatprep.subr.bf16.mxu0 0
  %1169 = vmatpush1.bf16.msra.mxu0 0
  %1170 = vmatprep.subr.bf16.mxu0 0
  %1171 = vmatpush1.bf16.msra.mxu0 0
  %1172 = vmatprep.subr.bf16.mxu0 0
  %1173 = vmatpush1.bf16.msra.mxu0 %v219
  %1174 = vmatprep.subr.bf16.mxu0 0
  %1175 = vmatpush1.bf16.msra.mxu0 %v218
  %1176 = vmatprep.subr.bf16.mxu0 0
  %1177 = vmatpush1.bf16.msra.mxu0 %v217
  %1178 = vmatprep.subr.bf16.mxu0 0
  %1179 = vmatpush1.bf16.msra.mxu0 %v216
  %1180 = vmatprep.subr.bf16.mxu0 0
  %1181 = vmatpush2.bf16.msra.mxu0 0
  %1182 = vmatprep.subr.bf16.mxu0 0
  %1183 = vmatpush2.bf16.msra.mxu0 0
  %1184 = vmatprep.subr.bf16.mxu0 0
  %1185 = vmatpush2.bf16.msra.mxu0 0
  %1186 = vmatprep.subr.bf16.mxu0 0
  %1187 = vmatpush2.bf16.msra.mxu0 0
  %1188 = vmatprep.subr.bf16.mxu0 0
  %1189 = vmatpush2.bf16.msra.mxu0 0
  %1190 = vmatprep.subr.bf16.mxu0 0
  %1191 = vmatpush2.bf16.msra.mxu0 0
  %1192 = vmatprep.subr.bf16.mxu0 0
  %1193 = vmatpush2.bf16.msra.mxu0 0
  %1194 = vmatprep.subr.bf16.mxu0 0
  %1195 = vmatpush2.bf16.msra.mxu0 0
  %1196 = vmatprep.mubr.bf16.mxu0 0
  %1197 = vmatmul.mubr.bf16.gmra.mxu0 %v1153
  %v1198 = vpop.f32.mrf.mxu0
  %v1199 = vadd.f32 %v142, %v1198
  %v1200 = vpop.f32.mrf.mxu0
  %v1201 = vpop.f32.mrf.mxu0
  %v1202 = vadd.f32 %v145, %v1201
  %v1203 = vpop.f32.mrf.mxu0
  %1204 = vmatprep.mubr.bf16.mxu0 0
  %1205 = vmatmul.mubr.bf16.gmra.mxu0 %v1156
  %v1206 = vpop.f32.mrf.mxu0
  %v1207 = vadd.f32 %v150, %v1206
  %v1208 = vpop.f32.mrf.mxu0
  %v1209 = vpop.f32.mrf.mxu0
  %v1210 = vadd.f32 %v153, %v1209
  %v1211 = vpop.f32.mrf.mxu0
  %1212 = vmatprep.mubr.bf16.mxu0 0
  %1213 = vmatmul.mubr.bf16.gmra.mxu0 %v1159
  %v1214 = vpop.f32.mrf.mxu0
  %v1215 = vadd.f32 %v158, %v1214
  %v1216 = vpop.f32.mrf.mxu0
  %v1217 = vpop.f32.mrf.mxu0
  %v1218 = vadd.f32 %v161, %v1217
  %v1219 = vpop.f32.mrf.mxu0
  %1220 = vmatprep.mubr.bf16.mxu0 0
  %1221 = vmatmul.mubr.bf16.gmra.mxu0 %v1162
  %v1222 = vpop.f32.mrf.mxu0
  %v1223 = vadd.f32 %v166, %v1222
  %v1224 = vpop.f32.mrf.mxu0
  %v1225 = vpop.f32.mrf.mxu0
  %v1226 = vadd.f32 %v169, %v1225
  %v1227 = vpop.f32.mrf.mxu0
  %1228 = vdwg.mxu0
  %v1229 = vmul.f32 %v1199, %v305
  %v1230 = vmul.f32 %v1202, %v305
  %v1231 = vmul.f32 %v1207, %v305
  %v1232 = vmul.f32 %v1210, %v305
  %v1233 = vmul.f32 %v1215, %v305
  %v1234 = vmul.f32 %v1218, %v305
  %v1235 = vmul.f32 %v1223, %v305
  %v1236 = vmul.f32 %v1226, %v305
  %v1237 = vadd.f32 %v1229, %v319
  %v1238 = vadd.f32 %v1230, %v319
  %v1239 = vadd.f32 %v1231, %v319
  %v1240 = vadd.f32 %v1232, %v319
  %v1241 = vadd.f32 %v1233, %v319
  %v1242 = vadd.f32 %v1234, %v319
  %v1243 = vadd.f32 %v1235, %v319
  %v1244 = vadd.f32 %v1236, %v319
  %vm1245 = vcmp.ge.f32.partialorder %v1237, 0.0
  %vm1246 = vcmp.ge.f32.partialorder %v1238, 0.0
  %vm1247 = vcmp.ge.f32.partialorder %v1239, 0.0
  %vm1248 = vcmp.ge.f32.partialorder %v1240, 0.0
  %vm1249 = vcmp.ge.f32.partialorder %v1241, 0.0
  %vm1250 = vcmp.ge.f32.partialorder %v1242, 0.0
  %vm1251 = vcmp.ge.f32.partialorder %v1243, 0.0
  %vm1252 = vcmp.ge.f32.partialorder %v1244, 0.0
  %v1253 = vmul.f32 %v1237, 0.2
  %v1254 = vmul.f32 %v1238, 0.2
  %v1255 = vmul.f32 %v1239, 0.2
  %v1256 = vmul.f32 %v1240, 0.2
  %v1257 = vmul.f32 %v1241, 0.2
  %v1258 = vmul.f32 %v1242, 0.2
  %v1259 = vmul.f32 %v1243, 0.2
  %v1260 = vmul.f32 %v1244, 0.2
  %v1261 = vsel %vm1245, %v1237, %v1253
  %v1262 = vsel %vm1246, %v1238, %v1254
  %v1263 = vsel %vm1247, %v1239, %v1255
  %v1264 = vsel %vm1248, %v1240, %v1256
  %v1265 = vsel %vm1249, %v1241, %v1257
  %v1266 = vsel %vm1250, %v1242, %v1258
  %v1267 = vsel %vm1251, %v1243, %v1259
  %v1268 = vsel %vm1252, %v1244, %v1260
  %v1269 = vmax.f32 %v1115, %v1261
  %v1270 = vmax.f32 %v1116, %v1262
  %v1271 = vmax.f32 %v1117, %v1263
  %v1272 = vmax.f32 %v1118, %v1264
  %v1273 = vmax.f32 %v1119, %v1265
  %v1274 = vmax.f32 %v1120, %v1266
  %v1275 = vmax.f32 %v1121, %v1267
  %v1276 = vmax.f32 %v1122, %v1268
  %s1277 = scalar_lea.vmem %s0, 224
  %v1278 = vld [vmem:[%s1277] sm:$0xf]
  %v1279 = vld [vmem:[%s1277 + $0x4] sm:$0xf]
  %v1280 = vld [vmem:[%s1277 + $0x8] sm:$0xf]
  %v1281 = vld [vmem:[%s1277 + $0xc] sm:$0xf]
  %v1282 = vld [vmem:[%s1277 + $0x10] sm:$0xf]
  %v1283 = vld [vmem:[%s1277 + $0x14] sm:$0xf]
  %v1284 = vld [vmem:[%s1277 + $0x18] sm:$0xf]
  %v1285 = vld [vmem:[%s1277 + $0x1c] sm:$0xf]
  %v1294 = vunpack.c.l.b16 %v1278
  %v1295 = vunpack.c.l.b16 %v1279
  %v1296 = vunpack.c.l.b16 %v1280
  %v1297 = vunpack.c.l.b16 %v1281
  %v1298 = vunpack.c.l.b16 %v1282
  %v1299 = vunpack.c.l.b16 %v1283
  %v1300 = vunpack.c.l.b16 %v1284
  %v1301 = vunpack.c.l.b16 %v1285
  %v1302 = vpack.c.b16 %v1295, %v1294
  %v1303 = vpack.c.b16 %v1297, %v1296
  %v1304 = vpack.c.b16 %v1299, %v1298
  %v1305 = vpack.c.b16 %v1301, %v1300
  %v1307 = vsel %vm94, %v1302, 0
  %v1310 = vsel %vm94, %v1303, 0
  %v1313 = vsel %vm94, %v1304, 0
  %v1316 = vsel %vm94, %v1305, 0
  %1318 = vmatprep.subr.bf16.mxu0 0
  %1319 = vmatpush1.bf16.msra.mxu0 0
  %1320 = vmatprep.subr.bf16.mxu0 0
  %1321 = vmatpush1.bf16.msra.mxu0 0
  %1322 = vmatprep.subr.bf16.mxu0 0
  %1323 = vmatpush1.bf16.msra.mxu0 0
  %1324 = vmatprep.subr.bf16.mxu0 0
  %1325 = vmatpush1.bf16.msra.mxu0 0
  %1326 = vmatprep.subr.bf16.mxu0 0
  %1327 = vmatpush1.bf16.msra.mxu0 %v219
  %1328 = vmatprep.subr.bf16.mxu0 0
  %1329 = vmatpush1.bf16.msra.mxu0 %v218
  %1330 = vmatprep.subr.bf16.mxu0 0
  %1331 = vmatpush1.bf16.msra.mxu0 %v217
  %1332 = vmatprep.subr.bf16.mxu0 0
  %1333 = vmatpush1.bf16.msra.mxu0 %v216
  %1334 = vmatprep.subr.bf16.mxu0 0
  %1335 = vmatpush2.bf16.msra.mxu0 0
  %1336 = vmatprep.subr.bf16.mxu0 0
  %1337 = vmatpush2.bf16.msra.mxu0 0
  %1338 = vmatprep.subr.bf16.mxu0 0
  %1339 = vmatpush2.bf16.msra.mxu0 0
  %1340 = vmatprep.subr.bf16.mxu0 0
  %1341 = vmatpush2.bf16.msra.mxu0 0
  %1342 = vmatprep.subr.bf16.mxu0 0
  %1343 = vmatpush2.bf16.msra.mxu0 0
  %1344 = vmatprep.subr.bf16.mxu0 0
  %1345 = vmatpush2.bf16.msra.mxu0 0
  %1346 = vmatprep.subr.bf16.mxu0 0
  %1347 = vmatpush2.bf16.msra.mxu0 0
  %1348 = vmatprep.subr.bf16.mxu0 0
  %1349 = vmatpush2.bf16.msra.mxu0 0
  %1350 = vmatprep.mubr.bf16.mxu0 0
  %1351 = vmatmul.mubr.bf16.gmra.mxu0 %v1307
  %v1352 = vpop.f32.mrf.mxu0
  %v1353 = vadd.f32 %v142, %v1352
  %v1354 = vpop.f32.mrf.mxu0
  %v1355 = vpop.f32.mrf.mxu0
  %v1356 = vadd.f32 %v145, %v1355
  %v1357 = vpop.f32.mrf.mxu0
  %1358 = vmatprep.mubr.bf16.mxu0 0
  %1359 = vmatmul.mubr.bf16.gmra.mxu0 %v1310
  %v1360 = vpop.f32.mrf.mxu0
  %v1361 = vadd.f32 %v150, %v1360
  %v1362 = vpop.f32.mrf.mxu0
  %v1363 = vpop.f32.mrf.mxu0
  %v1364 = vadd.f32 %v153, %v1363
  %v1365 = vpop.f32.mrf.mxu0
  %1366 = vmatprep.mubr.bf16.mxu0 0
  %1367 = vmatmul.mubr.bf16.gmra.mxu0 %v1313
  %v1368 = vpop.f32.mrf.mxu0
  %v1369 = vadd.f32 %v158, %v1368
  %v1370 = vpop.f32.mrf.mxu0
  %v1371 = vpop.f32.mrf.mxu0
  %v1372 = vadd.f32 %v161, %v1371
  %v1373 = vpop.f32.mrf.mxu0
  %1374 = vmatprep.mubr.bf16.mxu0 0
  %1375 = vmatmul.mubr.bf16.gmra.mxu0 %v1316
  %v1376 = vpop.f32.mrf.mxu0
  %v1377 = vadd.f32 %v166, %v1376
  %v1378 = vpop.f32.mrf.mxu0
  %v1379 = vpop.f32.mrf.mxu0
  %v1380 = vadd.f32 %v169, %v1379
  %v1381 = vpop.f32.mrf.mxu0
  %1382 = vdwg.mxu0
  %v1383 = vmul.f32 %v1353, %v305
  %v1384 = vmul.f32 %v1356, %v305
  %v1385 = vmul.f32 %v1361, %v305
  %v1386 = vmul.f32 %v1364, %v305
  %v1387 = vmul.f32 %v1369, %v305
  %v1388 = vmul.f32 %v1372, %v305
  %v1389 = vmul.f32 %v1377, %v305
  %v1390 = vmul.f32 %v1380, %v305
  %v1391 = vadd.f32 %v1383, %v319
  %v1392 = vadd.f32 %v1384, %v319
  %v1393 = vadd.f32 %v1385, %v319
  %v1394 = vadd.f32 %v1386, %v319
  %v1395 = vadd.f32 %v1387, %v319
  %v1396 = vadd.f32 %v1388, %v319
  %v1397 = vadd.f32 %v1389, %v319
  %v1398 = vadd.f32 %v1390, %v319
  %vm1399 = vcmp.ge.f32.partialorder %v1391, 0.0
  %vm1400 = vcmp.ge.f32.partialorder %v1392, 0.0
  %vm1401 = vcmp.ge.f32.partialorder %v1393, 0.0
  %vm1402 = vcmp.ge.f32.partialorder %v1394, 0.0
  %vm1403 = vcmp.ge.f32.partialorder %v1395, 0.0
  %vm1404 = vcmp.ge.f32.partialorder %v1396, 0.0
  %vm1405 = vcmp.ge.f32.partialorder %v1397, 0.0
  %vm1406 = vcmp.ge.f32.partialorder %v1398, 0.0
  %v1407 = vmul.f32 %v1391, 0.2
  %v1408 = vmul.f32 %v1392, 0.2
  %v1409 = vmul.f32 %v1393, 0.2
  %v1410 = vmul.f32 %v1394, 0.2
  %v1411 = vmul.f32 %v1395, 0.2
  %v1412 = vmul.f32 %v1396, 0.2
  %v1413 = vmul.f32 %v1397, 0.2
  %v1414 = vmul.f32 %v1398, 0.2
  %v1415 = vsel %vm1399, %v1391, %v1407
  %v1416 = vsel %vm1400, %v1392, %v1408
  %v1417 = vsel %vm1401, %v1393, %v1409
  %v1418 = vsel %vm1402, %v1394, %v1410
  %v1419 = vsel %vm1403, %v1395, %v1411
  %v1420 = vsel %vm1404, %v1396, %v1412
  %v1421 = vsel %vm1405, %v1397, %v1413
  %v1422 = vsel %vm1406, %v1398, %v1414
  %v1423 = vmax.f32 %v1269, %v1415
  %v1424 = vmax.f32 %v1270, %v1416
  %v1425 = vmax.f32 %v1271, %v1417
  %v1426 = vmax.f32 %v1272, %v1418
  %v1427 = vmax.f32 %v1273, %v1419
  %v1428 = vmax.f32 %v1274, %v1420
  %v1429 = vmax.f32 %v1275, %v1421
  %v1430 = vmax.f32 %v1276, %v1422
  %1431 = vst.msk [vmem:[%s6] sm:$0xff] %vm94, %v1423
  %1432 = vst.msk [vmem:[%s6 + $0x8] sm:$0xff] %vm94, %v1424
  %1433 = vst.msk [vmem:[%s6 + $0x10] sm:$0xff] %vm94, %v1425
  %1434 = vst.msk [vmem:[%s6 + $0x18] sm:$0xff] %vm94, %v1426
  %1435 = vst.msk [vmem:[%s6 + $0x20] sm:$0xff] %vm94, %v1427
  %1436 = vst.msk [vmem:[%s6 + $0x28] sm:$0xff] %vm94, %v1428
  %1437 = vst.msk [vmem:[%s6 + $0x30] sm:$0xff] %vm94, %v1429
  %1438 = vst.msk [vmem:[%s6 + $0x38] sm:$0xff] %vm94, %v1430
  // Predicated region
  $region26: #{dgcnn_semseg_forward.13} parent=0 // pred_check
    _
  $region27: #{dgcnn_semseg_forward.13} parent=0 // pred_check_branch
    %1440 = sbr.rel (0) target = $region29
  $region28: #{dgcnn_semseg_forward.13} parent=0 // pred_region
    _
  $region29: #{dgcnn_semseg_forward.13} parent=0 // pred_fallthru
    _
  // Predicated region
  $region30: #{dgcnn_semseg_forward.13} parent=0 // pred_check
    _
  $region31: #{dgcnn_semseg_forward.13} parent=0 // pred_check_branch
    %1442 = sbr.rel (0) target = $region33
  $region32: #{dgcnn_semseg_forward.13} parent=0 // pred_region
    _
  $region33: #{dgcnn_semseg_forward.13} parent=0 // pred_fallthru
    _

// kernel: dgcnn_semseg_forward.15
$region0: #{dgcnn_semseg_forward.15}
  #allocation0 [shape = 'u32[]', space=smem, size = 0x4, offset = 0x4, fixed_abs, tag = 'smem constant byte address 0x4 - core index']
  #allocation1 [shape = 'u32[144,128]{1,0:T(1,128)}', space=vmem, size = 0x12000, scoped, tag = 'internal scratch']
  %s0 = inlined_call_operand.vmem [shape: bf16[2,32,192], index: 0, kind: input, shape index: {}]
  %s1 = inlined_call_operand.vmem [shape: f32[2,1,512], index: 1, kind: input, shape index: {}]
  %s2 = inlined_call_operand.vmem [shape: bf16[192,512], index: 2, kind: input, shape index: {}]
  %s3 = inlined_call_operand.vmem [shape: f32[1,512], index: 3, kind: input, shape index: {}]
  %s4 = inlined_call_operand.vmem [shape: f32[1,512], index: 4, kind: input, shape index: {}]
  %s5 = inlined_call_operand.vmem [shape: bf16[512,256], index: 5, kind: input, shape index: {}]
  %s6 = inlined_call_operand.vmem [shape: f32[1,256], index: 6, kind: input, shape index: {}]
  %s7 = inlined_call_operand.vmem [shape: f32[1,256], index: 7, kind: input, shape index: {}]
  %s8 = inlined_call_operand.vmem [shape: bf16[256,5], index: 8, kind: input, shape index: {}]
  %s9 = inlined_call_operand.vmem [shape: f32[2,32,5], index: 9, kind: output, shape index: {}]
  %s10 = sld [smem:[#allocation0]]
  $region69: #{dgcnn_semseg_forward.15} parent=0
    _
  %s12 = ssub.s32 1, %s10
  %s13 = scalar_select 0, %s12, %s10
  loop: start=0, step=1, limit=4
  $region2: #{dgcnn_semseg_forward.15} parent=0 // loop_pre_header
    _
  $region3: #{dgcnn_semseg_forward.15} parent=0 // loop_header
    %s15 = sphi 0, %s19
    %p16 = scmp.ge.s32.totalorder %s15, 4
    %s22 = sphi 0, %s34
    %s23 = sphi 0, %s30
    %s24 = sphi 0, %s22
    %s25 = sphi 0, %s23
    %s26 = sphi 0, %s24
    %s27 = sphi 0, %s25
    %s39 = sphi 0, %s41
    %s42 = sphi 0, %s39
    %s43 = sphi 0, %s42
    %s59 = sphi 0, %s43
    %s65 = sphi 0, %s67
    %s68 = sphi 0, %s65
    %s69 = sphi 0, %s68
    %s85 = sphi 0, %s69
    %s89 = sphi 0, %s89
    %s91 = sphi 0, %s89
    %s92 = sphi 0, %s91
    %s106 = sphi 0, %s92
    %s110 = sphi 0, %s110
    %s112 = sphi 0, %s110
    %s113 = sphi 0, %s112
    %s127 = sphi 0, %s113
    %s131 = sphi 0, %s131
    %s133 = sphi 0, %s131
    %s134 = sphi 0, %s133
    %s148 = sphi 0, %s134
    %s152 = sphi 0, %s152
    %s154 = sphi 0, %s152
    %s155 = sphi 0, %s154
    %s169 = sphi 0, %s155
    %s173 = sphi 0, %s173
    %s175 = sphi 0, %s173
    %s176 = sphi 0, %s175
    %s190 = sphi 0, %s176
    %s194 = sphi 0, %s194
    %s196 = sphi 0, %s194
    %s197 = sphi 0, %s196
    %s211 = sphi 0, %s197
    %s215 = sphi 0, %s215
    %s217 = sphi 0, %s215
    %s218 = sphi 0, %s217
    %s232 = sphi 0, %s218
    %s240 = sphi 0, %s242
    %s243 = sphi 0, %s240
    %s244 = sphi 0, %s243
    %s260 = sphi 0, %s244
  $region4: #{dgcnn_semseg_forward.15} parent=0 // loop_header_branch
    %18 = sbr.rel (%p16) target = $region8
  $region5: #{dgcnn_semseg_forward.15} parent=0 // loop_body
    %s20 = ssub.s32 %s15, 1
    %s21 = ssub.s32 %s15, 2
    %s28 = sadd.s32 1, %s23
    %p29 = scmp.ge.s32.totalorder %s28, 1
    %s30 = scalar_select %p29, 0, %s28
    %s31 = sadd.s32 1, %s22
    %s32 = scalar_select %p29, %s31, %s22
    %p33 = scmp.ge.s32.totalorder %s32, 2
    %s34 = scalar_select %p33, 0, %s32
    %s35 = ssub.s32 %s22, %s34
    %s36 = ssub.s32 %s23, %s30
    %s37 = sor.u32 %s35, %s36
    %p38 = scmp.eq.s32.totalorder %s37, 0
    %s40 = sadd.s32 %s39, 1
    %s41 = scalar_select %p38, %s39, %s40
    %p44 = pneg %p38
    %p45 = scmp.eq.s32.totalorder %s15, 1
    %p46 = por %p44, %p45
    %p47 = scmp.ne.s32.totalorder %s39, %s42
    %p48 = scmp.eq.s32.totalorder %s15, 0
    %p49 = por %p47, %p48
    %p50 = scmp.ne.s32.totalorder %s39, %s42
    %p51 = scmp.eq.s32.totalorder %s20, 1
    %p52 = por %p50, %p51
    %p53 = scmp.ne.s32.totalorder %s42, %s43
    %p54 = scmp.eq.s32.totalorder %s20, 0
    %p55 = por %p53, %p54
    %p56 = scmp.ne.s32.totalorder %s42, %s43
    %p57 = scmp.eq.s32.totalorder %s21, 1
    %p58 = por %p56, %p57
    %p60 = scmp.ne.s32.totalorder %s43, %s59
    %p61 = scmp.eq.s32.totalorder %s21, 0
    %p62 = por %p60, %p61
    %s63 = ssub.s32 %s22, %s34
    %p64 = scmp.eq.s32.totalorder %s63, 0
    %s66 = sadd.s32 %s65, 1
    %s67 = scalar_select %p64, %s65, %s66
    %p70 = pneg %p64
    %p71 = scmp.eq.s32.totalorder %s15, 1
    %p72 = por %p70, %p71
    %p73 = scmp.ne.s32.totalorder %s65, %s68
    %p74 = scmp.eq.s32.totalorder %s15, 0
    %p75 = por %p73, %p74
    %p76 = scmp.ne.s32.totalorder %s65, %s68
    %p77 = scmp.eq.s32.totalorder %s20, 1
    %p78 = por %p76, %p77
    %p79 = scmp.ne.s32.totalorder %s68, %s69
    %p80 = scmp.eq.s32.totalorder %s20, 0
    %p81 = por %p79, %p80
    %p82 = scmp.ne.s32.totalorder %s68, %s69
    %p83 = scmp.eq.s32.totalorder %s21, 1
    %p84 = por %p82, %p83
    %p86 = scmp.ne.s32.totalorder %s69, %s85
    %p87 = scmp.eq.s32.totalorder %s21, 0
    %p88 = por %p86, %p87
    %s90 = sadd.s32 %s89, 1
    %p93 = scmp.eq.s32.totalorder %s15, 1
    %p94 = scmp.ne.s32.totalorder %s89, %s91
    %p95 = scmp.eq.s32.totalorder %s15, 0
    %p96 = por %p94, %p95
    %p97 = scmp.ne.s32.totalorder %s89, %s91
    %p98 = scmp.eq.s32.totalorder %s20, 1
    %p99 = por %p97, %p98
    %p100 = scmp.ne.s32.totalorder %s91, %s92
    %p101 = scmp.eq.s32.totalorder %s20, 0
    %p102 = por %p100, %p101
    %p103 = scmp.ne.s32.totalorder %s91, %s92
    %p104 = scmp.eq.s32.totalorder %s21, 1
    %p105 = por %p103, %p104
    %p107 = scmp.ne.s32.totalorder %s92, %s106
    %p108 = scmp.eq.s32.totalorder %s21, 0
    %p109 = por %p107, %p108
    %s111 = sadd.s32 %s110, 1
    %p114 = scmp.eq.s32.totalorder %s15, 1
    %p115 = scmp.ne.s32.totalorder %s110, %s112
    %p116 = scmp.eq.s32.totalorder %s15, 0
    %p117 = por %p115, %p116
    %p118 = scmp.ne.s32.totalorder %s110, %s112
    %p119 = scmp.eq.s32.totalorder %s20, 1
    %p120 = por %p118, %p119
    %p121 = scmp.ne.s32.totalorder %s112, %s113
    %p122 = scmp.eq.s32.totalorder %s20, 0
    %p123 = por %p121, %p122
    %p124 = scmp.ne.s32.totalorder %s112, %s113
    %p125 = scmp.eq.s32.totalorder %s21, 1
    %p126 = por %p124, %p125
    %p128 = scmp.ne.s32.totalorder %s113, %s127
    %p129 = scmp.eq.s32.totalorder %s21, 0
    %p130 = por %p128, %p129
    %s132 = sadd.s32 %s131, 1
    %p135 = scmp.eq.s32.totalorder %s15, 1
    %p136 = scmp.ne.s32.totalorder %s131, %s133
    %p137 = scmp.eq.s32.totalorder %s15, 0
    %p138 = por %p136, %p137
    %p139 = scmp.ne.s32.totalorder %s131, %s133
    %p140 = scmp.eq.s32.totalorder %s20, 1
    %p141 = por %p139, %p140
    %p142 = scmp.ne.s32.totalorder %s133, %s134
    %p143 = scmp.eq.s32.totalorder %s20, 0
    %p144 = por %p142, %p143
    %p145 = scmp.ne.s32.totalorder %s133, %s134
    %p146 = scmp.eq.s32.totalorder %s21, 1
    %p147 = por %p145, %p146
    %p149 = scmp.ne.s32.totalorder %s134, %s148
    %p150 = scmp.eq.s32.totalorder %s21, 0
    %p151 = por %p149, %p150
    %s153 = sadd.s32 %s152, 1
    %p156 = scmp.eq.s32.totalorder %s15, 1
    %p157 = scmp.ne.s32.totalorder %s152, %s154
    %p158 = scmp.eq.s32.totalorder %s15, 0
    %p159 = por %p157, %p158
    %p160 = scmp.ne.s32.totalorder %s152, %s154
    %p161 = scmp.eq.s32.totalorder %s20, 1
    %p162 = por %p160, %p161
    %p163 = scmp.ne.s32.totalorder %s154, %s155
    %p164 = scmp.eq.s32.totalorder %s20, 0
    %p165 = por %p163, %p164
    %p166 = scmp.ne.s32.totalorder %s154, %s155
    %p167 = scmp.eq.s32.totalorder %s21, 1
    %p168 = por %p166, %p167
    %p170 = scmp.ne.s32.totalorder %s155, %s169
    %p171 = scmp.eq.s32.totalorder %s21, 0
    %p172 = por %p170, %p171
    %s174 = sadd.s32 %s173, 1
    %p177 = scmp.eq.s32.totalorder %s15, 1
    %p178 = scmp.ne.s32.totalorder %s173, %s175
    %p179 = scmp.eq.s32.totalorder %s15, 0
    %p180 = por %p178, %p179
    %p181 = scmp.ne.s32.totalorder %s173, %s175
    %p182 = scmp.eq.s32.totalorder %s20, 1
    %p183 = por %p181, %p182
    %p184 = scmp.ne.s32.totalorder %s175, %s176
    %p185 = scmp.eq.s32.totalorder %s20, 0
    %p186 = por %p184, %p185
    %p187 = scmp.ne.s32.totalorder %s175, %s176
    %p188 = scmp.eq.s32.totalorder %s21, 1
    %p189 = por %p187, %p188
    %p191 = scmp.ne.s32.totalorder %s176, %s190
    %p192 = scmp.eq.s32.totalorder %s21, 0
    %p193 = por %p191, %p192
    %s195 = sadd.s32 %s194, 1
    %p198 = scmp.eq.s32.totalorder %s15, 1
    %p199 = scmp.ne.s32.totalorder %s194, %s196
    %p200 = scmp.eq.s32.totalorder %s15, 0
    %p201 = por %p199, %p200
    %p202 = scmp.ne.s32.totalorder %s194, %s196
    %p203 = scmp.eq.s32.totalorder %s20, 1
    %p204 = por %p202, %p203
    %p205 = scmp.ne.s32.totalorder %s196, %s197
    %p206 = scmp.eq.s32.totalorder %s20, 0
    %p207 = por %p205, %p206
    %p208 = scmp.ne.s32.totalorder %s196, %s197
    %p209 = scmp.eq.s32.totalorder %s21, 1
    %p210 = por %p208, %p209
    %p212 = scmp.ne.s32.totalorder %s197, %s211
    %p213 = scmp.eq.s32.totalorder %s21, 0
    %p214 = por %p212, %p213
    %s216 = sadd.s32 %s215, 1
    %p219 = scmp.eq.s32.totalorder %s15, 1
    %p220 = scmp.ne.s32.totalorder %s215, %s217
    %p221 = scmp.eq.s32.totalorder %s15, 0
    %p222 = por %p220, %p221
    %p223 = scmp.ne.s32.totalorder %s215, %s217
    %p224 = scmp.eq.s32.totalorder %s20, 1
    %p225 = por %p223, %p224
    %p226 = scmp.ne.s32.totalorder %s217, %s218
    %p227 = scmp.eq.s32.totalorder %s20, 0
    %p228 = por %p226, %p227
    %p229 = scmp.ne.s32.totalorder %s217, %s218
    %p230 = scmp.eq.s32.totalorder %s21, 1
    %p231 = por %p229, %p230
    %p233 = scmp.ne.s32.totalorder %s218, %s232
    %p234 = scmp.eq.s32.totalorder %s21, 0
    %p235 = por %p233, %p234
    %s236 = ssub.s32 %s22, %s34
    %s237 = ssub.s32 %s23, %s30
    %s238 = sor.u32 %s236, %s237
    %p239 = scmp.eq.s32.totalorder %s238, 0
    %s241 = sadd.s32 %s240, 1
    %s242 = scalar_select %p239, %s240, %s241
    %p245 = pneg %p239
    %p246 = scmp.eq.s32.totalorder %s15, 1
    %p247 = por %p245, %p246
    %p248 = scmp.ne.s32.totalorder %s240, %s243
    %p249 = scmp.eq.s32.totalorder %s15, 0
    %p250 = por %p248, %p249
    %p251 = scmp.ne.s32.totalorder %s240, %s243
    %p252 = scmp.eq.s32.totalorder %s20, 1
    %p253 = por %p251, %p252
    %p254 = scmp.ne.s32.totalorder %s243, %s244
    %p255 = scmp.eq.s32.totalorder %s20, 0
    %p256 = por %p254, %p255
    %p257 = scmp.ne.s32.totalorder %s243, %s244
    %p258 = scmp.eq.s32.totalorder %s21, 1
    %p259 = por %p257, %p258
    %p261 = scmp.ne.s32.totalorder %s244, %s260
    %p262 = scmp.eq.s32.totalorder %s21, 0
    %p263 = por %p261, %p262
    %p264 = scmp.le.s32.totalorder 1, %s15
    %p265 = scmp.lt.s32.totalorder %s15, 3
    %p266 = pnand %p264, %p265
    %p267 = pneg %p266
    // Predicated region
    $region9: #{dgcnn_semseg_forward.15} parent=5 // pred_check
      _
    $region10: #{dgcnn_semseg_forward.15} parent=5 // pred_check_branch
      %269 = sbr.rel (%p266) target = $region12
    $region11: #{dgcnn_semseg_forward.15} parent=5 // pred_region
      %s270 = ssub.s32 %s15, 1
      // Predicated region
      $region13: #{dgcnn_semseg_forward.15} parent=11 // pred_check
        %p271 = pneg %p102
      $region14: #{dgcnn_semseg_forward.15} parent=11 // pred_check_branch
        %273 = sbr.rel (%p271) target = $region16
      $region15: #{dgcnn_semseg_forward.15} parent=11 // pred_region
        _
      $region16: #{dgcnn_semseg_forward.15} parent=11 // pred_fallthru
        _
      // Predicated region
      $region17: #{dgcnn_semseg_forward.15} parent=11 // pred_check
        %p274 = pneg %p123
      $region18: #{dgcnn_semseg_forward.15} parent=11 // pred_check_branch
        %276 = sbr.rel (%p274) target = $region20
      $region19: #{dgcnn_semseg_forward.15} parent=11 // pred_region
        _
      $region20: #{dgcnn_semseg_forward.15} parent=11 // pred_fallthru
        _
      // Predicated region
      $region21: #{dgcnn_semseg_forward.15} parent=11 // pred_check
        %p277 = pneg %p144
      $region22: #{dgcnn_semseg_forward.15} parent=11 // pred_check_branch
        %279 = sbr.rel (%p277) target = $region24
      $region23: #{dgcnn_semseg_forward.15} parent=11 // pred_region
        _
      $region24: #{dgcnn_semseg_forward.15} parent=11 // pred_fallthru
        _
      // Predicated region
      $region25: #{dgcnn_semseg_forward.15} parent=11 // pred_check
        %p280 = pneg %p165
      $region26: #{dgcnn_semseg_forward.15} parent=11 // pred_check_branch
        %282 = sbr.rel (%p280) target = $region28
      $region27: #{dgcnn_semseg_forward.15} parent=11 // pred_region
        _
      $region28: #{dgcnn_semseg_forward.15} parent=11 // pred_fallthru
        _
      // Predicated region
      $region29: #{dgcnn_semseg_forward.15} parent=11 // pred_check
        %p283 = pneg %p186
      $region30: #{dgcnn_semseg_forward.15} parent=11 // pred_check_branch
        %285 = sbr.rel (%p283) target = $region32
      $region31: #{dgcnn_semseg_forward.15} parent=11 // pred_region
        _
      $region32: #{dgcnn_semseg_forward.15} parent=11 // pred_fallthru
        _
      // Predicated region
      $region33: #{dgcnn_semseg_forward.15} parent=11 // pred_check
        %p286 = pneg %p207
      $region34: #{dgcnn_semseg_forward.15} parent=11 // pred_check_branch
        %288 = sbr.rel (%p286) target = $region36
      $region35: #{dgcnn_semseg_forward.15} parent=11 // pred_region
        _
      $region36: #{dgcnn_semseg_forward.15} parent=11 // pred_fallthru
        _
      // Predicated region
      $region37: #{dgcnn_semseg_forward.15} parent=11 // pred_check
        %p289 = pneg %p228
      $region38: #{dgcnn_semseg_forward.15} parent=11 // pred_check_branch
        %291 = sbr.rel (%p289) target = $region40
      $region39: #{dgcnn_semseg_forward.15} parent=11 // pred_region
        _
      $region40: #{dgcnn_semseg_forward.15} parent=11 // pred_fallthru
        _
    $region12: #{dgcnn_semseg_forward.15} parent=5 // pred_fallthru
      _
    %p292 = scmp.lt.s32.totalorder %s15, 2
    // Predicated region
    $region41: #{dgcnn_semseg_forward.15} parent=5 // pred_check
      %p293 = pneg %p292
    $region42: #{dgcnn_semseg_forward.15} parent=5 // pred_check_branch
      %295 = sbr.rel (%p293) target = $region44
    $region43: #{dgcnn_semseg_forward.15} parent=5 // pred_region
      // Predicated region
      $region45: #{dgcnn_semseg_forward.15} parent=43 // pred_check
        %p296 = pneg %p49
      $region46: #{dgcnn_semseg_forward.15} parent=43 // pred_check_branch
        %298 = sbr.rel (%p296) target = $region48
      $region47: #{dgcnn_semseg_forward.15} parent=43 // pred_region
        %s299 = smul.u32 4, %s23
        %p300 = scmp.lt.s32.totalorder %s22, 1
        %s301 = scalar_select %p300, %s22, 1
        %p302 = scmp.lt.s32.totalorder %s299, 3
        %s303 = scalar_select %p302, %s299, 3
        %s304 = smul.addr %s303, 2
        %s305 = smul.addr %s301, 8
        %s306 = sadd.s32 %s304, %s305
        %s307 = smul.addr %s306, 4
        %s308 = scalar_lea.vmem %s0, %s307
        %s309 = smul.u32 4, %s23
      $region48: #{dgcnn_semseg_forward.15} parent=43 // pred_fallthru
        _
      // Predicated region
      $region49: #{dgcnn_semseg_forward.15} parent=43 // pred_check
        %p310 = pneg %p75
      $region50: #{dgcnn_semseg_forward.15} parent=43 // pred_check_branch
        %312 = sbr.rel (%p310) target = $region52
      $region51: #{dgcnn_semseg_forward.15} parent=43 // pred_region
        %p313 = scmp.lt.s32.totalorder %s22, 1
        %s314 = scalar_select %p313, %s22, 1
        %s315 = smul.addr %s314, 4
        %s316 = scalar_lea.vmem %s1, %s315
      $region52: #{dgcnn_semseg_forward.15} parent=43 // pred_fallthru
        _
    $region44: #{dgcnn_semseg_forward.15} parent=5 // pred_fallthru
      _
    %p317 = scmp.le.s32.totalorder 1, %s15
    %p318 = scmp.lt.s32.totalorder %s15, 3
    %p319 = pnand %p317, %p318
    %p320 = pneg %p319
    // Predicated region
    $region53: #{dgcnn_semseg_forward.15} parent=5 // pred_check
      _
    $region54: #{dgcnn_semseg_forward.15} parent=5 // pred_check_branch
      %322 = sbr.rel (%p319) target = $region56
    $region55: #{dgcnn_semseg_forward.15} parent=5 // pred_region
      %s323 = ssub.s32 %s15, 1
      %s324 = smul.u32 4, %s25
      %p325 = scmp.lt.s32.totalorder %s24, 1
      %s326 = scalar_select %p325, %s24, 1
      %p327 = scmp.lt.s32.totalorder %s324, 3
      %s328 = scalar_select %p327, %s324, 3
      %s329 = smul.addr %s328, 2
      %s330 = smul.addr %s326, 8
      %s331 = sadd.s32 %s329, %s330
      %s332 = smul.addr %s331, 4
      %s333 = scalar_lea.vmem %s0, %s332
      %p334 = pneg %p55
      %p335 = pneg %p52
      %p336 = scmp.lt.s32.totalorder %s24, 1
      %s337 = scalar_select %p336, %s24, 1
      %s338 = smul.addr %s337, 4
      %s339 = scalar_lea.vmem %s1, %s338
      %p340 = pneg %p81
      %p341 = pneg %p78
      %p342 = pneg %p102
      %p343 = pneg %p99
      %p344 = pneg %p123
      %p345 = pneg %p120
      %p346 = pneg %p144
      %p347 = pneg %p141
      %p348 = pneg %p165
      %p349 = pneg %p162
      %p350 = pneg %p186
      %p351 = pneg %p183
      %p352 = pneg %p207
      %p353 = pneg %p204
      %p354 = pneg %p228
      %p355 = pneg %p225
      %p356 = pneg %p256
      %p357 = pneg %p253
      %s358 = smul.u32 4, %s25
      %p359 = scmp.lt.s32.totalorder %s24, 1
      %s360 = scalar_select %p359, %s24, 1
      %p361 = scmp.lt.s32.totalorder %s358, 3
      %s362 = scalar_select %p361, %s358, 3
      %s363 = smul.addr %s360, 4
      %s364 = sadd.s32 %s362, %s363
      %s365 = smul.addr %s364, 8
      %s366 = scalar_lea.vmem %s9, %s365
      %s367 = smul.u32 4, %s25
      %p368 = scmp.lt.s32.totalorder %s24, 1
      %s369 = scalar_select %p368, %s24, 1
      %p370 = scmp.lt.s32.totalorder %s367, 3
      %s371 = scalar_select %p370, %s367, 3
      %s372 = smul.addr %s371, 2
      %s373 = smul.addr %s369, 8
      %s374 = sadd.s32 %s372, %s373
      %s375 = smul.addr %s374, 4
      %s376 = scalar_lea.vmem %s0, %s375
      %s377 = smul.u32 4, %s25
      %p378 = scmp.lt.s32.totalorder %s24, 1
      %s379 = scalar_select %p378, %s24, 1
      %s380 = smul.addr %s379, 4
      %s381 = scalar_lea.vmem %s1, %s380
      %s382 = smul.u32 4, %s25
      %p383 = scmp.lt.s32.totalorder %s24, 1
      %s384 = scalar_select %p383, %s24, 1
      %p385 = scmp.lt.s32.totalorder %s382, 3
      %s386 = scalar_select %p385, %s382, 3
      %s387 = smul.addr %s384, 4
      %s388 = sadd.s32 %s386, %s387
      %s389 = smul.addr %s388, 8
      %s390 = scalar_lea.vmem %s9, %s389
      %s391 = smul.u32 4, %s25
      %v393 = vld [vmem:[%s376] sm:$0xff]
      %v394 = vld [vmem:[%s376 + $0x8] sm:$0xff]
      %v395 = vld [vmem:[%s376 + $0x10] sm:$0xff]
      %v396 = vld [vmem:[%s376 + $0x18] sm:$0xff]
      %v397 = vld [vmem:[%s2] sm:$0xff]
      %v398 = vld [vmem:[%s2 + $0x8] sm:$0xff]
      %v399 = vld [vmem:[%s2 + $0x10] sm:$0xff]
      %v400 = vld [vmem:[%s2 + $0x18] sm:$0xff]
      %v401 = vld [vmem:[%s2 + $0x20] sm:$0xff]
      %v402 = vld [vmem:[%s2 + $0x28] sm:$0xff]
      %v403 = vld [vmem:[%s2 + $0x30] sm:$0xff]
      %v404 = vld [vmem:[%s2 + $0x38] sm:$0xff]
      %v405 = vld [vmem:[%s2 + $0x40] sm:$0xff]
      %v406 = vld [vmem:[%s2 + $0x48] sm:$0xff]
      %v407 = vld [vmem:[%s2 + $0x50] sm:$0xff]
      %v408 = vld [vmem:[%s2 + $0x58] sm:$0xff]
      %v409 = vld [vmem:[%s2 + $0x60] sm:$0xff]
      %v410 = vld [vmem:[%s2 + $0x68] sm:$0xff]
      %v411 = vld [vmem:[%s2 + $0x70] sm:$0xff]
      %v412 = vld [vmem:[%s2 + $0x78] sm:$0xff]
      %v413 = vld [vmem:[%s2 + $0x80] sm:$0xff]
      %v414 = vld [vmem:[%s2 + $0x88] sm:$0xff]
      %v415 = vld [vmem:[%s2 + $0x90] sm:$0xff]
      %v416 = vld [vmem:[%s2 + $0x98] sm:$0xff]
      %v417 = vld [vmem:[%s2 + $0xa0] sm:$0xff]
      %v418 = vld [vmem:[%s2 + $0xa8] sm:$0xff]
      %v419 = vld [vmem:[%s2 + $0xb0] sm:$0xff]
      %v420 = vld [vmem:[%s2 + $0xb8] sm:$0xff]
      %v421 = vld [vmem:[%s2 + $0xc0] sm:$0xff]
      %v422 = vld [vmem:[%s2 + $0xc8] sm:$0xff]
      %v423 = vld [vmem:[%s2 + $0xd0] sm:$0xff]
      %v424 = vld [vmem:[%s2 + $0xd8] sm:$0xff]
      %v425 = vld [vmem:[%s2 + $0xe0] sm:$0xff]
      %v426 = vld [vmem:[%s2 + $0xe8] sm:$0xff]
      %v427 = vld [vmem:[%s2 + $0xf0] sm:$0xff]
      %v428 = vld [vmem:[%s2 + $0xf8] sm:$0xff]
      %v429 = vld [vmem:[%s2 + $0x100] sm:$0xff]
      %v430 = vld [vmem:[%s2 + $0x108] sm:$0xff]
      %v431 = vld [vmem:[%s2 + $0x110] sm:$0xff]
      %v432 = vld [vmem:[%s2 + $0x118] sm:$0xff]
      %v433 = vld [vmem:[%s2 + $0x120] sm:$0xff]
      %v434 = vld [vmem:[%s2 + $0x128] sm:$0xff]
      %v435 = vld [vmem:[%s2 + $0x130] sm:$0xff]
      %v436 = vld [vmem:[%s2 + $0x138] sm:$0xff]
      %v437 = vld [vmem:[%s2 + $0x140] sm:$0xff]
      %v438 = vld [vmem:[%s2 + $0x148] sm:$0xff]
      %v439 = vld [vmem:[%s2 + $0x150] sm:$0xff]
      %v440 = vld [vmem:[%s2 + $0x158] sm:$0xff]
      %v441 = vld [vmem:[%s2 + $0x160] sm:$0xff]
      %v442 = vld [vmem:[%s2 + $0x168] sm:$0xff]
      %v443 = vld [vmem:[%s2 + $0x170] sm:$0xff]
      %v444 = vld [vmem:[%s2 + $0x178] sm:$0xff]
      %v445 = vld [vmem:[%s381] sm:$0xf]
      %v447 = vlaneseq
      %v448 = vshrl.u32 %v447, 7
      %v449 = vsub.s32 0, %v448
      %v450 = vrot.slane %v445, %v449
      %v451 = vlaneseq
      %v452 = vshrl.u32 %v451, 7
      %v453 = vsub.s32 1, %v452
      %v454 = vrot.slane %v445, %v453
      %v455 = vlaneseq
      %v456 = vshrl.u32 %v455, 7
      %v457 = vsub.s32 2, %v456
      %v458 = vrot.slane %v445, %v457
      %v459 = vlaneseq
      %v460 = vshrl.u32 %v459, 7
      %v461 = vsub.s32 3, %v460
      %v462 = vrot.slane %v445, %v461
      %v471 = vunpack.c.l.b16 %v393
      %v472 = vunpack.c.h.b16 %v393
      %v473 = vunpack.c.l.b16 %v394
      %v474 = vunpack.c.h.b16 %v394
      %v475 = vunpack.c.l.b16 %v395
      %v476 = vunpack.c.h.b16 %v395
      %v477 = vunpack.c.l.b16 %v396
      %v478 = vunpack.c.h.b16 %v396
      %v479 = vpack.c.b16 %v473, %v471
      %v480 = vpack.c.b16 %v474, %v472
      %v481 = vpack.c.b16 %v477, %v475
      %v482 = vpack.c.b16 %v478, %v476
      %v533 = vunpack.c.l.b16 %v397
      %v534 = vunpack.c.h.b16 %v397
      %v535 = vunpack.c.l.b16 %v398
      %v536 = vunpack.c.h.b16 %v398
      %v537 = vunpack.c.l.b16 %v399
      %v538 = vunpack.c.h.b16 %v399
      %v539 = vunpack.c.l.b16 %v400
      %v540 = vunpack.c.h.b16 %v400
      %v541 = vunpack.c.l.b16 %v401
      %v542 = vunpack.c.h.b16 %v401
      %v543 = vunpack.c.l.b16 %v402
      %v544 = vunpack.c.h.b16 %v402
      %v545 = vunpack.c.l.b16 %v403
      %v546 = vunpack.c.h.b16 %v403
      %v547 = vunpack.c.l.b16 %v404
      %v548 = vunpack.c.h.b16 %v404
      %v549 = vunpack.c.l.b16 %v405
      %v550 = vunpack.c.h.b16 %v405
      %v551 = vunpack.c.l.b16 %v406
      %v552 = vunpack.c.h.b16 %v406
      %v553 = vunpack.c.l.b16 %v407
      %v554 = vunpack.c.h.b16 %v407
      %v555 = vunpack.c.l.b16 %v408
      %v556 = vunpack.c.h.b16 %v408
      %v557 = vunpack.c.l.b16 %v409
      %v558 = vunpack.c.h.b16 %v409
      %v559 = vunpack.c.l.b16 %v410
      %v560 = vunpack.c.h.b16 %v410
      %v561 = vunpack.c.l.b16 %v411
      %v562 = vunpack.c.h.b16 %v411
      %v563 = vunpack.c.l.b16 %v412
      %v564 = vunpack.c.h.b16 %v412
      %v565 = vunpack.c.l.b16 %v413
      %v566 = vunpack.c.h.b16 %v413
      %v567 = vunpack.c.l.b16 %v414
      %v568 = vunpack.c.h.b16 %v414
      %v569 = vunpack.c.l.b16 %v415
      %v570 = vunpack.c.h.b16 %v415
      %v571 = vunpack.c.l.b16 %v416
      %v572 = vunpack.c.h.b16 %v416
      %v573 = vunpack.c.l.b16 %v417
      %v574 = vunpack.c.h.b16 %v417
      %v575 = vunpack.c.l.b16 %v418
      %v576 = vunpack.c.h.b16 %v418
      %v577 = vunpack.c.l.b16 %v419
      %v578 = vunpack.c.h.b16 %v419
      %v579 = vunpack.c.l.b16 %v420
      %v580 = vunpack.c.h.b16 %v420
      %v581 = vunpack.c.l.b16 %v421
      %v582 = vunpack.c.h.b16 %v421
      %v583 = vunpack.c.l.b16 %v422
      %v584 = vunpack.c.h.b16 %v422
      %v585 = vunpack.c.l.b16 %v423
      %v586 = vunpack.c.h.b16 %v423
      %v587 = vunpack.c.l.b16 %v424
      %v588 = vunpack.c.h.b16 %v424
      %v589 = vunpack.c.l.b16 %v425
      %v590 = vunpack.c.h.b16 %v425
      %v591 = vunpack.c.l.b16 %v426
      %v592 = vunpack.c.h.b16 %v426
      %v593 = vunpack.c.l.b16 %v427
      %v594 = vunpack.c.h.b16 %v427
      %v595 = vunpack.c.l.b16 %v428
      %v596 = vunpack.c.h.b16 %v428
      %v597 = vunpack.c.l.b16 %v429
      %v598 = vunpack.c.h.b16 %v429
      %v599 = vunpack.c.l.b16 %v430
      %v600 = vunpack.c.h.b16 %v430
      %v601 = vunpack.c.l.b16 %v431
      %v602 = vunpack.c.h.b16 %v431
      %v603 = vunpack.c.l.b16 %v432
      %v604 = vunpack.c.h.b16 %v432
      %v605 = vunpack.c.l.b16 %v433
      %v606 = vunpack.c.h.b16 %v433
      %v607 = vunpack.c.l.b16 %v434
      %v608 = vunpack.c.h.b16 %v434
      %v609 = vunpack.c.l.b16 %v435
      %v610 = vunpack.c.h.b16 %v435
      %v611 = vunpack.c.l.b16 %v436
      %v612 = vunpack.c.h.b16 %v436
      %v613 = vunpack.c.l.b16 %v437
      %v614 = vunpack.c.h.b16 %v437
      %v615 = vunpack.c.l.b16 %v438
      %v616 = vunpack.c.h.b16 %v438
      %v617 = vunpack.c.l.b16 %v439
      %v618 = vunpack.c.h.b16 %v439
      %v619 = vunpack.c.l.b16 %v440
      %v620 = vunpack.c.h.b16 %v440
      %v621 = vunpack.c.l.b16 %v441
      %v622 = vunpack.c.h.b16 %v441
      %v623 = vunpack.c.l.b16 %v442
      %v624 = vunpack.c.h.b16 %v442
      %v625 = vunpack.c.l.b16 %v443
      %v626 = vunpack.c.h.b16 %v443
      %v627 = vunpack.c.l.b16 %v444
      %v628 = vunpack.c.h.b16 %v444
      %v629 = vpack.c.b16 %v537, %v533
      %v630 = vpack.c.b16 %v538, %v534
      %v631 = vpack.c.b16 %v539, %v535
      %v632 = vpack.c.b16 %v540, %v536
      %v633 = vpack.c.b16 %v545, %v541
      %v634 = vpack.c.b16 %v546, %v542
      %v635 = vpack.c.b16 %v547, %v543
      %v636 = vpack.c.b16 %v548, %v544
      %v637 = vpack.c.b16 %v553, %v549
      %v638 = vpack.c.b16 %v554, %v550
      %v639 = vpack.c.b16 %v555, %v551
      %v640 = vpack.c.b16 %v556, %v552
      %v641 = vpack.c.b16 %v561, %v557
      %v642 = vpack.c.b16 %v562, %v558
      %v643 = vpack.c.b16 %v563, %v559
      %v644 = vpack.c.b16 %v564, %v560
      %v645 = vpack.c.b16 %v569, %v565
      %v646 = vpack.c.b16 %v570, %v566
      %v647 = vpack.c.b16 %v571, %v567
      %v648 = vpack.c.b16 %v572, %v568
      %v649 = vpack.c.b16 %v577, %v573
      %v650 = vpack.c.b16 %v578, %v574
      %v651 = vpack.c.b16 %v579, %v575
      %v652 = vpack.c.b16 %v580, %v576
      %v653 = vpack.c.b16 %v585, %v581
      %v654 = vpack.c.b16 %v586, %v582
      %v655 = vpack.c.b16 %v587, %v583
      %v656 = vpack.c.b16 %v588, %v584
      %v657 = vpack.c.b16 %v593, %v589
      %v658 = vpack.c.b16 %v594, %v590
      %v659 = vpack.c.b16 %v595, %v591
      %v660 = vpack.c.b16 %v596, %v592
      %v661 = vpack.c.b16 %v601, %v597
      %v662 = vpack.c.b16 %v602, %v598
      %v663 = vpack.c.b16 %v603, %v599
      %v664 = vpack.c.b16 %v604, %v600
      %v665 = vpack.c.b16 %v609, %v605
      %v666 = vpack.c.b16 %v610, %v606
      %v667 = vpack.c.b16 %v611, %v607
      %v668 = vpack.c.b16 %v612, %v608
      %v669 = vpack.c.b16 %v617, %v613
      %v670 = vpack.c.b16 %v618, %v614
      %v671 = vpack.c.b16 %v619, %v615
      %v672 = vpack.c.b16 %v620, %v616
      %v673 = vpack.c.b16 %v625, %v621
      %v674 = vpack.c.b16 %v626, %v622
      %v675 = vpack.c.b16 %v627, %v623
      %v676 = vpack.c.b16 %v628, %v624
      %vm725 = vcmask 523264
      %v727 = vsel %vm725, %v480, 0
      %v730 = vsel %vm725, %v482, 0
      %732 = vmatprep.subr.bf16.mxu0 %v658
      %733 = vmatpush1.bf16.msra.mxu0 %v657
      %734 = vmatprep.subr.bf16.mxu0 %v654
      %735 = vmatpush1.bf16.msra.mxu0 %v653
      %736 = vmatprep.subr.bf16.mxu0 %v650
      %737 = vmatpush1.bf16.msra.mxu0 %v649
      %738 = vmatprep.subr.bf16.mxu0 %v646
      %739 = vmatpush1.bf16.msra.mxu0 %v645
      %740 = vmatprep.subr.bf16.mxu0 %v642
      %741 = vmatpush1.bf16.msra.mxu0 %v641
      %742 = vmatprep.subr.bf16.mxu0 %v638
      %743 = vmatpush1.bf16.msra.mxu0 %v637
      %744 = vmatprep.subr.bf16.mxu0 %v634
      %745 = vmatpush1.bf16.msra.mxu0 %v633
      %746 = vmatprep.subr.bf16.mxu0 %v630
      %747 = vmatpush1.bf16.msra.mxu0 %v629
      %748 = vmatprep.subr.bf16.mxu0 0
      %749 = vmatpush2.bf16.msra.mxu0 0
      %750 = vmatprep.subr.bf16.mxu0 0
      %751 = vmatpush2.bf16.msra.mxu0 0
      %752 = vmatprep.subr.bf16.mxu0 0
      %753 = vmatpush2.bf16.msra.mxu0 0
      %754 = vmatprep.subr.bf16.mxu0 0
      %755 = vmatpush2.bf16.msra.mxu0 0
      %756 = vmatprep.subr.bf16.mxu0 %v674
      %757 = vmatpush2.bf16.msra.mxu0 %v673
      %758 = vmatprep.subr.bf16.mxu0 %v670
      %759 = vmatpush2.bf16.msra.mxu0 %v669
      %760 = vmatprep.subr.bf16.mxu0 %v666
      %761 = vmatpush2.bf16.msra.mxu0 %v665
      %762 = vmatprep.subr.bf16.mxu0 %v662
      %763 = vmatpush2.bf16.msra.mxu0 %v661
      %764 = vmatprep.mubr.bf16.mxu0 %v727
      %765 = vmatmul.mubr.bf16.gmra.mxu0 %v479
      %v766 = vpop.f32.mrf.mxu0
      %v767 = vadd.f32 %v450, %v766
      %v768 = vpop.f32.mrf.mxu0
      %v769 = vadd.f32 %v454, %v768
      %v770 = vpop.f32.mrf.mxu0
      %v771 = vadd.f32 %v450, %v770
      %v772 = vpop.f32.mrf.mxu0
      %v773 = vadd.f32 %v454, %v772
      %774 = vmatprep.mubr.bf16.mxu0 %v730
      %775 = vmatmul.mubr.bf16.gmra.mxu0 %v481
      %v776 = vpop.f32.mrf.mxu0
      %v777 = vadd.f32 %v450, %v776
      %v778 = vpop.f32.mrf.mxu0
      %v779 = vadd.f32 %v454, %v778
      %v780 = vpop.f32.mrf.mxu0
      %v781 = vadd.f32 %v450, %v780
      %v782 = vpop.f32.mrf.mxu0
      %v783 = vadd.f32 %v454, %v782
      %784 = vdwg.mxu0
      %785 = vmatprep.subr.bf16.mxu0 %v660
      %786 = vmatpush1.bf16.msra.mxu0 %v659
      %787 = vmatprep.subr.bf16.mxu0 %v656
      %788 = vmatpush1.bf16.msra.mxu0 %v655
      %789 = vmatprep.subr.bf16.mxu0 %v652
      %790 = vmatpush1.bf16.msra.mxu0 %v651
      %791 = vmatprep.subr.bf16.mxu0 %v648
      %792 = vmatpush1.bf16.msra.mxu0 %v647
      %793 = vmatprep.subr.bf16.mxu0 %v644
      %794 = vmatpush1.bf16.msra.mxu0 %v643
      %795 = vmatprep.subr.bf16.mxu0 %v640
      %796 = vmatpush1.bf16.msra.mxu0 %v639
      %797 = vmatprep.subr.bf16.mxu0 %v636
      %798 = vmatpush1.bf16.msra.mxu0 %v635
      %799 = vmatprep.subr.bf16.mxu0 %v632
      %800 = vmatpush1.bf16.msra.mxu0 %v631
      %801 = vmatprep.subr.bf16.mxu0 0
      %802 = vmatpush2.bf16.msra.mxu0 0
      %803 = vmatprep.subr.bf16.mxu0 0
      %804 = vmatpush2.bf16.msra.mxu0 0
      %805 = vmatprep.subr.bf16.mxu0 0
      %806 = vmatpush2.bf16.msra.mxu0 0
      %807 = vmatprep.subr.bf16.mxu0 0
      %808 = vmatpush2.bf16.msra.mxu0 0
      %809 = vmatprep.subr.bf16.mxu0 %v676
      %810 = vmatpush2.bf16.msra.mxu0 %v675
      %811 = vmatprep.subr.bf16.mxu0 %v672
      %812 = vmatpush2.bf16.msra.mxu0 %v671
      %813 = vmatprep.subr.bf16.mxu0 %v668
      %814 = vmatpush2.bf16.msra.mxu0 %v667
      %815 = vmatprep.subr.bf16.mxu0 %v664
      %816 = vmatpush2.bf16.msra.mxu0 %v663
      %817 = vmatprep.mubr.bf16.mxu0 %v727
      %818 = vmatmul.mubr.bf16.gmra.mxu0 %v479
      %v819 = vpop.f32.mrf.mxu0
      %v820 = vadd.f32 %v458, %v819
      %v821 = vpop.f32.mrf.mxu0
      %v822 = vadd.f32 %v462, %v821
      %v823 = vpop.f32.mrf.mxu0
      %v824 = vadd.f32 %v458, %v823
      %v825 = vpop.f32.mrf.mxu0
      %v826 = vadd.f32 %v462, %v825
      %827 = vmatprep.mubr.bf16.mxu0 %v730
      %828 = vmatmul.mubr.bf16.gmra.mxu0 %v481
      %v829 = vpop.f32.mrf.mxu0
      %v830 = vadd.f32 %v458, %v829
      %v831 = vpop.f32.mrf.mxu0
      %v832 = vadd.f32 %v462, %v831
      %v833 = vpop.f32.mrf.mxu0
      %v834 = vadd.f32 %v458, %v833
      %v835 = vpop.f32.mrf.mxu0
      %v836 = vadd.f32 %v462, %v835
      %837 = vdwg.mxu0
      %v838 = vld [vmem:[%s3] sm:$0xf]
      %v840 = vlaneseq
      %v841 = vshrl.u32 %v840, 7
      %v842 = vsub.s32 0, %v841
      %v843 = vrot.slane %v838, %v842
      %v844 = vlaneseq
      %v845 = vshrl.u32 %v844, 7
      %v846 = vsub.s32 1, %v845
      %v847 = vrot.slane %v838, %v846
      %v848 = vlaneseq
      %v849 = vshrl.u32 %v848, 7
      %v850 = vsub.s32 2, %v849
      %v851 = vrot.slane %v838, %v850
      %v852 = vlaneseq
      %v853 = vshrl.u32 %v852, 7
      %v854 = vsub.s32 3, %v853
      %v855 = vrot.slane %v838, %v854
      %v860 = vmul.f32 %v767, %v843
      %v861 = vmul.f32 %v769, %v847
      %v862 = vmul.f32 %v820, %v851
      %v863 = vmul.f32 %v822, %v855
      %v864 = vmul.f32 %v771, %v843
      %v865 = vmul.f32 %v773, %v847
      %v866 = vmul.f32 %v824, %v851
      %v867 = vmul.f32 %v826, %v855
      %v868 = vmul.f32 %v777, %v843
      %v869 = vmul.f32 %v779, %v847
      %v870 = vmul.f32 %v830, %v851
      %v871 = vmul.f32 %v832, %v855
      %v872 = vmul.f32 %v781, %v843
      %v873 = vmul.f32 %v783, %v847
      %v874 = vmul.f32 %v834, %v851
      %v875 = vmul.f32 %v836, %v855
      %v876 = vld [vmem:[%s4] sm:$0xf]
      %v878 = vlaneseq
      %v879 = vshrl.u32 %v878, 7
      %v880 = vsub.s32 0, %v879
      %v881 = vrot.slane %v876, %v880
      %v882 = vlaneseq
      %v883 = vshrl.u32 %v882, 7
      %v884 = vsub.s32 1, %v883
      %v885 = vrot.slane %v876, %v884
      %v886 = vlaneseq
      %v887 = vshrl.u32 %v886, 7
      %v888 = vsub.s32 2, %v887
      %v889 = vrot.slane %v876, %v888
      %v890 = vlaneseq
      %v891 = vshrl.u32 %v890, 7
      %v892 = vsub.s32 3, %v891
      %v893 = vrot.slane %v876, %v892
      %v898 = vadd.f32 %v860, %v881
      %v899 = vadd.f32 %v861, %v885
      %v900 = vadd.f32 %v862, %v889
      %v901 = vadd.f32 %v863, %v893
      %v902 = vadd.f32 %v864, %v881
      %v903 = vadd.f32 %v865, %v885
      %v904 = vadd.f32 %v866, %v889
      %v905 = vadd.f32 %v867, %v893
      %v906 = vadd.f32 %v868, %v881
      %v907 = vadd.f32 %v869, %v885
      %v908 = vadd.f32 %v870, %v889
      %v909 = vadd.f32 %v871, %v893
      %v910 = vadd.f32 %v872, %v881
      %v911 = vadd.f32 %v873, %v885
      %v912 = vadd.f32 %v874, %v889
      %v913 = vadd.f32 %v875, %v893
      %vm914 = vcmp.ge.f32.partialorder %v898, 0.0
      %vm915 = vcmp.ge.f32.partialorder %v899, 0.0
      %vm916 = vcmp.ge.f32.partialorder %v900, 0.0
      %vm917 = vcmp.ge.f32.partialorder %v901, 0.0
      %vm918 = vcmp.ge.f32.partialorder %v902, 0.0
      %vm919 = vcmp.ge.f32.partialorder %v903, 0.0
      %vm920 = vcmp.ge.f32.partialorder %v904, 0.0
      %vm921 = vcmp.ge.f32.partialorder %v905, 0.0
      %vm922 = vcmp.ge.f32.partialorder %v906, 0.0
      %vm923 = vcmp.ge.f32.partialorder %v907, 0.0
      %vm924 = vcmp.ge.f32.partialorder %v908, 0.0
      %vm925 = vcmp.ge.f32.partialorder %v909, 0.0
      %vm926 = vcmp.ge.f32.partialorder %v910, 0.0
      %vm927 = vcmp.ge.f32.partialorder %v911, 0.0
      %vm928 = vcmp.ge.f32.partialorder %v912, 0.0
      %vm929 = vcmp.ge.f32.partialorder %v913, 0.0
      %v930 = vmul.f32 %v898, 0.2
      %v931 = vmul.f32 %v899, 0.2
      %v932 = vmul.f32 %v900, 0.2
      %v933 = vmul.f32 %v901, 0.2
      %v934 = vmul.f32 %v902, 0.2
      %v935 = vmul.f32 %v903, 0.2
      %v936 = vmul.f32 %v904, 0.2
      %v937 = vmul.f32 %v905, 0.2
      %v938 = vmul.f32 %v906, 0.2
      %v939 = vmul.f32 %v907, 0.2
      %v940 = vmul.f32 %v908, 0.2
      %v941 = vmul.f32 %v909, 0.2
      %v942 = vmul.f32 %v910, 0.2
      %v943 = vmul.f32 %v911, 0.2
      %v944 = vmul.f32 %v912, 0.2
      %v945 = vmul.f32 %v913, 0.2
      %v946 = vsel %vm914, %v898, %v930
      %v947 = vsel %vm915, %v899, %v931
      %v948 = vsel %vm916, %v900, %v932
      %v949 = vsel %vm917, %v901, %v933
      %v950 = vsel %vm918, %v902, %v934
      %v951 = vsel %vm919, %v903, %v935
      %v952 = vsel %vm920, %v904, %v936
      %v953 = vsel %vm921, %v905, %v937
      %v954 = vsel %vm922, %v906, %v938
      %v955 = vsel %vm923, %v907, %v939
      %v956 = vsel %vm924, %v908, %v940
      %v957 = vsel %vm925, %v909, %v941
      %v958 = vsel %vm926, %v910, %v942
      %v959 = vsel %vm927, %v911, %v943
      %v960 = vsel %vm928, %v912, %v944
      %v961 = vsel %vm929, %v913, %v945
      %v962 = vpack.c.bf16 %v950, %v946
      %v963 = vpack.c.bf16 %v951, %v947
      %v964 = vpack.c.bf16 %v952, %v948
      %v965 = vpack.c.bf16 %v953, %v949
      %v966 = vpack.c.bf16 %v958, %v954
      %v967 = vpack.c.bf16 %v959, %v955
      %v968 = vpack.c.bf16 %v960, %v956
      %v969 = vpack.c.bf16 %v961, %v957
      %v970 = vld [vmem:[%s5] sm:$0xff]
      %v971 = vld [vmem:[%s5 + $0x8] sm:$0xff]
      %v972 = vld [vmem:[%s5 + $0x10] sm:$0xff]
      %v973 = vld [vmem:[%s5 + $0x18] sm:$0xff]
      %v974 = vld [vmem:[%s5 + $0x20] sm:$0xff]
      %v975 = vld [vmem:[%s5 + $0x28] sm:$0xff]
      %v976 = vld [vmem:[%s5 + $0x30] sm:$0xff]
      %v977 = vld [vmem:[%s5 + $0x38] sm:$0xff]
      %v978 = vld [vmem:[%s5 + $0x40] sm:$0xff]
      %v979 = vld [vmem:[%s5 + $0x48] sm:$0xff]
      %v980 = vld [vmem:[%s5 + $0x50] sm:$0xff]
      %v981 = vld [vmem:[%s5 + $0x58] sm:$0xff]
      %v982 = vld [vmem:[%s5 + $0x60] sm:$0xff]
      %v983 = vld [vmem:[%s5 + $0x68] sm:$0xff]
      %v984 = vld [vmem:[%s5 + $0x70] sm:$0xff]
      %v985 = vld [vmem:[%s5 + $0x78] sm:$0xff]
      %v986 = vld [vmem:[%s5 + $0x80] sm:$0xff]
      %v987 = vld [vmem:[%s5 + $0x88] sm:$0xff]
      %v988 = vld [vmem:[%s5 + $0x90] sm:$0xff]
      %v989 = vld [vmem:[%s5 + $0x98] sm:$0xff]
      %v990 = vld [vmem:[%s5 + $0xa0] sm:$0xff]
      %v991 = vld [vmem:[%s5 + $0xa8] sm:$0xff]
      %v992 = vld [vmem:[%s5 + $0xb0] sm:$0xff]
      %v993 = vld [vmem:[%s5 + $0xb8] sm:$0xff]
      %v994 = vld [vmem:[%s5 + $0xc0] sm:$0xff]
      %v995 = vld [vmem:[%s5 + $0xc8] sm:$0xff]
      %v996 = vld [vmem:[%s5 + $0xd0] sm:$0xff]
      %v997 = vld [vmem:[%s5 + $0xd8] sm:$0xff]
      %v998 = vld [vmem:[%s5 + $0xe0] sm:$0xff]
      %v999 = vld [vmem:[%s5 + $0xe8] sm:$0xff]
      %v1000 = vld [vmem:[%s5 + $0xf0] sm:$0xff]
      %v1001 = vld [vmem:[%s5 + $0xf8] sm:$0xff]
      %v1002 = vld [vmem:[%s5 + $0x100] sm:$0xff]
      %v1003 = vld [vmem:[%s5 + $0x108] sm:$0xff]
      %v1004 = vld [vmem:[%s5 + $0x110] sm:$0xff]
      %v1005 = vld [vmem:[%s5 + $0x118] sm:$0xff]
      %v1006 = vld [vmem:[%s5 + $0x120] sm:$0xff]
      %v1007 = vld [vmem:[%s5 + $0x128] sm:$0xff]
      %v1008 = vld [vmem:[%s5 + $0x130] sm:$0xff]
      %v1009 = vld [vmem:[%s5 + $0x138] sm:$0xff]
      %v1010 = vld [vmem:[%s5 + $0x140] sm:$0xff]
      %v1011 = vld [vmem:[%s5 + $0x148] sm:$0xff]
      %v1012 = vld [vmem:[%s5 + $0x150] sm:$0xff]
      %v1013 = vld [vmem:[%s5 + $0x158] sm:$0xff]
      %v1014 = vld [vmem:[%s5 + $0x160] sm:$0xff]
      %v1015 = vld [vmem:[%s5 + $0x168] sm:$0xff]
      %v1016 = vld [vmem:[%s5 + $0x170] sm:$0xff]
      %v1017 = vld [vmem:[%s5 + $0x178] sm:$0xff]
      %v1018 = vld [vmem:[%s5 + $0x180] sm:$0xff]
      %v1019 = vld [vmem:[%s5 + $0x188] sm:$0xff]
      %v1020 = vld [vmem:[%s5 + $0x190] sm:$0xff]
      %v1021 = vld [vmem:[%s5 + $0x198] sm:$0xff]
      %v1022 = vld [vmem:[%s5 + $0x1a0] sm:$0xff]
      %v1023 = vld [vmem:[%s5 + $0x1a8] sm:$0xff]
      %v1024 = vld [vmem:[%s5 + $0x1b0] sm:$0xff]
      %v1025 = vld [vmem:[%s5 + $0x1b8] sm:$0xff]
      %v1026 = vld [vmem:[%s5 + $0x1c0] sm:$0xff]
      %v1027 = vld [vmem:[%s5 + $0x1c8] sm:$0xff]
      %v1028 = vld [vmem:[%s5 + $0x1d0] sm:$0xff]
      %v1029 = vld [vmem:[%s5 + $0x1d8] sm:$0xff]
      %v1030 = vld [vmem:[%s5 + $0x1e0] sm:$0xff]
      %v1031 = vld [vmem:[%s5 + $0x1e8] sm:$0xff]
      %v1032 = vld [vmem:[%s5 + $0x1f0] sm:$0xff]
      %v1033 = vld [vmem:[%s5 + $0x1f8] sm:$0xff]
      %v1098 = vunpack.c.l.b16 %v970
      %v1099 = vunpack.c.h.b16 %v970
      %v1100 = vunpack.c.l.b16 %v971
      %v1101 = vunpack.c.h.b16 %v971
      %v1102 = vunpack.c.l.b16 %v972
      %v1103 = vunpack.c.h.b16 %v972
      %v1104 = vunpack.c.l.b16 %v973
      %v1105 = vunpack.c.h.b16 %v973
      %v1106 = vunpack.c.l.b16 %v974
      %v1107 = vunpack.c.h.b16 %v974
      %v1108 = vunpack.c.l.b16 %v975
      %v1109 = vunpack.c.h.b16 %v975
      %v1110 = vunpack.c.l.b16 %v976
      %v1111 = vunpack.c.h.b16 %v976
      %v1112 = vunpack.c.l.b16 %v977
      %v1113 = vunpack.c.h.b16 %v977
      %v1114 = vunpack.c.l.b16 %v978
      %v1115 = vunpack.c.h.b16 %v978
      %v1116 = vunpack.c.l.b16 %v979
      %v1117 = vunpack.c.h.b16 %v979
      %v1118 = vunpack.c.l.b16 %v980
      %v1119 = vunpack.c.h.b16 %v980
      %v1120 = vunpack.c.l.b16 %v981
      %v1121 = vunpack.c.h.b16 %v981
      %v1122 = vunpack.c.l.b16 %v982
      %v1123 = vunpack.c.h.b16 %v982
      %v1124 = vunpack.c.l.b16 %v983
      %v1125 = vunpack.c.h.b16 %v983
      %v1126 = vunpack.c.l.b16 %v984
      %v1127 = vunpack.c.h.b16 %v984
      %v1128 = vunpack.c.l.b16 %v985
      %v1129 = vunpack.c.h.b16 %v985
      %v1130 = vunpack.c.l.b16 %v986
      %v1131 = vunpack.c.h.b16 %v986
      %v1132 = vunpack.c.l.b16 %v987
      %v1133 = vunpack.c.h.b16 %v987
      %v1134 = vunpack.c.l.b16 %v988
      %v1135 = vunpack.c.h.b16 %v988
      %v1136 = vunpack.c.l.b16 %v989
      %v1137 = vunpack.c.h.b16 %v989
      %v1138 = vunpack.c.l.b16 %v990
      %v1139 = vunpack.c.h.b16 %v990
      %v1140 = vunpack.c.l.b16 %v991
      %v1141 = vunpack.c.h.b16 %v991
      %v1142 = vunpack.c.l.b16 %v992
      %v1143 = vunpack.c.h.b16 %v992
      %v1144 = vunpack.c.l.b16 %v993
      %v1145 = vunpack.c.h.b16 %v993
      %v1146 = vunpack.c.l.b16 %v994
      %v1147 = vunpack.c.h.b16 %v994
      %v1148 = vunpack.c.l.b16 %v995
      %v1149 = vunpack.c.h.b16 %v995
      %v1150 = vunpack.c.l.b16 %v996
      %v1151 = vunpack.c.h.b16 %v996
      %v1152 = vunpack.c.l.b16 %v997
      %v1153 = vunpack.c.h.b16 %v997
      %v1154 = vunpack.c.l.b16 %v998
      %v1155 = vunpack.c.h.b16 %v998
      %v1156 = vunpack.c.l.b16 %v999
      %v1157 = vunpack.c.h.b16 %v999
      %v1158 = vunpack.c.l.b16 %v1000
      %v1159 = vunpack.c.h.b16 %v1000
      %v1160 = vunpack.c.l.b16 %v1001
      %v1161 = vunpack.c.h.b16 %v1001
      %v1162 = vunpack.c.l.b16 %v1002
      %v1163 = vunpack.c.h.b16 %v1002
      %v1164 = vunpack.c.l.b16 %v1003
      %v1165 = vunpack.c.h.b16 %v1003
      %v1166 = vunpack.c.l.b16 %v1004
      %v1167 = vunpack.c.h.b16 %v1004
      %v1168 = vunpack.c.l.b16 %v1005
      %v1169 = vunpack.c.h.b16 %v1005
      %v1170 = vunpack.c.l.b16 %v1006
      %v1171 = vunpack.c.h.b16 %v1006
      %v1172 = vunpack.c.l.b16 %v1007
      %v1173 = vunpack.c.h.b16 %v1007
      %v1174 = vunpack.c.l.b16 %v1008
      %v1175 = vunpack.c.h.b16 %v1008
      %v1176 = vunpack.c.l.b16 %v1009
      %v1177 = vunpack.c.h.b16 %v1009
      %v1178 = vunpack.c.l.b16 %v1010
      %v1179 = vunpack.c.h.b16 %v1010
      %v1180 = vunpack.c.l.b16 %v1011
      %v1181 = vunpack.c.h.b16 %v1011
      %v1182 = vunpack.c.l.b16 %v1012
      %v1183 = vunpack.c.h.b16 %v1012
      %v1184 = vunpack.c.l.b16 %v1013
      %v1185 = vunpack.c.h.b16 %v1013
      %v1186 = vunpack.c.l.b16 %v1014
      %v1187 = vunpack.c.h.b16 %v1014
      %v1188 = vunpack.c.l.b16 %v1015
      %v1189 = vunpack.c.h.b16 %v1015
      %v1190 = vunpack.c.l.b16 %v1016
      %v1191 = vunpack.c.h.b16 %v1016
      %v1192 = vunpack.c.l.b16 %v1017
      %v1193 = vunpack.c.h.b16 %v1017
      %v1194 = vunpack.c.l.b16 %v1018
      %v1195 = vunpack.c.h.b16 %v1018
      %v1196 = vunpack.c.l.b16 %v1019
      %v1197 = vunpack.c.h.b16 %v1019
      %v1198 = vunpack.c.l.b16 %v1020
      %v1199 = vunpack.c.h.b16 %v1020
      %v1200 = vunpack.c.l.b16 %v1021
      %v1201 = vunpack.c.h.b16 %v1021
      %v1202 = vunpack.c.l.b16 %v1022
      %v1203 = vunpack.c.h.b16 %v1022
      %v1204 = vunpack.c.l.b16 %v1023
      %v1205 = vunpack.c.h.b16 %v1023
      %v1206 = vunpack.c.l.b16 %v1024
      %v1207 = vunpack.c.h.b16 %v1024
      %v1208 = vunpack.c.l.b16 %v1025
      %v1209 = vunpack.c.h.b16 %v1025
      %v1210 = vunpack.c.l.b16 %v1026
      %v1211 = vunpack.c.h.b16 %v1026
      %v1212 = vunpack.c.l.b16 %v1027
      %v1213 = vunpack.c.h.b16 %v1027
      %v1214 = vunpack.c.l.b16 %v1028
      %v1215 = vunpack.c.h.b16 %v1028
      %v1216 = vunpack.c.l.b16 %v1029
      %v1217 = vunpack.c.h.b16 %v1029
      %v1218 = vunpack.c.l.b16 %v1030
      %v1219 = vunpack.c.h.b16 %v1030
      %v1220 = vunpack.c.l.b16 %v1031
      %v1221 = vunpack.c.h.b16 %v1031
      %v1222 = vunpack.c.l.b16 %v1032
      %v1223 = vunpack.c.h.b16 %v1032
      %v1224 = vunpack.c.l.b16 %v1033
      %v1225 = vunpack.c.h.b16 %v1033
      %v1226 = vpack.c.b16 %v1100, %v1098
      %v1227 = vpack.c.b16 %v1101, %v1099
      %v1228 = vpack.c.b16 %v1104, %v1102
      %v1229 = vpack.c.b16 %v1105, %v1103
      %v1230 = vpack.c.b16 %v1108, %v1106
      %v1231 = vpack.c.b16 %v1109, %v1107
      %v1232 = vpack.c.b16 %v1112, %v1110
      %v1233 = vpack.c.b16 %v1113, %v1111
      %v1234 = vpack.c.b16 %v1116, %v1114
      %v1235 = vpack.c.b16 %v1117, %v1115
      %v1236 = vpack.c.b16 %v1120, %v1118
      %v1237 = vpack.c.b16 %v1121, %v1119
      %v1238 = vpack.c.b16 %v1124, %v1122
      %v1239 = vpack.c.b16 %v1125, %v1123
      %v1240 = vpack.c.b16 %v1128, %v1126
      %v1241 = vpack.c.b16 %v1129, %v1127
      %v1242 = vpack.c.b16 %v1132, %v1130
      %v1243 = vpack.c.b16 %v1133, %v1131
      %v1244 = vpack.c.b16 %v1136, %v1134
      %v1245 = vpack.c.b16 %v1137, %v1135
      %v1246 = vpack.c.b16 %v1140, %v1138
      %v1247 = vpack.c.b16 %v1141, %v1139
      %v1248 = vpack.c.b16 %v1144, %v1142
      %v1249 = vpack.c.b16 %v1145, %v1143
      %v1250 = vpack.c.b16 %v1148, %v1146
      %v1251 = vpack.c.b16 %v1149, %v1147
      %v1252 = vpack.c.b16 %v1152, %v1150
      %v1253 = vpack.c.b16 %v1153, %v1151
      %v1254 = vpack.c.b16 %v1156, %v1154
      %v1255 = vpack.c.b16 %v1157, %v1155
      %v1256 = vpack.c.b16 %v1160, %v1158
      %v1257 = vpack.c.b16 %v1161, %v1159
      %v1258 = vpack.c.b16 %v1164, %v1162
      %v1259 = vpack.c.b16 %v1165, %v1163
      %v1260 = vpack.c.b16 %v1168, %v1166
      %v1261 = vpack.c.b16 %v1169, %v1167
      %v1262 = vpack.c.b16 %v1172, %v1170
      %v1263 = vpack.c.b16 %v1173, %v1171
      %v1264 = vpack.c.b16 %v1176, %v1174
      %v1265 = vpack.c.b16 %v1177, %v1175
      %v1266 = vpack.c.b16 %v1180, %v1178
      %v1267 = vpack.c.b16 %v1181, %v1179
      %v1268 = vpack.c.b16 %v1184, %v1182
      %v1269 = vpack.c.b16 %v1185, %v1183
      %v1270 = vpack.c.b16 %v1188, %v1186
      %v1271 = vpack.c.b16 %v1189, %v1187
      %v1272 = vpack.c.b16 %v1192, %v1190
      %v1273 = vpack.c.b16 %v1193, %v1191
      %v1274 = vpack.c.b16 %v1196, %v1194
      %v1275 = vpack.c.b16 %v1197, %v1195
      %v1276 = vpack.c.b16 %v1200, %v1198
      %v1277 = vpack.c.b16 %v1201, %v1199
      %v1278 = vpack.c.b16 %v1204, %v1202
      %v1279 = vpack.c.b16 %v1205, %v1203
      %v1280 = vpack.c.b16 %v1208, %v1206
      %v1281 = vpack.c.b16 %v1209, %v1207
      %v1282 = vpack.c.b16 %v1212, %v1210
      %v1283 = vpack.c.b16 %v1213, %v1211
      %v1284 = vpack.c.b16 %v1216, %v1214
      %v1285 = vpack.c.b16 %v1217, %v1215
      %v1286 = vpack.c.b16 %v1220, %v1218
      %v1287 = vpack.c.b16 %v1221, %v1219
      %v1288 = vpack.c.b16 %v1224, %v1222
      %v1289 = vpack.c.b16 %v1225, %v1223
      %1354 = vmatprep.subr.bf16.mxu0 %v1241
      %1355 = vmatpush1.bf16.msra.mxu0 %v1240
      %1356 = vmatprep.subr.bf16.mxu0 %v1239
      %1357 = vmatpush1.bf16.msra.mxu0 %v1238
      %1358 = vmatprep.subr.bf16.mxu0 %v1237
      %1359 = vmatpush1.bf16.msra.mxu0 %v1236
      %1360 = vmatprep.subr.bf16.mxu0 %v1235
      %1361 = vmatpush1.bf16.msra.mxu0 %v1234
      %1362 = vmatprep.subr.bf16.mxu0 %v1233
      %1363 = vmatpush1.bf16.msra.mxu0 %v1232
      %1364 = vmatprep.subr.bf16.mxu0 %v1231
      %1365 = vmatpush1.bf16.msra.mxu0 %v1230
      %1366 = vmatprep.subr.bf16.mxu0 %v1229
      %1367 = vmatpush1.bf16.msra.mxu0 %v1228
      %1368 = vmatprep.subr.bf16.mxu0 %v1227
      %1369 = vmatpush1.bf16.msra.mxu0 %v1226
      %1370 = vmatprep.subr.bf16.mxu0 %v1257
      %1371 = vmatpush2.bf16.msra.mxu0 %v1256
      %1372 = vmatprep.subr.bf16.mxu0 %v1255
      %1373 = vmatpush2.bf16.msra.mxu0 %v1254
      %1374 = vmatprep.subr.bf16.mxu0 %v1253
      %1375 = vmatpush2.bf16.msra.mxu0 %v1252
      %1376 = vmatprep.subr.bf16.mxu0 %v1251
      %1377 = vmatpush2.bf16.msra.mxu0 %v1250
      %1378 = vmatprep.subr.bf16.mxu0 %v1249
      %1379 = vmatpush2.bf16.msra.mxu0 %v1248
      %1380 = vmatprep.subr.bf16.mxu0 %v1247
      %1381 = vmatpush2.bf16.msra.mxu0 %v1246
      %1382 = vmatprep.subr.bf16.mxu0 %v1245
      %1383 = vmatpush2.bf16.msra.mxu0 %v1244
      %1384 = vmatprep.subr.bf16.mxu0 %v1243
      %1385 = vmatpush2.bf16.msra.mxu0 %v1242
      %1386 = vmatprep.mubr.bf16.mxu0 %v963
      %1387 = vmatmul.mubr.bf16.gmra.mxu0 %v962
      %v1388 = vpop.f32.mrf.mxu0
      %v1389 = vadd.f32 0.0, %v1388
      %v1390 = vpop.f32.mrf.mxu0
      %v1391 = vadd.f32 0.0, %v1390
      %v1392 = vpop.f32.mrf.mxu0
      %v1393 = vadd.f32 0.0, %v1392
      %v1394 = vpop.f32.mrf.mxu0
      %v1395 = vadd.f32 0.0, %v1394
      %1396 = vmatprep.mubr.bf16.mxu0 %v967
      %1397 = vmatmul.mubr.bf16.gmra.mxu0 %v966
      %v1398 = vpop.f32.mrf.mxu0
      %v1399 = vadd.f32 0.0, %v1398
      %v1400 = vpop.f32.mrf.mxu0
      %v1401 = vadd.f32 0.0, %v1400
      %v1402 = vpop.f32.mrf.mxu0
      %v1403 = vadd.f32 0.0, %v1402
      %v1404 = vpop.f32.mrf.mxu0
      %v1405 = vadd.f32 0.0, %v1404
      %1406 = vdwg.mxu0
      %1407 = vmatprep.subr.bf16.mxu0 %v1273
      %1408 = vmatpush1.bf16.msra.mxu0 %v1272
      %1409 = vmatprep.subr.bf16.mxu0 %v1271
      %1410 = vmatpush1.bf16.msra.mxu0 %v1270
      %1411 = vmatprep.subr.bf16.mxu0 %v1269
      %1412 = vmatpush1.bf16.msra.mxu0 %v1268
      %1413 = vmatprep.subr.bf16.mxu0 %v1267
      %1414 = vmatpush1.bf16.msra.mxu0 %v1266
      %1415 = vmatprep.subr.bf16.mxu0 %v1265
      %1416 = vmatpush1.bf16.msra.mxu0 %v1264
      %1417 = vmatprep.subr.bf16.mxu0 %v1263
      %1418 = vmatpush1.bf16.msra.mxu0 %v1262
      %1419 = vmatprep.subr.bf16.mxu0 %v1261
      %1420 = vmatpush1.bf16.msra.mxu0 %v1260
      %1421 = vmatprep.subr.bf16.mxu0 %v1259
      %1422 = vmatpush1.bf16.msra.mxu0 %v1258
      %1423 = vmatprep.subr.bf16.mxu0 %v1289
      %1424 = vmatpush2.bf16.msra.mxu0 %v1288
      %1425 = vmatprep.subr.bf16.mxu0 %v1287
      %1426 = vmatpush2.bf16.msra.mxu0 %v1286
      %1427 = vmatprep.subr.bf16.mxu0 %v1285
      %1428 = vmatpush2.bf16.msra.mxu0 %v1284
      %1429 = vmatprep.subr.bf16.mxu0 %v1283
      %1430 = vmatpush2.bf16.msra.mxu0 %v1282
      %1431 = vmatprep.subr.bf16.mxu0 %v1281
      %1432 = vmatpush2.bf16.msra.mxu0 %v1280
      %1433 = vmatprep.subr.bf16.mxu0 %v1279
      %1434 = vmatpush2.bf16.msra.mxu0 %v1278
      %1435 = vmatprep.subr.bf16.mxu0 %v1277
      %1436 = vmatpush2.bf16.msra.mxu0 %v1276
      %1437 = vmatprep.subr.bf16.mxu0 %v1275
      %1438 = vmatpush2.bf16.msra.mxu0 %v1274
      %1439 = vmatprep.mubr.bf16.mxu0 %v965
      %1440 = vmatmul.mubr.bf16.gmra.mxu0 %v964
      %v1441 = vpop.f32.mrf.mxu0
      %v1442 = vadd.f32 %v1389, %v1441
      %v1443 = vpop.f32.mrf.mxu0
      %v1444 = vadd.f32 %v1391, %v1443
      %v1445 = vpop.f32.mrf.mxu0
      %v1446 = vadd.f32 %v1393, %v1445
      %v1447 = vpop.f32.mrf.mxu0
      %v1448 = vadd.f32 %v1395, %v1447
      %1449 = vmatprep.mubr.bf16.mxu0 %v969
      %1450 = vmatmul.mubr.bf16.gmra.mxu0 %v968
      %v1451 = vpop.f32.mrf.mxu0
      %v1452 = vadd.f32 %v1399, %v1451
      %v1453 = vpop.f32.mrf.mxu0
      %v1454 = vadd.f32 %v1401, %v1453
      %v1455 = vpop.f32.mrf.mxu0
      %v1456 = vadd.f32 %v1403, %v1455
      %v1457 = vpop.f32.mrf.mxu0
      %v1458 = vadd.f32 %v1405, %v1457
      %1459 = vdwg.mxu0
      %v1460 = vld [vmem:[%s6] sm:$0x3]
      %v1462 = vlaneseq
      %v1463 = vshrl.u32 %v1462, 7
      %v1464 = vsub.s32 0, %v1463
      %v1465 = vrot.slane %v1460, %v1464
      %v1466 = vlaneseq
      %v1467 = vshrl.u32 %v1466, 7
      %v1468 = vsub.s32 1, %v1467
      %v1469 = vrot.slane %v1460, %v1468
      %v1472 = vmul.f32 %v1442, %v1465
      %v1473 = vmul.f32 %v1444, %v1469
      %v1474 = vmul.f32 %v1446, %v1465
      %v1475 = vmul.f32 %v1448, %v1469
      %v1476 = vmul.f32 %v1452, %v1465
      %v1477 = vmul.f32 %v1454, %v1469
      %v1478 = vmul.f32 %v1456, %v1465
      %v1479 = vmul.f32 %v1458, %v1469
      %v1480 = vld [vmem:[%s7] sm:$0x3]
      %v1482 = vlaneseq
      %v1483 = vshrl.u32 %v1482, 7
      %v1484 = vsub.s32 0, %v1483
      %v1485 = vrot.slane %v1480, %v1484
      %v1486 = vlaneseq
      %v1487 = vshrl.u32 %v1486, 7
      %v1488 = vsub.s32 1, %v1487
      %v1489 = vrot.slane %v1480, %v1488
      %v1492 = vadd.f32 %v1472, %v1485
      %v1493 = vadd.f32 %v1473, %v1489
      %v1494 = vadd.f32 %v1474, %v1485
      %v1495 = vadd.f32 %v1475, %v1489
      %v1496 = vadd.f32 %v1476, %v1485
      %v1497 = vadd.f32 %v1477, %v1489
      %v1498 = vadd.f32 %v1478, %v1485
      %v1499 = vadd.f32 %v1479, %v1489
      %vm1500 = vcmp.ge.f32.partialorder %v1492, 0.0
      %vm1501 = vcmp.ge.f32.partialorder %v1493, 0.0
      %vm1502 = vcmp.ge.f32.partialorder %v1494, 0.0
      %vm1503 = vcmp.ge.f32.partialorder %v1495, 0.0
      %vm1504 = vcmp.ge.f32.partialorder %v1496, 0.0
      %vm1505 = vcmp.ge.f32.partialorder %v1497, 0.0
      %vm1506 = vcmp.ge.f32.partialorder %v1498, 0.0
      %vm1507 = vcmp.ge.f32.partialorder %v1499, 0.0
      %v1508 = vmul.f32 %v1492, 0.2
      %v1509 = vmul.f32 %v1493, 0.2
      %v1510 = vmul.f32 %v1494, 0.2
      %v1511 = vmul.f32 %v1495, 0.2
      %v1512 = vmul.f32 %v1496, 0.2
      %v1513 = vmul.f32 %v1497, 0.2
      %v1514 = vmul.f32 %v1498, 0.2
      %v1515 = vmul.f32 %v1499, 0.2
      %v1516 = vsel %vm1500, %v1492, %v1508
      %v1517 = vsel %vm1501, %v1493, %v1509
      %v1518 = vsel %vm1502, %v1494, %v1510
      %v1519 = vsel %vm1503, %v1495, %v1511
      %v1520 = vsel %vm1504, %v1496, %v1512
      %v1521 = vsel %vm1505, %v1497, %v1513
      %v1522 = vsel %vm1506, %v1498, %v1514
      %v1523 = vsel %vm1507, %v1499, %v1515
      %v1524 = vpack.c.bf16 %v1518, %v1516
      %v1525 = vpack.c.bf16 %v1519, %v1517
      %v1526 = vpack.c.bf16 %v1522, %v1520
      %v1527 = vpack.c.bf16 %v1523, %v1521
      %v1528 = vld [vmem:[%s8] sm:$0xf]
      %v1529 = vld [vmem:[%s8 + $0x4] sm:$0xf]
      %v1530 = vld [vmem:[%s8 + $0x8] sm:$0xf]
      %v1531 = vld [vmem:[%s8 + $0xc] sm:$0xf]
      %v1532 = vld [vmem:[%s8 + $0x10] sm:$0xf]
      %v1533 = vld [vmem:[%s8 + $0x14] sm:$0xf]
      %v1534 = vld [vmem:[%s8 + $0x18] sm:$0xf]
      %v1535 = vld [vmem:[%s8 + $0x1c] sm:$0xf]
      %v1536 = vld [vmem:[%s8 + $0x20] sm:$0xf]
      %v1537 = vld [vmem:[%s8 + $0x24] sm:$0xf]
      %v1538 = vld [vmem:[%s8 + $0x28] sm:$0xf]
      %v1539 = vld [vmem:[%s8 + $0x2c] sm:$0xf]
      %v1540 = vld [vmem:[%s8 + $0x30] sm:$0xf]
      %v1541 = vld [vmem:[%s8 + $0x34] sm:$0xf]
      %v1542 = vld [vmem:[%s8 + $0x38] sm:$0xf]
      %v1543 = vld [vmem:[%s8 + $0x3c] sm:$0xf]
      %v1544 = vld [vmem:[%s8 + $0x40] sm:$0xf]
      %v1545 = vld [vmem:[%s8 + $0x44] sm:$0xf]
      %v1546 = vld [vmem:[%s8 + $0x48] sm:$0xf]
      %v1547 = vld [vmem:[%s8 + $0x4c] sm:$0xf]
      %v1548 = vld [vmem:[%s8 + $0x50] sm:$0xf]
      %v1549 = vld [vmem:[%s8 + $0x54] sm:$0xf]
      %v1550 = vld [vmem:[%s8 + $0x58] sm:$0xf]
      %v1551 = vld [vmem:[%s8 + $0x5c] sm:$0xf]
      %v1552 = vld [vmem:[%s8 + $0x60] sm:$0xf]
      %v1553 = vld [vmem:[%s8 + $0x64] sm:$0xf]
      %v1554 = vld [vmem:[%s8 + $0x68] sm:$0xf]
      %v1555 = vld [vmem:[%s8 + $0x6c] sm:$0xf]
      %v1556 = vld [vmem:[%s8 + $0x70] sm:$0xf]
      %v1557 = vld [vmem:[%s8 + $0x74] sm:$0xf]
      %v1558 = vld [vmem:[%s8 + $0x78] sm:$0xf]
      %v1559 = vld [vmem:[%s8 + $0x7c] sm:$0xf]
      %v1592 = vunpack.c.l.b16 %v1528
      %v1593 = vunpack.c.l.b16 %v1529
      %v1594 = vunpack.c.l.b16 %v1530
      %v1595 = vunpack.c.l.b16 %v1531
      %v1596 = vunpack.c.l.b16 %v1532
      %v1597 = vunpack.c.l.b16 %v1533
      %v1598 = vunpack.c.l.b16 %v1534
      %v1599 = vunpack.c.l.b16 %v1535
      %v1600 = vunpack.c.l.b16 %v1536
      %v1601 = vunpack.c.l.b16 %v1537
      %v1602 = vunpack.c.l.b16 %v1538
      %v1603 = vunpack.c.l.b16 %v1539
      %v1604 = vunpack.c.l.b16 %v1540
      %v1605 = vunpack.c.l.b16 %v1541
      %v1606 = vunpack.c.l.b16 %v1542
      %v1607 = vunpack.c.l.b16 %v1543
      %v1608 = vunpack.c.l.b16 %v1544
      %v1609 = vunpack.c.l.b16 %v1545
      %v1610 = vunpack.c.l.b16 %v1546
      %v1611 = vunpack.c.l.b16 %v1547
      %v1612 = vunpack.c.l.b16 %v1548
      %v1613 = vunpack.c.l.b16 %v1549
      %v1614 = vunpack.c.l.b16 %v1550
      %v1615 = vunpack.c.l.b16 %v1551
      %v1616 = vunpack.c.l.b16 %v1552
      %v1617 = vunpack.c.l.b16 %v1553
      %v1618 = vunpack.c.l.b16 %v1554
      %v1619 = vunpack.c.l.b16 %v1555
      %v1620 = vunpack.c.l.b16 %v1556
      %v1621 = vunpack.c.l.b16 %v1557
      %v1622 = vunpack.c.l.b16 %v1558
      %v1623 = vunpack.c.l.b16 %v1559
      %v1624 = vpack.c.b16 %v1593, %v1592
      %v1625 = vpack.c.b16 %v1595, %v1594
      %v1626 = vpack.c.b16 %v1597, %v1596
      %v1627 = vpack.c.b16 %v1599, %v1598
      %v1628 = vpack.c.b16 %v1601, %v1600
      %v1629 = vpack.c.b16 %v1603, %v1602
      %v1630 = vpack.c.b16 %v1605, %v1604
      %v1631 = vpack.c.b16 %v1607, %v1606
      %v1632 = vpack.c.b16 %v1609, %v1608
      %v1633 = vpack.c.b16 %v1611, %v1610
      %v1634 = vpack.c.b16 %v1613, %v1612
      %v1635 = vpack.c.b16 %v1615, %v1614
      %v1636 = vpack.c.b16 %v1617, %v1616
      %v1637 = vpack.c.b16 %v1619, %v1618
      %v1638 = vpack.c.b16 %v1621, %v1620
      %v1639 = vpack.c.b16 %v1623, %v1622
      %1656 = vmatprep.subr.bf16.mxu0 0
      %1657 = vmatpush1.bf16.msra.mxu0 %v1631
      %1658 = vmatprep.subr.bf16.mxu0 0
      %1659 = vmatpush1.bf16.msra.mxu0 %v1630
      %1660 = vmatprep.subr.bf16.mxu0 0
      %1661 = vmatpush1.bf16.msra.mxu0 %v1629
      %1662 = vmatprep.subr.bf16.mxu0 0
      %1663 = vmatpush1.bf16.msra.mxu0 %v1628
      %1664 = vmatprep.subr.bf16.mxu0 0
      %1665 = vmatpush1.bf16.msra.mxu0 %v1627
      %1666 = vmatprep.subr.bf16.mxu0 0
      %1667 = vmatpush1.bf16.msra.mxu0 %v1626
      %1668 = vmatprep.subr.bf16.mxu0 0
      %1669 = vmatpush1.bf16.msra.mxu0 %v1625
      %1670 = vmatprep.subr.bf16.mxu0 0
      %1671 = vmatpush1.bf16.msra.mxu0 %v1624
      %1672 = vmatprep.subr.bf16.mxu0 0
      %1673 = vmatpush2.bf16.msra.mxu0 %v1639
      %1674 = vmatprep.subr.bf16.mxu0 0
      %1675 = vmatpush2.bf16.msra.mxu0 %v1638
      %1676 = vmatprep.subr.bf16.mxu0 0
      %1677 = vmatpush2.bf16.msra.mxu0 %v1637
      %1678 = vmatprep.subr.bf16.mxu0 0
      %1679 = vmatpush2.bf16.msra.mxu0 %v1636
      %1680 = vmatprep.subr.bf16.mxu0 0
      %1681 = vmatpush2.bf16.msra.mxu0 %v1635
      %1682 = vmatprep.subr.bf16.mxu0 0
      %1683 = vmatpush2.bf16.msra.mxu0 %v1634
      %1684 = vmatprep.subr.bf16.mxu0 0
      %1685 = vmatpush2.bf16.msra.mxu0 %v1633
      %1686 = vmatprep.subr.bf16.mxu0 0
      %1687 = vmatpush2.bf16.msra.mxu0 %v1632
      %1688 = vmatprep.mubr.bf16.mxu0 %v1525
      %1689 = vmatmul.mubr.bf16.gmra.mxu0 %v1524
      %v1690 = vpop.f32.mrf.mxu0
      %v1691 = vadd.f32 0.0, %v1690
      %v1692 = vpop.f32.mrf.mxu0
      %v1693 = vpop.f32.mrf.mxu0
      %v1694 = vadd.f32 0.0, %v1693
      %v1695 = vpop.f32.mrf.mxu0
      %1696 = vmatprep.mubr.bf16.mxu0 %v1527
      %1697 = vmatmul.mubr.bf16.gmra.mxu0 %v1526
      %v1698 = vpop.f32.mrf.mxu0
      %v1699 = vadd.f32 0.0, %v1698
      %v1700 = vpop.f32.mrf.mxu0
      %v1701 = vpop.f32.mrf.mxu0
      %v1702 = vadd.f32 0.0, %v1701
      %v1703 = vpop.f32.mrf.mxu0
      %1704 = vdwg.mxu0
      %vm1705 = vcmask 39936
      %1706 = vst.msk [vmem:[%s390] sm:$0xff] %vm1705, %v1691
      %1707 = vst.msk [vmem:[%s390 + $0x8] sm:$0xff] %vm1705, %v1694
      %1708 = vst.msk [vmem:[%s390 + $0x10] sm:$0xff] %vm1705, %v1699
      %1709 = vst.msk [vmem:[%s390 + $0x18] sm:$0xff] %vm1705, %v1702
      %s1710 = smul.u32 4, %s25
      %p1711 = scmp.lt.s32.totalorder %s24, 1
      %s1712 = scalar_select %p1711, %s24, 1
      %p1713 = scmp.lt.s32.totalorder %s1710, 3
      %s1714 = scalar_select %p1713, %s1710, 3
      %s1715 = smul.addr %s1712, 4
      %s1716 = sadd.s32 %s1714, %s1715
      %s1717 = smul.addr %s1716, 8
      %s1718 = scalar_lea.vmem %s9, %s1717
      // Predicated region
      $region57: #{dgcnn_semseg_forward.15} parent=55 // pred_check
        %p1719 = pneg %p253
      $region58: #{dgcnn_semseg_forward.15} parent=55 // pred_check_branch
        %1721 = sbr.rel (%p1719) target = $region60
      $region59: #{dgcnn_semseg_forward.15} parent=55 // pred_region
        %s1722 = smul.u32 4, %s25
      $region60: #{dgcnn_semseg_forward.15} parent=55 // pred_fallthru
        _
    $region56: #{dgcnn_semseg_forward.15} parent=5 // pred_fallthru
      _
    %p1723 = scmp.le.s32.totalorder 2, %s15
    // Predicated region
    $region61: #{dgcnn_semseg_forward.15} parent=5 // pred_check
      %p1724 = pneg %p1723
    $region62: #{dgcnn_semseg_forward.15} parent=5 // pred_check_branch
      %1726 = sbr.rel (%p1724) target = $region64
    $region63: #{dgcnn_semseg_forward.15} parent=5 // pred_region
      %s1727 = ssub.s32 %s15, 2
      // Predicated region
      $region65: #{dgcnn_semseg_forward.15} parent=63 // pred_check
        %p1728 = pneg %p259
      $region66: #{dgcnn_semseg_forward.15} parent=63 // pred_check_branch
        %1730 = sbr.rel (%p1728) target = $region68
      $region67: #{dgcnn_semseg_forward.15} parent=63 // pred_region
        %s1731 = smul.u32 4, %s27
        %p1732 = scmp.lt.s32.totalorder %s26, 1
        %s1733 = scalar_select %p1732, %s26, 1
        %p1734 = scmp.lt.s32.totalorder %s1731, 3
        %s1735 = scalar_select %p1734, %s1731, 3
        %s1736 = smul.addr %s1733, 4
        %s1737 = sadd.s32 %s1735, %s1736
        %s1738 = smul.addr %s1737, 8
        %s1739 = scalar_lea.vmem %s9, %s1738
      $region68: #{dgcnn_semseg_forward.15} parent=63 // pred_fallthru
        _
    $region64: #{dgcnn_semseg_forward.15} parent=5 // pred_fallthru
      _
  $region6: #{dgcnn_semseg_forward.15} parent=0 // loop_footer
    %s19 = sadd.s32 1, %s15
  $region7: #{dgcnn_semseg_forward.15} parent=0 // loop_footer_branch
    %14 = sbr.rel target = $region3
  $region8: #{dgcnn_semseg_forward.15} parent=0 // loop_exit
    _

</llo_original>
